<compile_context>
chip_gen: v7x
topology: tpu7x:2x2x1
jax: 0.10.0
libtpu: 0.0.40
codegen_flags: <defaults>
</compile_context>

<pallas_src>
import functools
import jax
import jax.numpy as jnp
from jax.experimental import pallas as pl
from jax.experimental.pallas import tpu as pltpu


# ----------------------------------------------------------------------------
# Fused transformer kernel (one grid step per batch element)
# ----------------------------------------------------------------------------

def _transformer_kernel(*refs, names, num_layers, num_heads, hidden, dh):
    patches_ref = refs[0]
    w = {name: refs[1 + i] for i, name in enumerate(names)}
    out_ref = refs[1 + len(names)]
    attnw_ref = refs[2 + len(names)]

    D = hidden
    f32 = jnp.float32

    def ln(x, g, b):
        mu = jnp.mean(x, axis=-1, keepdims=True)
        var = jnp.mean((x - mu) ** 2, axis=-1, keepdims=True)
        return (x - mu) * jax.lax.rsqrt(var + 1e-6) * g + b

    def mha(q, k, v, wo, bo):
        """Multi-head attention on pre-projected q/k/v (head-major columns).
        Output projection is accumulated per head (avoids lane concat).
        Returns (projected output (Sq, D), list of per-head softmax probs)."""
        scale = 1.0 / (dh ** 0.5)
        out = bo                              # (1, D) -> broadcasts over rows
        probs = []
        for h in range(num_heads):            # unrolled; H is small & static
            sl = slice(h * dh, (h + 1) * dh)
            s = jnp.dot(q[:, sl], k[:, sl].T, preferred_element_type=f32) * scale
            s = s - jnp.max(s, axis=-1, keepdims=True)
            e = jnp.exp(s)
            p = e * pl.reciprocal(jnp.sum(e, axis=-1, keepdims=True), approx=True)
            probs.append(p)
            ctx_h = jnp.dot(p, v[:, sl], preferred_element_type=f32)
            out = out + jnp.dot(ctx_h, wo[sl, :], preferred_element_type=f32)
        return out, probs

    # ---- embeddings: patch matmul + position embedding (dropout == identity)
    patches = patches_ref[0]                                        # (S, Cpp)
    x = (jnp.dot(patches, w["patch_w"][...], preferred_element_type=f32)
         + w["patch_b"][...] + w["pos_emb"][...])                   # (S, D)

    # ---- encoder stack (layers share params: reference deep-copies one block)
    enc = x
    for _ in range(num_layers):
        h = ln(enc, w["e_ln1_g"][...], w["e_ln1_b"][...])
        qkv = (jnp.dot(h, w["e_wqkv"][...], preferred_element_type=f32)
               + w["e_bqkv"][...])
        attn_out, _ = mha(qkv[:, :D], qkv[:, D:2 * D], qkv[:, 2 * D:],
                          w["e_wo"][...], w["e_bo"][...])
        enc = enc + attn_out
        h = ln(enc, w["e_ln2_g"][...], w["e_ln2_b"][...])
        hm = jax.nn.gelu(jnp.dot(h, w["e_w1"][...], preferred_element_type=f32)
                         + w["e_b1"][...], approximate=True)
        enc = enc + (jnp.dot(hm, w["e_w2"][...], preferred_element_type=f32)
                     + w["e_b2"][...])

    # ---- decoder stack (self-attn + cross-attn to encoder output + MLP)
    dec = x
    last_probs = None
    for _ in range(num_layers):
        # self-attention
        h = ln(dec, w["d_ln1_g"][...], w["d_ln1_b"][...])
        qkv = (jnp.dot(h, w["d_s_wqkv"][...], preferred_element_type=f32)
               + w["d_s_bqkv"][...])
        sa_out, _ = mha(qkv[:, :D], qkv[:, D:2 * D], qkv[:, 2 * D:],
                        w["d_s_wo"][...], w["d_s_bo"][...])
        dec = dec + sa_out
        # cross-attention to the encoder output
        h = ln(dec, w["d_ln2_g"][...], w["d_ln2_b"][...])
        q = (jnp.dot(h, w["d_c_wq"][...], preferred_element_type=f32)
             + w["d_c_bq"][...])
        kv = (jnp.dot(enc, w["d_c_wkv"][...], preferred_element_type=f32)
              + w["d_c_bkv"][...])
        ca_out, last_probs = mha(q, kv[:, :D], kv[:, D:],
                                 w["d_c_wo"][...], w["d_c_bo"][...])
        dec = dec + ca_out
        # MLP
        h = ln(dec, w["d_ln3_g"][...], w["d_ln3_b"][...])
        hm = jax.nn.gelu(jnp.dot(h, w["d_w1"][...], preferred_element_type=f32)
                         + w["d_b1"][...], approximate=True)
        dec = dec + (jnp.dot(hm, w["d_w2"][...], preferred_element_type=f32)
                     + w["d_b2"][...])

    out_ref[0] = dec
    # only the final decoder layer's cross-attention weights are returned
    for h in range(num_heads):
        attnw_ref[0, h] = last_probs[h]


# ----------------------------------------------------------------------------
# Parameter packing (fused QKV / KV weights, 2-D biases) + wrapper
# ----------------------------------------------------------------------------

def _pack_params(params):
    emb, enc, dec = params["emb"], params["enc_block"], params["dec_block"]

    def r2(v):
        return v if v.ndim == 2 else v.reshape(1, -1)

    ea, sa, ca = enc["attn"], dec["self_attn"], dec["cross_attn"]
    flat = dict(
        patch_w=emb["patch_w"], patch_b=r2(emb["patch_b"]),
        pos_emb=emb["pos_emb"][0],
        # encoder block
        e_ln1_g=r2(enc["ln1_g"]), e_ln1_b=r2(enc["ln1_b"]),
        e_wqkv=jnp.concatenate([ea["wq"], ea["wk"], ea["wv"]], axis=1),
        e_bqkv=r2(jnp.concatenate([ea["bq"], ea["bk"], ea["bv"]])),
        e_wo=ea["wo"], e_bo=r2(ea["bo"]),
        e_ln2_g=r2(enc["ln2_g"]), e_ln2_b=r2(enc["ln2_b"]),
        e_w1=enc["mlp_w1"], e_b1=r2(enc["mlp_b1"]),
        e_w2=enc["mlp_w2"], e_b2=r2(enc["mlp_b2"]),
        # decoder block
        d_ln1_g=r2(dec["ln1_g"]), d_ln1_b=r2(dec["ln1_b"]),
        d_s_wqkv=jnp.concatenate([sa["wq"], sa["wk"], sa["wv"]], axis=1),
        d_s_bqkv=r2(jnp.concatenate([sa["bq"], sa["bk"], sa["bv"]])),
        d_s_wo=sa["wo"], d_s_bo=r2(sa["bo"]),
        d_ln2_g=r2(dec["ln2_g"]), d_ln2_b=r2(dec["ln2_b"]),
        d_c_wq=ca["wq"], d_c_bq=r2(ca["bq"]),
        d_c_wkv=jnp.concatenate([ca["wk"], ca["wv"]], axis=1),
        d_c_bkv=r2(jnp.concatenate([ca["bk"], ca["bv"]])),
        d_c_wo=ca["wo"], d_c_bo=r2(ca["bo"]),
        d_ln3_g=r2(dec["ln3_g"]), d_ln3_b=r2(dec["ln3_b"]),
        d_w1=dec["mlp_w1"], d_b1=r2(dec["mlp_b1"]),
        d_w2=dec["mlp_w2"], d_b2=r2(dec["mlp_b2"]),
    )
    return flat


def transformer_forward(x_nchw, params, *, num_layers, num_heads, patch):
    B, C, H, W = x_nchw.shape
    hp, wp = H // patch, W // patch
    S = hp * wp
    Cpp = C * patch * patch
    # patchify (XLA glue): Conv2d stride=patch == per-patch matmul
    patches = (x_nchw.reshape(B, C, hp, patch, wp, patch)
                     .transpose(0, 2, 4, 1, 3, 5)
                     .reshape(B, S, Cpp))

    flat = _pack_params(params)
    names = tuple(flat.keys())
    D = params["emb"]["patch_w"].shape[1]
    dh = D // num_heads

    kernel = functools.partial(_transformer_kernel, names=names,
                               num_layers=num_layers, num_heads=num_heads,
                               hidden=D, dh=dh)

    in_specs = [pl.BlockSpec((1, S, Cpp), lambda b: (b, 0, 0))]
    for n in names:
        arr = flat[n]
        # full-array blocks; block index is constant -> stays VMEM-resident
        in_specs.append(pl.BlockSpec(arr.shape, lambda b, _nd=arr.ndim: (0,) * _nd))

    out_shape = (jax.ShapeDtypeStruct((B, S, D), jnp.float32),
                 jax.ShapeDtypeStruct((B, num_heads, S, S), jnp.float32))
    out_specs = (pl.BlockSpec((1, S, D), lambda b: (b, 0, 0)),
                 pl.BlockSpec((1, num_heads, S, S), lambda b: (b, 0, 0, 0)))

    out, weights = pl.pallas_call(
        kernel,
        out_shape=out_shape,
        grid=(B,),
        in_specs=in_specs,
        out_specs=out_specs,
        compiler_params=pltpu.CompilerParams(
            dimension_semantics=("parallel",)),   # batch split across TCs on v7x
    )(patches, *[flat[n] for n in names])
    return out, weights                           # final dropout is identity


# ----------------------------------------------------------------------------
# Deterministic parameter construction (same structure as reference module)
# ----------------------------------------------------------------------------

def _init_linear(key, d_in, d_out):
    return (0.02 * jax.random.normal(key, (d_in, d_out), jnp.float32),
            jnp.zeros((d_out,), jnp.float32))


def _init_attn(key, D):
    ks = jax.random.split(key, 4)
    wq, bq = _init_linear(ks[0], D, D)
    wk, bk = _init_linear(ks[1], D, D)
    wv, bv = _init_linear(ks[2], D, D)
    wo, bo = _init_linear(ks[3], D, D)
    return dict(wq=wq, bq=bq, wk=wk, bk=bk, wv=wv, bv=bv, wo=wo, bo=bo)


def _init_enc_block(key, D, Dm):
    ks = jax.random.split(key, 3)
    w1, b1 = _init_linear(ks[1], D, Dm)
    w2, b2 = _init_linear(ks[2], Dm, D)
    return dict(
        ln1_g=jnp.ones((D,), jnp.float32), ln1_b=jnp.zeros((D,), jnp.float32),
        ln2_g=jnp.ones((D,), jnp.float32), ln2_b=jnp.zeros((D,), jnp.float32),
        attn=_init_attn(ks[0], D),
        mlp_w1=w1, mlp_b1=b1, mlp_w2=w2, mlp_b2=b2,
    )


def _init_dec_block(key, D, Dm):
    ks = jax.random.split(key, 4)
    w1, b1 = _init_linear(ks[2], D, Dm)
    w2, b2 = _init_linear(ks[3], Dm, D)
    return dict(
        ln1_g=jnp.ones((D,), jnp.float32), ln1_b=jnp.zeros((D,), jnp.float32),
        ln2_g=jnp.ones((D,), jnp.float32), ln2_b=jnp.zeros((D,), jnp.float32),
        ln3_g=jnp.ones((D,), jnp.float32), ln3_b=jnp.zeros((D,), jnp.float32),
        self_attn=_init_attn(ks[0], D),
        cross_attn=_init_attn(ks[1], D),
        mlp_w1=w1, mlp_b1=b1, mlp_w2=w2, mlp_b2=b2,
    )


def init_params(key, *, in_ch, img, patch, D, Dm):
    n_patches = (img // patch) ** 2
    ks = jax.random.split(key, 4)
    pw, pb = _init_linear(ks[0], in_ch * patch * patch, D)
    emb = dict(patch_w=pw, patch_b=pb,
               pos_emb=0.02 * jax.random.normal(ks[1], (1, n_patches, D), jnp.float32))
    return dict(emb=emb,
                enc_block=_init_enc_block(ks[2], D, Dm),
                dec_block=_init_dec_block(ks[3], D, Dm))


# ----------------------------------------------------------------------------
# Demo
# ----------------------------------------------------------------------------

if __name__ == "__main__":
    B, C, IMG = 2, 4, 16
    PATCH = 8                 # -> n_patches = 4
    D, DM = 32, 64            # hidden size, mlp dim
    HEADS = 4
    NUM_LAYERS = 2

    key = jax.random.PRNGKey(0)
    kx, kp = jax.random.split(key)
    x = jax.random.normal(kx, (B, C, IMG, IMG), jnp.float32)   # NCHW, like PyTorch
    params = init_params(kp, in_ch=C, img=IMG, patch=PATCH, D=D, Dm=DM)

    fwd = jax.jit(functools.partial(transformer_forward,
                                    num_layers=NUM_LAYERS,
                                    num_heads=HEADS,
                                    patch=PATCH))
    out, attn_weights = fwd(x, params)
    jax.block_until_ready(out)
    jax.block_until_ready(attn_weights)

    S = (IMG // PATCH) ** 2
    assert out.shape == (B, S, D)
    assert attn_weights.shape == (B, HEADS, S, S)
    assert bool(jnp.all(jnp.isfinite(out))) and bool(jnp.all(jnp.isfinite(attn_weights)))
    print("KERNEL_OK")
</pallas_src>

<mosaic_0001>
module attributes {stable_mosaic.version = 11 : i64} {
  func.func @_transformer_kernel(%arg0: i32, %arg1: memref<1x4x256xf32, #tpu.memory_space<vmem>>, %arg2: memref<256x32xf32, #tpu.memory_space<vmem>>, %arg3: memref<1x32xf32, #tpu.memory_space<vmem>>, %arg4: memref<4x32xf32, #tpu.memory_space<vmem>>, %arg5: memref<1x32xf32, #tpu.memory_space<vmem>>, %arg6: memref<1x32xf32, #tpu.memory_space<vmem>>, %arg7: memref<32x96xf32, #tpu.memory_space<vmem>>, %arg8: memref<1x96xf32, #tpu.memory_space<vmem>>, %arg9: memref<32x32xf32, #tpu.memory_space<vmem>>, %arg10: memref<1x32xf32, #tpu.memory_space<vmem>>, %arg11: memref<1x32xf32, #tpu.memory_space<vmem>>, %arg12: memref<1x32xf32, #tpu.memory_space<vmem>>, %arg13: memref<32x64xf32, #tpu.memory_space<vmem>>, %arg14: memref<1x64xf32, #tpu.memory_space<vmem>>, %arg15: memref<64x32xf32, #tpu.memory_space<vmem>>, %arg16: memref<1x32xf32, #tpu.memory_space<vmem>>, %arg17: memref<1x32xf32, #tpu.memory_space<vmem>>, %arg18: memref<1x32xf32, #tpu.memory_space<vmem>>, %arg19: memref<32x96xf32, #tpu.memory_space<vmem>>, %arg20: memref<1x96xf32, #tpu.memory_space<vmem>>, %arg21: memref<32x32xf32, #tpu.memory_space<vmem>>, %arg22: memref<1x32xf32, #tpu.memory_space<vmem>>, %arg23: memref<1x32xf32, #tpu.memory_space<vmem>>, %arg24: memref<1x32xf32, #tpu.memory_space<vmem>>, %arg25: memref<32x32xf32, #tpu.memory_space<vmem>>, %arg26: memref<1x32xf32, #tpu.memory_space<vmem>>, %arg27: memref<32x64xf32, #tpu.memory_space<vmem>>, %arg28: memref<1x64xf32, #tpu.memory_space<vmem>>, %arg29: memref<32x32xf32, #tpu.memory_space<vmem>>, %arg30: memref<1x32xf32, #tpu.memory_space<vmem>>, %arg31: memref<1x32xf32, #tpu.memory_space<vmem>>, %arg32: memref<1x32xf32, #tpu.memory_space<vmem>>, %arg33: memref<32x64xf32, #tpu.memory_space<vmem>>, %arg34: memref<1x64xf32, #tpu.memory_space<vmem>>, %arg35: memref<64x32xf32, #tpu.memory_space<vmem>>, %arg36: memref<1x32xf32, #tpu.memory_space<vmem>>, %arg37: memref<1x4x32xf32, #tpu.memory_space<vmem>>, %arg38: memref<1x4x4x4xf32, #tpu.memory_space<vmem>>) attributes {dimension_semantics = [#tpu.dimension_semantics<parallel>], iteration_bounds = array<i64: 2>, scalar_prefetch = 0 : i64, scratch_operands = 0 : i64, tpu.core_type = #tpu.core_type<tc>, window_params = [{transform_indices = @transform_0, window_bounds = array<i64: 1, 4, 256>}, {pipeline_mode = #tpu.pipeline_mode<synchronous>, transform_indices = @transform_1, window_bounds = array<i64: 256, 32>}, {pipeline_mode = #tpu.pipeline_mode<synchronous>, transform_indices = @transform_2, window_bounds = array<i64: 1, 32>}, {pipeline_mode = #tpu.pipeline_mode<synchronous>, transform_indices = @transform_3, window_bounds = array<i64: 4, 32>}, {pipeline_mode = #tpu.pipeline_mode<synchronous>, transform_indices = @transform_4, window_bounds = array<i64: 1, 32>}, {pipeline_mode = #tpu.pipeline_mode<synchronous>, transform_indices = @transform_5, window_bounds = array<i64: 1, 32>}, {pipeline_mode = #tpu.pipeline_mode<synchronous>, transform_indices = @transform_6, window_bounds = array<i64: 32, 96>}, {pipeline_mode = #tpu.pipeline_mode<synchronous>, transform_indices = @transform_7, window_bounds = array<i64: 1, 96>}, {pipeline_mode = #tpu.pipeline_mode<synchronous>, transform_indices = @transform_8, window_bounds = array<i64: 32, 32>}, {pipeline_mode = #tpu.pipeline_mode<synchronous>, transform_indices = @transform_9, window_bounds = array<i64: 1, 32>}, {pipeline_mode = #tpu.pipeline_mode<synchronous>, transform_indices = @transform_10, window_bounds = array<i64: 1, 32>}, {pipeline_mode = #tpu.pipeline_mode<synchronous>, transform_indices = @transform_11, window_bounds = array<i64: 1, 32>}, {pipeline_mode = #tpu.pipeline_mode<synchronous>, transform_indices = @transform_12, window_bounds = array<i64: 32, 64>}, {pipeline_mode = #tpu.pipeline_mode<synchronous>, transform_indices = @transform_13, window_bounds = array<i64: 1, 64>}, {pipeline_mode = #tpu.pipeline_mode<synchronous>, transform_indices = @transform_14, window_bounds = array<i64: 64, 32>}, {pipeline_mode = #tpu.pipeline_mode<synchronous>, transform_indices = @transform_15, window_bounds = array<i64: 1, 32>}, {pipeline_mode = #tpu.pipeline_mode<synchronous>, transform_indices = @transform_16, window_bounds = array<i64: 1, 32>}, {pipeline_mode = #tpu.pipeline_mode<synchronous>, transform_indices = @transform_17, window_bounds = array<i64: 1, 32>}, {pipeline_mode = #tpu.pipeline_mode<synchronous>, transform_indices = @transform_18, window_bounds = array<i64: 32, 96>}, {pipeline_mode = #tpu.pipeline_mode<synchronous>, transform_indices = @transform_19, window_bounds = array<i64: 1, 96>}, {pipeline_mode = #tpu.pipeline_mode<synchronous>, transform_indices = @transform_20, window_bounds = array<i64: 32, 32>}, {pipeline_mode = #tpu.pipeline_mode<synchronous>, transform_indices = @transform_21, window_bounds = array<i64: 1, 32>}, {pipeline_mode = #tpu.pipeline_mode<synchronous>, transform_indices = @transform_22, window_bounds = array<i64: 1, 32>}, {pipeline_mode = #tpu.pipeline_mode<synchronous>, transform_indices = @transform_23, window_bounds = array<i64: 1, 32>}, {pipeline_mode = #tpu.pipeline_mode<synchronous>, transform_indices = @transform_24, window_bounds = array<i64: 32, 32>}, {pipeline_mode = #tpu.pipeline_mode<synchronous>, transform_indices = @transform_25, window_bounds = array<i64: 1, 32>}, {pipeline_mode = #tpu.pipeline_mode<synchronous>, transform_indices = @transform_26, window_bounds = array<i64: 32, 64>}, {pipeline_mode = #tpu.pipeline_mode<synchronous>, transform_indices = @transform_27, window_bounds = array<i64: 1, 64>}, {pipeline_mode = #tpu.pipeline_mode<synchronous>, transform_indices = @transform_28, window_bounds = array<i64: 32, 32>}, {pipeline_mode = #tpu.pipeline_mode<synchronous>, transform_indices = @transform_29, window_bounds = array<i64: 1, 32>}, {pipeline_mode = #tpu.pipeline_mode<synchronous>, transform_indices = @transform_30, window_bounds = array<i64: 1, 32>}, {pipeline_mode = #tpu.pipeline_mode<synchronous>, transform_indices = @transform_31, window_bounds = array<i64: 1, 32>}, {pipeline_mode = #tpu.pipeline_mode<synchronous>, transform_indices = @transform_32, window_bounds = array<i64: 32, 64>}, {pipeline_mode = #tpu.pipeline_mode<synchronous>, transform_indices = @transform_33, window_bounds = array<i64: 1, 64>}, {pipeline_mode = #tpu.pipeline_mode<synchronous>, transform_indices = @transform_34, window_bounds = array<i64: 64, 32>}, {pipeline_mode = #tpu.pipeline_mode<synchronous>, transform_indices = @transform_35, window_bounds = array<i64: 1, 32>}, {transform_indices = @transform_36, window_bounds = array<i64: 1, 4, 32>}, {transform_indices = @transform_37, window_bounds = array<i64: 1, 4, 4, 4>}]} {
    %c0 = arith.constant 0 : index
    %c0_0 = arith.constant 0 : index
    %c0_1 = arith.constant 0 : index
    %0 = vector.load %arg1[%c0, %c0_0, %c0_1] : memref<1x4x256xf32, #tpu.memory_space<vmem>>, vector<1x4x256xf32>
    %1 = vector.shape_cast %0 : vector<1x4x256xf32> to vector<4x256xf32>
    %c0_2 = arith.constant 0 : index
    %c0_3 = arith.constant 0 : index
    %2 = vector.load %arg2[%c0_2, %c0_3] : memref<256x32xf32, #tpu.memory_space<vmem>>, vector<256x32xf32>
    %cst = arith.constant dense<0.000000e+00> : vector<4x32xf32>
    %3 = tpu.matmul %1, %2, %cst {dimension_numbers = #tpu.dot_dimension_numbers<[1], [0], [0], [1], [0, 0, 1, 1], [], []>} : vector<4x256xf32>, vector<256x32xf32>, vector<4x32xf32> -> vector<4x32xf32>
    %c0_4 = arith.constant 0 : index
    %c0_5 = arith.constant 0 : index
    %4 = vector.load %arg3[%c0_4, %c0_5] : memref<1x32xf32, #tpu.memory_space<vmem>>, vector<1x32xf32>
    %5 = vector.broadcast %4 : vector<1x32xf32> to vector<4x32xf32>
    %6 = arith.addf %3, %5 : vector<4x32xf32>
    %c0_6 = arith.constant 0 : index
    %c0_7 = arith.constant 0 : index
    %7 = vector.load %arg4[%c0_6, %c0_7] : memref<4x32xf32, #tpu.memory_space<vmem>>, vector<4x32xf32>
    %8 = arith.addf %6, %7 : vector<4x32xf32>
    %c0_8 = arith.constant 0 : index
    %c0_9 = arith.constant 0 : index
    %9 = vector.load %arg5[%c0_8, %c0_9] : memref<1x32xf32, #tpu.memory_space<vmem>>, vector<1x32xf32>
    %c0_10 = arith.constant 0 : index
    %c0_11 = arith.constant 0 : index
    %10 = vector.load %arg6[%c0_10, %c0_11] : memref<1x32xf32, #tpu.memory_space<vmem>>, vector<1x32xf32>
    %cst_12 = arith.constant dense<0.000000e+00> : vector<4xf32>
    %11 = vector.multi_reduction <add>, %8, %cst_12 [1] : vector<4x32xf32> to vector<4xf32>
    %12 = vector.shape_cast %11 : vector<4xf32> to vector<4x1xf32>
    %cst_13 = arith.constant 3.200000e+01 : f32
    %13 = vector.broadcast %cst_13 : f32 to vector<4x1xf32>
    %14 = arith.divf %12, %13 : vector<4x1xf32>
    %15 = vector.broadcast %14 : vector<4x1xf32> to vector<4x32xf32>
    %16 = arith.subf %8, %15 : vector<4x32xf32>
    %17 = arith.mulf %16, %16 : vector<4x32xf32>
    %cst_14 = arith.constant dense<0.000000e+00> : vector<4xf32>
    %18 = vector.multi_reduction <add>, %17, %cst_14 [1] : vector<4x32xf32> to vector<4xf32>
    %19 = vector.shape_cast %18 : vector<4xf32> to vector<4x1xf32>
    %cst_15 = arith.constant 3.200000e+01 : f32
    %20 = vector.broadcast %cst_15 : f32 to vector<4x1xf32>
    %21 = arith.divf %19, %20 : vector<4x1xf32>
    %22 = vector.broadcast %14 : vector<4x1xf32> to vector<4x32xf32>
    %23 = arith.subf %8, %22 : vector<4x32xf32>
    %cst_16 = arith.constant 9.99999997E-7 : f32
    %24 = vector.broadcast %cst_16 : f32 to vector<4x1xf32>
    %25 = arith.addf %21, %24 : vector<4x1xf32>
    %26 = math.rsqrt %25 : vector<4x1xf32>
    %27 = vector.broadcast %26 : vector<4x1xf32> to vector<4x32xf32>
    %28 = arith.mulf %23, %27 : vector<4x32xf32>
    %29 = vector.broadcast %9 : vector<1x32xf32> to vector<4x32xf32>
    %30 = arith.mulf %28, %29 : vector<4x32xf32>
    %31 = vector.broadcast %10 : vector<1x32xf32> to vector<4x32xf32>
    %32 = arith.addf %30, %31 : vector<4x32xf32>
    %c0_17 = arith.constant 0 : index
    %c0_18 = arith.constant 0 : index
    %33 = vector.load %arg7[%c0_17, %c0_18] : memref<32x96xf32, #tpu.memory_space<vmem>>, vector<32x96xf32>
    %cst_19 = arith.constant dense<0.000000e+00> : vector<4x96xf32>
    %34 = tpu.matmul %32, %33, %cst_19 {dimension_numbers = #tpu.dot_dimension_numbers<[1], [0], [0], [1], [0, 0, 1, 1], [], []>} : vector<4x32xf32>, vector<32x96xf32>, vector<4x96xf32> -> vector<4x96xf32>
    %c0_20 = arith.constant 0 : index
    %c0_21 = arith.constant 0 : index
    %35 = vector.load %arg8[%c0_20, %c0_21] : memref<1x96xf32, #tpu.memory_space<vmem>>, vector<1x96xf32>
    %36 = vector.broadcast %35 : vector<1x96xf32> to vector<4x96xf32>
    %37 = arith.addf %34, %36 : vector<4x96xf32>
    %38 = vector.extract_strided_slice %37 {offsets = [0, 0], sizes = [4, 32], strides = [1, 1]} : vector<4x96xf32> to vector<4x32xf32>
    %39 = vector.extract_strided_slice %37 {offsets = [0, 32], sizes = [4, 32], strides = [1, 1]} : vector<4x96xf32> to vector<4x32xf32>
    %40 = vector.extract_strided_slice %37 {offsets = [0, 64], sizes = [4, 32], strides = [1, 1]} : vector<4x96xf32> to vector<4x32xf32>
    %c0_22 = arith.constant 0 : index
    %c0_23 = arith.constant 0 : index
    %41 = vector.load %arg9[%c0_22, %c0_23] : memref<32x32xf32, #tpu.memory_space<vmem>>, vector<32x32xf32>
    %c0_24 = arith.constant 0 : index
    %c0_25 = arith.constant 0 : index
    %42 = vector.load %arg10[%c0_24, %c0_25] : memref<1x32xf32, #tpu.memory_space<vmem>>, vector<1x32xf32>
    %43 = vector.extract_strided_slice %38 {offsets = [0, 0], sizes = [4, 8], strides = [1, 1]} : vector<4x32xf32> to vector<4x8xf32>
    %44 = vector.extract_strided_slice %39 {offsets = [0, 0], sizes = [4, 8], strides = [1, 1]} : vector<4x32xf32> to vector<4x8xf32>
    %45 = tpu.transpose %44, [1, 0] : vector<4x8xf32> -> vector<8x4xf32>
    %cst_26 = arith.constant dense<0.000000e+00> : vector<4x4xf32>
    %46 = tpu.matmul %43, %45, %cst_26 {dimension_numbers = #tpu.dot_dimension_numbers<[1], [0], [0], [1], [0, 0, 1, 1], [], []>} : vector<4x8xf32>, vector<8x4xf32>, vector<4x4xf32> -> vector<4x4xf32>
    %cst_27 = arith.constant 0.353553385 : f32
    %47 = vector.broadcast %cst_27 : f32 to vector<4x4xf32>
    %48 = arith.mulf %46, %47 : vector<4x4xf32>
    %cst_28 = arith.constant dense<0xFF800000> : vector<4xf32>
    %49 = vector.multi_reduction <maximumf>, %48, %cst_28 [1] : vector<4x4xf32> to vector<4xf32>
    %50 = vector.shape_cast %49 : vector<4xf32> to vector<4x1xf32>
    %51 = vector.broadcast %50 : vector<4x1xf32> to vector<4x4xf32>
    %52 = arith.subf %48, %51 : vector<4x4xf32>
    %53 = math.exp %52 : vector<4x4xf32>
    %cst_29 = arith.constant dense<0.000000e+00> : vector<4xf32>
    %54 = vector.multi_reduction <add>, %53, %cst_29 [1] : vector<4x4xf32> to vector<4xf32>
    %55 = vector.shape_cast %54 : vector<4xf32> to vector<4x1xf32>
    %56 = tpu.reciprocal %55 {approx = true} : vector<4x1xf32> -> vector<4x1xf32>
    %57 = vector.broadcast %56 : vector<4x1xf32> to vector<4x4xf32>
    %58 = arith.mulf %53, %57 : vector<4x4xf32>
    %59 = vector.extract_strided_slice %40 {offsets = [0, 0], sizes = [4, 8], strides = [1, 1]} : vector<4x32xf32> to vector<4x8xf32>
    %cst_30 = arith.constant dense<0.000000e+00> : vector<4x8xf32>
    %60 = tpu.matmul %58, %59, %cst_30 {dimension_numbers = #tpu.dot_dimension_numbers<[1], [0], [0], [1], [0, 0, 1, 1], [], []>} : vector<4x4xf32>, vector<4x8xf32>, vector<4x8xf32> -> vector<4x8xf32>
    %61 = vector.extract_strided_slice %41 {offsets = [0, 0], sizes = [8, 32], strides = [1, 1]} : vector<32x32xf32> to vector<8x32xf32>
    %cst_31 = arith.constant dense<0.000000e+00> : vector<4x32xf32>
    %62 = tpu.matmul %60, %61, %cst_31 {dimension_numbers = #tpu.dot_dimension_numbers<[1], [0], [0], [1], [0, 0, 1, 1], [], []>} : vector<4x8xf32>, vector<8x32xf32>, vector<4x32xf32> -> vector<4x32xf32>
    %63 = vector.broadcast %42 : vector<1x32xf32> to vector<4x32xf32>
    %64 = arith.addf %63, %62 : vector<4x32xf32>
    %65 = vector.extract_strided_slice %38 {offsets = [0, 8], sizes = [4, 8], strides = [1, 1]} : vector<4x32xf32> to vector<4x8xf32>
    %66 = vector.extract_strided_slice %39 {offsets = [0, 8], sizes = [4, 8], strides = [1, 1]} : vector<4x32xf32> to vector<4x8xf32>
    %67 = tpu.transpose %66, [1, 0] : vector<4x8xf32> -> vector<8x4xf32>
    %cst_32 = arith.constant dense<0.000000e+00> : vector<4x4xf32>
    %68 = tpu.matmul %65, %67, %cst_32 {dimension_numbers = #tpu.dot_dimension_numbers<[1], [0], [0], [1], [0, 0, 1, 1], [], []>} : vector<4x8xf32>, vector<8x4xf32>, vector<4x4xf32> -> vector<4x4xf32>
    %cst_33 = arith.constant 0.353553385 : f32
    %69 = vector.broadcast %cst_33 : f32 to vector<4x4xf32>
    %70 = arith.mulf %68, %69 : vector<4x4xf32>
    %cst_34 = arith.constant dense<0xFF800000> : vector<4xf32>
    %71 = vector.multi_reduction <maximumf>, %70, %cst_34 [1] : vector<4x4xf32> to vector<4xf32>
    %72 = vector.shape_cast %71 : vector<4xf32> to vector<4x1xf32>
    %73 = vector.broadcast %72 : vector<4x1xf32> to vector<4x4xf32>
    %74 = arith.subf %70, %73 : vector<4x4xf32>
    %75 = math.exp %74 : vector<4x4xf32>
    %cst_35 = arith.constant dense<0.000000e+00> : vector<4xf32>
    %76 = vector.multi_reduction <add>, %75, %cst_35 [1] : vector<4x4xf32> to vector<4xf32>
    %77 = vector.shape_cast %76 : vector<4xf32> to vector<4x1xf32>
    %78 = tpu.reciprocal %77 {approx = true} : vector<4x1xf32> -> vector<4x1xf32>
    %79 = vector.broadcast %78 : vector<4x1xf32> to vector<4x4xf32>
    %80 = arith.mulf %75, %79 : vector<4x4xf32>
    %81 = vector.extract_strided_slice %40 {offsets = [0, 8], sizes = [4, 8], strides = [1, 1]} : vector<4x32xf32> to vector<4x8xf32>
    %cst_36 = arith.constant dense<0.000000e+00> : vector<4x8xf32>
    %82 = tpu.matmul %80, %81, %cst_36 {dimension_numbers = #tpu.dot_dimension_numbers<[1], [0], [0], [1], [0, 0, 1, 1], [], []>} : vector<4x4xf32>, vector<4x8xf32>, vector<4x8xf32> -> vector<4x8xf32>
    %83 = vector.extract_strided_slice %41 {offsets = [8, 0], sizes = [8, 32], strides = [1, 1]} : vector<32x32xf32> to vector<8x32xf32>
    %cst_37 = arith.constant dense<0.000000e+00> : vector<4x32xf32>
    %84 = tpu.matmul %82, %83, %cst_37 {dimension_numbers = #tpu.dot_dimension_numbers<[1], [0], [0], [1], [0, 0, 1, 1], [], []>} : vector<4x8xf32>, vector<8x32xf32>, vector<4x32xf32> -> vector<4x32xf32>
    %85 = arith.addf %64, %84 : vector<4x32xf32>
    %86 = vector.extract_strided_slice %38 {offsets = [0, 16], sizes = [4, 8], strides = [1, 1]} : vector<4x32xf32> to vector<4x8xf32>
    %87 = vector.extract_strided_slice %39 {offsets = [0, 16], sizes = [4, 8], strides = [1, 1]} : vector<4x32xf32> to vector<4x8xf32>
    %88 = tpu.transpose %87, [1, 0] : vector<4x8xf32> -> vector<8x4xf32>
    %cst_38 = arith.constant dense<0.000000e+00> : vector<4x4xf32>
    %89 = tpu.matmul %86, %88, %cst_38 {dimension_numbers = #tpu.dot_dimension_numbers<[1], [0], [0], [1], [0, 0, 1, 1], [], []>} : vector<4x8xf32>, vector<8x4xf32>, vector<4x4xf32> -> vector<4x4xf32>
    %cst_39 = arith.constant 0.353553385 : f32
    %90 = vector.broadcast %cst_39 : f32 to vector<4x4xf32>
    %91 = arith.mulf %89, %90 : vector<4x4xf32>
    %cst_40 = arith.constant dense<0xFF800000> : vector<4xf32>
    %92 = vector.multi_reduction <maximumf>, %91, %cst_40 [1] : vector<4x4xf32> to vector<4xf32>
    %93 = vector.shape_cast %92 : vector<4xf32> to vector<4x1xf32>
    %94 = vector.broadcast %93 : vector<4x1xf32> to vector<4x4xf32>
    %95 = arith.subf %91, %94 : vector<4x4xf32>
    %96 = math.exp %95 : vector<4x4xf32>
    %cst_41 = arith.constant dense<0.000000e+00> : vector<4xf32>
    %97 = vector.multi_reduction <add>, %96, %cst_41 [1] : vector<4x4xf32> to vector<4xf32>
    %98 = vector.shape_cast %97 : vector<4xf32> to vector<4x1xf32>
    %99 = tpu.reciprocal %98 {approx = true} : vector<4x1xf32> -> vector<4x1xf32>
    %100 = vector.broadcast %99 : vector<4x1xf32> to vector<4x4xf32>
    %101 = arith.mulf %96, %100 : vector<4x4xf32>
    %102 = vector.extract_strided_slice %40 {offsets = [0, 16], sizes = [4, 8], strides = [1, 1]} : vector<4x32xf32> to vector<4x8xf32>
    %cst_42 = arith.constant dense<0.000000e+00> : vector<4x8xf32>
    %103 = tpu.matmul %101, %102, %cst_42 {dimension_numbers = #tpu.dot_dimension_numbers<[1], [0], [0], [1], [0, 0, 1, 1], [], []>} : vector<4x4xf32>, vector<4x8xf32>, vector<4x8xf32> -> vector<4x8xf32>
    %104 = vector.extract_strided_slice %41 {offsets = [16, 0], sizes = [8, 32], strides = [1, 1]} : vector<32x32xf32> to vector<8x32xf32>
    %cst_43 = arith.constant dense<0.000000e+00> : vector<4x32xf32>
    %105 = tpu.matmul %103, %104, %cst_43 {dimension_numbers = #tpu.dot_dimension_numbers<[1], [0], [0], [1], [0, 0, 1, 1], [], []>} : vector<4x8xf32>, vector<8x32xf32>, vector<4x32xf32> -> vector<4x32xf32>
    %106 = arith.addf %85, %105 : vector<4x32xf32>
    %107 = vector.extract_strided_slice %38 {offsets = [0, 24], sizes = [4, 8], strides = [1, 1]} : vector<4x32xf32> to vector<4x8xf32>
    %108 = vector.extract_strided_slice %39 {offsets = [0, 24], sizes = [4, 8], strides = [1, 1]} : vector<4x32xf32> to vector<4x8xf32>
    %109 = tpu.transpose %108, [1, 0] : vector<4x8xf32> -> vector<8x4xf32>
    %cst_44 = arith.constant dense<0.000000e+00> : vector<4x4xf32>
    %110 = tpu.matmul %107, %109, %cst_44 {dimension_numbers = #tpu.dot_dimension_numbers<[1], [0], [0], [1], [0, 0, 1, 1], [], []>} : vector<4x8xf32>, vector<8x4xf32>, vector<4x4xf32> -> vector<4x4xf32>
    %cst_45 = arith.constant 0.353553385 : f32
    %111 = vector.broadcast %cst_45 : f32 to vector<4x4xf32>
    %112 = arith.mulf %110, %111 : vector<4x4xf32>
    %cst_46 = arith.constant dense<0xFF800000> : vector<4xf32>
    %113 = vector.multi_reduction <maximumf>, %112, %cst_46 [1] : vector<4x4xf32> to vector<4xf32>
    %114 = vector.shape_cast %113 : vector<4xf32> to vector<4x1xf32>
    %115 = vector.broadcast %114 : vector<4x1xf32> to vector<4x4xf32>
    %116 = arith.subf %112, %115 : vector<4x4xf32>
    %117 = math.exp %116 : vector<4x4xf32>
    %cst_47 = arith.constant dense<0.000000e+00> : vector<4xf32>
    %118 = vector.multi_reduction <add>, %117, %cst_47 [1] : vector<4x4xf32> to vector<4xf32>
    %119 = vector.shape_cast %118 : vector<4xf32> to vector<4x1xf32>
    %120 = tpu.reciprocal %119 {approx = true} : vector<4x1xf32> -> vector<4x1xf32>
    %121 = vector.broadcast %120 : vector<4x1xf32> to vector<4x4xf32>
    %122 = arith.mulf %117, %121 : vector<4x4xf32>
    %123 = vector.extract_strided_slice %40 {offsets = [0, 24], sizes = [4, 8], strides = [1, 1]} : vector<4x32xf32> to vector<4x8xf32>
    %cst_48 = arith.constant dense<0.000000e+00> : vector<4x8xf32>
    %124 = tpu.matmul %122, %123, %cst_48 {dimension_numbers = #tpu.dot_dimension_numbers<[1], [0], [0], [1], [0, 0, 1, 1], [], []>} : vector<4x4xf32>, vector<4x8xf32>, vector<4x8xf32> -> vector<4x8xf32>
    %125 = vector.extract_strided_slice %41 {offsets = [24, 0], sizes = [8, 32], strides = [1, 1]} : vector<32x32xf32> to vector<8x32xf32>
    %cst_49 = arith.constant dense<0.000000e+00> : vector<4x32xf32>
    %126 = tpu.matmul %124, %125, %cst_49 {dimension_numbers = #tpu.dot_dimension_numbers<[1], [0], [0], [1], [0, 0, 1, 1], [], []>} : vector<4x8xf32>, vector<8x32xf32>, vector<4x32xf32> -> vector<4x32xf32>
    %127 = arith.addf %106, %126 : vector<4x32xf32>
    %128 = arith.addf %8, %127 : vector<4x32xf32>
    %c0_50 = arith.constant 0 : index
    %c0_51 = arith.constant 0 : index
    %129 = vector.load %arg11[%c0_50, %c0_51] : memref<1x32xf32, #tpu.memory_space<vmem>>, vector<1x32xf32>
    %c0_52 = arith.constant 0 : index
    %c0_53 = arith.constant 0 : index
    %130 = vector.load %arg12[%c0_52, %c0_53] : memref<1x32xf32, #tpu.memory_space<vmem>>, vector<1x32xf32>
    %cst_54 = arith.constant dense<0.000000e+00> : vector<4xf32>
    %131 = vector.multi_reduction <add>, %128, %cst_54 [1] : vector<4x32xf32> to vector<4xf32>
    %132 = vector.shape_cast %131 : vector<4xf32> to vector<4x1xf32>
    %cst_55 = arith.constant 3.200000e+01 : f32
    %133 = vector.broadcast %cst_55 : f32 to vector<4x1xf32>
    %134 = arith.divf %132, %133 : vector<4x1xf32>
    %135 = vector.broadcast %134 : vector<4x1xf32> to vector<4x32xf32>
    %136 = arith.subf %128, %135 : vector<4x32xf32>
    %137 = arith.mulf %136, %136 : vector<4x32xf32>
    %cst_56 = arith.constant dense<0.000000e+00> : vector<4xf32>
    %138 = vector.multi_reduction <add>, %137, %cst_56 [1] : vector<4x32xf32> to vector<4xf32>
    %139 = vector.shape_cast %138 : vector<4xf32> to vector<4x1xf32>
    %cst_57 = arith.constant 3.200000e+01 : f32
    %140 = vector.broadcast %cst_57 : f32 to vector<4x1xf32>
    %141 = arith.divf %139, %140 : vector<4x1xf32>
    %142 = vector.broadcast %134 : vector<4x1xf32> to vector<4x32xf32>
    %143 = arith.subf %128, %142 : vector<4x32xf32>
    %cst_58 = arith.constant 9.99999997E-7 : f32
    %144 = vector.broadcast %cst_58 : f32 to vector<4x1xf32>
    %145 = arith.addf %141, %144 : vector<4x1xf32>
    %146 = math.rsqrt %145 : vector<4x1xf32>
    %147 = vector.broadcast %146 : vector<4x1xf32> to vector<4x32xf32>
    %148 = arith.mulf %143, %147 : vector<4x32xf32>
    %149 = vector.broadcast %129 : vector<1x32xf32> to vector<4x32xf32>
    %150 = arith.mulf %148, %149 : vector<4x32xf32>
    %151 = vector.broadcast %130 : vector<1x32xf32> to vector<4x32xf32>
    %152 = arith.addf %150, %151 : vector<4x32xf32>
    %c0_59 = arith.constant 0 : index
    %c0_60 = arith.constant 0 : index
    %153 = vector.load %arg13[%c0_59, %c0_60] : memref<32x64xf32, #tpu.memory_space<vmem>>, vector<32x64xf32>
    %cst_61 = arith.constant dense<0.000000e+00> : vector<4x64xf32>
    %154 = tpu.matmul %152, %153, %cst_61 {dimension_numbers = #tpu.dot_dimension_numbers<[1], [0], [0], [1], [0, 0, 1, 1], [], []>} : vector<4x32xf32>, vector<32x64xf32>, vector<4x64xf32> -> vector<4x64xf32>
    %c0_62 = arith.constant 0 : index
    %c0_63 = arith.constant 0 : index
    %155 = vector.load %arg14[%c0_62, %c0_63] : memref<1x64xf32, #tpu.memory_space<vmem>>, vector<1x64xf32>
    %156 = vector.broadcast %155 : vector<1x64xf32> to vector<4x64xf32>
    %157 = arith.addf %154, %156 : vector<4x64xf32>
    %158 = arith.mulf %157, %157 : vector<4x64xf32>
    %159 = arith.mulf %157, %158 : vector<4x64xf32>
    %cst_64 = arith.constant 4.471500e-02 : f32
    %160 = vector.broadcast %cst_64 : f32 to vector<4x64xf32>
    %161 = arith.mulf %160, %159 : vector<4x64xf32>
    %162 = arith.addf %157, %161 : vector<4x64xf32>
    %cst_65 = arith.constant 0.797884583 : f32
    %163 = vector.broadcast %cst_65 : f32 to vector<4x64xf32>
    %164 = arith.mulf %163, %162 : vector<4x64xf32>
    %165 = math.tanh %164 : vector<4x64xf32>
    %cst_66 = arith.constant 1.000000e+00 : f32
    %166 = vector.broadcast %cst_66 : f32 to vector<4x64xf32>
    %167 = arith.addf %166, %165 : vector<4x64xf32>
    %cst_67 = arith.constant 5.000000e-01 : f32
    %168 = vector.broadcast %cst_67 : f32 to vector<4x64xf32>
    %169 = arith.mulf %168, %167 : vector<4x64xf32>
    %170 = arith.mulf %157, %169 : vector<4x64xf32>
    %c0_68 = arith.constant 0 : index
    %c0_69 = arith.constant 0 : index
    %171 = vector.load %arg15[%c0_68, %c0_69] : memref<64x32xf32, #tpu.memory_space<vmem>>, vector<64x32xf32>
    %cst_70 = arith.constant dense<0.000000e+00> : vector<4x32xf32>
    %172 = tpu.matmul %170, %171, %cst_70 {dimension_numbers = #tpu.dot_dimension_numbers<[1], [0], [0], [1], [0, 0, 1, 1], [], []>} : vector<4x64xf32>, vector<64x32xf32>, vector<4x32xf32> -> vector<4x32xf32>
    %c0_71 = arith.constant 0 : index
    %c0_72 = arith.constant 0 : index
    %173 = vector.load %arg16[%c0_71, %c0_72] : memref<1x32xf32, #tpu.memory_space<vmem>>, vector<1x32xf32>
    %174 = vector.broadcast %173 : vector<1x32xf32> to vector<4x32xf32>
    %175 = arith.addf %172, %174 : vector<4x32xf32>
    %176 = arith.addf %128, %175 : vector<4x32xf32>
    %c0_73 = arith.constant 0 : index
    %c0_74 = arith.constant 0 : index
    %177 = vector.load %arg5[%c0_73, %c0_74] : memref<1x32xf32, #tpu.memory_space<vmem>>, vector<1x32xf32>
    %c0_75 = arith.constant 0 : index
    %c0_76 = arith.constant 0 : index
    %178 = vector.load %arg6[%c0_75, %c0_76] : memref<1x32xf32, #tpu.memory_space<vmem>>, vector<1x32xf32>
    %cst_77 = arith.constant dense<0.000000e+00> : vector<4xf32>
    %179 = vector.multi_reduction <add>, %176, %cst_77 [1] : vector<4x32xf32> to vector<4xf32>
    %180 = vector.shape_cast %179 : vector<4xf32> to vector<4x1xf32>
    %cst_78 = arith.constant 3.200000e+01 : f32
    %181 = vector.broadcast %cst_78 : f32 to vector<4x1xf32>
    %182 = arith.divf %180, %181 : vector<4x1xf32>
    %183 = vector.broadcast %182 : vector<4x1xf32> to vector<4x32xf32>
    %184 = arith.subf %176, %183 : vector<4x32xf32>
    %185 = arith.mulf %184, %184 : vector<4x32xf32>
    %cst_79 = arith.constant dense<0.000000e+00> : vector<4xf32>
    %186 = vector.multi_reduction <add>, %185, %cst_79 [1] : vector<4x32xf32> to vector<4xf32>
    %187 = vector.shape_cast %186 : vector<4xf32> to vector<4x1xf32>
    %cst_80 = arith.constant 3.200000e+01 : f32
    %188 = vector.broadcast %cst_80 : f32 to vector<4x1xf32>
    %189 = arith.divf %187, %188 : vector<4x1xf32>
    %190 = vector.broadcast %182 : vector<4x1xf32> to vector<4x32xf32>
    %191 = arith.subf %176, %190 : vector<4x32xf32>
    %cst_81 = arith.constant 9.99999997E-7 : f32
    %192 = vector.broadcast %cst_81 : f32 to vector<4x1xf32>
    %193 = arith.addf %189, %192 : vector<4x1xf32>
    %194 = math.rsqrt %193 : vector<4x1xf32>
    %195 = vector.broadcast %194 : vector<4x1xf32> to vector<4x32xf32>
    %196 = arith.mulf %191, %195 : vector<4x32xf32>
    %197 = vector.broadcast %177 : vector<1x32xf32> to vector<4x32xf32>
    %198 = arith.mulf %196, %197 : vector<4x32xf32>
    %199 = vector.broadcast %178 : vector<1x32xf32> to vector<4x32xf32>
    %200 = arith.addf %198, %199 : vector<4x32xf32>
    %c0_82 = arith.constant 0 : index
    %c0_83 = arith.constant 0 : index
    %201 = vector.load %arg7[%c0_82, %c0_83] : memref<32x96xf32, #tpu.memory_space<vmem>>, vector<32x96xf32>
    %cst_84 = arith.constant dense<0.000000e+00> : vector<4x96xf32>
    %202 = tpu.matmul %200, %201, %cst_84 {dimension_numbers = #tpu.dot_dimension_numbers<[1], [0], [0], [1], [0, 0, 1, 1], [], []>} : vector<4x32xf32>, vector<32x96xf32>, vector<4x96xf32> -> vector<4x96xf32>
    %c0_85 = arith.constant 0 : index
    %c0_86 = arith.constant 0 : index
    %203 = vector.load %arg8[%c0_85, %c0_86] : memref<1x96xf32, #tpu.memory_space<vmem>>, vector<1x96xf32>
    %204 = vector.broadcast %203 : vector<1x96xf32> to vector<4x96xf32>
    %205 = arith.addf %202, %204 : vector<4x96xf32>
    %206 = vector.extract_strided_slice %205 {offsets = [0, 0], sizes = [4, 32], strides = [1, 1]} : vector<4x96xf32> to vector<4x32xf32>
    %207 = vector.extract_strided_slice %205 {offsets = [0, 32], sizes = [4, 32], strides = [1, 1]} : vector<4x96xf32> to vector<4x32xf32>
    %208 = vector.extract_strided_slice %205 {offsets = [0, 64], sizes = [4, 32], strides = [1, 1]} : vector<4x96xf32> to vector<4x32xf32>
    %c0_87 = arith.constant 0 : index
    %c0_88 = arith.constant 0 : index
    %209 = vector.load %arg9[%c0_87, %c0_88] : memref<32x32xf32, #tpu.memory_space<vmem>>, vector<32x32xf32>
    %c0_89 = arith.constant 0 : index
    %c0_90 = arith.constant 0 : index
    %210 = vector.load %arg10[%c0_89, %c0_90] : memref<1x32xf32, #tpu.memory_space<vmem>>, vector<1x32xf32>
    %211 = vector.extract_strided_slice %206 {offsets = [0, 0], sizes = [4, 8], strides = [1, 1]} : vector<4x32xf32> to vector<4x8xf32>
    %212 = vector.extract_strided_slice %207 {offsets = [0, 0], sizes = [4, 8], strides = [1, 1]} : vector<4x32xf32> to vector<4x8xf32>
    %213 = tpu.transpose %212, [1, 0] : vector<4x8xf32> -> vector<8x4xf32>
    %cst_91 = arith.constant dense<0.000000e+00> : vector<4x4xf32>
    %214 = tpu.matmul %211, %213, %cst_91 {dimension_numbers = #tpu.dot_dimension_numbers<[1], [0], [0], [1], [0, 0, 1, 1], [], []>} : vector<4x8xf32>, vector<8x4xf32>, vector<4x4xf32> -> vector<4x4xf32>
    %cst_92 = arith.constant 0.353553385 : f32
    %215 = vector.broadcast %cst_92 : f32 to vector<4x4xf32>
    %216 = arith.mulf %214, %215 : vector<4x4xf32>
    %cst_93 = arith.constant dense<0xFF800000> : vector<4xf32>
    %217 = vector.multi_reduction <maximumf>, %216, %cst_93 [1] : vector<4x4xf32> to vector<4xf32>
    %218 = vector.shape_cast %217 : vector<4xf32> to vector<4x1xf32>
    %219 = vector.broadcast %218 : vector<4x1xf32> to vector<4x4xf32>
    %220 = arith.subf %216, %219 : vector<4x4xf32>
    %221 = math.exp %220 : vector<4x4xf32>
    %cst_94 = arith.constant dense<0.000000e+00> : vector<4xf32>
    %222 = vector.multi_reduction <add>, %221, %cst_94 [1] : vector<4x4xf32> to vector<4xf32>
    %223 = vector.shape_cast %222 : vector<4xf32> to vector<4x1xf32>
    %224 = tpu.reciprocal %223 {approx = true} : vector<4x1xf32> -> vector<4x1xf32>
    %225 = vector.broadcast %224 : vector<4x1xf32> to vector<4x4xf32>
    %226 = arith.mulf %221, %225 : vector<4x4xf32>
    %227 = vector.extract_strided_slice %208 {offsets = [0, 0], sizes = [4, 8], strides = [1, 1]} : vector<4x32xf32> to vector<4x8xf32>
    %cst_95 = arith.constant dense<0.000000e+00> : vector<4x8xf32>
    %228 = tpu.matmul %226, %227, %cst_95 {dimension_numbers = #tpu.dot_dimension_numbers<[1], [0], [0], [1], [0, 0, 1, 1], [], []>} : vector<4x4xf32>, vector<4x8xf32>, vector<4x8xf32> -> vector<4x8xf32>
    %229 = vector.extract_strided_slice %209 {offsets = [0, 0], sizes = [8, 32], strides = [1, 1]} : vector<32x32xf32> to vector<8x32xf32>
    %cst_96 = arith.constant dense<0.000000e+00> : vector<4x32xf32>
    %230 = tpu.matmul %228, %229, %cst_96 {dimension_numbers = #tpu.dot_dimension_numbers<[1], [0], [0], [1], [0, 0, 1, 1], [], []>} : vector<4x8xf32>, vector<8x32xf32>, vector<4x32xf32> -> vector<4x32xf32>
    %231 = vector.broadcast %210 : vector<1x32xf32> to vector<4x32xf32>
    %232 = arith.addf %231, %230 : vector<4x32xf32>
    %233 = vector.extract_strided_slice %206 {offsets = [0, 8], sizes = [4, 8], strides = [1, 1]} : vector<4x32xf32> to vector<4x8xf32>
    %234 = vector.extract_strided_slice %207 {offsets = [0, 8], sizes = [4, 8], strides = [1, 1]} : vector<4x32xf32> to vector<4x8xf32>
    %235 = tpu.transpose %234, [1, 0] : vector<4x8xf32> -> vector<8x4xf32>
    %cst_97 = arith.constant dense<0.000000e+00> : vector<4x4xf32>
    %236 = tpu.matmul %233, %235, %cst_97 {dimension_numbers = #tpu.dot_dimension_numbers<[1], [0], [0], [1], [0, 0, 1, 1], [], []>} : vector<4x8xf32>, vector<8x4xf32>, vector<4x4xf32> -> vector<4x4xf32>
    %cst_98 = arith.constant 0.353553385 : f32
    %237 = vector.broadcast %cst_98 : f32 to vector<4x4xf32>
    %238 = arith.mulf %236, %237 : vector<4x4xf32>
    %cst_99 = arith.constant dense<0xFF800000> : vector<4xf32>
    %239 = vector.multi_reduction <maximumf>, %238, %cst_99 [1] : vector<4x4xf32> to vector<4xf32>
    %240 = vector.shape_cast %239 : vector<4xf32> to vector<4x1xf32>
    %241 = vector.broadcast %240 : vector<4x1xf32> to vector<4x4xf32>
    %242 = arith.subf %238, %241 : vector<4x4xf32>
    %243 = math.exp %242 : vector<4x4xf32>
    %cst_100 = arith.constant dense<0.000000e+00> : vector<4xf32>
    %244 = vector.multi_reduction <add>, %243, %cst_100 [1] : vector<4x4xf32> to vector<4xf32>
    %245 = vector.shape_cast %244 : vector<4xf32> to vector<4x1xf32>
    %246 = tpu.reciprocal %245 {approx = true} : vector<4x1xf32> -> vector<4x1xf32>
    %247 = vector.broadcast %246 : vector<4x1xf32> to vector<4x4xf32>
    %248 = arith.mulf %243, %247 : vector<4x4xf32>
    %249 = vector.extract_strided_slice %208 {offsets = [0, 8], sizes = [4, 8], strides = [1, 1]} : vector<4x32xf32> to vector<4x8xf32>
    %cst_101 = arith.constant dense<0.000000e+00> : vector<4x8xf32>
    %250 = tpu.matmul %248, %249, %cst_101 {dimension_numbers = #tpu.dot_dimension_numbers<[1], [0], [0], [1], [0, 0, 1, 1], [], []>} : vector<4x4xf32>, vector<4x8xf32>, vector<4x8xf32> -> vector<4x8xf32>
    %251 = vector.extract_strided_slice %209 {offsets = [8, 0], sizes = [8, 32], strides = [1, 1]} : vector<32x32xf32> to vector<8x32xf32>
    %cst_102 = arith.constant dense<0.000000e+00> : vector<4x32xf32>
    %252 = tpu.matmul %250, %251, %cst_102 {dimension_numbers = #tpu.dot_dimension_numbers<[1], [0], [0], [1], [0, 0, 1, 1], [], []>} : vector<4x8xf32>, vector<8x32xf32>, vector<4x32xf32> -> vector<4x32xf32>
    %253 = arith.addf %232, %252 : vector<4x32xf32>
    %254 = vector.extract_strided_slice %206 {offsets = [0, 16], sizes = [4, 8], strides = [1, 1]} : vector<4x32xf32> to vector<4x8xf32>
    %255 = vector.extract_strided_slice %207 {offsets = [0, 16], sizes = [4, 8], strides = [1, 1]} : vector<4x32xf32> to vector<4x8xf32>
    %256 = tpu.transpose %255, [1, 0] : vector<4x8xf32> -> vector<8x4xf32>
    %cst_103 = arith.constant dense<0.000000e+00> : vector<4x4xf32>
    %257 = tpu.matmul %254, %256, %cst_103 {dimension_numbers = #tpu.dot_dimension_numbers<[1], [0], [0], [1], [0, 0, 1, 1], [], []>} : vector<4x8xf32>, vector<8x4xf32>, vector<4x4xf32> -> vector<4x4xf32>
    %cst_104 = arith.constant 0.353553385 : f32
    %258 = vector.broadcast %cst_104 : f32 to vector<4x4xf32>
    %259 = arith.mulf %257, %258 : vector<4x4xf32>
    %cst_105 = arith.constant dense<0xFF800000> : vector<4xf32>
    %260 = vector.multi_reduction <maximumf>, %259, %cst_105 [1] : vector<4x4xf32> to vector<4xf32>
    %261 = vector.shape_cast %260 : vector<4xf32> to vector<4x1xf32>
    %262 = vector.broadcast %261 : vector<4x1xf32> to vector<4x4xf32>
    %263 = arith.subf %259, %262 : vector<4x4xf32>
    %264 = math.exp %263 : vector<4x4xf32>
    %cst_106 = arith.constant dense<0.000000e+00> : vector<4xf32>
    %265 = vector.multi_reduction <add>, %264, %cst_106 [1] : vector<4x4xf32> to vector<4xf32>
    %266 = vector.shape_cast %265 : vector<4xf32> to vector<4x1xf32>
    %267 = tpu.reciprocal %266 {approx = true} : vector<4x1xf32> -> vector<4x1xf32>
    %268 = vector.broadcast %267 : vector<4x1xf32> to vector<4x4xf32>
    %269 = arith.mulf %264, %268 : vector<4x4xf32>
    %270 = vector.extract_strided_slice %208 {offsets = [0, 16], sizes = [4, 8], strides = [1, 1]} : vector<4x32xf32> to vector<4x8xf32>
    %cst_107 = arith.constant dense<0.000000e+00> : vector<4x8xf32>
    %271 = tpu.matmul %269, %270, %cst_107 {dimension_numbers = #tpu.dot_dimension_numbers<[1], [0], [0], [1], [0, 0, 1, 1], [], []>} : vector<4x4xf32>, vector<4x8xf32>, vector<4x8xf32> -> vector<4x8xf32>
    %272 = vector.extract_strided_slice %209 {offsets = [16, 0], sizes = [8, 32], strides = [1, 1]} : vector<32x32xf32> to vector<8x32xf32>
    %cst_108 = arith.constant dense<0.000000e+00> : vector<4x32xf32>
    %273 = tpu.matmul %271, %272, %cst_108 {dimension_numbers = #tpu.dot_dimension_numbers<[1], [0], [0], [1], [0, 0, 1, 1], [], []>} : vector<4x8xf32>, vector<8x32xf32>, vector<4x32xf32> -> vector<4x32xf32>
    %274 = arith.addf %253, %273 : vector<4x32xf32>
    %275 = vector.extract_strided_slice %206 {offsets = [0, 24], sizes = [4, 8], strides = [1, 1]} : vector<4x32xf32> to vector<4x8xf32>
    %276 = vector.extract_strided_slice %207 {offsets = [0, 24], sizes = [4, 8], strides = [1, 1]} : vector<4x32xf32> to vector<4x8xf32>
    %277 = tpu.transpose %276, [1, 0] : vector<4x8xf32> -> vector<8x4xf32>
    %cst_109 = arith.constant dense<0.000000e+00> : vector<4x4xf32>
    %278 = tpu.matmul %275, %277, %cst_109 {dimension_numbers = #tpu.dot_dimension_numbers<[1], [0], [0], [1], [0, 0, 1, 1], [], []>} : vector<4x8xf32>, vector<8x4xf32>, vector<4x4xf32> -> vector<4x4xf32>
    %cst_110 = arith.constant 0.353553385 : f32
    %279 = vector.broadcast %cst_110 : f32 to vector<4x4xf32>
    %280 = arith.mulf %278, %279 : vector<4x4xf32>
    %cst_111 = arith.constant dense<0xFF800000> : vector<4xf32>
    %281 = vector.multi_reduction <maximumf>, %280, %cst_111 [1] : vector<4x4xf32> to vector<4xf32>
    %282 = vector.shape_cast %281 : vector<4xf32> to vector<4x1xf32>
    %283 = vector.broadcast %282 : vector<4x1xf32> to vector<4x4xf32>
    %284 = arith.subf %280, %283 : vector<4x4xf32>
    %285 = math.exp %284 : vector<4x4xf32>
    %cst_112 = arith.constant dense<0.000000e+00> : vector<4xf32>
    %286 = vector.multi_reduction <add>, %285, %cst_112 [1] : vector<4x4xf32> to vector<4xf32>
    %287 = vector.shape_cast %286 : vector<4xf32> to vector<4x1xf32>
    %288 = tpu.reciprocal %287 {approx = true} : vector<4x1xf32> -> vector<4x1xf32>
    %289 = vector.broadcast %288 : vector<4x1xf32> to vector<4x4xf32>
    %290 = arith.mulf %285, %289 : vector<4x4xf32>
    %291 = vector.extract_strided_slice %208 {offsets = [0, 24], sizes = [4, 8], strides = [1, 1]} : vector<4x32xf32> to vector<4x8xf32>
    %cst_113 = arith.constant dense<0.000000e+00> : vector<4x8xf32>
    %292 = tpu.matmul %290, %291, %cst_113 {dimension_numbers = #tpu.dot_dimension_numbers<[1], [0], [0], [1], [0, 0, 1, 1], [], []>} : vector<4x4xf32>, vector<4x8xf32>, vector<4x8xf32> -> vector<4x8xf32>
    %293 = vector.extract_strided_slice %209 {offsets = [24, 0], sizes = [8, 32], strides = [1, 1]} : vector<32x32xf32> to vector<8x32xf32>
    %cst_114 = arith.constant dense<0.000000e+00> : vector<4x32xf32>
    %294 = tpu.matmul %292, %293, %cst_114 {dimension_numbers = #tpu.dot_dimension_numbers<[1], [0], [0], [1], [0, 0, 1, 1], [], []>} : vector<4x8xf32>, vector<8x32xf32>, vector<4x32xf32> -> vector<4x32xf32>
    %295 = arith.addf %274, %294 : vector<4x32xf32>
    %296 = arith.addf %176, %295 : vector<4x32xf32>
    %c0_115 = arith.constant 0 : index
    %c0_116 = arith.constant 0 : index
    %297 = vector.load %arg11[%c0_115, %c0_116] : memref<1x32xf32, #tpu.memory_space<vmem>>, vector<1x32xf32>
    %c0_117 = arith.constant 0 : index
    %c0_118 = arith.constant 0 : index
    %298 = vector.load %arg12[%c0_117, %c0_118] : memref<1x32xf32, #tpu.memory_space<vmem>>, vector<1x32xf32>
    %cst_119 = arith.constant dense<0.000000e+00> : vector<4xf32>
    %299 = vector.multi_reduction <add>, %296, %cst_119 [1] : vector<4x32xf32> to vector<4xf32>
    %300 = vector.shape_cast %299 : vector<4xf32> to vector<4x1xf32>
    %cst_120 = arith.constant 3.200000e+01 : f32
    %301 = vector.broadcast %cst_120 : f32 to vector<4x1xf32>
    %302 = arith.divf %300, %301 : vector<4x1xf32>
    %303 = vector.broadcast %302 : vector<4x1xf32> to vector<4x32xf32>
    %304 = arith.subf %296, %303 : vector<4x32xf32>
    %305 = arith.mulf %304, %304 : vector<4x32xf32>
    %cst_121 = arith.constant dense<0.000000e+00> : vector<4xf32>
    %306 = vector.multi_reduction <add>, %305, %cst_121 [1] : vector<4x32xf32> to vector<4xf32>
    %307 = vector.shape_cast %306 : vector<4xf32> to vector<4x1xf32>
    %cst_122 = arith.constant 3.200000e+01 : f32
    %308 = vector.broadcast %cst_122 : f32 to vector<4x1xf32>
    %309 = arith.divf %307, %308 : vector<4x1xf32>
    %310 = vector.broadcast %302 : vector<4x1xf32> to vector<4x32xf32>
    %311 = arith.subf %296, %310 : vector<4x32xf32>
    %cst_123 = arith.constant 9.99999997E-7 : f32
    %312 = vector.broadcast %cst_123 : f32 to vector<4x1xf32>
    %313 = arith.addf %309, %312 : vector<4x1xf32>
    %314 = math.rsqrt %313 : vector<4x1xf32>
    %315 = vector.broadcast %314 : vector<4x1xf32> to vector<4x32xf32>
    %316 = arith.mulf %311, %315 : vector<4x32xf32>
    %317 = vector.broadcast %297 : vector<1x32xf32> to vector<4x32xf32>
    %318 = arith.mulf %316, %317 : vector<4x32xf32>
    %319 = vector.broadcast %298 : vector<1x32xf32> to vector<4x32xf32>
    %320 = arith.addf %318, %319 : vector<4x32xf32>
    %c0_124 = arith.constant 0 : index
    %c0_125 = arith.constant 0 : index
    %321 = vector.load %arg13[%c0_124, %c0_125] : memref<32x64xf32, #tpu.memory_space<vmem>>, vector<32x64xf32>
    %cst_126 = arith.constant dense<0.000000e+00> : vector<4x64xf32>
    %322 = tpu.matmul %320, %321, %cst_126 {dimension_numbers = #tpu.dot_dimension_numbers<[1], [0], [0], [1], [0, 0, 1, 1], [], []>} : vector<4x32xf32>, vector<32x64xf32>, vector<4x64xf32> -> vector<4x64xf32>
    %c0_127 = arith.constant 0 : index
    %c0_128 = arith.constant 0 : index
    %323 = vector.load %arg14[%c0_127, %c0_128] : memref<1x64xf32, #tpu.memory_space<vmem>>, vector<1x64xf32>
    %324 = vector.broadcast %323 : vector<1x64xf32> to vector<4x64xf32>
    %325 = arith.addf %322, %324 : vector<4x64xf32>
    %326 = arith.mulf %325, %325 : vector<4x64xf32>
    %327 = arith.mulf %325, %326 : vector<4x64xf32>
    %cst_129 = arith.constant 4.471500e-02 : f32
    %328 = vector.broadcast %cst_129 : f32 to vector<4x64xf32>
    %329 = arith.mulf %328, %327 : vector<4x64xf32>
    %330 = arith.addf %325, %329 : vector<4x64xf32>
    %cst_130 = arith.constant 0.797884583 : f32
    %331 = vector.broadcast %cst_130 : f32 to vector<4x64xf32>
    %332 = arith.mulf %331, %330 : vector<4x64xf32>
    %333 = math.tanh %332 : vector<4x64xf32>
    %cst_131 = arith.constant 1.000000e+00 : f32
    %334 = vector.broadcast %cst_131 : f32 to vector<4x64xf32>
    %335 = arith.addf %334, %333 : vector<4x64xf32>
    %cst_132 = arith.constant 5.000000e-01 : f32
    %336 = vector.broadcast %cst_132 : f32 to vector<4x64xf32>
    %337 = arith.mulf %336, %335 : vector<4x64xf32>
    %338 = arith.mulf %325, %337 : vector<4x64xf32>
    %c0_133 = arith.constant 0 : index
    %c0_134 = arith.constant 0 : index
    %339 = vector.load %arg15[%c0_133, %c0_134] : memref<64x32xf32, #tpu.memory_space<vmem>>, vector<64x32xf32>
    %cst_135 = arith.constant dense<0.000000e+00> : vector<4x32xf32>
    %340 = tpu.matmul %338, %339, %cst_135 {dimension_numbers = #tpu.dot_dimension_numbers<[1], [0], [0], [1], [0, 0, 1, 1], [], []>} : vector<4x64xf32>, vector<64x32xf32>, vector<4x32xf32> -> vector<4x32xf32>
    %c0_136 = arith.constant 0 : index
    %c0_137 = arith.constant 0 : index
    %341 = vector.load %arg16[%c0_136, %c0_137] : memref<1x32xf32, #tpu.memory_space<vmem>>, vector<1x32xf32>
    %342 = vector.broadcast %341 : vector<1x32xf32> to vector<4x32xf32>
    %343 = arith.addf %340, %342 : vector<4x32xf32>
    %344 = arith.addf %296, %343 : vector<4x32xf32>
    %c0_138 = arith.constant 0 : index
    %c0_139 = arith.constant 0 : index
    %345 = vector.load %arg17[%c0_138, %c0_139] : memref<1x32xf32, #tpu.memory_space<vmem>>, vector<1x32xf32>
    %c0_140 = arith.constant 0 : index
    %c0_141 = arith.constant 0 : index
    %346 = vector.load %arg18[%c0_140, %c0_141] : memref<1x32xf32, #tpu.memory_space<vmem>>, vector<1x32xf32>
    %cst_142 = arith.constant dense<0.000000e+00> : vector<4xf32>
    %347 = vector.multi_reduction <add>, %8, %cst_142 [1] : vector<4x32xf32> to vector<4xf32>
    %348 = vector.shape_cast %347 : vector<4xf32> to vector<4x1xf32>
    %cst_143 = arith.constant 3.200000e+01 : f32
    %349 = vector.broadcast %cst_143 : f32 to vector<4x1xf32>
    %350 = arith.divf %348, %349 : vector<4x1xf32>
    %351 = vector.broadcast %350 : vector<4x1xf32> to vector<4x32xf32>
    %352 = arith.subf %8, %351 : vector<4x32xf32>
    %353 = arith.mulf %352, %352 : vector<4x32xf32>
    %cst_144 = arith.constant dense<0.000000e+00> : vector<4xf32>
    %354 = vector.multi_reduction <add>, %353, %cst_144 [1] : vector<4x32xf32> to vector<4xf32>
    %355 = vector.shape_cast %354 : vector<4xf32> to vector<4x1xf32>
    %cst_145 = arith.constant 3.200000e+01 : f32
    %356 = vector.broadcast %cst_145 : f32 to vector<4x1xf32>
    %357 = arith.divf %355, %356 : vector<4x1xf32>
    %358 = vector.broadcast %350 : vector<4x1xf32> to vector<4x32xf32>
    %359 = arith.subf %8, %358 : vector<4x32xf32>
    %cst_146 = arith.constant 9.99999997E-7 : f32
    %360 = vector.broadcast %cst_146 : f32 to vector<4x1xf32>
    %361 = arith.addf %357, %360 : vector<4x1xf32>
    %362 = math.rsqrt %361 : vector<4x1xf32>
    %363 = vector.broadcast %362 : vector<4x1xf32> to vector<4x32xf32>
    %364 = arith.mulf %359, %363 : vector<4x32xf32>
    %365 = vector.broadcast %345 : vector<1x32xf32> to vector<4x32xf32>
    %366 = arith.mulf %364, %365 : vector<4x32xf32>
    %367 = vector.broadcast %346 : vector<1x32xf32> to vector<4x32xf32>
    %368 = arith.addf %366, %367 : vector<4x32xf32>
    %c0_147 = arith.constant 0 : index
    %c0_148 = arith.constant 0 : index
    %369 = vector.load %arg19[%c0_147, %c0_148] : memref<32x96xf32, #tpu.memory_space<vmem>>, vector<32x96xf32>
    %cst_149 = arith.constant dense<0.000000e+00> : vector<4x96xf32>
    %370 = tpu.matmul %368, %369, %cst_149 {dimension_numbers = #tpu.dot_dimension_numbers<[1], [0], [0], [1], [0, 0, 1, 1], [], []>} : vector<4x32xf32>, vector<32x96xf32>, vector<4x96xf32> -> vector<4x96xf32>
    %c0_150 = arith.constant 0 : index
    %c0_151 = arith.constant 0 : index
    %371 = vector.load %arg20[%c0_150, %c0_151] : memref<1x96xf32, #tpu.memory_space<vmem>>, vector<1x96xf32>
    %372 = vector.broadcast %371 : vector<1x96xf32> to vector<4x96xf32>
    %373 = arith.addf %370, %372 : vector<4x96xf32>
    %374 = vector.extract_strided_slice %373 {offsets = [0, 0], sizes = [4, 32], strides = [1, 1]} : vector<4x96xf32> to vector<4x32xf32>
    %375 = vector.extract_strided_slice %373 {offsets = [0, 32], sizes = [4, 32], strides = [1, 1]} : vector<4x96xf32> to vector<4x32xf32>
    %376 = vector.extract_strided_slice %373 {offsets = [0, 64], sizes = [4, 32], strides = [1, 1]} : vector<4x96xf32> to vector<4x32xf32>
    %c0_152 = arith.constant 0 : index
    %c0_153 = arith.constant 0 : index
    %377 = vector.load %arg21[%c0_152, %c0_153] : memref<32x32xf32, #tpu.memory_space<vmem>>, vector<32x32xf32>
    %c0_154 = arith.constant 0 : index
    %c0_155 = arith.constant 0 : index
    %378 = vector.load %arg22[%c0_154, %c0_155] : memref<1x32xf32, #tpu.memory_space<vmem>>, vector<1x32xf32>
    %379 = vector.extract_strided_slice %374 {offsets = [0, 0], sizes = [4, 8], strides = [1, 1]} : vector<4x32xf32> to vector<4x8xf32>
    %380 = vector.extract_strided_slice %375 {offsets = [0, 0], sizes = [4, 8], strides = [1, 1]} : vector<4x32xf32> to vector<4x8xf32>
    %381 = tpu.transpose %380, [1, 0] : vector<4x8xf32> -> vector<8x4xf32>
    %cst_156 = arith.constant dense<0.000000e+00> : vector<4x4xf32>
    %382 = tpu.matmul %379, %381, %cst_156 {dimension_numbers = #tpu.dot_dimension_numbers<[1], [0], [0], [1], [0, 0, 1, 1], [], []>} : vector<4x8xf32>, vector<8x4xf32>, vector<4x4xf32> -> vector<4x4xf32>
    %cst_157 = arith.constant 0.353553385 : f32
    %383 = vector.broadcast %cst_157 : f32 to vector<4x4xf32>
    %384 = arith.mulf %382, %383 : vector<4x4xf32>
    %cst_158 = arith.constant dense<0xFF800000> : vector<4xf32>
    %385 = vector.multi_reduction <maximumf>, %384, %cst_158 [1] : vector<4x4xf32> to vector<4xf32>
    %386 = vector.shape_cast %385 : vector<4xf32> to vector<4x1xf32>
    %387 = vector.broadcast %386 : vector<4x1xf32> to vector<4x4xf32>
    %388 = arith.subf %384, %387 : vector<4x4xf32>
    %389 = math.exp %388 : vector<4x4xf32>
    %cst_159 = arith.constant dense<0.000000e+00> : vector<4xf32>
    %390 = vector.multi_reduction <add>, %389, %cst_159 [1] : vector<4x4xf32> to vector<4xf32>
    %391 = vector.shape_cast %390 : vector<4xf32> to vector<4x1xf32>
    %392 = tpu.reciprocal %391 {approx = true} : vector<4x1xf32> -> vector<4x1xf32>
    %393 = vector.broadcast %392 : vector<4x1xf32> to vector<4x4xf32>
    %394 = arith.mulf %389, %393 : vector<4x4xf32>
    %395 = vector.extract_strided_slice %376 {offsets = [0, 0], sizes = [4, 8], strides = [1, 1]} : vector<4x32xf32> to vector<4x8xf32>
    %cst_160 = arith.constant dense<0.000000e+00> : vector<4x8xf32>
    %396 = tpu.matmul %394, %395, %cst_160 {dimension_numbers = #tpu.dot_dimension_numbers<[1], [0], [0], [1], [0, 0, 1, 1], [], []>} : vector<4x4xf32>, vector<4x8xf32>, vector<4x8xf32> -> vector<4x8xf32>
    %397 = vector.extract_strided_slice %377 {offsets = [0, 0], sizes = [8, 32], strides = [1, 1]} : vector<32x32xf32> to vector<8x32xf32>
    %cst_161 = arith.constant dense<0.000000e+00> : vector<4x32xf32>
    %398 = tpu.matmul %396, %397, %cst_161 {dimension_numbers = #tpu.dot_dimension_numbers<[1], [0], [0], [1], [0, 0, 1, 1], [], []>} : vector<4x8xf32>, vector<8x32xf32>, vector<4x32xf32> -> vector<4x32xf32>
    %399 = vector.broadcast %378 : vector<1x32xf32> to vector<4x32xf32>
    %400 = arith.addf %399, %398 : vector<4x32xf32>
    %401 = vector.extract_strided_slice %374 {offsets = [0, 8], sizes = [4, 8], strides = [1, 1]} : vector<4x32xf32> to vector<4x8xf32>
    %402 = vector.extract_strided_slice %375 {offsets = [0, 8], sizes = [4, 8], strides = [1, 1]} : vector<4x32xf32> to vector<4x8xf32>
    %403 = tpu.transpose %402, [1, 0] : vector<4x8xf32> -> vector<8x4xf32>
    %cst_162 = arith.constant dense<0.000000e+00> : vector<4x4xf32>
    %404 = tpu.matmul %401, %403, %cst_162 {dimension_numbers = #tpu.dot_dimension_numbers<[1], [0], [0], [1], [0, 0, 1, 1], [], []>} : vector<4x8xf32>, vector<8x4xf32>, vector<4x4xf32> -> vector<4x4xf32>
    %cst_163 = arith.constant 0.353553385 : f32
    %405 = vector.broadcast %cst_163 : f32 to vector<4x4xf32>
    %406 = arith.mulf %404, %405 : vector<4x4xf32>
    %cst_164 = arith.constant dense<0xFF800000> : vector<4xf32>
    %407 = vector.multi_reduction <maximumf>, %406, %cst_164 [1] : vector<4x4xf32> to vector<4xf32>
    %408 = vector.shape_cast %407 : vector<4xf32> to vector<4x1xf32>
    %409 = vector.broadcast %408 : vector<4x1xf32> to vector<4x4xf32>
    %410 = arith.subf %406, %409 : vector<4x4xf32>
    %411 = math.exp %410 : vector<4x4xf32>
    %cst_165 = arith.constant dense<0.000000e+00> : vector<4xf32>
    %412 = vector.multi_reduction <add>, %411, %cst_165 [1] : vector<4x4xf32> to vector<4xf32>
    %413 = vector.shape_cast %412 : vector<4xf32> to vector<4x1xf32>
    %414 = tpu.reciprocal %413 {approx = true} : vector<4x1xf32> -> vector<4x1xf32>
    %415 = vector.broadcast %414 : vector<4x1xf32> to vector<4x4xf32>
    %416 = arith.mulf %411, %415 : vector<4x4xf32>
    %417 = vector.extract_strided_slice %376 {offsets = [0, 8], sizes = [4, 8], strides = [1, 1]} : vector<4x32xf32> to vector<4x8xf32>
    %cst_166 = arith.constant dense<0.000000e+00> : vector<4x8xf32>
    %418 = tpu.matmul %416, %417, %cst_166 {dimension_numbers = #tpu.dot_dimension_numbers<[1], [0], [0], [1], [0, 0, 1, 1], [], []>} : vector<4x4xf32>, vector<4x8xf32>, vector<4x8xf32> -> vector<4x8xf32>
    %419 = vector.extract_strided_slice %377 {offsets = [8, 0], sizes = [8, 32], strides = [1, 1]} : vector<32x32xf32> to vector<8x32xf32>
    %cst_167 = arith.constant dense<0.000000e+00> : vector<4x32xf32>
    %420 = tpu.matmul %418, %419, %cst_167 {dimension_numbers = #tpu.dot_dimension_numbers<[1], [0], [0], [1], [0, 0, 1, 1], [], []>} : vector<4x8xf32>, vector<8x32xf32>, vector<4x32xf32> -> vector<4x32xf32>
    %421 = arith.addf %400, %420 : vector<4x32xf32>
    %422 = vector.extract_strided_slice %374 {offsets = [0, 16], sizes = [4, 8], strides = [1, 1]} : vector<4x32xf32> to vector<4x8xf32>
    %423 = vector.extract_strided_slice %375 {offsets = [0, 16], sizes = [4, 8], strides = [1, 1]} : vector<4x32xf32> to vector<4x8xf32>
    %424 = tpu.transpose %423, [1, 0] : vector<4x8xf32> -> vector<8x4xf32>
    %cst_168 = arith.constant dense<0.000000e+00> : vector<4x4xf32>
    %425 = tpu.matmul %422, %424, %cst_168 {dimension_numbers = #tpu.dot_dimension_numbers<[1], [0], [0], [1], [0, 0, 1, 1], [], []>} : vector<4x8xf32>, vector<8x4xf32>, vector<4x4xf32> -> vector<4x4xf32>
    %cst_169 = arith.constant 0.353553385 : f32
    %426 = vector.broadcast %cst_169 : f32 to vector<4x4xf32>
    %427 = arith.mulf %425, %426 : vector<4x4xf32>
    %cst_170 = arith.constant dense<0xFF800000> : vector<4xf32>
    %428 = vector.multi_reduction <maximumf>, %427, %cst_170 [1] : vector<4x4xf32> to vector<4xf32>
    %429 = vector.shape_cast %428 : vector<4xf32> to vector<4x1xf32>
    %430 = vector.broadcast %429 : vector<4x1xf32> to vector<4x4xf32>
    %431 = arith.subf %427, %430 : vector<4x4xf32>
    %432 = math.exp %431 : vector<4x4xf32>
    %cst_171 = arith.constant dense<0.000000e+00> : vector<4xf32>
    %433 = vector.multi_reduction <add>, %432, %cst_171 [1] : vector<4x4xf32> to vector<4xf32>
    %434 = vector.shape_cast %433 : vector<4xf32> to vector<4x1xf32>
    %435 = tpu.reciprocal %434 {approx = true} : vector<4x1xf32> -> vector<4x1xf32>
    %436 = vector.broadcast %435 : vector<4x1xf32> to vector<4x4xf32>
    %437 = arith.mulf %432, %436 : vector<4x4xf32>
    %438 = vector.extract_strided_slice %376 {offsets = [0, 16], sizes = [4, 8], strides = [1, 1]} : vector<4x32xf32> to vector<4x8xf32>
    %cst_172 = arith.constant dense<0.000000e+00> : vector<4x8xf32>
    %439 = tpu.matmul %437, %438, %cst_172 {dimension_numbers = #tpu.dot_dimension_numbers<[1], [0], [0], [1], [0, 0, 1, 1], [], []>} : vector<4x4xf32>, vector<4x8xf32>, vector<4x8xf32> -> vector<4x8xf32>
    %440 = vector.extract_strided_slice %377 {offsets = [16, 0], sizes = [8, 32], strides = [1, 1]} : vector<32x32xf32> to vector<8x32xf32>
    %cst_173 = arith.constant dense<0.000000e+00> : vector<4x32xf32>
    %441 = tpu.matmul %439, %440, %cst_173 {dimension_numbers = #tpu.dot_dimension_numbers<[1], [0], [0], [1], [0, 0, 1, 1], [], []>} : vector<4x8xf32>, vector<8x32xf32>, vector<4x32xf32> -> vector<4x32xf32>
    %442 = arith.addf %421, %441 : vector<4x32xf32>
    %443 = vector.extract_strided_slice %374 {offsets = [0, 24], sizes = [4, 8], strides = [1, 1]} : vector<4x32xf32> to vector<4x8xf32>
    %444 = vector.extract_strided_slice %375 {offsets = [0, 24], sizes = [4, 8], strides = [1, 1]} : vector<4x32xf32> to vector<4x8xf32>
    %445 = tpu.transpose %444, [1, 0] : vector<4x8xf32> -> vector<8x4xf32>
    %cst_174 = arith.constant dense<0.000000e+00> : vector<4x4xf32>
    %446 = tpu.matmul %443, %445, %cst_174 {dimension_numbers = #tpu.dot_dimension_numbers<[1], [0], [0], [1], [0, 0, 1, 1], [], []>} : vector<4x8xf32>, vector<8x4xf32>, vector<4x4xf32> -> vector<4x4xf32>
    %cst_175 = arith.constant 0.353553385 : f32
    %447 = vector.broadcast %cst_175 : f32 to vector<4x4xf32>
    %448 = arith.mulf %446, %447 : vector<4x4xf32>
    %cst_176 = arith.constant dense<0xFF800000> : vector<4xf32>
    %449 = vector.multi_reduction <maximumf>, %448, %cst_176 [1] : vector<4x4xf32> to vector<4xf32>
    %450 = vector.shape_cast %449 : vector<4xf32> to vector<4x1xf32>
    %451 = vector.broadcast %450 : vector<4x1xf32> to vector<4x4xf32>
    %452 = arith.subf %448, %451 : vector<4x4xf32>
    %453 = math.exp %452 : vector<4x4xf32>
    %cst_177 = arith.constant dense<0.000000e+00> : vector<4xf32>
    %454 = vector.multi_reduction <add>, %453, %cst_177 [1] : vector<4x4xf32> to vector<4xf32>
    %455 = vector.shape_cast %454 : vector<4xf32> to vector<4x1xf32>
    %456 = tpu.reciprocal %455 {approx = true} : vector<4x1xf32> -> vector<4x1xf32>
    %457 = vector.broadcast %456 : vector<4x1xf32> to vector<4x4xf32>
    %458 = arith.mulf %453, %457 : vector<4x4xf32>
    %459 = vector.extract_strided_slice %376 {offsets = [0, 24], sizes = [4, 8], strides = [1, 1]} : vector<4x32xf32> to vector<4x8xf32>
    %cst_178 = arith.constant dense<0.000000e+00> : vector<4x8xf32>
    %460 = tpu.matmul %458, %459, %cst_178 {dimension_numbers = #tpu.dot_dimension_numbers<[1], [0], [0], [1], [0, 0, 1, 1], [], []>} : vector<4x4xf32>, vector<4x8xf32>, vector<4x8xf32> -> vector<4x8xf32>
    %461 = vector.extract_strided_slice %377 {offsets = [24, 0], sizes = [8, 32], strides = [1, 1]} : vector<32x32xf32> to vector<8x32xf32>
    %cst_179 = arith.constant dense<0.000000e+00> : vector<4x32xf32>
    %462 = tpu.matmul %460, %461, %cst_179 {dimension_numbers = #tpu.dot_dimension_numbers<[1], [0], [0], [1], [0, 0, 1, 1], [], []>} : vector<4x8xf32>, vector<8x32xf32>, vector<4x32xf32> -> vector<4x32xf32>
    %463 = arith.addf %442, %462 : vector<4x32xf32>
    %464 = arith.addf %8, %463 : vector<4x32xf32>
    %c0_180 = arith.constant 0 : index
    %c0_181 = arith.constant 0 : index
    %465 = vector.load %arg23[%c0_180, %c0_181] : memref<1x32xf32, #tpu.memory_space<vmem>>, vector<1x32xf32>
    %c0_182 = arith.constant 0 : index
    %c0_183 = arith.constant 0 : index
    %466 = vector.load %arg24[%c0_182, %c0_183] : memref<1x32xf32, #tpu.memory_space<vmem>>, vector<1x32xf32>
    %cst_184 = arith.constant dense<0.000000e+00> : vector<4xf32>
    %467 = vector.multi_reduction <add>, %464, %cst_184 [1] : vector<4x32xf32> to vector<4xf32>
    %468 = vector.shape_cast %467 : vector<4xf32> to vector<4x1xf32>
    %cst_185 = arith.constant 3.200000e+01 : f32
    %469 = vector.broadcast %cst_185 : f32 to vector<4x1xf32>
    %470 = arith.divf %468, %469 : vector<4x1xf32>
    %471 = vector.broadcast %470 : vector<4x1xf32> to vector<4x32xf32>
    %472 = arith.subf %464, %471 : vector<4x32xf32>
    %473 = arith.mulf %472, %472 : vector<4x32xf32>
    %cst_186 = arith.constant dense<0.000000e+00> : vector<4xf32>
    %474 = vector.multi_reduction <add>, %473, %cst_186 [1] : vector<4x32xf32> to vector<4xf32>
    %475 = vector.shape_cast %474 : vector<4xf32> to vector<4x1xf32>
    %cst_187 = arith.constant 3.200000e+01 : f32
    %476 = vector.broadcast %cst_187 : f32 to vector<4x1xf32>
    %477 = arith.divf %475, %476 : vector<4x1xf32>
    %478 = vector.broadcast %470 : vector<4x1xf32> to vector<4x32xf32>
    %479 = arith.subf %464, %478 : vector<4x32xf32>
    %cst_188 = arith.constant 9.99999997E-7 : f32
    %480 = vector.broadcast %cst_188 : f32 to vector<4x1xf32>
    %481 = arith.addf %477, %480 : vector<4x1xf32>
    %482 = math.rsqrt %481 : vector<4x1xf32>
    %483 = vector.broadcast %482 : vector<4x1xf32> to vector<4x32xf32>
    %484 = arith.mulf %479, %483 : vector<4x32xf32>
    %485 = vector.broadcast %465 : vector<1x32xf32> to vector<4x32xf32>
    %486 = arith.mulf %484, %485 : vector<4x32xf32>
    %487 = vector.broadcast %466 : vector<1x32xf32> to vector<4x32xf32>
    %488 = arith.addf %486, %487 : vector<4x32xf32>
    %c0_189 = arith.constant 0 : index
    %c0_190 = arith.constant 0 : index
    %489 = vector.load %arg25[%c0_189, %c0_190] : memref<32x32xf32, #tpu.memory_space<vmem>>, vector<32x32xf32>
    %cst_191 = arith.constant dense<0.000000e+00> : vector<4x32xf32>
    %490 = tpu.matmul %488, %489, %cst_191 {dimension_numbers = #tpu.dot_dimension_numbers<[1], [0], [0], [1], [0, 0, 1, 1], [], []>} : vector<4x32xf32>, vector<32x32xf32>, vector<4x32xf32> -> vector<4x32xf32>
    %c0_192 = arith.constant 0 : index
    %c0_193 = arith.constant 0 : index
    %491 = vector.load %arg26[%c0_192, %c0_193] : memref<1x32xf32, #tpu.memory_space<vmem>>, vector<1x32xf32>
    %492 = vector.broadcast %491 : vector<1x32xf32> to vector<4x32xf32>
    %493 = arith.addf %490, %492 : vector<4x32xf32>
    %c0_194 = arith.constant 0 : index
    %c0_195 = arith.constant 0 : index
    %494 = vector.load %arg27[%c0_194, %c0_195] : memref<32x64xf32, #tpu.memory_space<vmem>>, vector<32x64xf32>
    %cst_196 = arith.constant dense<0.000000e+00> : vector<4x64xf32>
    %495 = tpu.matmul %344, %494, %cst_196 {dimension_numbers = #tpu.dot_dimension_numbers<[1], [0], [0], [1], [0, 0, 1, 1], [], []>} : vector<4x32xf32>, vector<32x64xf32>, vector<4x64xf32> -> vector<4x64xf32>
    %c0_197 = arith.constant 0 : index
    %c0_198 = arith.constant 0 : index
    %496 = vector.load %arg28[%c0_197, %c0_198] : memref<1x64xf32, #tpu.memory_space<vmem>>, vector<1x64xf32>
    %497 = vector.broadcast %496 : vector<1x64xf32> to vector<4x64xf32>
    %498 = arith.addf %495, %497 : vector<4x64xf32>
    %499 = vector.extract_strided_slice %498 {offsets = [0, 0], sizes = [4, 32], strides = [1, 1]} : vector<4x64xf32> to vector<4x32xf32>
    %500 = vector.extract_strided_slice %498 {offsets = [0, 32], sizes = [4, 32], strides = [1, 1]} : vector<4x64xf32> to vector<4x32xf32>
    %c0_199 = arith.constant 0 : index
    %c0_200 = arith.constant 0 : index
    %501 = vector.load %arg29[%c0_199, %c0_200] : memref<32x32xf32, #tpu.memory_space<vmem>>, vector<32x32xf32>
    %c0_201 = arith.constant 0 : index
    %c0_202 = arith.constant 0 : index
    %502 = vector.load %arg30[%c0_201, %c0_202] : memref<1x32xf32, #tpu.memory_space<vmem>>, vector<1x32xf32>
    %503 = vector.extract_strided_slice %493 {offsets = [0, 0], sizes = [4, 8], strides = [1, 1]} : vector<4x32xf32> to vector<4x8xf32>
    %504 = vector.extract_strided_slice %499 {offsets = [0, 0], sizes = [4, 8], strides = [1, 1]} : vector<4x32xf32> to vector<4x8xf32>
    %505 = tpu.transpose %504, [1, 0] : vector<4x8xf32> -> vector<8x4xf32>
    %cst_203 = arith.constant dense<0.000000e+00> : vector<4x4xf32>
    %506 = tpu.matmul %503, %505, %cst_203 {dimension_numbers = #tpu.dot_dimension_numbers<[1], [0], [0], [1], [0, 0, 1, 1], [], []>} : vector<4x8xf32>, vector<8x4xf32>, vector<4x4xf32> -> vector<4x4xf32>
    %cst_204 = arith.constant 0.353553385 : f32
    %507 = vector.broadcast %cst_204 : f32 to vector<4x4xf32>
    %508 = arith.mulf %506, %507 : vector<4x4xf32>
    %cst_205 = arith.constant dense<0xFF800000> : vector<4xf32>
    %509 = vector.multi_reduction <maximumf>, %508, %cst_205 [1] : vector<4x4xf32> to vector<4xf32>
    %510 = vector.shape_cast %509 : vector<4xf32> to vector<4x1xf32>
    %511 = vector.broadcast %510 : vector<4x1xf32> to vector<4x4xf32>
    %512 = arith.subf %508, %511 : vector<4x4xf32>
    %513 = math.exp %512 : vector<4x4xf32>
    %cst_206 = arith.constant dense<0.000000e+00> : vector<4xf32>
    %514 = vector.multi_reduction <add>, %513, %cst_206 [1] : vector<4x4xf32> to vector<4xf32>
    %515 = vector.shape_cast %514 : vector<4xf32> to vector<4x1xf32>
    %516 = tpu.reciprocal %515 {approx = true} : vector<4x1xf32> -> vector<4x1xf32>
    %517 = vector.broadcast %516 : vector<4x1xf32> to vector<4x4xf32>
    %518 = arith.mulf %513, %517 : vector<4x4xf32>
    %519 = vector.extract_strided_slice %500 {offsets = [0, 0], sizes = [4, 8], strides = [1, 1]} : vector<4x32xf32> to vector<4x8xf32>
    %cst_207 = arith.constant dense<0.000000e+00> : vector<4x8xf32>
    %520 = tpu.matmul %518, %519, %cst_207 {dimension_numbers = #tpu.dot_dimension_numbers<[1], [0], [0], [1], [0, 0, 1, 1], [], []>} : vector<4x4xf32>, vector<4x8xf32>, vector<4x8xf32> -> vector<4x8xf32>
    %521 = vector.extract_strided_slice %501 {offsets = [0, 0], sizes = [8, 32], strides = [1, 1]} : vector<32x32xf32> to vector<8x32xf32>
    %cst_208 = arith.constant dense<0.000000e+00> : vector<4x32xf32>
    %522 = tpu.matmul %520, %521, %cst_208 {dimension_numbers = #tpu.dot_dimension_numbers<[1], [0], [0], [1], [0, 0, 1, 1], [], []>} : vector<4x8xf32>, vector<8x32xf32>, vector<4x32xf32> -> vector<4x32xf32>
    %523 = vector.broadcast %502 : vector<1x32xf32> to vector<4x32xf32>
    %524 = arith.addf %523, %522 : vector<4x32xf32>
    %525 = vector.extract_strided_slice %493 {offsets = [0, 8], sizes = [4, 8], strides = [1, 1]} : vector<4x32xf32> to vector<4x8xf32>
    %526 = vector.extract_strided_slice %499 {offsets = [0, 8], sizes = [4, 8], strides = [1, 1]} : vector<4x32xf32> to vector<4x8xf32>
    %527 = tpu.transpose %526, [1, 0] : vector<4x8xf32> -> vector<8x4xf32>
    %cst_209 = arith.constant dense<0.000000e+00> : vector<4x4xf32>
    %528 = tpu.matmul %525, %527, %cst_209 {dimension_numbers = #tpu.dot_dimension_numbers<[1], [0], [0], [1], [0, 0, 1, 1], [], []>} : vector<4x8xf32>, vector<8x4xf32>, vector<4x4xf32> -> vector<4x4xf32>
    %cst_210 = arith.constant 0.353553385 : f32
    %529 = vector.broadcast %cst_210 : f32 to vector<4x4xf32>
    %530 = arith.mulf %528, %529 : vector<4x4xf32>
    %cst_211 = arith.constant dense<0xFF800000> : vector<4xf32>
    %531 = vector.multi_reduction <maximumf>, %530, %cst_211 [1] : vector<4x4xf32> to vector<4xf32>
    %532 = vector.shape_cast %531 : vector<4xf32> to vector<4x1xf32>
    %533 = vector.broadcast %532 : vector<4x1xf32> to vector<4x4xf32>
    %534 = arith.subf %530, %533 : vector<4x4xf32>
    %535 = math.exp %534 : vector<4x4xf32>
    %cst_212 = arith.constant dense<0.000000e+00> : vector<4xf32>
    %536 = vector.multi_reduction <add>, %535, %cst_212 [1] : vector<4x4xf32> to vector<4xf32>
    %537 = vector.shape_cast %536 : vector<4xf32> to vector<4x1xf32>
    %538 = tpu.reciprocal %537 {approx = true} : vector<4x1xf32> -> vector<4x1xf32>
    %539 = vector.broadcast %538 : vector<4x1xf32> to vector<4x4xf32>
    %540 = arith.mulf %535, %539 : vector<4x4xf32>
    %541 = vector.extract_strided_slice %500 {offsets = [0, 8], sizes = [4, 8], strides = [1, 1]} : vector<4x32xf32> to vector<4x8xf32>
    %cst_213 = arith.constant dense<0.000000e+00> : vector<4x8xf32>
    %542 = tpu.matmul %540, %541, %cst_213 {dimension_numbers = #tpu.dot_dimension_numbers<[1], [0], [0], [1], [0, 0, 1, 1], [], []>} : vector<4x4xf32>, vector<4x8xf32>, vector<4x8xf32> -> vector<4x8xf32>
    %543 = vector.extract_strided_slice %501 {offsets = [8, 0], sizes = [8, 32], strides = [1, 1]} : vector<32x32xf32> to vector<8x32xf32>
    %cst_214 = arith.constant dense<0.000000e+00> : vector<4x32xf32>
    %544 = tpu.matmul %542, %543, %cst_214 {dimension_numbers = #tpu.dot_dimension_numbers<[1], [0], [0], [1], [0, 0, 1, 1], [], []>} : vector<4x8xf32>, vector<8x32xf32>, vector<4x32xf32> -> vector<4x32xf32>
    %545 = arith.addf %524, %544 : vector<4x32xf32>
    %546 = vector.extract_strided_slice %493 {offsets = [0, 16], sizes = [4, 8], strides = [1, 1]} : vector<4x32xf32> to vector<4x8xf32>
    %547 = vector.extract_strided_slice %499 {offsets = [0, 16], sizes = [4, 8], strides = [1, 1]} : vector<4x32xf32> to vector<4x8xf32>
    %548 = tpu.transpose %547, [1, 0] : vector<4x8xf32> -> vector<8x4xf32>
    %cst_215 = arith.constant dense<0.000000e+00> : vector<4x4xf32>
    %549 = tpu.matmul %546, %548, %cst_215 {dimension_numbers = #tpu.dot_dimension_numbers<[1], [0], [0], [1], [0, 0, 1, 1], [], []>} : vector<4x8xf32>, vector<8x4xf32>, vector<4x4xf32> -> vector<4x4xf32>
    %cst_216 = arith.constant 0.353553385 : f32
    %550 = vector.broadcast %cst_216 : f32 to vector<4x4xf32>
    %551 = arith.mulf %549, %550 : vector<4x4xf32>
    %cst_217 = arith.constant dense<0xFF800000> : vector<4xf32>
    %552 = vector.multi_reduction <maximumf>, %551, %cst_217 [1] : vector<4x4xf32> to vector<4xf32>
    %553 = vector.shape_cast %552 : vector<4xf32> to vector<4x1xf32>
    %554 = vector.broadcast %553 : vector<4x1xf32> to vector<4x4xf32>
    %555 = arith.subf %551, %554 : vector<4x4xf32>
    %556 = math.exp %555 : vector<4x4xf32>
    %cst_218 = arith.constant dense<0.000000e+00> : vector<4xf32>
    %557 = vector.multi_reduction <add>, %556, %cst_218 [1] : vector<4x4xf32> to vector<4xf32>
    %558 = vector.shape_cast %557 : vector<4xf32> to vector<4x1xf32>
    %559 = tpu.reciprocal %558 {approx = true} : vector<4x1xf32> -> vector<4x1xf32>
    %560 = vector.broadcast %559 : vector<4x1xf32> to vector<4x4xf32>
    %561 = arith.mulf %556, %560 : vector<4x4xf32>
    %562 = vector.extract_strided_slice %500 {offsets = [0, 16], sizes = [4, 8], strides = [1, 1]} : vector<4x32xf32> to vector<4x8xf32>
    %cst_219 = arith.constant dense<0.000000e+00> : vector<4x8xf32>
    %563 = tpu.matmul %561, %562, %cst_219 {dimension_numbers = #tpu.dot_dimension_numbers<[1], [0], [0], [1], [0, 0, 1, 1], [], []>} : vector<4x4xf32>, vector<4x8xf32>, vector<4x8xf32> -> vector<4x8xf32>
    %564 = vector.extract_strided_slice %501 {offsets = [16, 0], sizes = [8, 32], strides = [1, 1]} : vector<32x32xf32> to vector<8x32xf32>
    %cst_220 = arith.constant dense<0.000000e+00> : vector<4x32xf32>
    %565 = tpu.matmul %563, %564, %cst_220 {dimension_numbers = #tpu.dot_dimension_numbers<[1], [0], [0], [1], [0, 0, 1, 1], [], []>} : vector<4x8xf32>, vector<8x32xf32>, vector<4x32xf32> -> vector<4x32xf32>
    %566 = arith.addf %545, %565 : vector<4x32xf32>
    %567 = vector.extract_strided_slice %493 {offsets = [0, 24], sizes = [4, 8], strides = [1, 1]} : vector<4x32xf32> to vector<4x8xf32>
    %568 = vector.extract_strided_slice %499 {offsets = [0, 24], sizes = [4, 8], strides = [1, 1]} : vector<4x32xf32> to vector<4x8xf32>
    %569 = tpu.transpose %568, [1, 0] : vector<4x8xf32> -> vector<8x4xf32>
    %cst_221 = arith.constant dense<0.000000e+00> : vector<4x4xf32>
    %570 = tpu.matmul %567, %569, %cst_221 {dimension_numbers = #tpu.dot_dimension_numbers<[1], [0], [0], [1], [0, 0, 1, 1], [], []>} : vector<4x8xf32>, vector<8x4xf32>, vector<4x4xf32> -> vector<4x4xf32>
    %cst_222 = arith.constant 0.353553385 : f32
    %571 = vector.broadcast %cst_222 : f32 to vector<4x4xf32>
    %572 = arith.mulf %570, %571 : vector<4x4xf32>
    %cst_223 = arith.constant dense<0xFF800000> : vector<4xf32>
    %573 = vector.multi_reduction <maximumf>, %572, %cst_223 [1] : vector<4x4xf32> to vector<4xf32>
    %574 = vector.shape_cast %573 : vector<4xf32> to vector<4x1xf32>
    %575 = vector.broadcast %574 : vector<4x1xf32> to vector<4x4xf32>
    %576 = arith.subf %572, %575 : vector<4x4xf32>
    %577 = math.exp %576 : vector<4x4xf32>
    %cst_224 = arith.constant dense<0.000000e+00> : vector<4xf32>
    %578 = vector.multi_reduction <add>, %577, %cst_224 [1] : vector<4x4xf32> to vector<4xf32>
    %579 = vector.shape_cast %578 : vector<4xf32> to vector<4x1xf32>
    %580 = tpu.reciprocal %579 {approx = true} : vector<4x1xf32> -> vector<4x1xf32>
    %581 = vector.broadcast %580 : vector<4x1xf32> to vector<4x4xf32>
    %582 = arith.mulf %577, %581 : vector<4x4xf32>
    %583 = vector.extract_strided_slice %500 {offsets = [0, 24], sizes = [4, 8], strides = [1, 1]} : vector<4x32xf32> to vector<4x8xf32>
    %cst_225 = arith.constant dense<0.000000e+00> : vector<4x8xf32>
    %584 = tpu.matmul %582, %583, %cst_225 {dimension_numbers = #tpu.dot_dimension_numbers<[1], [0], [0], [1], [0, 0, 1, 1], [], []>} : vector<4x4xf32>, vector<4x8xf32>, vector<4x8xf32> -> vector<4x8xf32>
    %585 = vector.extract_strided_slice %501 {offsets = [24, 0], sizes = [8, 32], strides = [1, 1]} : vector<32x32xf32> to vector<8x32xf32>
    %cst_226 = arith.constant dense<0.000000e+00> : vector<4x32xf32>
    %586 = tpu.matmul %584, %585, %cst_226 {dimension_numbers = #tpu.dot_dimension_numbers<[1], [0], [0], [1], [0, 0, 1, 1], [], []>} : vector<4x8xf32>, vector<8x32xf32>, vector<4x32xf32> -> vector<4x32xf32>
    %587 = arith.addf %566, %586 : vector<4x32xf32>
    %588 = arith.addf %464, %587 : vector<4x32xf32>
    %c0_227 = arith.constant 0 : index
    %c0_228 = arith.constant 0 : index
    %589 = vector.load %arg31[%c0_227, %c0_228] : memref<1x32xf32, #tpu.memory_space<vmem>>, vector<1x32xf32>
    %c0_229 = arith.constant 0 : index
    %c0_230 = arith.constant 0 : index
    %590 = vector.load %arg32[%c0_229, %c0_230] : memref<1x32xf32, #tpu.memory_space<vmem>>, vector<1x32xf32>
    %cst_231 = arith.constant dense<0.000000e+00> : vector<4xf32>
    %591 = vector.multi_reduction <add>, %588, %cst_231 [1] : vector<4x32xf32> to vector<4xf32>
    %592 = vector.shape_cast %591 : vector<4xf32> to vector<4x1xf32>
    %cst_232 = arith.constant 3.200000e+01 : f32
    %593 = vector.broadcast %cst_232 : f32 to vector<4x1xf32>
    %594 = arith.divf %592, %593 : vector<4x1xf32>
    %595 = vector.broadcast %594 : vector<4x1xf32> to vector<4x32xf32>
    %596 = arith.subf %588, %595 : vector<4x32xf32>
    %597 = arith.mulf %596, %596 : vector<4x32xf32>
    %cst_233 = arith.constant dense<0.000000e+00> : vector<4xf32>
    %598 = vector.multi_reduction <add>, %597, %cst_233 [1] : vector<4x32xf32> to vector<4xf32>
    %599 = vector.shape_cast %598 : vector<4xf32> to vector<4x1xf32>
    %cst_234 = arith.constant 3.200000e+01 : f32
    %600 = vector.broadcast %cst_234 : f32 to vector<4x1xf32>
    %601 = arith.divf %599, %600 : vector<4x1xf32>
    %602 = vector.broadcast %594 : vector<4x1xf32> to vector<4x32xf32>
    %603 = arith.subf %588, %602 : vector<4x32xf32>
    %cst_235 = arith.constant 9.99999997E-7 : f32
    %604 = vector.broadcast %cst_235 : f32 to vector<4x1xf32>
    %605 = arith.addf %601, %604 : vector<4x1xf32>
    %606 = math.rsqrt %605 : vector<4x1xf32>
    %607 = vector.broadcast %606 : vector<4x1xf32> to vector<4x32xf32>
    %608 = arith.mulf %603, %607 : vector<4x32xf32>
    %609 = vector.broadcast %589 : vector<1x32xf32> to vector<4x32xf32>
    %610 = arith.mulf %608, %609 : vector<4x32xf32>
    %611 = vector.broadcast %590 : vector<1x32xf32> to vector<4x32xf32>
    %612 = arith.addf %610, %611 : vector<4x32xf32>
    %c0_236 = arith.constant 0 : index
    %c0_237 = arith.constant 0 : index
    %613 = vector.load %arg33[%c0_236, %c0_237] : memref<32x64xf32, #tpu.memory_space<vmem>>, vector<32x64xf32>
    %cst_238 = arith.constant dense<0.000000e+00> : vector<4x64xf32>
    %614 = tpu.matmul %612, %613, %cst_238 {dimension_numbers = #tpu.dot_dimension_numbers<[1], [0], [0], [1], [0, 0, 1, 1], [], []>} : vector<4x32xf32>, vector<32x64xf32>, vector<4x64xf32> -> vector<4x64xf32>
    %c0_239 = arith.constant 0 : index
    %c0_240 = arith.constant 0 : index
    %615 = vector.load %arg34[%c0_239, %c0_240] : memref<1x64xf32, #tpu.memory_space<vmem>>, vector<1x64xf32>
    %616 = vector.broadcast %615 : vector<1x64xf32> to vector<4x64xf32>
    %617 = arith.addf %614, %616 : vector<4x64xf32>
    %618 = arith.mulf %617, %617 : vector<4x64xf32>
    %619 = arith.mulf %617, %618 : vector<4x64xf32>
    %cst_241 = arith.constant 4.471500e-02 : f32
    %620 = vector.broadcast %cst_241 : f32 to vector<4x64xf32>
    %621 = arith.mulf %620, %619 : vector<4x64xf32>
    %622 = arith.addf %617, %621 : vector<4x64xf32>
    %cst_242 = arith.constant 0.797884583 : f32
    %623 = vector.broadcast %cst_242 : f32 to vector<4x64xf32>
    %624 = arith.mulf %623, %622 : vector<4x64xf32>
    %625 = math.tanh %624 : vector<4x64xf32>
    %cst_243 = arith.constant 1.000000e+00 : f32
    %626 = vector.broadcast %cst_243 : f32 to vector<4x64xf32>
    %627 = arith.addf %626, %625 : vector<4x64xf32>
    %cst_244 = arith.constant 5.000000e-01 : f32
    %628 = vector.broadcast %cst_244 : f32 to vector<4x64xf32>
    %629 = arith.mulf %628, %627 : vector<4x64xf32>
    %630 = arith.mulf %617, %629 : vector<4x64xf32>
    %c0_245 = arith.constant 0 : index
    %c0_246 = arith.constant 0 : index
    %631 = vector.load %arg35[%c0_245, %c0_246] : memref<64x32xf32, #tpu.memory_space<vmem>>, vector<64x32xf32>
    %cst_247 = arith.constant dense<0.000000e+00> : vector<4x32xf32>
    %632 = tpu.matmul %630, %631, %cst_247 {dimension_numbers = #tpu.dot_dimension_numbers<[1], [0], [0], [1], [0, 0, 1, 1], [], []>} : vector<4x64xf32>, vector<64x32xf32>, vector<4x32xf32> -> vector<4x32xf32>
    %c0_248 = arith.constant 0 : index
    %c0_249 = arith.constant 0 : index
    %633 = vector.load %arg36[%c0_248, %c0_249] : memref<1x32xf32, #tpu.memory_space<vmem>>, vector<1x32xf32>
    %634 = vector.broadcast %633 : vector<1x32xf32> to vector<4x32xf32>
    %635 = arith.addf %632, %634 : vector<4x32xf32>
    %636 = arith.addf %588, %635 : vector<4x32xf32>
    %c0_250 = arith.constant 0 : index
    %c0_251 = arith.constant 0 : index
    %637 = vector.load %arg17[%c0_250, %c0_251] : memref<1x32xf32, #tpu.memory_space<vmem>>, vector<1x32xf32>
    %c0_252 = arith.constant 0 : index
    %c0_253 = arith.constant 0 : index
    %638 = vector.load %arg18[%c0_252, %c0_253] : memref<1x32xf32, #tpu.memory_space<vmem>>, vector<1x32xf32>
    %cst_254 = arith.constant dense<0.000000e+00> : vector<4xf32>
    %639 = vector.multi_reduction <add>, %636, %cst_254 [1] : vector<4x32xf32> to vector<4xf32>
    %640 = vector.shape_cast %639 : vector<4xf32> to vector<4x1xf32>
    %cst_255 = arith.constant 3.200000e+01 : f32
    %641 = vector.broadcast %cst_255 : f32 to vector<4x1xf32>
    %642 = arith.divf %640, %641 : vector<4x1xf32>
    %643 = vector.broadcast %642 : vector<4x1xf32> to vector<4x32xf32>
    %644 = arith.subf %636, %643 : vector<4x32xf32>
    %645 = arith.mulf %644, %644 : vector<4x32xf32>
    %cst_256 = arith.constant dense<0.000000e+00> : vector<4xf32>
    %646 = vector.multi_reduction <add>, %645, %cst_256 [1] : vector<4x32xf32> to vector<4xf32>
    %647 = vector.shape_cast %646 : vector<4xf32> to vector<4x1xf32>
    %cst_257 = arith.constant 3.200000e+01 : f32
    %648 = vector.broadcast %cst_257 : f32 to vector<4x1xf32>
    %649 = arith.divf %647, %648 : vector<4x1xf32>
    %650 = vector.broadcast %642 : vector<4x1xf32> to vector<4x32xf32>
    %651 = arith.subf %636, %650 : vector<4x32xf32>
    %cst_258 = arith.constant 9.99999997E-7 : f32
    %652 = vector.broadcast %cst_258 : f32 to vector<4x1xf32>
    %653 = arith.addf %649, %652 : vector<4x1xf32>
    %654 = math.rsqrt %653 : vector<4x1xf32>
    %655 = vector.broadcast %654 : vector<4x1xf32> to vector<4x32xf32>
    %656 = arith.mulf %651, %655 : vector<4x32xf32>
    %657 = vector.broadcast %637 : vector<1x32xf32> to vector<4x32xf32>
    %658 = arith.mulf %656, %657 : vector<4x32xf32>
    %659 = vector.broadcast %638 : vector<1x32xf32> to vector<4x32xf32>
    %660 = arith.addf %658, %659 : vector<4x32xf32>
    %c0_259 = arith.constant 0 : index
    %c0_260 = arith.constant 0 : index
    %661 = vector.load %arg19[%c0_259, %c0_260] : memref<32x96xf32, #tpu.memory_space<vmem>>, vector<32x96xf32>
    %cst_261 = arith.constant dense<0.000000e+00> : vector<4x96xf32>
    %662 = tpu.matmul %660, %661, %cst_261 {dimension_numbers = #tpu.dot_dimension_numbers<[1], [0], [0], [1], [0, 0, 1, 1], [], []>} : vector<4x32xf32>, vector<32x96xf32>, vector<4x96xf32> -> vector<4x96xf32>
    %c0_262 = arith.constant 0 : index
    %c0_263 = arith.constant 0 : index
    %663 = vector.load %arg20[%c0_262, %c0_263] : memref<1x96xf32, #tpu.memory_space<vmem>>, vector<1x96xf32>
    %664 = vector.broadcast %663 : vector<1x96xf32> to vector<4x96xf32>
    %665 = arith.addf %662, %664 : vector<4x96xf32>
    %666 = vector.extract_strided_slice %665 {offsets = [0, 0], sizes = [4, 32], strides = [1, 1]} : vector<4x96xf32> to vector<4x32xf32>
    %667 = vector.extract_strided_slice %665 {offsets = [0, 32], sizes = [4, 32], strides = [1, 1]} : vector<4x96xf32> to vector<4x32xf32>
    %668 = vector.extract_strided_slice %665 {offsets = [0, 64], sizes = [4, 32], strides = [1, 1]} : vector<4x96xf32> to vector<4x32xf32>
    %c0_264 = arith.constant 0 : index
    %c0_265 = arith.constant 0 : index
    %669 = vector.load %arg21[%c0_264, %c0_265] : memref<32x32xf32, #tpu.memory_space<vmem>>, vector<32x32xf32>
    %c0_266 = arith.constant 0 : index
    %c0_267 = arith.constant 0 : index
    %670 = vector.load %arg22[%c0_266, %c0_267] : memref<1x32xf32, #tpu.memory_space<vmem>>, vector<1x32xf32>
    %671 = vector.extract_strided_slice %666 {offsets = [0, 0], sizes = [4, 8], strides = [1, 1]} : vector<4x32xf32> to vector<4x8xf32>
    %672 = vector.extract_strided_slice %667 {offsets = [0, 0], sizes = [4, 8], strides = [1, 1]} : vector<4x32xf32> to vector<4x8xf32>
    %673 = tpu.transpose %672, [1, 0] : vector<4x8xf32> -> vector<8x4xf32>
    %cst_268 = arith.constant dense<0.000000e+00> : vector<4x4xf32>
    %674 = tpu.matmul %671, %673, %cst_268 {dimension_numbers = #tpu.dot_dimension_numbers<[1], [0], [0], [1], [0, 0, 1, 1], [], []>} : vector<4x8xf32>, vector<8x4xf32>, vector<4x4xf32> -> vector<4x4xf32>
    %cst_269 = arith.constant 0.353553385 : f32
    %675 = vector.broadcast %cst_269 : f32 to vector<4x4xf32>
    %676 = arith.mulf %674, %675 : vector<4x4xf32>
    %cst_270 = arith.constant dense<0xFF800000> : vector<4xf32>
    %677 = vector.multi_reduction <maximumf>, %676, %cst_270 [1] : vector<4x4xf32> to vector<4xf32>
    %678 = vector.shape_cast %677 : vector<4xf32> to vector<4x1xf32>
    %679 = vector.broadcast %678 : vector<4x1xf32> to vector<4x4xf32>
    %680 = arith.subf %676, %679 : vector<4x4xf32>
    %681 = math.exp %680 : vector<4x4xf32>
    %cst_271 = arith.constant dense<0.000000e+00> : vector<4xf32>
    %682 = vector.multi_reduction <add>, %681, %cst_271 [1] : vector<4x4xf32> to vector<4xf32>
    %683 = vector.shape_cast %682 : vector<4xf32> to vector<4x1xf32>
    %684 = tpu.reciprocal %683 {approx = true} : vector<4x1xf32> -> vector<4x1xf32>
    %685 = vector.broadcast %684 : vector<4x1xf32> to vector<4x4xf32>
    %686 = arith.mulf %681, %685 : vector<4x4xf32>
    %687 = vector.extract_strided_slice %668 {offsets = [0, 0], sizes = [4, 8], strides = [1, 1]} : vector<4x32xf32> to vector<4x8xf32>
    %cst_272 = arith.constant dense<0.000000e+00> : vector<4x8xf32>
    %688 = tpu.matmul %686, %687, %cst_272 {dimension_numbers = #tpu.dot_dimension_numbers<[1], [0], [0], [1], [0, 0, 1, 1], [], []>} : vector<4x4xf32>, vector<4x8xf32>, vector<4x8xf32> -> vector<4x8xf32>
    %689 = vector.extract_strided_slice %669 {offsets = [0, 0], sizes = [8, 32], strides = [1, 1]} : vector<32x32xf32> to vector<8x32xf32>
    %cst_273 = arith.constant dense<0.000000e+00> : vector<4x32xf32>
    %690 = tpu.matmul %688, %689, %cst_273 {dimension_numbers = #tpu.dot_dimension_numbers<[1], [0], [0], [1], [0, 0, 1, 1], [], []>} : vector<4x8xf32>, vector<8x32xf32>, vector<4x32xf32> -> vector<4x32xf32>
    %691 = vector.broadcast %670 : vector<1x32xf32> to vector<4x32xf32>
    %692 = arith.addf %691, %690 : vector<4x32xf32>
    %693 = vector.extract_strided_slice %666 {offsets = [0, 8], sizes = [4, 8], strides = [1, 1]} : vector<4x32xf32> to vector<4x8xf32>
    %694 = vector.extract_strided_slice %667 {offsets = [0, 8], sizes = [4, 8], strides = [1, 1]} : vector<4x32xf32> to vector<4x8xf32>
    %695 = tpu.transpose %694, [1, 0] : vector<4x8xf32> -> vector<8x4xf32>
    %cst_274 = arith.constant dense<0.000000e+00> : vector<4x4xf32>
    %696 = tpu.matmul %693, %695, %cst_274 {dimension_numbers = #tpu.dot_dimension_numbers<[1], [0], [0], [1], [0, 0, 1, 1], [], []>} : vector<4x8xf32>, vector<8x4xf32>, vector<4x4xf32> -> vector<4x4xf32>
    %cst_275 = arith.constant 0.353553385 : f32
    %697 = vector.broadcast %cst_275 : f32 to vector<4x4xf32>
    %698 = arith.mulf %696, %697 : vector<4x4xf32>
    %cst_276 = arith.constant dense<0xFF800000> : vector<4xf32>
    %699 = vector.multi_reduction <maximumf>, %698, %cst_276 [1] : vector<4x4xf32> to vector<4xf32>
    %700 = vector.shape_cast %699 : vector<4xf32> to vector<4x1xf32>
    %701 = vector.broadcast %700 : vector<4x1xf32> to vector<4x4xf32>
    %702 = arith.subf %698, %701 : vector<4x4xf32>
    %703 = math.exp %702 : vector<4x4xf32>
    %cst_277 = arith.constant dense<0.000000e+00> : vector<4xf32>
    %704 = vector.multi_reduction <add>, %703, %cst_277 [1] : vector<4x4xf32> to vector<4xf32>
    %705 = vector.shape_cast %704 : vector<4xf32> to vector<4x1xf32>
    %706 = tpu.reciprocal %705 {approx = true} : vector<4x1xf32> -> vector<4x1xf32>
    %707 = vector.broadcast %706 : vector<4x1xf32> to vector<4x4xf32>
    %708 = arith.mulf %703, %707 : vector<4x4xf32>
    %709 = vector.extract_strided_slice %668 {offsets = [0, 8], sizes = [4, 8], strides = [1, 1]} : vector<4x32xf32> to vector<4x8xf32>
    %cst_278 = arith.constant dense<0.000000e+00> : vector<4x8xf32>
    %710 = tpu.matmul %708, %709, %cst_278 {dimension_numbers = #tpu.dot_dimension_numbers<[1], [0], [0], [1], [0, 0, 1, 1], [], []>} : vector<4x4xf32>, vector<4x8xf32>, vector<4x8xf32> -> vector<4x8xf32>
    %711 = vector.extract_strided_slice %669 {offsets = [8, 0], sizes = [8, 32], strides = [1, 1]} : vector<32x32xf32> to vector<8x32xf32>
    %cst_279 = arith.constant dense<0.000000e+00> : vector<4x32xf32>
    %712 = tpu.matmul %710, %711, %cst_279 {dimension_numbers = #tpu.dot_dimension_numbers<[1], [0], [0], [1], [0, 0, 1, 1], [], []>} : vector<4x8xf32>, vector<8x32xf32>, vector<4x32xf32> -> vector<4x32xf32>
    %713 = arith.addf %692, %712 : vector<4x32xf32>
    %714 = vector.extract_strided_slice %666 {offsets = [0, 16], sizes = [4, 8], strides = [1, 1]} : vector<4x32xf32> to vector<4x8xf32>
    %715 = vector.extract_strided_slice %667 {offsets = [0, 16], sizes = [4, 8], strides = [1, 1]} : vector<4x32xf32> to vector<4x8xf32>
    %716 = tpu.transpose %715, [1, 0] : vector<4x8xf32> -> vector<8x4xf32>
    %cst_280 = arith.constant dense<0.000000e+00> : vector<4x4xf32>
    %717 = tpu.matmul %714, %716, %cst_280 {dimension_numbers = #tpu.dot_dimension_numbers<[1], [0], [0], [1], [0, 0, 1, 1], [], []>} : vector<4x8xf32>, vector<8x4xf32>, vector<4x4xf32> -> vector<4x4xf32>
    %cst_281 = arith.constant 0.353553385 : f32
    %718 = vector.broadcast %cst_281 : f32 to vector<4x4xf32>
    %719 = arith.mulf %717, %718 : vector<4x4xf32>
    %cst_282 = arith.constant dense<0xFF800000> : vector<4xf32>
    %720 = vector.multi_reduction <maximumf>, %719, %cst_282 [1] : vector<4x4xf32> to vector<4xf32>
    %721 = vector.shape_cast %720 : vector<4xf32> to vector<4x1xf32>
    %722 = vector.broadcast %721 : vector<4x1xf32> to vector<4x4xf32>
    %723 = arith.subf %719, %722 : vector<4x4xf32>
    %724 = math.exp %723 : vector<4x4xf32>
    %cst_283 = arith.constant dense<0.000000e+00> : vector<4xf32>
    %725 = vector.multi_reduction <add>, %724, %cst_283 [1] : vector<4x4xf32> to vector<4xf32>
    %726 = vector.shape_cast %725 : vector<4xf32> to vector<4x1xf32>
    %727 = tpu.reciprocal %726 {approx = true} : vector<4x1xf32> -> vector<4x1xf32>
    %728 = vector.broadcast %727 : vector<4x1xf32> to vector<4x4xf32>
    %729 = arith.mulf %724, %728 : vector<4x4xf32>
    %730 = vector.extract_strided_slice %668 {offsets = [0, 16], sizes = [4, 8], strides = [1, 1]} : vector<4x32xf32> to vector<4x8xf32>
    %cst_284 = arith.constant dense<0.000000e+00> : vector<4x8xf32>
    %731 = tpu.matmul %729, %730, %cst_284 {dimension_numbers = #tpu.dot_dimension_numbers<[1], [0], [0], [1], [0, 0, 1, 1], [], []>} : vector<4x4xf32>, vector<4x8xf32>, vector<4x8xf32> -> vector<4x8xf32>
    %732 = vector.extract_strided_slice %669 {offsets = [16, 0], sizes = [8, 32], strides = [1, 1]} : vector<32x32xf32> to vector<8x32xf32>
    %cst_285 = arith.constant dense<0.000000e+00> : vector<4x32xf32>
    %733 = tpu.matmul %731, %732, %cst_285 {dimension_numbers = #tpu.dot_dimension_numbers<[1], [0], [0], [1], [0, 0, 1, 1], [], []>} : vector<4x8xf32>, vector<8x32xf32>, vector<4x32xf32> -> vector<4x32xf32>
    %734 = arith.addf %713, %733 : vector<4x32xf32>
    %735 = vector.extract_strided_slice %666 {offsets = [0, 24], sizes = [4, 8], strides = [1, 1]} : vector<4x32xf32> to vector<4x8xf32>
    %736 = vector.extract_strided_slice %667 {offsets = [0, 24], sizes = [4, 8], strides = [1, 1]} : vector<4x32xf32> to vector<4x8xf32>
    %737 = tpu.transpose %736, [1, 0] : vector<4x8xf32> -> vector<8x4xf32>
    %cst_286 = arith.constant dense<0.000000e+00> : vector<4x4xf32>
    %738 = tpu.matmul %735, %737, %cst_286 {dimension_numbers = #tpu.dot_dimension_numbers<[1], [0], [0], [1], [0, 0, 1, 1], [], []>} : vector<4x8xf32>, vector<8x4xf32>, vector<4x4xf32> -> vector<4x4xf32>
    %cst_287 = arith.constant 0.353553385 : f32
    %739 = vector.broadcast %cst_287 : f32 to vector<4x4xf32>
    %740 = arith.mulf %738, %739 : vector<4x4xf32>
    %cst_288 = arith.constant dense<0xFF800000> : vector<4xf32>
    %741 = vector.multi_reduction <maximumf>, %740, %cst_288 [1] : vector<4x4xf32> to vector<4xf32>
    %742 = vector.shape_cast %741 : vector<4xf32> to vector<4x1xf32>
    %743 = vector.broadcast %742 : vector<4x1xf32> to vector<4x4xf32>
    %744 = arith.subf %740, %743 : vector<4x4xf32>
    %745 = math.exp %744 : vector<4x4xf32>
    %cst_289 = arith.constant dense<0.000000e+00> : vector<4xf32>
    %746 = vector.multi_reduction <add>, %745, %cst_289 [1] : vector<4x4xf32> to vector<4xf32>
    %747 = vector.shape_cast %746 : vector<4xf32> to vector<4x1xf32>
    %748 = tpu.reciprocal %747 {approx = true} : vector<4x1xf32> -> vector<4x1xf32>
    %749 = vector.broadcast %748 : vector<4x1xf32> to vector<4x4xf32>
    %750 = arith.mulf %745, %749 : vector<4x4xf32>
    %751 = vector.extract_strided_slice %668 {offsets = [0, 24], sizes = [4, 8], strides = [1, 1]} : vector<4x32xf32> to vector<4x8xf32>
    %cst_290 = arith.constant dense<0.000000e+00> : vector<4x8xf32>
    %752 = tpu.matmul %750, %751, %cst_290 {dimension_numbers = #tpu.dot_dimension_numbers<[1], [0], [0], [1], [0, 0, 1, 1], [], []>} : vector<4x4xf32>, vector<4x8xf32>, vector<4x8xf32> -> vector<4x8xf32>
    %753 = vector.extract_strided_slice %669 {offsets = [24, 0], sizes = [8, 32], strides = [1, 1]} : vector<32x32xf32> to vector<8x32xf32>
    %cst_291 = arith.constant dense<0.000000e+00> : vector<4x32xf32>
    %754 = tpu.matmul %752, %753, %cst_291 {dimension_numbers = #tpu.dot_dimension_numbers<[1], [0], [0], [1], [0, 0, 1, 1], [], []>} : vector<4x8xf32>, vector<8x32xf32>, vector<4x32xf32> -> vector<4x32xf32>
    %755 = arith.addf %734, %754 : vector<4x32xf32>
    %756 = arith.addf %636, %755 : vector<4x32xf32>
    %c0_292 = arith.constant 0 : index
    %c0_293 = arith.constant 0 : index
    %757 = vector.load %arg23[%c0_292, %c0_293] : memref<1x32xf32, #tpu.memory_space<vmem>>, vector<1x32xf32>
    %c0_294 = arith.constant 0 : index
    %c0_295 = arith.constant 0 : index
    %758 = vector.load %arg24[%c0_294, %c0_295] : memref<1x32xf32, #tpu.memory_space<vmem>>, vector<1x32xf32>
    %cst_296 = arith.constant dense<0.000000e+00> : vector<4xf32>
    %759 = vector.multi_reduction <add>, %756, %cst_296 [1] : vector<4x32xf32> to vector<4xf32>
    %760 = vector.shape_cast %759 : vector<4xf32> to vector<4x1xf32>
    %cst_297 = arith.constant 3.200000e+01 : f32
    %761 = vector.broadcast %cst_297 : f32 to vector<4x1xf32>
    %762 = arith.divf %760, %761 : vector<4x1xf32>
    %763 = vector.broadcast %762 : vector<4x1xf32> to vector<4x32xf32>
    %764 = arith.subf %756, %763 : vector<4x32xf32>
    %765 = arith.mulf %764, %764 : vector<4x32xf32>
    %cst_298 = arith.constant dense<0.000000e+00> : vector<4xf32>
    %766 = vector.multi_reduction <add>, %765, %cst_298 [1] : vector<4x32xf32> to vector<4xf32>
    %767 = vector.shape_cast %766 : vector<4xf32> to vector<4x1xf32>
    %cst_299 = arith.constant 3.200000e+01 : f32
    %768 = vector.broadcast %cst_299 : f32 to vector<4x1xf32>
    %769 = arith.divf %767, %768 : vector<4x1xf32>
    %770 = vector.broadcast %762 : vector<4x1xf32> to vector<4x32xf32>
    %771 = arith.subf %756, %770 : vector<4x32xf32>
    %cst_300 = arith.constant 9.99999997E-7 : f32
    %772 = vector.broadcast %cst_300 : f32 to vector<4x1xf32>
    %773 = arith.addf %769, %772 : vector<4x1xf32>
    %774 = math.rsqrt %773 : vector<4x1xf32>
    %775 = vector.broadcast %774 : vector<4x1xf32> to vector<4x32xf32>
    %776 = arith.mulf %771, %775 : vector<4x32xf32>
    %777 = vector.broadcast %757 : vector<1x32xf32> to vector<4x32xf32>
    %778 = arith.mulf %776, %777 : vector<4x32xf32>
    %779 = vector.broadcast %758 : vector<1x32xf32> to vector<4x32xf32>
    %780 = arith.addf %778, %779 : vector<4x32xf32>
    %c0_301 = arith.constant 0 : index
    %c0_302 = arith.constant 0 : index
    %781 = vector.load %arg25[%c0_301, %c0_302] : memref<32x32xf32, #tpu.memory_space<vmem>>, vector<32x32xf32>
    %cst_303 = arith.constant dense<0.000000e+00> : vector<4x32xf32>
    %782 = tpu.matmul %780, %781, %cst_303 {dimension_numbers = #tpu.dot_dimension_numbers<[1], [0], [0], [1], [0, 0, 1, 1], [], []>} : vector<4x32xf32>, vector<32x32xf32>, vector<4x32xf32> -> vector<4x32xf32>
    %c0_304 = arith.constant 0 : index
    %c0_305 = arith.constant 0 : index
    %783 = vector.load %arg26[%c0_304, %c0_305] : memref<1x32xf32, #tpu.memory_space<vmem>>, vector<1x32xf32>
    %784 = vector.broadcast %783 : vector<1x32xf32> to vector<4x32xf32>
    %785 = arith.addf %782, %784 : vector<4x32xf32>
    %c0_306 = arith.constant 0 : index
    %c0_307 = arith.constant 0 : index
    %786 = vector.load %arg27[%c0_306, %c0_307] : memref<32x64xf32, #tpu.memory_space<vmem>>, vector<32x64xf32>
    %cst_308 = arith.constant dense<0.000000e+00> : vector<4x64xf32>
    %787 = tpu.matmul %344, %786, %cst_308 {dimension_numbers = #tpu.dot_dimension_numbers<[1], [0], [0], [1], [0, 0, 1, 1], [], []>} : vector<4x32xf32>, vector<32x64xf32>, vector<4x64xf32> -> vector<4x64xf32>
    %c0_309 = arith.constant 0 : index
    %c0_310 = arith.constant 0 : index
    %788 = vector.load %arg28[%c0_309, %c0_310] : memref<1x64xf32, #tpu.memory_space<vmem>>, vector<1x64xf32>
    %789 = vector.broadcast %788 : vector<1x64xf32> to vector<4x64xf32>
    %790 = arith.addf %787, %789 : vector<4x64xf32>
    %791 = vector.extract_strided_slice %790 {offsets = [0, 0], sizes = [4, 32], strides = [1, 1]} : vector<4x64xf32> to vector<4x32xf32>
    %792 = vector.extract_strided_slice %790 {offsets = [0, 32], sizes = [4, 32], strides = [1, 1]} : vector<4x64xf32> to vector<4x32xf32>
    %c0_311 = arith.constant 0 : index
    %c0_312 = arith.constant 0 : index
    %793 = vector.load %arg29[%c0_311, %c0_312] : memref<32x32xf32, #tpu.memory_space<vmem>>, vector<32x32xf32>
    %c0_313 = arith.constant 0 : index
    %c0_314 = arith.constant 0 : index
    %794 = vector.load %arg30[%c0_313, %c0_314] : memref<1x32xf32, #tpu.memory_space<vmem>>, vector<1x32xf32>
    %795 = vector.extract_strided_slice %785 {offsets = [0, 0], sizes = [4, 8], strides = [1, 1]} : vector<4x32xf32> to vector<4x8xf32>
    %796 = vector.extract_strided_slice %791 {offsets = [0, 0], sizes = [4, 8], strides = [1, 1]} : vector<4x32xf32> to vector<4x8xf32>
    %797 = tpu.transpose %796, [1, 0] : vector<4x8xf32> -> vector<8x4xf32>
    %cst_315 = arith.constant dense<0.000000e+00> : vector<4x4xf32>
    %798 = tpu.matmul %795, %797, %cst_315 {dimension_numbers = #tpu.dot_dimension_numbers<[1], [0], [0], [1], [0, 0, 1, 1], [], []>} : vector<4x8xf32>, vector<8x4xf32>, vector<4x4xf32> -> vector<4x4xf32>
    %cst_316 = arith.constant 0.353553385 : f32
    %799 = vector.broadcast %cst_316 : f32 to vector<4x4xf32>
    %800 = arith.mulf %798, %799 : vector<4x4xf32>
    %cst_317 = arith.constant dense<0xFF800000> : vector<4xf32>
    %801 = vector.multi_reduction <maximumf>, %800, %cst_317 [1] : vector<4x4xf32> to vector<4xf32>
    %802 = vector.shape_cast %801 : vector<4xf32> to vector<4x1xf32>
    %803 = vector.broadcast %802 : vector<4x1xf32> to vector<4x4xf32>
    %804 = arith.subf %800, %803 : vector<4x4xf32>
    %805 = math.exp %804 : vector<4x4xf32>
    %cst_318 = arith.constant dense<0.000000e+00> : vector<4xf32>
    %806 = vector.multi_reduction <add>, %805, %cst_318 [1] : vector<4x4xf32> to vector<4xf32>
    %807 = vector.shape_cast %806 : vector<4xf32> to vector<4x1xf32>
    %808 = tpu.reciprocal %807 {approx = true} : vector<4x1xf32> -> vector<4x1xf32>
    %809 = vector.broadcast %808 : vector<4x1xf32> to vector<4x4xf32>
    %810 = arith.mulf %805, %809 : vector<4x4xf32>
    %811 = vector.extract_strided_slice %792 {offsets = [0, 0], sizes = [4, 8], strides = [1, 1]} : vector<4x32xf32> to vector<4x8xf32>
    %cst_319 = arith.constant dense<0.000000e+00> : vector<4x8xf32>
    %812 = tpu.matmul %810, %811, %cst_319 {dimension_numbers = #tpu.dot_dimension_numbers<[1], [0], [0], [1], [0, 0, 1, 1], [], []>} : vector<4x4xf32>, vector<4x8xf32>, vector<4x8xf32> -> vector<4x8xf32>
    %813 = vector.extract_strided_slice %793 {offsets = [0, 0], sizes = [8, 32], strides = [1, 1]} : vector<32x32xf32> to vector<8x32xf32>
    %cst_320 = arith.constant dense<0.000000e+00> : vector<4x32xf32>
    %814 = tpu.matmul %812, %813, %cst_320 {dimension_numbers = #tpu.dot_dimension_numbers<[1], [0], [0], [1], [0, 0, 1, 1], [], []>} : vector<4x8xf32>, vector<8x32xf32>, vector<4x32xf32> -> vector<4x32xf32>
    %815 = vector.broadcast %794 : vector<1x32xf32> to vector<4x32xf32>
    %816 = arith.addf %815, %814 : vector<4x32xf32>
    %817 = vector.extract_strided_slice %785 {offsets = [0, 8], sizes = [4, 8], strides = [1, 1]} : vector<4x32xf32> to vector<4x8xf32>
    %818 = vector.extract_strided_slice %791 {offsets = [0, 8], sizes = [4, 8], strides = [1, 1]} : vector<4x32xf32> to vector<4x8xf32>
    %819 = tpu.transpose %818, [1, 0] : vector<4x8xf32> -> vector<8x4xf32>
    %cst_321 = arith.constant dense<0.000000e+00> : vector<4x4xf32>
    %820 = tpu.matmul %817, %819, %cst_321 {dimension_numbers = #tpu.dot_dimension_numbers<[1], [0], [0], [1], [0, 0, 1, 1], [], []>} : vector<4x8xf32>, vector<8x4xf32>, vector<4x4xf32> -> vector<4x4xf32>
    %cst_322 = arith.constant 0.353553385 : f32
    %821 = vector.broadcast %cst_322 : f32 to vector<4x4xf32>
    %822 = arith.mulf %820, %821 : vector<4x4xf32>
    %cst_323 = arith.constant dense<0xFF800000> : vector<4xf32>
    %823 = vector.multi_reduction <maximumf>, %822, %cst_323 [1] : vector<4x4xf32> to vector<4xf32>
    %824 = vector.shape_cast %823 : vector<4xf32> to vector<4x1xf32>
    %825 = vector.broadcast %824 : vector<4x1xf32> to vector<4x4xf32>
    %826 = arith.subf %822, %825 : vector<4x4xf32>
    %827 = math.exp %826 : vector<4x4xf32>
    %cst_324 = arith.constant dense<0.000000e+00> : vector<4xf32>
    %828 = vector.multi_reduction <add>, %827, %cst_324 [1] : vector<4x4xf32> to vector<4xf32>
    %829 = vector.shape_cast %828 : vector<4xf32> to vector<4x1xf32>
    %830 = tpu.reciprocal %829 {approx = true} : vector<4x1xf32> -> vector<4x1xf32>
    %831 = vector.broadcast %830 : vector<4x1xf32> to vector<4x4xf32>
    %832 = arith.mulf %827, %831 : vector<4x4xf32>
    %833 = vector.extract_strided_slice %792 {offsets = [0, 8], sizes = [4, 8], strides = [1, 1]} : vector<4x32xf32> to vector<4x8xf32>
    %cst_325 = arith.constant dense<0.000000e+00> : vector<4x8xf32>
    %834 = tpu.matmul %832, %833, %cst_325 {dimension_numbers = #tpu.dot_dimension_numbers<[1], [0], [0], [1], [0, 0, 1, 1], [], []>} : vector<4x4xf32>, vector<4x8xf32>, vector<4x8xf32> -> vector<4x8xf32>
    %835 = vector.extract_strided_slice %793 {offsets = [8, 0], sizes = [8, 32], strides = [1, 1]} : vector<32x32xf32> to vector<8x32xf32>
    %cst_326 = arith.constant dense<0.000000e+00> : vector<4x32xf32>
    %836 = tpu.matmul %834, %835, %cst_326 {dimension_numbers = #tpu.dot_dimension_numbers<[1], [0], [0], [1], [0, 0, 1, 1], [], []>} : vector<4x8xf32>, vector<8x32xf32>, vector<4x32xf32> -> vector<4x32xf32>
    %837 = arith.addf %816, %836 : vector<4x32xf32>
    %838 = vector.extract_strided_slice %785 {offsets = [0, 16], sizes = [4, 8], strides = [1, 1]} : vector<4x32xf32> to vector<4x8xf32>
    %839 = vector.extract_strided_slice %791 {offsets = [0, 16], sizes = [4, 8], strides = [1, 1]} : vector<4x32xf32> to vector<4x8xf32>
    %840 = tpu.transpose %839, [1, 0] : vector<4x8xf32> -> vector<8x4xf32>
    %cst_327 = arith.constant dense<0.000000e+00> : vector<4x4xf32>
    %841 = tpu.matmul %838, %840, %cst_327 {dimension_numbers = #tpu.dot_dimension_numbers<[1], [0], [0], [1], [0, 0, 1, 1], [], []>} : vector<4x8xf32>, vector<8x4xf32>, vector<4x4xf32> -> vector<4x4xf32>
    %cst_328 = arith.constant 0.353553385 : f32
    %842 = vector.broadcast %cst_328 : f32 to vector<4x4xf32>
    %843 = arith.mulf %841, %842 : vector<4x4xf32>
    %cst_329 = arith.constant dense<0xFF800000> : vector<4xf32>
    %844 = vector.multi_reduction <maximumf>, %843, %cst_329 [1] : vector<4x4xf32> to vector<4xf32>
    %845 = vector.shape_cast %844 : vector<4xf32> to vector<4x1xf32>
    %846 = vector.broadcast %845 : vector<4x1xf32> to vector<4x4xf32>
    %847 = arith.subf %843, %846 : vector<4x4xf32>
    %848 = math.exp %847 : vector<4x4xf32>
    %cst_330 = arith.constant dense<0.000000e+00> : vector<4xf32>
    %849 = vector.multi_reduction <add>, %848, %cst_330 [1] : vector<4x4xf32> to vector<4xf32>
    %850 = vector.shape_cast %849 : vector<4xf32> to vector<4x1xf32>
    %851 = tpu.reciprocal %850 {approx = true} : vector<4x1xf32> -> vector<4x1xf32>
    %852 = vector.broadcast %851 : vector<4x1xf32> to vector<4x4xf32>
    %853 = arith.mulf %848, %852 : vector<4x4xf32>
    %854 = vector.extract_strided_slice %792 {offsets = [0, 16], sizes = [4, 8], strides = [1, 1]} : vector<4x32xf32> to vector<4x8xf32>
    %cst_331 = arith.constant dense<0.000000e+00> : vector<4x8xf32>
    %855 = tpu.matmul %853, %854, %cst_331 {dimension_numbers = #tpu.dot_dimension_numbers<[1], [0], [0], [1], [0, 0, 1, 1], [], []>} : vector<4x4xf32>, vector<4x8xf32>, vector<4x8xf32> -> vector<4x8xf32>
    %856 = vector.extract_strided_slice %793 {offsets = [16, 0], sizes = [8, 32], strides = [1, 1]} : vector<32x32xf32> to vector<8x32xf32>
    %cst_332 = arith.constant dense<0.000000e+00> : vector<4x32xf32>
    %857 = tpu.matmul %855, %856, %cst_332 {dimension_numbers = #tpu.dot_dimension_numbers<[1], [0], [0], [1], [0, 0, 1, 1], [], []>} : vector<4x8xf32>, vector<8x32xf32>, vector<4x32xf32> -> vector<4x32xf32>
    %858 = arith.addf %837, %857 : vector<4x32xf32>
    %859 = vector.extract_strided_slice %785 {offsets = [0, 24], sizes = [4, 8], strides = [1, 1]} : vector<4x32xf32> to vector<4x8xf32>
    %860 = vector.extract_strided_slice %791 {offsets = [0, 24], sizes = [4, 8], strides = [1, 1]} : vector<4x32xf32> to vector<4x8xf32>
    %861 = tpu.transpose %860, [1, 0] : vector<4x8xf32> -> vector<8x4xf32>
    %cst_333 = arith.constant dense<0.000000e+00> : vector<4x4xf32>
    %862 = tpu.matmul %859, %861, %cst_333 {dimension_numbers = #tpu.dot_dimension_numbers<[1], [0], [0], [1], [0, 0, 1, 1], [], []>} : vector<4x8xf32>, vector<8x4xf32>, vector<4x4xf32> -> vector<4x4xf32>
    %cst_334 = arith.constant 0.353553385 : f32
    %863 = vector.broadcast %cst_334 : f32 to vector<4x4xf32>
    %864 = arith.mulf %862, %863 : vector<4x4xf32>
    %cst_335 = arith.constant dense<0xFF800000> : vector<4xf32>
    %865 = vector.multi_reduction <maximumf>, %864, %cst_335 [1] : vector<4x4xf32> to vector<4xf32>
    %866 = vector.shape_cast %865 : vector<4xf32> to vector<4x1xf32>
    %867 = vector.broadcast %866 : vector<4x1xf32> to vector<4x4xf32>
    %868 = arith.subf %864, %867 : vector<4x4xf32>
    %869 = math.exp %868 : vector<4x4xf32>
    %cst_336 = arith.constant dense<0.000000e+00> : vector<4xf32>
    %870 = vector.multi_reduction <add>, %869, %cst_336 [1] : vector<4x4xf32> to vector<4xf32>
    %871 = vector.shape_cast %870 : vector<4xf32> to vector<4x1xf32>
    %872 = tpu.reciprocal %871 {approx = true} : vector<4x1xf32> -> vector<4x1xf32>
    %873 = vector.broadcast %872 : vector<4x1xf32> to vector<4x4xf32>
    %874 = arith.mulf %869, %873 : vector<4x4xf32>
    %875 = vector.extract_strided_slice %792 {offsets = [0, 24], sizes = [4, 8], strides = [1, 1]} : vector<4x32xf32> to vector<4x8xf32>
    %cst_337 = arith.constant dense<0.000000e+00> : vector<4x8xf32>
    %876 = tpu.matmul %874, %875, %cst_337 {dimension_numbers = #tpu.dot_dimension_numbers<[1], [0], [0], [1], [0, 0, 1, 1], [], []>} : vector<4x4xf32>, vector<4x8xf32>, vector<4x8xf32> -> vector<4x8xf32>
    %877 = vector.extract_strided_slice %793 {offsets = [24, 0], sizes = [8, 32], strides = [1, 1]} : vector<32x32xf32> to vector<8x32xf32>
    %cst_338 = arith.constant dense<0.000000e+00> : vector<4x32xf32>
    %878 = tpu.matmul %876, %877, %cst_338 {dimension_numbers = #tpu.dot_dimension_numbers<[1], [0], [0], [1], [0, 0, 1, 1], [], []>} : vector<4x8xf32>, vector<8x32xf32>, vector<4x32xf32> -> vector<4x32xf32>
    %879 = arith.addf %858, %878 : vector<4x32xf32>
    %880 = arith.addf %756, %879 : vector<4x32xf32>
    %c0_339 = arith.constant 0 : index
    %c0_340 = arith.constant 0 : index
    %881 = vector.load %arg31[%c0_339, %c0_340] : memref<1x32xf32, #tpu.memory_space<vmem>>, vector<1x32xf32>
    %c0_341 = arith.constant 0 : index
    %c0_342 = arith.constant 0 : index
    %882 = vector.load %arg32[%c0_341, %c0_342] : memref<1x32xf32, #tpu.memory_space<vmem>>, vector<1x32xf32>
    %cst_343 = arith.constant dense<0.000000e+00> : vector<4xf32>
    %883 = vector.multi_reduction <add>, %880, %cst_343 [1] : vector<4x32xf32> to vector<4xf32>
    %884 = vector.shape_cast %883 : vector<4xf32> to vector<4x1xf32>
    %cst_344 = arith.constant 3.200000e+01 : f32
    %885 = vector.broadcast %cst_344 : f32 to vector<4x1xf32>
    %886 = arith.divf %884, %885 : vector<4x1xf32>
    %887 = vector.broadcast %886 : vector<4x1xf32> to vector<4x32xf32>
    %888 = arith.subf %880, %887 : vector<4x32xf32>
    %889 = arith.mulf %888, %888 : vector<4x32xf32>
    %cst_345 = arith.constant dense<0.000000e+00> : vector<4xf32>
    %890 = vector.multi_reduction <add>, %889, %cst_345 [1] : vector<4x32xf32> to vector<4xf32>
    %891 = vector.shape_cast %890 : vector<4xf32> to vector<4x1xf32>
    %cst_346 = arith.constant 3.200000e+01 : f32
    %892 = vector.broadcast %cst_346 : f32 to vector<4x1xf32>
    %893 = arith.divf %891, %892 : vector<4x1xf32>
    %894 = vector.broadcast %886 : vector<4x1xf32> to vector<4x32xf32>
    %895 = arith.subf %880, %894 : vector<4x32xf32>
    %cst_347 = arith.constant 9.99999997E-7 : f32
    %896 = vector.broadcast %cst_347 : f32 to vector<4x1xf32>
    %897 = arith.addf %893, %896 : vector<4x1xf32>
    %898 = math.rsqrt %897 : vector<4x1xf32>
    %899 = vector.broadcast %898 : vector<4x1xf32> to vector<4x32xf32>
    %900 = arith.mulf %895, %899 : vector<4x32xf32>
    %901 = vector.broadcast %881 : vector<1x32xf32> to vector<4x32xf32>
    %902 = arith.mulf %900, %901 : vector<4x32xf32>
    %903 = vector.broadcast %882 : vector<1x32xf32> to vector<4x32xf32>
    %904 = arith.addf %902, %903 : vector<4x32xf32>
    %c0_348 = arith.constant 0 : index
    %c0_349 = arith.constant 0 : index
    %905 = vector.load %arg33[%c0_348, %c0_349] : memref<32x64xf32, #tpu.memory_space<vmem>>, vector<32x64xf32>
    %cst_350 = arith.constant dense<0.000000e+00> : vector<4x64xf32>
    %906 = tpu.matmul %904, %905, %cst_350 {dimension_numbers = #tpu.dot_dimension_numbers<[1], [0], [0], [1], [0, 0, 1, 1], [], []>} : vector<4x32xf32>, vector<32x64xf32>, vector<4x64xf32> -> vector<4x64xf32>
    %c0_351 = arith.constant 0 : index
    %c0_352 = arith.constant 0 : index
    %907 = vector.load %arg34[%c0_351, %c0_352] : memref<1x64xf32, #tpu.memory_space<vmem>>, vector<1x64xf32>
    %908 = vector.broadcast %907 : vector<1x64xf32> to vector<4x64xf32>
    %909 = arith.addf %906, %908 : vector<4x64xf32>
    %910 = arith.mulf %909, %909 : vector<4x64xf32>
    %911 = arith.mulf %909, %910 : vector<4x64xf32>
    %cst_353 = arith.constant 4.471500e-02 : f32
    %912 = vector.broadcast %cst_353 : f32 to vector<4x64xf32>
    %913 = arith.mulf %912, %911 : vector<4x64xf32>
    %914 = arith.addf %909, %913 : vector<4x64xf32>
    %cst_354 = arith.constant 0.797884583 : f32
    %915 = vector.broadcast %cst_354 : f32 to vector<4x64xf32>
    %916 = arith.mulf %915, %914 : vector<4x64xf32>
    %917 = math.tanh %916 : vector<4x64xf32>
    %cst_355 = arith.constant 1.000000e+00 : f32
    %918 = vector.broadcast %cst_355 : f32 to vector<4x64xf32>
    %919 = arith.addf %918, %917 : vector<4x64xf32>
    %cst_356 = arith.constant 5.000000e-01 : f32
    %920 = vector.broadcast %cst_356 : f32 to vector<4x64xf32>
    %921 = arith.mulf %920, %919 : vector<4x64xf32>
    %922 = arith.mulf %909, %921 : vector<4x64xf32>
    %c0_357 = arith.constant 0 : index
    %c0_358 = arith.constant 0 : index
    %923 = vector.load %arg35[%c0_357, %c0_358] : memref<64x32xf32, #tpu.memory_space<vmem>>, vector<64x32xf32>
    %cst_359 = arith.constant dense<0.000000e+00> : vector<4x32xf32>
    %924 = tpu.matmul %922, %923, %cst_359 {dimension_numbers = #tpu.dot_dimension_numbers<[1], [0], [0], [1], [0, 0, 1, 1], [], []>} : vector<4x64xf32>, vector<64x32xf32>, vector<4x32xf32> -> vector<4x32xf32>
    %c0_360 = arith.constant 0 : index
    %c0_361 = arith.constant 0 : index
    %925 = vector.load %arg36[%c0_360, %c0_361] : memref<1x32xf32, #tpu.memory_space<vmem>>, vector<1x32xf32>
    %926 = vector.broadcast %925 : vector<1x32xf32> to vector<4x32xf32>
    %927 = arith.addf %924, %926 : vector<4x32xf32>
    %928 = arith.addf %880, %927 : vector<4x32xf32>
    %c0_362 = arith.constant 0 : index
    %c0_363 = arith.constant 0 : index
    %c0_364 = arith.constant 0 : index
    %929 = vector.load %arg37[%c0_362, %c0_363, %c0_364] : memref<1x4x32xf32, #tpu.memory_space<vmem>>, vector<1x4x32xf32>
    %930 = vector.shape_cast %929 : vector<1x4x32xf32> to vector<4x32xf32>
    %931 = vector.shape_cast %928 : vector<4x32xf32> to vector<1x4x32xf32>
    tpu.vector_store %arg37[%c0_362, %c0_363, %c0_364], %931 {strides = array<i32>} : memref<1x4x32xf32, #tpu.memory_space<vmem>>, vector<1x4x32xf32>,
    %c0_365 = arith.constant 0 : index
    %c0_366 = arith.constant 0 : index
    %c0_367 = arith.constant 0 : index
    %c0_368 = arith.constant 0 : index
    %932 = vector.load %arg38[%c0_365, %c0_366, %c0_367, %c0_368] : memref<1x4x4x4xf32, #tpu.memory_space<vmem>>, vector<1x1x4x4xf32>
    %933 = vector.shape_cast %932 : vector<1x1x4x4xf32> to vector<4x4xf32>
    %934 = vector.shape_cast %810 : vector<4x4xf32> to vector<1x1x4x4xf32>
    tpu.vector_store %arg38[%c0_365, %c0_366, %c0_367, %c0_368], %934 {strides = array<i32>} : memref<1x4x4x4xf32, #tpu.memory_space<vmem>>, vector<1x1x4x4xf32>,
    %c0_369 = arith.constant 0 : index
    %c1 = arith.constant 1 : index
    %c0_370 = arith.constant 0 : index
    %c0_371 = arith.constant 0 : index
    %935 = vector.load %arg38[%c0_369, %c1, %c0_370, %c0_371] : memref<1x4x4x4xf32, #tpu.memory_space<vmem>>, vector<1x1x4x4xf32>
    %936 = vector.shape_cast %935 : vector<1x1x4x4xf32> to vector<4x4xf32>
    %937 = vector.shape_cast %832 : vector<4x4xf32> to vector<1x1x4x4xf32>
    tpu.vector_store %arg38[%c0_369, %c1, %c0_370, %c0_371], %937 {strides = array<i32>} : memref<1x4x4x4xf32, #tpu.memory_space<vmem>>, vector<1x1x4x4xf32>,
    %c0_372 = arith.constant 0 : index
    %c2 = arith.constant 2 : index
    %c0_373 = arith.constant 0 : index
    %c0_374 = arith.constant 0 : index
    %938 = vector.load %arg38[%c0_372, %c2, %c0_373, %c0_374] : memref<1x4x4x4xf32, #tpu.memory_space<vmem>>, vector<1x1x4x4xf32>
    %939 = vector.shape_cast %938 : vector<1x1x4x4xf32> to vector<4x4xf32>
    %940 = vector.shape_cast %853 : vector<4x4xf32> to vector<1x1x4x4xf32>
    tpu.vector_store %arg38[%c0_372, %c2, %c0_373, %c0_374], %940 {strides = array<i32>} : memref<1x4x4x4xf32, #tpu.memory_space<vmem>>, vector<1x1x4x4xf32>,
    %c0_375 = arith.constant 0 : index
    %c3 = arith.constant 3 : index
    %c0_376 = arith.constant 0 : index
    %c0_377 = arith.constant 0 : index
    %941 = vector.load %arg38[%c0_375, %c3, %c0_376, %c0_377] : memref<1x4x4x4xf32, #tpu.memory_space<vmem>>, vector<1x1x4x4xf32>
    %942 = vector.shape_cast %941 : vector<1x1x4x4xf32> to vector<4x4xf32>
    %943 = vector.shape_cast %874 : vector<4x4xf32> to vector<1x1x4x4xf32>
    tpu.vector_store %arg38[%c0_375, %c3, %c0_376, %c0_377], %943 {strides = array<i32>} : memref<1x4x4x4xf32, #tpu.memory_space<vmem>>, vector<1x1x4x4xf32>,
    return
  }
  func.func @transform_0(%arg0: i32) -> (i32, i32, i32) {
    %c0_i32 = arith.constant 0 : i32
    %c0_i32_0 = arith.constant 0 : i32
    %c0_i32_1 = arith.constant 0 : i32
    return %arg0, %c0_i32, %c0_i32_0 : i32, i32, i32
  }
  func.func @transform_1(%arg0: i32) -> (i32, i32) {
    %c0_i32 = arith.constant 0 : i32
    %c0_i32_0 = arith.constant 0 : i32
    %c0_i32_1 = arith.constant 0 : i32
    return %c0_i32, %c0_i32_0 : i32, i32
  }
  func.func @transform_2(%arg0: i32) -> (i32, i32) {
    %c0_i32 = arith.constant 0 : i32
    %c0_i32_0 = arith.constant 0 : i32
    %c0_i32_1 = arith.constant 0 : i32
    return %c0_i32, %c0_i32_0 : i32, i32
  }
  func.func @transform_3(%arg0: i32) -> (i32, i32) {
    %c0_i32 = arith.constant 0 : i32
    %c0_i32_0 = arith.constant 0 : i32
    %c0_i32_1 = arith.constant 0 : i32
    return %c0_i32, %c0_i32_0 : i32, i32
  }
  func.func @transform_4(%arg0: i32) -> (i32, i32) {
    %c0_i32 = arith.constant 0 : i32
    %c0_i32_0 = arith.constant 0 : i32
    %c0_i32_1 = arith.constant 0 : i32
    return %c0_i32, %c0_i32_0 : i32, i32
  }
  func.func @transform_5(%arg0: i32) -> (i32, i32) {
    %c0_i32 = arith.constant 0 : i32
    %c0_i32_0 = arith.constant 0 : i32
    %c0_i32_1 = arith.constant 0 : i32
    return %c0_i32, %c0_i32_0 : i32, i32
  }
  func.func @transform_6(%arg0: i32) -> (i32, i32) {
    %c0_i32 = arith.constant 0 : i32
    %c0_i32_0 = arith.constant 0 : i32
    %c0_i32_1 = arith.constant 0 : i32
    return %c0_i32, %c0_i32_0 : i32, i32
  }
  func.func @transform_7(%arg0: i32) -> (i32, i32) {
    %c0_i32 = arith.constant 0 : i32
    %c0_i32_0 = arith.constant 0 : i32
    %c0_i32_1 = arith.constant 0 : i32
    return %c0_i32, %c0_i32_0 : i32, i32
  }
  func.func @transform_8(%arg0: i32) -> (i32, i32) {
    %c0_i32 = arith.constant 0 : i32
    %c0_i32_0 = arith.constant 0 : i32
    %c0_i32_1 = arith.constant 0 : i32
    return %c0_i32, %c0_i32_0 : i32, i32
  }
  func.func @transform_9(%arg0: i32) -> (i32, i32) {
    %c0_i32 = arith.constant 0 : i32
    %c0_i32_0 = arith.constant 0 : i32
    %c0_i32_1 = arith.constant 0 : i32
    return %c0_i32, %c0_i32_0 : i32, i32
  }
  func.func @transform_10(%arg0: i32) -> (i32, i32) {
    %c0_i32 = arith.constant 0 : i32
    %c0_i32_0 = arith.constant 0 : i32
    %c0_i32_1 = arith.constant 0 : i32
    return %c0_i32, %c0_i32_0 : i32, i32
  }
  func.func @transform_11(%arg0: i32) -> (i32, i32) {
    %c0_i32 = arith.constant 0 : i32
    %c0_i32_0 = arith.constant 0 : i32
    %c0_i32_1 = arith.constant 0 : i32
    return %c0_i32, %c0_i32_0 : i32, i32
  }
  func.func @transform_12(%arg0: i32) -> (i32, i32) {
    %c0_i32 = arith.constant 0 : i32
    %c0_i32_0 = arith.constant 0 : i32
    %c0_i32_1 = arith.constant 0 : i32
    return %c0_i32, %c0_i32_0 : i32, i32
  }
  func.func @transform_13(%arg0: i32) -> (i32, i32) {
    %c0_i32 = arith.constant 0 : i32
    %c0_i32_0 = arith.constant 0 : i32
    %c0_i32_1 = arith.constant 0 : i32
    return %c0_i32, %c0_i32_0 : i32, i32
  }
  func.func @transform_14(%arg0: i32) -> (i32, i32) {
    %c0_i32 = arith.constant 0 : i32
    %c0_i32_0 = arith.constant 0 : i32
    %c0_i32_1 = arith.constant 0 : i32
    return %c0_i32, %c0_i32_0 : i32, i32
  }
  func.func @transform_15(%arg0: i32) -> (i32, i32) {
    %c0_i32 = arith.constant 0 : i32
    %c0_i32_0 = arith.constant 0 : i32
    %c0_i32_1 = arith.constant 0 : i32
    return %c0_i32, %c0_i32_0 : i32, i32
  }
  func.func @transform_16(%arg0: i32) -> (i32, i32) {
    %c0_i32 = arith.constant 0 : i32
    %c0_i32_0 = arith.constant 0 : i32
    %c0_i32_1 = arith.constant 0 : i32
    return %c0_i32, %c0_i32_0 : i32, i32
  }
  func.func @transform_17(%arg0: i32) -> (i32, i32) {
    %c0_i32 = arith.constant 0 : i32
    %c0_i32_0 = arith.constant 0 : i32
    %c0_i32_1 = arith.constant 0 : i32
    return %c0_i32, %c0_i32_0 : i32, i32
  }
  func.func @transform_18(%arg0: i32) -> (i32, i32) {
    %c0_i32 = arith.constant 0 : i32
    %c0_i32_0 = arith.constant 0 : i32
    %c0_i32_1 = arith.constant 0 : i32
    return %c0_i32, %c0_i32_0 : i32, i32
  }
  func.func @transform_19(%arg0: i32) -> (i32, i32) {
    %c0_i32 = arith.constant 0 : i32
    %c0_i32_0 = arith.constant 0 : i32
    %c0_i32_1 = arith.constant 0 : i32
    return %c0_i32, %c0_i32_0 : i32, i32
  }
  func.func @transform_20(%arg0: i32) -> (i32, i32) {
    %c0_i32 = arith.constant 0 : i32
    %c0_i32_0 = arith.constant 0 : i32
    %c0_i32_1 = arith.constant 0 : i32
    return %c0_i32, %c0_i32_0 : i32, i32
  }
  func.func @transform_21(%arg0: i32) -> (i32, i32) {
    %c0_i32 = arith.constant 0 : i32
    %c0_i32_0 = arith.constant 0 : i32
    %c0_i32_1 = arith.constant 0 : i32
    return %c0_i32, %c0_i32_0 : i32, i32
  }
  func.func @transform_22(%arg0: i32) -> (i32, i32) {
    %c0_i32 = arith.constant 0 : i32
    %c0_i32_0 = arith.constant 0 : i32
    %c0_i32_1 = arith.constant 0 : i32
    return %c0_i32, %c0_i32_0 : i32, i32
  }
  func.func @transform_23(%arg0: i32) -> (i32, i32) {
    %c0_i32 = arith.constant 0 : i32
    %c0_i32_0 = arith.constant 0 : i32
    %c0_i32_1 = arith.constant 0 : i32
    return %c0_i32, %c0_i32_0 : i32, i32
  }
  func.func @transform_24(%arg0: i32) -> (i32, i32) {
    %c0_i32 = arith.constant 0 : i32
    %c0_i32_0 = arith.constant 0 : i32
    %c0_i32_1 = arith.constant 0 : i32
    return %c0_i32, %c0_i32_0 : i32, i32
  }
  func.func @transform_25(%arg0: i32) -> (i32, i32) {
    %c0_i32 = arith.constant 0 : i32
    %c0_i32_0 = arith.constant 0 : i32
    %c0_i32_1 = arith.constant 0 : i32
    return %c0_i32, %c0_i32_0 : i32, i32
  }
  func.func @transform_26(%arg0: i32) -> (i32, i32) {
    %c0_i32 = arith.constant 0 : i32
    %c0_i32_0 = arith.constant 0 : i32
    %c0_i32_1 = arith.constant 0 : i32
    return %c0_i32, %c0_i32_0 : i32, i32
  }
  func.func @transform_27(%arg0: i32) -> (i32, i32) {
    %c0_i32 = arith.constant 0 : i32
    %c0_i32_0 = arith.constant 0 : i32
    %c0_i32_1 = arith.constant 0 : i32
    return %c0_i32, %c0_i32_0 : i32, i32
  }
  func.func @transform_28(%arg0: i32) -> (i32, i32) {
    %c0_i32 = arith.constant 0 : i32
    %c0_i32_0 = arith.constant 0 : i32
    %c0_i32_1 = arith.constant 0 : i32
    return %c0_i32, %c0_i32_0 : i32, i32
  }
  func.func @transform_29(%arg0: i32) -> (i32, i32) {
    %c0_i32 = arith.constant 0 : i32
    %c0_i32_0 = arith.constant 0 : i32
    %c0_i32_1 = arith.constant 0 : i32
    return %c0_i32, %c0_i32_0 : i32, i32
  }
  func.func @transform_30(%arg0: i32) -> (i32, i32) {
    %c0_i32 = arith.constant 0 : i32
    %c0_i32_0 = arith.constant 0 : i32
    %c0_i32_1 = arith.constant 0 : i32
    return %c0_i32, %c0_i32_0 : i32, i32
  }
  func.func @transform_31(%arg0: i32) -> (i32, i32) {
    %c0_i32 = arith.constant 0 : i32
    %c0_i32_0 = arith.constant 0 : i32
    %c0_i32_1 = arith.constant 0 : i32
    return %c0_i32, %c0_i32_0 : i32, i32
  }
  func.func @transform_32(%arg0: i32) -> (i32, i32) {
    %c0_i32 = arith.constant 0 : i32
    %c0_i32_0 = arith.constant 0 : i32
    %c0_i32_1 = arith.constant 0 : i32
    return %c0_i32, %c0_i32_0 : i32, i32
  }
  func.func @transform_33(%arg0: i32) -> (i32, i32) {
    %c0_i32 = arith.constant 0 : i32
    %c0_i32_0 = arith.constant 0 : i32
    %c0_i32_1 = arith.constant 0 : i32
    return %c0_i32, %c0_i32_0 : i32, i32
  }
  func.func @transform_34(%arg0: i32) -> (i32, i32) {
    %c0_i32 = arith.constant 0 : i32
    %c0_i32_0 = arith.constant 0 : i32
    %c0_i32_1 = arith.constant 0 : i32
    return %c0_i32, %c0_i32_0 : i32, i32
  }
  func.func @transform_35(%arg0: i32) -> (i32, i32) {
    %c0_i32 = arith.constant 0 : i32
    %c0_i32_0 = arith.constant 0 : i32
    %c0_i32_1 = arith.constant 0 : i32
    return %c0_i32, %c0_i32_0 : i32, i32
  }
  func.func @transform_36(%arg0: i32) -> (i32, i32, i32) {
    %c0_i32 = arith.constant 0 : i32
    %c0_i32_0 = arith.constant 0 : i32
    %c0_i32_1 = arith.constant 0 : i32
    return %arg0, %c0_i32, %c0_i32_0 : i32, i32, i32
  }
  func.func @transform_37(%arg0: i32) -> (i32, i32, i32, i32) {
    %c0_i32 = arith.constant 0 : i32
    %c0_i32_0 = arith.constant 0 : i32
    %c0_i32_1 = arith.constant 0 : i32
    %c0_i32_2 = arith.constant 0 : i32
    return %arg0, %c0_i32, %c0_i32_0, %c0_i32_1 : i32, i32, i32, i32
  }
}

</mosaic_0001>

<llo_original>
// kernel: transformer_forward.1
$region0: #{transformer_forward.1}
  #allocation0 [shape = 'u32[]', space=smem, size = 0x4, offset = 0x4, fixed_abs, tag = 'smem constant byte address 0x4 - core index']
  #allocation1 [shape = 'u32[144,128]{1,0:T(1,128)}', space=vmem, size = 0x12000, scoped, tag = 'internal scratch']
  %s0 = inlined_call_operand.smem [shape: u32[38], index: -1, kind: input, shape index: {}]
  %s1 = sld [smem:[%s0]]
  %s2 = scalar_lea.smem %s0, 1
  %s3 = sld [smem:[%s2]]
  %s4 = scalar_lea.smem %s0, 2
  %s5 = sld [smem:[%s4]]
  %s6 = scalar_lea.smem %s0, 3
  %s7 = sld [smem:[%s6]]
  %s8 = scalar_lea.smem %s0, 4
  %s9 = sld [smem:[%s8]]
  %s10 = scalar_lea.smem %s0, 5
  %s11 = sld [smem:[%s10]]
  %s12 = scalar_lea.smem %s0, 6
  %s13 = sld [smem:[%s12]]
  %s14 = scalar_lea.smem %s0, 7
  %s15 = sld [smem:[%s14]]
  %s16 = scalar_lea.smem %s0, 8
  %s17 = sld [smem:[%s16]]
  %s18 = scalar_lea.smem %s0, 9
  %s19 = sld [smem:[%s18]]
  %s20 = scalar_lea.smem %s0, 10
  %s21 = sld [smem:[%s20]]
  %s22 = scalar_lea.smem %s0, 11
  %s23 = sld [smem:[%s22]]
  %s24 = scalar_lea.smem %s0, 12
  %s25 = sld [smem:[%s24]]
  %s26 = scalar_lea.smem %s0, 13
  %s27 = sld [smem:[%s26]]
  %s28 = scalar_lea.smem %s0, 14
  %s29 = sld [smem:[%s28]]
  %s30 = scalar_lea.smem %s0, 15
  %s31 = sld [smem:[%s30]]
  %s32 = scalar_lea.smem %s0, 16
  %s33 = sld [smem:[%s32]]
  %s34 = scalar_lea.smem %s0, 17
  %s35 = sld [smem:[%s34]]
  %s36 = scalar_lea.smem %s0, 18
  %s37 = sld [smem:[%s36]]
  %s38 = scalar_lea.smem %s0, 19
  %s39 = sld [smem:[%s38]]
  %s40 = scalar_lea.smem %s0, 20
  %s41 = sld [smem:[%s40]]
  %s42 = scalar_lea.smem %s0, 21
  %s43 = sld [smem:[%s42]]
  %s44 = scalar_lea.smem %s0, 22
  %s45 = sld [smem:[%s44]]
  %s46 = scalar_lea.smem %s0, 23
  %s47 = sld [smem:[%s46]]
  %s48 = scalar_lea.smem %s0, 24
  %s49 = sld [smem:[%s48]]
  %s50 = scalar_lea.smem %s0, 25
  %s51 = sld [smem:[%s50]]
  %s52 = scalar_lea.smem %s0, 26
  %s53 = sld [smem:[%s52]]
  %s54 = scalar_lea.smem %s0, 27
  %s55 = sld [smem:[%s54]]
  %s56 = scalar_lea.smem %s0, 28
  %s57 = sld [smem:[%s56]]
  %s58 = scalar_lea.smem %s0, 29
  %s59 = sld [smem:[%s58]]
  %s60 = scalar_lea.smem %s0, 30
  %s61 = sld [smem:[%s60]]
  %s62 = scalar_lea.smem %s0, 31
  %s63 = sld [smem:[%s62]]
  %s64 = scalar_lea.smem %s0, 32
  %s65 = sld [smem:[%s64]]
  %s66 = scalar_lea.smem %s0, 33
  %s67 = sld [smem:[%s66]]
  %s68 = scalar_lea.smem %s0, 34
  %s69 = sld [smem:[%s68]]
  %s70 = scalar_lea.smem %s0, 35
  %s71 = sld [smem:[%s70]]
  %s72 = scalar_lea.smem %s0, 36
  %s73 = sld [smem:[%s72]]
  %s74 = scalar_lea.smem %s0, 37
  %s75 = sld [smem:[%s74]]
  %76 = xla_tuple %s73, %s75
  %s77 = sld [smem:[#allocation0]]
  $region185: #{transformer_forward.1} parent=0
    _
  %s79 = ssub.s32 1, %s77
  %s80 = scalar_select 0, %s79, %s77
  $region1: #{transformer_forward.1} parent=0
    #allocation2 [shape = 'u8[4096]{0}', space=vmem, size = 0x1000, scoped, tag = 'output window, operand 0']
    #allocation3 [shape = 's32[2]{0}', space=sflag, size = 0x8, scoped, tag = 'scoped memory for transformer_forward.1']
    #allocation4 [shape = 'u8[16384]{0}', space=vmem, size = 0x4000, scoped, tag = 'output window, operand 1']
    #allocation5 [shape = 's32[2]{0}', space=sflag, size = 0x8, scoped, tag = 'scoped memory for transformer_forward.1']
    %81 = vsyncpa [#allocation3], 0
    %s82 = scalar_lea.sflag [#allocation3], 1
    %83 = vsyncpa %s82, 0
    %84 = vsyncpa [#allocation5], 0
    %s85 = scalar_lea.sflag [#allocation5], 1
    %86 = vsyncpa %s85, 0
    loop: start=0, step=1, limit=4
    $region2: #{transformer_forward.1} parent=1 // loop_pre_header
      _
    $region3: #{transformer_forward.1} parent=1 // loop_header
      %s88 = sphi 0, %s92
      %p89 = scmp.ge.s32.totalorder %s88, 4
      %s98 = sphi 0, %s100
      %s101 = sphi 0, %s98
      %s102 = sphi 0, %s101
      %s118 = sphi 0, %s102
      %s122 = sphi 0, %s122
      %s124 = sphi 0, %s122
      %s125 = sphi 0, %s124
      %s139 = sphi 0, %s125
      %s143 = sphi 0, %s143
      %s145 = sphi 0, %s143
      %s146 = sphi 0, %s145
      %s160 = sphi 0, %s146
      %s164 = sphi 0, %s164
      %s166 = sphi 0, %s164
      %s167 = sphi 0, %s166
      %s181 = sphi 0, %s167
      %s185 = sphi 0, %s185
      %s187 = sphi 0, %s185
      %s188 = sphi 0, %s187
      %s202 = sphi 0, %s188
      %s206 = sphi 0, %s206
      %s208 = sphi 0, %s206
      %s209 = sphi 0, %s208
      %s223 = sphi 0, %s209
      %s227 = sphi 0, %s227
      %s229 = sphi 0, %s227
      %s230 = sphi 0, %s229
      %s244 = sphi 0, %s230
      %s248 = sphi 0, %s248
      %s250 = sphi 0, %s248
      %s251 = sphi 0, %s250
      %s265 = sphi 0, %s251
      %s269 = sphi 0, %s269
      %s271 = sphi 0, %s269
      %s272 = sphi 0, %s271
      %s286 = sphi 0, %s272
      %s290 = sphi 0, %s290
      %s292 = sphi 0, %s290
      %s293 = sphi 0, %s292
      %s307 = sphi 0, %s293
      %s311 = sphi 0, %s311
      %s313 = sphi 0, %s311
      %s314 = sphi 0, %s313
      %s328 = sphi 0, %s314
      %s332 = sphi 0, %s332
      %s334 = sphi 0, %s332
      %s335 = sphi 0, %s334
      %s349 = sphi 0, %s335
      %s353 = sphi 0, %s353
      %s355 = sphi 0, %s353
      %s356 = sphi 0, %s355
      %s370 = sphi 0, %s356
      %s374 = sphi 0, %s374
      %s376 = sphi 0, %s374
      %s377 = sphi 0, %s376
      %s391 = sphi 0, %s377
      %s395 = sphi 0, %s395
      %s397 = sphi 0, %s395
      %s398 = sphi 0, %s397
      %s412 = sphi 0, %s398
      %s416 = sphi 0, %s416
      %s418 = sphi 0, %s416
      %s419 = sphi 0, %s418
      %s433 = sphi 0, %s419
      %s437 = sphi 0, %s437
      %s439 = sphi 0, %s437
      %s440 = sphi 0, %s439
      %s454 = sphi 0, %s440
      %s458 = sphi 0, %s458
      %s460 = sphi 0, %s458
      %s461 = sphi 0, %s460
      %s475 = sphi 0, %s461
      %s479 = sphi 0, %s479
      %s481 = sphi 0, %s479
      %s482 = sphi 0, %s481
      %s496 = sphi 0, %s482
      %s500 = sphi 0, %s500
      %s502 = sphi 0, %s500
      %s503 = sphi 0, %s502
      %s517 = sphi 0, %s503
      %s521 = sphi 0, %s521
      %s523 = sphi 0, %s521
      %s524 = sphi 0, %s523
      %s538 = sphi 0, %s524
      %s542 = sphi 0, %s542
      %s544 = sphi 0, %s542
      %s545 = sphi 0, %s544
      %s559 = sphi 0, %s545
      %s563 = sphi 0, %s563
      %s565 = sphi 0, %s563
      %s566 = sphi 0, %s565
      %s580 = sphi 0, %s566
      %s584 = sphi 0, %s584
      %s586 = sphi 0, %s584
      %s587 = sphi 0, %s586
      %s601 = sphi 0, %s587
      %s605 = sphi 0, %s605
      %s607 = sphi 0, %s605
      %s608 = sphi 0, %s607
      %s622 = sphi 0, %s608
      %s626 = sphi 0, %s626
      %s628 = sphi 0, %s626
      %s629 = sphi 0, %s628
      %s643 = sphi 0, %s629
      %s647 = sphi 0, %s647
      %s649 = sphi 0, %s647
      %s650 = sphi 0, %s649
      %s664 = sphi 0, %s650
      %s668 = sphi 0, %s668
      %s670 = sphi 0, %s668
      %s671 = sphi 0, %s670
      %s685 = sphi 0, %s671
      %s689 = sphi 0, %s689
      %s691 = sphi 0, %s689
      %s692 = sphi 0, %s691
      %s706 = sphi 0, %s692
      %s710 = sphi 0, %s710
      %s712 = sphi 0, %s710
      %s713 = sphi 0, %s712
      %s727 = sphi 0, %s713
      %s731 = sphi 0, %s731
      %s733 = sphi 0, %s731
      %s734 = sphi 0, %s733
      %s748 = sphi 0, %s734
      %s752 = sphi 0, %s752
      %s754 = sphi 0, %s752
      %s755 = sphi 0, %s754
      %s769 = sphi 0, %s755
      %s773 = sphi 0, %s773
      %s775 = sphi 0, %s773
      %s776 = sphi 0, %s775
      %s790 = sphi 0, %s776
      %s794 = sphi 0, %s794
      %s796 = sphi 0, %s794
      %s797 = sphi 0, %s796
      %s811 = sphi 0, %s797
      %s815 = sphi 0, %s815
      %s817 = sphi 0, %s815
      %s818 = sphi 0, %s817
      %s832 = sphi 0, %s818
      %s836 = sphi 0, %s836
      %s838 = sphi 0, %s836
      %s839 = sphi 0, %s838
      %s853 = sphi 0, %s839
      %s859 = sphi 0, %s861
      %s862 = sphi 0, %s859
      %s863 = sphi 0, %s862
      %s879 = sphi 0, %s863
      %s885 = sphi 0, %s887
      %s888 = sphi 0, %s885
      %s889 = sphi 0, %s888
      %s905 = sphi 0, %s889
    $region4: #{transformer_forward.1} parent=1 // loop_header_branch
      %91 = sbr.rel (%p89) target = $region8
    $region5: #{transformer_forward.1} parent=1 // loop_body
      %s93 = ssub.s32 %s88, 1
      %s94 = ssub.s32 %s88, 2
      %s95 = sadd.s32 %s88, 1
      %s96 = ssub.s32 %s88, %s95
      %p97 = scmp.eq.s32.totalorder %s96, 0
      %s99 = sadd.s32 %s98, 1
      %s100 = scalar_select %p97, %s98, %s99
      %p103 = pneg %p97
      %p104 = scmp.eq.s32.totalorder %s88, 1
      %p105 = por %p103, %p104
      %p106 = scmp.ne.s32.totalorder %s98, %s101
      %p107 = scmp.eq.s32.totalorder %s88, 0
      %p108 = por %p106, %p107
      %p109 = scmp.ne.s32.totalorder %s98, %s101
      %p110 = scmp.eq.s32.totalorder %s93, 1
      %p111 = por %p109, %p110
      %p112 = scmp.ne.s32.totalorder %s101, %s102
      %p113 = scmp.eq.s32.totalorder %s93, 0
      %p114 = por %p112, %p113
      %p115 = scmp.ne.s32.totalorder %s101, %s102
      %p116 = scmp.eq.s32.totalorder %s94, 1
      %p117 = por %p115, %p116
      %p119 = scmp.ne.s32.totalorder %s102, %s118
      %p120 = scmp.eq.s32.totalorder %s94, 0
      %p121 = por %p119, %p120
      %s123 = sadd.s32 %s122, 1
      %p126 = scmp.eq.s32.totalorder %s88, 1
      %p127 = scmp.ne.s32.totalorder %s122, %s124
      %p128 = scmp.eq.s32.totalorder %s88, 0
      %p129 = por %p127, %p128
      %p130 = scmp.ne.s32.totalorder %s122, %s124
      %p131 = scmp.eq.s32.totalorder %s93, 1
      %p132 = por %p130, %p131
      %p133 = scmp.ne.s32.totalorder %s124, %s125
      %p134 = scmp.eq.s32.totalorder %s93, 0
      %p135 = por %p133, %p134
      %p136 = scmp.ne.s32.totalorder %s124, %s125
      %p137 = scmp.eq.s32.totalorder %s94, 1
      %p138 = por %p136, %p137
      %p140 = scmp.ne.s32.totalorder %s125, %s139
      %p141 = scmp.eq.s32.totalorder %s94, 0
      %p142 = por %p140, %p141
      %s144 = sadd.s32 %s143, 1
      %p147 = scmp.eq.s32.totalorder %s88, 1
      %p148 = scmp.ne.s32.totalorder %s143, %s145
      %p149 = scmp.eq.s32.totalorder %s88, 0
      %p150 = por %p148, %p149
      %p151 = scmp.ne.s32.totalorder %s143, %s145
      %p152 = scmp.eq.s32.totalorder %s93, 1
      %p153 = por %p151, %p152
      %p154 = scmp.ne.s32.totalorder %s145, %s146
      %p155 = scmp.eq.s32.totalorder %s93, 0
      %p156 = por %p154, %p155
      %p157 = scmp.ne.s32.totalorder %s145, %s146
      %p158 = scmp.eq.s32.totalorder %s94, 1
      %p159 = por %p157, %p158
      %p161 = scmp.ne.s32.totalorder %s146, %s160
      %p162 = scmp.eq.s32.totalorder %s94, 0
      %p163 = por %p161, %p162
      %s165 = sadd.s32 %s164, 1
      %p168 = scmp.eq.s32.totalorder %s88, 1
      %p169 = scmp.ne.s32.totalorder %s164, %s166
      %p170 = scmp.eq.s32.totalorder %s88, 0
      %p171 = por %p169, %p170
      %p172 = scmp.ne.s32.totalorder %s164, %s166
      %p173 = scmp.eq.s32.totalorder %s93, 1
      %p174 = por %p172, %p173
      %p175 = scmp.ne.s32.totalorder %s166, %s167
      %p176 = scmp.eq.s32.totalorder %s93, 0
      %p177 = por %p175, %p176
      %p178 = scmp.ne.s32.totalorder %s166, %s167
      %p179 = scmp.eq.s32.totalorder %s94, 1
      %p180 = por %p178, %p179
      %p182 = scmp.ne.s32.totalorder %s167, %s181
      %p183 = scmp.eq.s32.totalorder %s94, 0
      %p184 = por %p182, %p183
      %s186 = sadd.s32 %s185, 1
      %p189 = scmp.eq.s32.totalorder %s88, 1
      %p190 = scmp.ne.s32.totalorder %s185, %s187
      %p191 = scmp.eq.s32.totalorder %s88, 0
      %p192 = por %p190, %p191
      %p193 = scmp.ne.s32.totalorder %s185, %s187
      %p194 = scmp.eq.s32.totalorder %s93, 1
      %p195 = por %p193, %p194
      %p196 = scmp.ne.s32.totalorder %s187, %s188
      %p197 = scmp.eq.s32.totalorder %s93, 0
      %p198 = por %p196, %p197
      %p199 = scmp.ne.s32.totalorder %s187, %s188
      %p200 = scmp.eq.s32.totalorder %s94, 1
      %p201 = por %p199, %p200
      %p203 = scmp.ne.s32.totalorder %s188, %s202
      %p204 = scmp.eq.s32.totalorder %s94, 0
      %p205 = por %p203, %p204
      %s207 = sadd.s32 %s206, 1
      %p210 = scmp.eq.s32.totalorder %s88, 1
      %p211 = scmp.ne.s32.totalorder %s206, %s208
      %p212 = scmp.eq.s32.totalorder %s88, 0
      %p213 = por %p211, %p212
      %p214 = scmp.ne.s32.totalorder %s206, %s208
      %p215 = scmp.eq.s32.totalorder %s93, 1
      %p216 = por %p214, %p215
      %p217 = scmp.ne.s32.totalorder %s208, %s209
      %p218 = scmp.eq.s32.totalorder %s93, 0
      %p219 = por %p217, %p218
      %p220 = scmp.ne.s32.totalorder %s208, %s209
      %p221 = scmp.eq.s32.totalorder %s94, 1
      %p222 = por %p220, %p221
      %p224 = scmp.ne.s32.totalorder %s209, %s223
      %p225 = scmp.eq.s32.totalorder %s94, 0
      %p226 = por %p224, %p225
      %s228 = sadd.s32 %s227, 1
      %p231 = scmp.eq.s32.totalorder %s88, 1
      %p232 = scmp.ne.s32.totalorder %s227, %s229
      %p233 = scmp.eq.s32.totalorder %s88, 0
      %p234 = por %p232, %p233
      %p235 = scmp.ne.s32.totalorder %s227, %s229
      %p236 = scmp.eq.s32.totalorder %s93, 1
      %p237 = por %p235, %p236
      %p238 = scmp.ne.s32.totalorder %s229, %s230
      %p239 = scmp.eq.s32.totalorder %s93, 0
      %p240 = por %p238, %p239
      %p241 = scmp.ne.s32.totalorder %s229, %s230
      %p242 = scmp.eq.s32.totalorder %s94, 1
      %p243 = por %p241, %p242
      %p245 = scmp.ne.s32.totalorder %s230, %s244
      %p246 = scmp.eq.s32.totalorder %s94, 0
      %p247 = por %p245, %p246
      %s249 = sadd.s32 %s248, 1
      %p252 = scmp.eq.s32.totalorder %s88, 1
      %p253 = scmp.ne.s32.totalorder %s248, %s250
      %p254 = scmp.eq.s32.totalorder %s88, 0
      %p255 = por %p253, %p254
      %p256 = scmp.ne.s32.totalorder %s248, %s250
      %p257 = scmp.eq.s32.totalorder %s93, 1
      %p258 = por %p256, %p257
      %p259 = scmp.ne.s32.totalorder %s250, %s251
      %p260 = scmp.eq.s32.totalorder %s93, 0
      %p261 = por %p259, %p260
      %p262 = scmp.ne.s32.totalorder %s250, %s251
      %p263 = scmp.eq.s32.totalorder %s94, 1
      %p264 = por %p262, %p263
      %p266 = scmp.ne.s32.totalorder %s251, %s265
      %p267 = scmp.eq.s32.totalorder %s94, 0
      %p268 = por %p266, %p267
      %s270 = sadd.s32 %s269, 1
      %p273 = scmp.eq.s32.totalorder %s88, 1
      %p274 = scmp.ne.s32.totalorder %s269, %s271
      %p275 = scmp.eq.s32.totalorder %s88, 0
      %p276 = por %p274, %p275
      %p277 = scmp.ne.s32.totalorder %s269, %s271
      %p278 = scmp.eq.s32.totalorder %s93, 1
      %p279 = por %p277, %p278
      %p280 = scmp.ne.s32.totalorder %s271, %s272
      %p281 = scmp.eq.s32.totalorder %s93, 0
      %p282 = por %p280, %p281
      %p283 = scmp.ne.s32.totalorder %s271, %s272
      %p284 = scmp.eq.s32.totalorder %s94, 1
      %p285 = por %p283, %p284
      %p287 = scmp.ne.s32.totalorder %s272, %s286
      %p288 = scmp.eq.s32.totalorder %s94, 0
      %p289 = por %p287, %p288
      %s291 = sadd.s32 %s290, 1
      %p294 = scmp.eq.s32.totalorder %s88, 1
      %p295 = scmp.ne.s32.totalorder %s290, %s292
      %p296 = scmp.eq.s32.totalorder %s88, 0
      %p297 = por %p295, %p296
      %p298 = scmp.ne.s32.totalorder %s290, %s292
      %p299 = scmp.eq.s32.totalorder %s93, 1
      %p300 = por %p298, %p299
      %p301 = scmp.ne.s32.totalorder %s292, %s293
      %p302 = scmp.eq.s32.totalorder %s93, 0
      %p303 = por %p301, %p302
      %p304 = scmp.ne.s32.totalorder %s292, %s293
      %p305 = scmp.eq.s32.totalorder %s94, 1
      %p306 = por %p304, %p305
      %p308 = scmp.ne.s32.totalorder %s293, %s307
      %p309 = scmp.eq.s32.totalorder %s94, 0
      %p310 = por %p308, %p309
      %s312 = sadd.s32 %s311, 1
      %p315 = scmp.eq.s32.totalorder %s88, 1
      %p316 = scmp.ne.s32.totalorder %s311, %s313
      %p317 = scmp.eq.s32.totalorder %s88, 0
      %p318 = por %p316, %p317
      %p319 = scmp.ne.s32.totalorder %s311, %s313
      %p320 = scmp.eq.s32.totalorder %s93, 1
      %p321 = por %p319, %p320
      %p322 = scmp.ne.s32.totalorder %s313, %s314
      %p323 = scmp.eq.s32.totalorder %s93, 0
      %p324 = por %p322, %p323
      %p325 = scmp.ne.s32.totalorder %s313, %s314
      %p326 = scmp.eq.s32.totalorder %s94, 1
      %p327 = por %p325, %p326
      %p329 = scmp.ne.s32.totalorder %s314, %s328
      %p330 = scmp.eq.s32.totalorder %s94, 0
      %p331 = por %p329, %p330
      %s333 = sadd.s32 %s332, 1
      %p336 = scmp.eq.s32.totalorder %s88, 1
      %p337 = scmp.ne.s32.totalorder %s332, %s334
      %p338 = scmp.eq.s32.totalorder %s88, 0
      %p339 = por %p337, %p338
      %p340 = scmp.ne.s32.totalorder %s332, %s334
      %p341 = scmp.eq.s32.totalorder %s93, 1
      %p342 = por %p340, %p341
      %p343 = scmp.ne.s32.totalorder %s334, %s335
      %p344 = scmp.eq.s32.totalorder %s93, 0
      %p345 = por %p343, %p344
      %p346 = scmp.ne.s32.totalorder %s334, %s335
      %p347 = scmp.eq.s32.totalorder %s94, 1
      %p348 = por %p346, %p347
      %p350 = scmp.ne.s32.totalorder %s335, %s349
      %p351 = scmp.eq.s32.totalorder %s94, 0
      %p352 = por %p350, %p351
      %s354 = sadd.s32 %s353, 1
      %p357 = scmp.eq.s32.totalorder %s88, 1
      %p358 = scmp.ne.s32.totalorder %s353, %s355
      %p359 = scmp.eq.s32.totalorder %s88, 0
      %p360 = por %p358, %p359
      %p361 = scmp.ne.s32.totalorder %s353, %s355
      %p362 = scmp.eq.s32.totalorder %s93, 1
      %p363 = por %p361, %p362
      %p364 = scmp.ne.s32.totalorder %s355, %s356
      %p365 = scmp.eq.s32.totalorder %s93, 0
      %p366 = por %p364, %p365
      %p367 = scmp.ne.s32.totalorder %s355, %s356
      %p368 = scmp.eq.s32.totalorder %s94, 1
      %p369 = por %p367, %p368
      %p371 = scmp.ne.s32.totalorder %s356, %s370
      %p372 = scmp.eq.s32.totalorder %s94, 0
      %p373 = por %p371, %p372
      %s375 = sadd.s32 %s374, 1
      %p378 = scmp.eq.s32.totalorder %s88, 1
      %p379 = scmp.ne.s32.totalorder %s374, %s376
      %p380 = scmp.eq.s32.totalorder %s88, 0
      %p381 = por %p379, %p380
      %p382 = scmp.ne.s32.totalorder %s374, %s376
      %p383 = scmp.eq.s32.totalorder %s93, 1
      %p384 = por %p382, %p383
      %p385 = scmp.ne.s32.totalorder %s376, %s377
      %p386 = scmp.eq.s32.totalorder %s93, 0
      %p387 = por %p385, %p386
      %p388 = scmp.ne.s32.totalorder %s376, %s377
      %p389 = scmp.eq.s32.totalorder %s94, 1
      %p390 = por %p388, %p389
      %p392 = scmp.ne.s32.totalorder %s377, %s391
      %p393 = scmp.eq.s32.totalorder %s94, 0
      %p394 = por %p392, %p393
      %s396 = sadd.s32 %s395, 1
      %p399 = scmp.eq.s32.totalorder %s88, 1
      %p400 = scmp.ne.s32.totalorder %s395, %s397
      %p401 = scmp.eq.s32.totalorder %s88, 0
      %p402 = por %p400, %p401
      %p403 = scmp.ne.s32.totalorder %s395, %s397
      %p404 = scmp.eq.s32.totalorder %s93, 1
      %p405 = por %p403, %p404
      %p406 = scmp.ne.s32.totalorder %s397, %s398
      %p407 = scmp.eq.s32.totalorder %s93, 0
      %p408 = por %p406, %p407
      %p409 = scmp.ne.s32.totalorder %s397, %s398
      %p410 = scmp.eq.s32.totalorder %s94, 1
      %p411 = por %p409, %p410
      %p413 = scmp.ne.s32.totalorder %s398, %s412
      %p414 = scmp.eq.s32.totalorder %s94, 0
      %p415 = por %p413, %p414
      %s417 = sadd.s32 %s416, 1
      %p420 = scmp.eq.s32.totalorder %s88, 1
      %p421 = scmp.ne.s32.totalorder %s416, %s418
      %p422 = scmp.eq.s32.totalorder %s88, 0
      %p423 = por %p421, %p422
      %p424 = scmp.ne.s32.totalorder %s416, %s418
      %p425 = scmp.eq.s32.totalorder %s93, 1
      %p426 = por %p424, %p425
      %p427 = scmp.ne.s32.totalorder %s418, %s419
      %p428 = scmp.eq.s32.totalorder %s93, 0
      %p429 = por %p427, %p428
      %p430 = scmp.ne.s32.totalorder %s418, %s419
      %p431 = scmp.eq.s32.totalorder %s94, 1
      %p432 = por %p430, %p431
      %p434 = scmp.ne.s32.totalorder %s419, %s433
      %p435 = scmp.eq.s32.totalorder %s94, 0
      %p436 = por %p434, %p435
      %s438 = sadd.s32 %s437, 1
      %p441 = scmp.eq.s32.totalorder %s88, 1
      %p442 = scmp.ne.s32.totalorder %s437, %s439
      %p443 = scmp.eq.s32.totalorder %s88, 0
      %p444 = por %p442, %p443
      %p445 = scmp.ne.s32.totalorder %s437, %s439
      %p446 = scmp.eq.s32.totalorder %s93, 1
      %p447 = por %p445, %p446
      %p448 = scmp.ne.s32.totalorder %s439, %s440
      %p449 = scmp.eq.s32.totalorder %s93, 0
      %p450 = por %p448, %p449
      %p451 = scmp.ne.s32.totalorder %s439, %s440
      %p452 = scmp.eq.s32.totalorder %s94, 1
      %p453 = por %p451, %p452
      %p455 = scmp.ne.s32.totalorder %s440, %s454
      %p456 = scmp.eq.s32.totalorder %s94, 0
      %p457 = por %p455, %p456
      %s459 = sadd.s32 %s458, 1
      %p462 = scmp.eq.s32.totalorder %s88, 1
      %p463 = scmp.ne.s32.totalorder %s458, %s460
      %p464 = scmp.eq.s32.totalorder %s88, 0
      %p465 = por %p463, %p464
      %p466 = scmp.ne.s32.totalorder %s458, %s460
      %p467 = scmp.eq.s32.totalorder %s93, 1
      %p468 = por %p466, %p467
      %p469 = scmp.ne.s32.totalorder %s460, %s461
      %p470 = scmp.eq.s32.totalorder %s93, 0
      %p471 = por %p469, %p470
      %p472 = scmp.ne.s32.totalorder %s460, %s461
      %p473 = scmp.eq.s32.totalorder %s94, 1
      %p474 = por %p472, %p473
      %p476 = scmp.ne.s32.totalorder %s461, %s475
      %p477 = scmp.eq.s32.totalorder %s94, 0
      %p478 = por %p476, %p477
      %s480 = sadd.s32 %s479, 1
      %p483 = scmp.eq.s32.totalorder %s88, 1
      %p484 = scmp.ne.s32.totalorder %s479, %s481
      %p485 = scmp.eq.s32.totalorder %s88, 0
      %p486 = por %p484, %p485
      %p487 = scmp.ne.s32.totalorder %s479, %s481
      %p488 = scmp.eq.s32.totalorder %s93, 1
      %p489 = por %p487, %p488
      %p490 = scmp.ne.s32.totalorder %s481, %s482
      %p491 = scmp.eq.s32.totalorder %s93, 0
      %p492 = por %p490, %p491
      %p493 = scmp.ne.s32.totalorder %s481, %s482
      %p494 = scmp.eq.s32.totalorder %s94, 1
      %p495 = por %p493, %p494
      %p497 = scmp.ne.s32.totalorder %s482, %s496
      %p498 = scmp.eq.s32.totalorder %s94, 0
      %p499 = por %p497, %p498
      %s501 = sadd.s32 %s500, 1
      %p504 = scmp.eq.s32.totalorder %s88, 1
      %p505 = scmp.ne.s32.totalorder %s500, %s502
      %p506 = scmp.eq.s32.totalorder %s88, 0
      %p507 = por %p505, %p506
      %p508 = scmp.ne.s32.totalorder %s500, %s502
      %p509 = scmp.eq.s32.totalorder %s93, 1
      %p510 = por %p508, %p509
      %p511 = scmp.ne.s32.totalorder %s502, %s503
      %p512 = scmp.eq.s32.totalorder %s93, 0
      %p513 = por %p511, %p512
      %p514 = scmp.ne.s32.totalorder %s502, %s503
      %p515 = scmp.eq.s32.totalorder %s94, 1
      %p516 = por %p514, %p515
      %p518 = scmp.ne.s32.totalorder %s503, %s517
      %p519 = scmp.eq.s32.totalorder %s94, 0
      %p520 = por %p518, %p519
      %s522 = sadd.s32 %s521, 1
      %p525 = scmp.eq.s32.totalorder %s88, 1
      %p526 = scmp.ne.s32.totalorder %s521, %s523
      %p527 = scmp.eq.s32.totalorder %s88, 0
      %p528 = por %p526, %p527
      %p529 = scmp.ne.s32.totalorder %s521, %s523
      %p530 = scmp.eq.s32.totalorder %s93, 1
      %p531 = por %p529, %p530
      %p532 = scmp.ne.s32.totalorder %s523, %s524
      %p533 = scmp.eq.s32.totalorder %s93, 0
      %p534 = por %p532, %p533
      %p535 = scmp.ne.s32.totalorder %s523, %s524
      %p536 = scmp.eq.s32.totalorder %s94, 1
      %p537 = por %p535, %p536
      %p539 = scmp.ne.s32.totalorder %s524, %s538
      %p540 = scmp.eq.s32.totalorder %s94, 0
      %p541 = por %p539, %p540
      %s543 = sadd.s32 %s542, 1
      %p546 = scmp.eq.s32.totalorder %s88, 1
      %p547 = scmp.ne.s32.totalorder %s542, %s544
      %p548 = scmp.eq.s32.totalorder %s88, 0
      %p549 = por %p547, %p548
      %p550 = scmp.ne.s32.totalorder %s542, %s544
      %p551 = scmp.eq.s32.totalorder %s93, 1
      %p552 = por %p550, %p551
      %p553 = scmp.ne.s32.totalorder %s544, %s545
      %p554 = scmp.eq.s32.totalorder %s93, 0
      %p555 = por %p553, %p554
      %p556 = scmp.ne.s32.totalorder %s544, %s545
      %p557 = scmp.eq.s32.totalorder %s94, 1
      %p558 = por %p556, %p557
      %p560 = scmp.ne.s32.totalorder %s545, %s559
      %p561 = scmp.eq.s32.totalorder %s94, 0
      %p562 = por %p560, %p561
      %s564 = sadd.s32 %s563, 1
      %p567 = scmp.eq.s32.totalorder %s88, 1
      %p568 = scmp.ne.s32.totalorder %s563, %s565
      %p569 = scmp.eq.s32.totalorder %s88, 0
      %p570 = por %p568, %p569
      %p571 = scmp.ne.s32.totalorder %s563, %s565
      %p572 = scmp.eq.s32.totalorder %s93, 1
      %p573 = por %p571, %p572
      %p574 = scmp.ne.s32.totalorder %s565, %s566
      %p575 = scmp.eq.s32.totalorder %s93, 0
      %p576 = por %p574, %p575
      %p577 = scmp.ne.s32.totalorder %s565, %s566
      %p578 = scmp.eq.s32.totalorder %s94, 1
      %p579 = por %p577, %p578
      %p581 = scmp.ne.s32.totalorder %s566, %s580
      %p582 = scmp.eq.s32.totalorder %s94, 0
      %p583 = por %p581, %p582
      %s585 = sadd.s32 %s584, 1
      %p588 = scmp.eq.s32.totalorder %s88, 1
      %p589 = scmp.ne.s32.totalorder %s584, %s586
      %p590 = scmp.eq.s32.totalorder %s88, 0
      %p591 = por %p589, %p590
      %p592 = scmp.ne.s32.totalorder %s584, %s586
      %p593 = scmp.eq.s32.totalorder %s93, 1
      %p594 = por %p592, %p593
      %p595 = scmp.ne.s32.totalorder %s586, %s587
      %p596 = scmp.eq.s32.totalorder %s93, 0
      %p597 = por %p595, %p596
      %p598 = scmp.ne.s32.totalorder %s586, %s587
      %p599 = scmp.eq.s32.totalorder %s94, 1
      %p600 = por %p598, %p599
      %p602 = scmp.ne.s32.totalorder %s587, %s601
      %p603 = scmp.eq.s32.totalorder %s94, 0
      %p604 = por %p602, %p603
      %s606 = sadd.s32 %s605, 1
      %p609 = scmp.eq.s32.totalorder %s88, 1
      %p610 = scmp.ne.s32.totalorder %s605, %s607
      %p611 = scmp.eq.s32.totalorder %s88, 0
      %p612 = por %p610, %p611
      %p613 = scmp.ne.s32.totalorder %s605, %s607
      %p614 = scmp.eq.s32.totalorder %s93, 1
      %p615 = por %p613, %p614
      %p616 = scmp.ne.s32.totalorder %s607, %s608
      %p617 = scmp.eq.s32.totalorder %s93, 0
      %p618 = por %p616, %p617
      %p619 = scmp.ne.s32.totalorder %s607, %s608
      %p620 = scmp.eq.s32.totalorder %s94, 1
      %p621 = por %p619, %p620
      %p623 = scmp.ne.s32.totalorder %s608, %s622
      %p624 = scmp.eq.s32.totalorder %s94, 0
      %p625 = por %p623, %p624
      %s627 = sadd.s32 %s626, 1
      %p630 = scmp.eq.s32.totalorder %s88, 1
      %p631 = scmp.ne.s32.totalorder %s626, %s628
      %p632 = scmp.eq.s32.totalorder %s88, 0
      %p633 = por %p631, %p632
      %p634 = scmp.ne.s32.totalorder %s626, %s628
      %p635 = scmp.eq.s32.totalorder %s93, 1
      %p636 = por %p634, %p635
      %p637 = scmp.ne.s32.totalorder %s628, %s629
      %p638 = scmp.eq.s32.totalorder %s93, 0
      %p639 = por %p637, %p638
      %p640 = scmp.ne.s32.totalorder %s628, %s629
      %p641 = scmp.eq.s32.totalorder %s94, 1
      %p642 = por %p640, %p641
      %p644 = scmp.ne.s32.totalorder %s629, %s643
      %p645 = scmp.eq.s32.totalorder %s94, 0
      %p646 = por %p644, %p645
      %s648 = sadd.s32 %s647, 1
      %p651 = scmp.eq.s32.totalorder %s88, 1
      %p652 = scmp.ne.s32.totalorder %s647, %s649
      %p653 = scmp.eq.s32.totalorder %s88, 0
      %p654 = por %p652, %p653
      %p655 = scmp.ne.s32.totalorder %s647, %s649
      %p656 = scmp.eq.s32.totalorder %s93, 1
      %p657 = por %p655, %p656
      %p658 = scmp.ne.s32.totalorder %s649, %s650
      %p659 = scmp.eq.s32.totalorder %s93, 0
      %p660 = por %p658, %p659
      %p661 = scmp.ne.s32.totalorder %s649, %s650
      %p662 = scmp.eq.s32.totalorder %s94, 1
      %p663 = por %p661, %p662
      %p665 = scmp.ne.s32.totalorder %s650, %s664
      %p666 = scmp.eq.s32.totalorder %s94, 0
      %p667 = por %p665, %p666
      %s669 = sadd.s32 %s668, 1
      %p672 = scmp.eq.s32.totalorder %s88, 1
      %p673 = scmp.ne.s32.totalorder %s668, %s670
      %p674 = scmp.eq.s32.totalorder %s88, 0
      %p675 = por %p673, %p674
      %p676 = scmp.ne.s32.totalorder %s668, %s670
      %p677 = scmp.eq.s32.totalorder %s93, 1
      %p678 = por %p676, %p677
      %p679 = scmp.ne.s32.totalorder %s670, %s671
      %p680 = scmp.eq.s32.totalorder %s93, 0
      %p681 = por %p679, %p680
      %p682 = scmp.ne.s32.totalorder %s670, %s671
      %p683 = scmp.eq.s32.totalorder %s94, 1
      %p684 = por %p682, %p683
      %p686 = scmp.ne.s32.totalorder %s671, %s685
      %p687 = scmp.eq.s32.totalorder %s94, 0
      %p688 = por %p686, %p687
      %s690 = sadd.s32 %s689, 1
      %p693 = scmp.eq.s32.totalorder %s88, 1
      %p694 = scmp.ne.s32.totalorder %s689, %s691
      %p695 = scmp.eq.s32.totalorder %s88, 0
      %p696 = por %p694, %p695
      %p697 = scmp.ne.s32.totalorder %s689, %s691
      %p698 = scmp.eq.s32.totalorder %s93, 1
      %p699 = por %p697, %p698
      %p700 = scmp.ne.s32.totalorder %s691, %s692
      %p701 = scmp.eq.s32.totalorder %s93, 0
      %p702 = por %p700, %p701
      %p703 = scmp.ne.s32.totalorder %s691, %s692
      %p704 = scmp.eq.s32.totalorder %s94, 1
      %p705 = por %p703, %p704
      %p707 = scmp.ne.s32.totalorder %s692, %s706
      %p708 = scmp.eq.s32.totalorder %s94, 0
      %p709 = por %p707, %p708
      %s711 = sadd.s32 %s710, 1
      %p714 = scmp.eq.s32.totalorder %s88, 1
      %p715 = scmp.ne.s32.totalorder %s710, %s712
      %p716 = scmp.eq.s32.totalorder %s88, 0
      %p717 = por %p715, %p716
      %p718 = scmp.ne.s32.totalorder %s710, %s712
      %p719 = scmp.eq.s32.totalorder %s93, 1
      %p720 = por %p718, %p719
      %p721 = scmp.ne.s32.totalorder %s712, %s713
      %p722 = scmp.eq.s32.totalorder %s93, 0
      %p723 = por %p721, %p722
      %p724 = scmp.ne.s32.totalorder %s712, %s713
      %p725 = scmp.eq.s32.totalorder %s94, 1
      %p726 = por %p724, %p725
      %p728 = scmp.ne.s32.totalorder %s713, %s727
      %p729 = scmp.eq.s32.totalorder %s94, 0
      %p730 = por %p728, %p729
      %s732 = sadd.s32 %s731, 1
      %p735 = scmp.eq.s32.totalorder %s88, 1
      %p736 = scmp.ne.s32.totalorder %s731, %s733
      %p737 = scmp.eq.s32.totalorder %s88, 0
      %p738 = por %p736, %p737
      %p739 = scmp.ne.s32.totalorder %s731, %s733
      %p740 = scmp.eq.s32.totalorder %s93, 1
      %p741 = por %p739, %p740
      %p742 = scmp.ne.s32.totalorder %s733, %s734
      %p743 = scmp.eq.s32.totalorder %s93, 0
      %p744 = por %p742, %p743
      %p745 = scmp.ne.s32.totalorder %s733, %s734
      %p746 = scmp.eq.s32.totalorder %s94, 1
      %p747 = por %p745, %p746
      %p749 = scmp.ne.s32.totalorder %s734, %s748
      %p750 = scmp.eq.s32.totalorder %s94, 0
      %p751 = por %p749, %p750
      %s753 = sadd.s32 %s752, 1
      %p756 = scmp.eq.s32.totalorder %s88, 1
      %p757 = scmp.ne.s32.totalorder %s752, %s754
      %p758 = scmp.eq.s32.totalorder %s88, 0
      %p759 = por %p757, %p758
      %p760 = scmp.ne.s32.totalorder %s752, %s754
      %p761 = scmp.eq.s32.totalorder %s93, 1
      %p762 = por %p760, %p761
      %p763 = scmp.ne.s32.totalorder %s754, %s755
      %p764 = scmp.eq.s32.totalorder %s93, 0
      %p765 = por %p763, %p764
      %p766 = scmp.ne.s32.totalorder %s754, %s755
      %p767 = scmp.eq.s32.totalorder %s94, 1
      %p768 = por %p766, %p767
      %p770 = scmp.ne.s32.totalorder %s755, %s769
      %p771 = scmp.eq.s32.totalorder %s94, 0
      %p772 = por %p770, %p771
      %s774 = sadd.s32 %s773, 1
      %p777 = scmp.eq.s32.totalorder %s88, 1
      %p778 = scmp.ne.s32.totalorder %s773, %s775
      %p779 = scmp.eq.s32.totalorder %s88, 0
      %p780 = por %p778, %p779
      %p781 = scmp.ne.s32.totalorder %s773, %s775
      %p782 = scmp.eq.s32.totalorder %s93, 1
      %p783 = por %p781, %p782
      %p784 = scmp.ne.s32.totalorder %s775, %s776
      %p785 = scmp.eq.s32.totalorder %s93, 0
      %p786 = por %p784, %p785
      %p787 = scmp.ne.s32.totalorder %s775, %s776
      %p788 = scmp.eq.s32.totalorder %s94, 1
      %p789 = por %p787, %p788
      %p791 = scmp.ne.s32.totalorder %s776, %s790
      %p792 = scmp.eq.s32.totalorder %s94, 0
      %p793 = por %p791, %p792
      %s795 = sadd.s32 %s794, 1
      %p798 = scmp.eq.s32.totalorder %s88, 1
      %p799 = scmp.ne.s32.totalorder %s794, %s796
      %p800 = scmp.eq.s32.totalorder %s88, 0
      %p801 = por %p799, %p800
      %p802 = scmp.ne.s32.totalorder %s794, %s796
      %p803 = scmp.eq.s32.totalorder %s93, 1
      %p804 = por %p802, %p803
      %p805 = scmp.ne.s32.totalorder %s796, %s797
      %p806 = scmp.eq.s32.totalorder %s93, 0
      %p807 = por %p805, %p806
      %p808 = scmp.ne.s32.totalorder %s796, %s797
      %p809 = scmp.eq.s32.totalorder %s94, 1
      %p810 = por %p808, %p809
      %p812 = scmp.ne.s32.totalorder %s797, %s811
      %p813 = scmp.eq.s32.totalorder %s94, 0
      %p814 = por %p812, %p813
      %s816 = sadd.s32 %s815, 1
      %p819 = scmp.eq.s32.totalorder %s88, 1
      %p820 = scmp.ne.s32.totalorder %s815, %s817
      %p821 = scmp.eq.s32.totalorder %s88, 0
      %p822 = por %p820, %p821
      %p823 = scmp.ne.s32.totalorder %s815, %s817
      %p824 = scmp.eq.s32.totalorder %s93, 1
      %p825 = por %p823, %p824
      %p826 = scmp.ne.s32.totalorder %s817, %s818
      %p827 = scmp.eq.s32.totalorder %s93, 0
      %p828 = por %p826, %p827
      %p829 = scmp.ne.s32.totalorder %s817, %s818
      %p830 = scmp.eq.s32.totalorder %s94, 1
      %p831 = por %p829, %p830
      %p833 = scmp.ne.s32.totalorder %s818, %s832
      %p834 = scmp.eq.s32.totalorder %s94, 0
      %p835 = por %p833, %p834
      %s837 = sadd.s32 %s836, 1
      %p840 = scmp.eq.s32.totalorder %s88, 1
      %p841 = scmp.ne.s32.totalorder %s836, %s838
      %p842 = scmp.eq.s32.totalorder %s88, 0
      %p843 = por %p841, %p842
      %p844 = scmp.ne.s32.totalorder %s836, %s838
      %p845 = scmp.eq.s32.totalorder %s93, 1
      %p846 = por %p844, %p845
      %p847 = scmp.ne.s32.totalorder %s838, %s839
      %p848 = scmp.eq.s32.totalorder %s93, 0
      %p849 = por %p847, %p848
      %p850 = scmp.ne.s32.totalorder %s838, %s839
      %p851 = scmp.eq.s32.totalorder %s94, 1
      %p852 = por %p850, %p851
      %p854 = scmp.ne.s32.totalorder %s839, %s853
      %p855 = scmp.eq.s32.totalorder %s94, 0
      %p856 = por %p854, %p855
      %s857 = ssub.s32 %s88, %s95
      %p858 = scmp.eq.s32.totalorder %s857, 0
      %s860 = sadd.s32 %s859, 1
      %s861 = scalar_select %p858, %s859, %s860
      %p864 = pneg %p858
      %p865 = scmp.eq.s32.totalorder %s88, 1
      %p866 = por %p864, %p865
      %p867 = scmp.ne.s32.totalorder %s859, %s862
      %p868 = scmp.eq.s32.totalorder %s88, 0
      %p869 = por %p867, %p868
      %p870 = scmp.ne.s32.totalorder %s859, %s862
      %p871 = scmp.eq.s32.totalorder %s93, 1
      %p872 = por %p870, %p871
      %p873 = scmp.ne.s32.totalorder %s862, %s863
      %p874 = scmp.eq.s32.totalorder %s93, 0
      %p875 = por %p873, %p874
      %p876 = scmp.ne.s32.totalorder %s862, %s863
      %p877 = scmp.eq.s32.totalorder %s94, 1
      %p878 = por %p876, %p877
      %p880 = scmp.ne.s32.totalorder %s863, %s879
      %p881 = scmp.eq.s32.totalorder %s94, 0
      %p882 = por %p880, %p881
      %s883 = ssub.s32 %s88, %s95
      %p884 = scmp.eq.s32.totalorder %s883, 0
      %s886 = sadd.s32 %s885, 1
      %s887 = scalar_select %p884, %s885, %s886
      %p890 = pneg %p884
      %p891 = scmp.eq.s32.totalorder %s88, 1
      %p892 = por %p890, %p891
      %p893 = scmp.ne.s32.totalorder %s885, %s888
      %p894 = scmp.eq.s32.totalorder %s88, 0
      %p895 = por %p893, %p894
      %p896 = scmp.ne.s32.totalorder %s885, %s888
      %p897 = scmp.eq.s32.totalorder %s93, 1
      %p898 = por %p896, %p897
      %p899 = scmp.ne.s32.totalorder %s888, %s889
      %p900 = scmp.eq.s32.totalorder %s93, 0
      %p901 = por %p899, %p900
      %p902 = scmp.ne.s32.totalorder %s888, %s889
      %p903 = scmp.eq.s32.totalorder %s94, 1
      %p904 = por %p902, %p903
      %p906 = scmp.ne.s32.totalorder %s889, %s905
      %p907 = scmp.eq.s32.totalorder %s94, 0
      %p908 = por %p906, %p907
      %p909 = scmp.le.s32.totalorder 1, %s88
      %p910 = scmp.lt.s32.totalorder %s88, 3
      %p911 = pnand %p909, %p910
      %p912 = pneg %p911
      // Predicated region
      $region9: #{transformer_forward.1} parent=5 // pred_check
        _
      $region10: #{transformer_forward.1} parent=5 // pred_check_branch
        %914 = sbr.rel (%p911) target = $region12
      $region11: #{transformer_forward.1} parent=5 // pred_region
        %s915 = ssub.s32 %s88, 1
        // Predicated region
        $region13: #{transformer_forward.1} parent=11 // pred_check
          %p916 = pneg %p135
        $region14: #{transformer_forward.1} parent=11 // pred_check_branch
          %918 = sbr.rel (%p916) target = $region16
        $region15: #{transformer_forward.1} parent=11 // pred_region
          _
        $region16: #{transformer_forward.1} parent=11 // pred_fallthru
          _
        // Predicated region
        $region17: #{transformer_forward.1} parent=11 // pred_check
          %p919 = pneg %p156
        $region18: #{transformer_forward.1} parent=11 // pred_check_branch
          %921 = sbr.rel (%p919) target = $region20
        $region19: #{transformer_forward.1} parent=11 // pred_region
          _
        $region20: #{transformer_forward.1} parent=11 // pred_fallthru
          _
        // Predicated region
        $region21: #{transformer_forward.1} parent=11 // pred_check
          %p922 = pneg %p177
        $region22: #{transformer_forward.1} parent=11 // pred_check_branch
          %924 = sbr.rel (%p922) target = $region24
        $region23: #{transformer_forward.1} parent=11 // pred_region
          _
        $region24: #{transformer_forward.1} parent=11 // pred_fallthru
          _
        // Predicated region
        $region25: #{transformer_forward.1} parent=11 // pred_check
          %p925 = pneg %p198
        $region26: #{transformer_forward.1} parent=11 // pred_check_branch
          %927 = sbr.rel (%p925) target = $region28
        $region27: #{transformer_forward.1} parent=11 // pred_region
          _
        $region28: #{transformer_forward.1} parent=11 // pred_fallthru
          _
        // Predicated region
        $region29: #{transformer_forward.1} parent=11 // pred_check
          %p928 = pneg %p219
        $region30: #{transformer_forward.1} parent=11 // pred_check_branch
          %930 = sbr.rel (%p928) target = $region32
        $region31: #{transformer_forward.1} parent=11 // pred_region
          _
        $region32: #{transformer_forward.1} parent=11 // pred_fallthru
          _
        // Predicated region
        $region33: #{transformer_forward.1} parent=11 // pred_check
          %p931 = pneg %p240
        $region34: #{transformer_forward.1} parent=11 // pred_check_branch
          %933 = sbr.rel (%p931) target = $region36
        $region35: #{transformer_forward.1} parent=11 // pred_region
          _
        $region36: #{transformer_forward.1} parent=11 // pred_fallthru
          _
        // Predicated region
        $region37: #{transformer_forward.1} parent=11 // pred_check
          %p934 = pneg %p261
        $region38: #{transformer_forward.1} parent=11 // pred_check_branch
          %936 = sbr.rel (%p934) target = $region40
        $region39: #{transformer_forward.1} parent=11 // pred_region
          _
        $region40: #{transformer_forward.1} parent=11 // pred_fallthru
          _
        // Predicated region
        $region41: #{transformer_forward.1} parent=11 // pred_check
          %p937 = pneg %p282
        $region42: #{transformer_forward.1} parent=11 // pred_check_branch
          %939 = sbr.rel (%p937) target = $region44
        $region43: #{transformer_forward.1} parent=11 // pred_region
          _
        $region44: #{transformer_forward.1} parent=11 // pred_fallthru
          _
        // Predicated region
        $region45: #{transformer_forward.1} parent=11 // pred_check
          %p940 = pneg %p303
        $region46: #{transformer_forward.1} parent=11 // pred_check_branch
          %942 = sbr.rel (%p940) target = $region48
        $region47: #{transformer_forward.1} parent=11 // pred_region
          _
        $region48: #{transformer_forward.1} parent=11 // pred_fallthru
          _
        // Predicated region
        $region49: #{transformer_forward.1} parent=11 // pred_check
          %p943 = pneg %p324
        $region50: #{transformer_forward.1} parent=11 // pred_check_branch
          %945 = sbr.rel (%p943) target = $region52
        $region51: #{transformer_forward.1} parent=11 // pred_region
          _
        $region52: #{transformer_forward.1} parent=11 // pred_fallthru
          _
        // Predicated region
        $region53: #{transformer_forward.1} parent=11 // pred_check
          %p946 = pneg %p345
        $region54: #{transformer_forward.1} parent=11 // pred_check_branch
          %948 = sbr.rel (%p946) target = $region56
        $region55: #{transformer_forward.1} parent=11 // pred_region
          _
        $region56: #{transformer_forward.1} parent=11 // pred_fallthru
          _
        // Predicated region
        $region57: #{transformer_forward.1} parent=11 // pred_check
          %p949 = pneg %p366
        $region58: #{transformer_forward.1} parent=11 // pred_check_branch
          %951 = sbr.rel (%p949) target = $region60
        $region59: #{transformer_forward.1} parent=11 // pred_region
          _
        $region60: #{transformer_forward.1} parent=11 // pred_fallthru
          _
        // Predicated region
        $region61: #{transformer_forward.1} parent=11 // pred_check
          %p952 = pneg %p387
        $region62: #{transformer_forward.1} parent=11 // pred_check_branch
          %954 = sbr.rel (%p952) target = $region64
        $region63: #{transformer_forward.1} parent=11 // pred_region
          _
        $region64: #{transformer_forward.1} parent=11 // pred_fallthru
          _
        // Predicated region
        $region65: #{transformer_forward.1} parent=11 // pred_check
          %p955 = pneg %p408
        $region66: #{transformer_forward.1} parent=11 // pred_check_branch
          %957 = sbr.rel (%p955) target = $region68
        $region67: #{transformer_forward.1} parent=11 // pred_region
          _
        $region68: #{transformer_forward.1} parent=11 // pred_fallthru
          _
        // Predicated region
        $region69: #{transformer_forward.1} parent=11 // pred_check
          %p958 = pneg %p429
        $region70: #{transformer_forward.1} parent=11 // pred_check_branch
          %960 = sbr.rel (%p958) target = $region72
        $region71: #{transformer_forward.1} parent=11 // pred_region
          _
        $region72: #{transformer_forward.1} parent=11 // pred_fallthru
          _
        // Predicated region
        $region73: #{transformer_forward.1} parent=11 // pred_check
          %p961 = pneg %p450
        $region74: #{transformer_forward.1} parent=11 // pred_check_branch
          %963 = sbr.rel (%p961) target = $region76
        $region75: #{transformer_forward.1} parent=11 // pred_region
          _
        $region76: #{transformer_forward.1} parent=11 // pred_fallthru
          _
        // Predicated region
        $region77: #{transformer_forward.1} parent=11 // pred_check
          %p964 = pneg %p471
        $region78: #{transformer_forward.1} parent=11 // pred_check_branch
          %966 = sbr.rel (%p964) target = $region80
        $region79: #{transformer_forward.1} parent=11 // pred_region
          _
        $region80: #{transformer_forward.1} parent=11 // pred_fallthru
          _
        // Predicated region
        $region81: #{transformer_forward.1} parent=11 // pred_check
          %p967 = pneg %p492
        $region82: #{transformer_forward.1} parent=11 // pred_check_branch
          %969 = sbr.rel (%p967) target = $region84
        $region83: #{transformer_forward.1} parent=11 // pred_region
          _
        $region84: #{transformer_forward.1} parent=11 // pred_fallthru
          _
        // Predicated region
        $region85: #{transformer_forward.1} parent=11 // pred_check
          %p970 = pneg %p513
        $region86: #{transformer_forward.1} parent=11 // pred_check_branch
          %972 = sbr.rel (%p970) target = $region88
        $region87: #{transformer_forward.1} parent=11 // pred_region
          _
        $region88: #{transformer_forward.1} parent=11 // pred_fallthru
          _
        // Predicated region
        $region89: #{transformer_forward.1} parent=11 // pred_check
          %p973 = pneg %p534
        $region90: #{transformer_forward.1} parent=11 // pred_check_branch
          %975 = sbr.rel (%p973) target = $region92
        $region91: #{transformer_forward.1} parent=11 // pred_region
          _
        $region92: #{transformer_forward.1} parent=11 // pred_fallthru
          _
        // Predicated region
        $region93: #{transformer_forward.1} parent=11 // pred_check
          %p976 = pneg %p555
        $region94: #{transformer_forward.1} parent=11 // pred_check_branch
          %978 = sbr.rel (%p976) target = $region96
        $region95: #{transformer_forward.1} parent=11 // pred_region
          _
        $region96: #{transformer_forward.1} parent=11 // pred_fallthru
          _
        // Predicated region
        $region97: #{transformer_forward.1} parent=11 // pred_check
          %p979 = pneg %p576
        $region98: #{transformer_forward.1} parent=11 // pred_check_branch
          %981 = sbr.rel (%p979) target = $region100
        $region99: #{transformer_forward.1} parent=11 // pred_region
          _
        $region100: #{transformer_forward.1} parent=11 // pred_fallthru
          _
        // Predicated region
        $region101: #{transformer_forward.1} parent=11 // pred_check
          %p982 = pneg %p597
        $region102: #{transformer_forward.1} parent=11 // pred_check_branch
          %984 = sbr.rel (%p982) target = $region104
        $region103: #{transformer_forward.1} parent=11 // pred_region
          _
        $region104: #{transformer_forward.1} parent=11 // pred_fallthru
          _
        // Predicated region
        $region105: #{transformer_forward.1} parent=11 // pred_check
          %p985 = pneg %p618
        $region106: #{transformer_forward.1} parent=11 // pred_check_branch
          %987 = sbr.rel (%p985) target = $region108
        $region107: #{transformer_forward.1} parent=11 // pred_region
          _
        $region108: #{transformer_forward.1} parent=11 // pred_fallthru
          _
        // Predicated region
        $region109: #{transformer_forward.1} parent=11 // pred_check
          %p988 = pneg %p639
        $region110: #{transformer_forward.1} parent=11 // pred_check_branch
          %990 = sbr.rel (%p988) target = $region112
        $region111: #{transformer_forward.1} parent=11 // pred_region
          _
        $region112: #{transformer_forward.1} parent=11 // pred_fallthru
          _
        // Predicated region
        $region113: #{transformer_forward.1} parent=11 // pred_check
          %p991 = pneg %p660
        $region114: #{transformer_forward.1} parent=11 // pred_check_branch
          %993 = sbr.rel (%p991) target = $region116
        $region115: #{transformer_forward.1} parent=11 // pred_region
          _
        $region116: #{transformer_forward.1} parent=11 // pred_fallthru
          _
        // Predicated region
        $region117: #{transformer_forward.1} parent=11 // pred_check
          %p994 = pneg %p681
        $region118: #{transformer_forward.1} parent=11 // pred_check_branch
          %996 = sbr.rel (%p994) target = $region120
        $region119: #{transformer_forward.1} parent=11 // pred_region
          _
        $region120: #{transformer_forward.1} parent=11 // pred_fallthru
          _
        // Predicated region
        $region121: #{transformer_forward.1} parent=11 // pred_check
          %p997 = pneg %p702
        $region122: #{transformer_forward.1} parent=11 // pred_check_branch
          %999 = sbr.rel (%p997) target = $region124
        $region123: #{transformer_forward.1} parent=11 // pred_region
          _
        $region124: #{transformer_forward.1} parent=11 // pred_fallthru
          _
        // Predicated region
        $region125: #{transformer_forward.1} parent=11 // pred_check
          %p1000 = pneg %p723
        $region126: #{transformer_forward.1} parent=11 // pred_check_branch
          %1002 = sbr.rel (%p1000) target = $region128
        $region127: #{transformer_forward.1} parent=11 // pred_region
          _
        $region128: #{transformer_forward.1} parent=11 // pred_fallthru
          _
        // Predicated region
        $region129: #{transformer_forward.1} parent=11 // pred_check
          %p1003 = pneg %p744
        $region130: #{transformer_forward.1} parent=11 // pred_check_branch
          %1005 = sbr.rel (%p1003) target = $region132
        $region131: #{transformer_forward.1} parent=11 // pred_region
          _
        $region132: #{transformer_forward.1} parent=11 // pred_fallthru
          _
        // Predicated region
        $region133: #{transformer_forward.1} parent=11 // pred_check
          %p1006 = pneg %p765
        $region134: #{transformer_forward.1} parent=11 // pred_check_branch
          %1008 = sbr.rel (%p1006) target = $region136
        $region135: #{transformer_forward.1} parent=11 // pred_region
          _
        $region136: #{transformer_forward.1} parent=11 // pred_fallthru
          _
        // Predicated region
        $region137: #{transformer_forward.1} parent=11 // pred_check
          %p1009 = pneg %p786
        $region138: #{transformer_forward.1} parent=11 // pred_check_branch
          %1011 = sbr.rel (%p1009) target = $region140
        $region139: #{transformer_forward.1} parent=11 // pred_region
          _
        $region140: #{transformer_forward.1} parent=11 // pred_fallthru
          _
        // Predicated region
        $region141: #{transformer_forward.1} parent=11 // pred_check
          %p1012 = pneg %p807
        $region142: #{transformer_forward.1} parent=11 // pred_check_branch
          %1014 = sbr.rel (%p1012) target = $region144
        $region143: #{transformer_forward.1} parent=11 // pred_region
          _
        $region144: #{transformer_forward.1} parent=11 // pred_fallthru
          _
        // Predicated region
        $region145: #{transformer_forward.1} parent=11 // pred_check
          %p1015 = pneg %p828
        $region146: #{transformer_forward.1} parent=11 // pred_check_branch
          %1017 = sbr.rel (%p1015) target = $region148
        $region147: #{transformer_forward.1} parent=11 // pred_region
          _
        $region148: #{transformer_forward.1} parent=11 // pred_fallthru
          _
        // Predicated region
        $region149: #{transformer_forward.1} parent=11 // pred_check
          %p1018 = pneg %p849
        $region150: #{transformer_forward.1} parent=11 // pred_check_branch
          %1020 = sbr.rel (%p1018) target = $region152
        $region151: #{transformer_forward.1} parent=11 // pred_region
          _
        $region152: #{transformer_forward.1} parent=11 // pred_fallthru
          _
      $region12: #{transformer_forward.1} parent=5 // pred_fallthru
        _
      %p1021 = scmp.lt.s32.totalorder %s88, 2
      // Predicated region
      $region153: #{transformer_forward.1} parent=5 // pred_check
        %p1022 = pneg %p1021
      $region154: #{transformer_forward.1} parent=5 // pred_check_branch
        %1024 = sbr.rel (%p1022) target = $region156
      $region155: #{transformer_forward.1} parent=5 // pred_region
        // Predicated region
        $region157: #{transformer_forward.1} parent=155 // pred_check
          %p1025 = pneg %p108
        $region158: #{transformer_forward.1} parent=155 // pred_check_branch
          %1027 = sbr.rel (%p1025) target = $region160
        $region159: #{transformer_forward.1} parent=155 // pred_region
          %p1028 = scmp.lt.s32.totalorder %s88, 1
          %s1029 = scalar_select %p1028, %s88, 1
          %s1030 = smul.addr %s1029, 2
          %s1031 = smul.addr %s1030, 4
          %s1032 = scalar_lea.vmem %s1, %s1031
        $region160: #{transformer_forward.1} parent=155 // pred_fallthru
          _
      $region156: #{transformer_forward.1} parent=5 // pred_fallthru
        _
      %p1033 = scmp.le.s32.totalorder 1, %s88
      %p1034 = scmp.lt.s32.totalorder %s88, 3
      %p1035 = pnand %p1033, %p1034
      %p1036 = pneg %p1035
      // Predicated region
      $region161: #{transformer_forward.1} parent=5 // pred_check
        _
      $region162: #{transformer_forward.1} parent=5 // pred_check_branch
        %1038 = sbr.rel (%p1035) target = $region164
      $region163: #{transformer_forward.1} parent=5 // pred_region
        %s1039 = ssub.s32 %s88, 1
        %p1040 = scmp.lt.s32.totalorder %s93, 1
        %s1041 = scalar_select %p1040, %s93, 1
        %s1042 = smul.addr %s1041, 2
        %s1043 = smul.addr %s1042, 4
        %s1044 = scalar_lea.vmem %s1, %s1043
        %p1045 = pneg %p114
        %p1046 = pneg %p111
        %p1047 = pneg %p135
        %p1048 = pneg %p132
        %p1049 = pneg %p156
        %p1050 = pneg %p153
        %p1051 = pneg %p177
        %p1052 = pneg %p174
        %p1053 = pneg %p198
        %p1054 = pneg %p195
        %p1055 = pneg %p219
        %p1056 = pneg %p216
        %p1057 = pneg %p240
        %p1058 = pneg %p237
        %p1059 = pneg %p261
        %p1060 = pneg %p258
        %p1061 = pneg %p282
        %p1062 = pneg %p279
        %p1063 = pneg %p303
        %p1064 = pneg %p300
        %p1065 = pneg %p324
        %p1066 = pneg %p321
        %p1067 = pneg %p345
        %p1068 = pneg %p342
        %p1069 = pneg %p366
        %p1070 = pneg %p363
        %p1071 = pneg %p387
        %p1072 = pneg %p384
        %p1073 = pneg %p408
        %p1074 = pneg %p405
        %p1075 = pneg %p429
        %p1076 = pneg %p426
        %p1077 = pneg %p450
        %p1078 = pneg %p447
        %p1079 = pneg %p471
        %p1080 = pneg %p468
        %p1081 = pneg %p492
        %p1082 = pneg %p489
        %p1083 = pneg %p513
        %p1084 = pneg %p510
        %p1085 = pneg %p534
        %p1086 = pneg %p531
        %p1087 = pneg %p555
        %p1088 = pneg %p552
        %p1089 = pneg %p576
        %p1090 = pneg %p573
        %p1091 = pneg %p597
        %p1092 = pneg %p594
        %p1093 = pneg %p618
        %p1094 = pneg %p615
        %p1095 = pneg %p639
        %p1096 = pneg %p636
        %p1097 = pneg %p660
        %p1098 = pneg %p657
        %p1099 = pneg %p681
        %p1100 = pneg %p678
        %p1101 = pneg %p702
        %p1102 = pneg %p699
        %p1103 = pneg %p723
        %p1104 = pneg %p720
        %p1105 = pneg %p744
        %p1106 = pneg %p741
        %p1107 = pneg %p765
        %p1108 = pneg %p762
        %p1109 = pneg %p786
        %p1110 = pneg %p783
        %p1111 = pneg %p807
        %p1112 = pneg %p804
        %p1113 = pneg %p828
        %p1114 = pneg %p825
        %p1115 = pneg %p849
        %p1116 = pneg %p846
        %p1117 = pneg %p875
        %p1118 = pneg %p872
        %s1119 = sand.u32 %s862, 1
        %s1120 = scalar_lea.sflag [#allocation3], %s1119
        %s1121 = sand.u32 %s862, 1
        %s1122 = smul.addr %s1121, 4
        %s1123 = scalar_lea.vmem [#allocation2], %s1122
        %p1124 = pneg %p901
        %p1125 = pneg %p898
        %s1126 = sand.u32 %s888, 1
        %s1127 = scalar_lea.sflag [#allocation5], %s1126
        %s1128 = sand.u32 %s888, 1
        %s1129 = smul.addr %s1128, 16
        %s1130 = scalar_lea.vmem [#allocation4], %s1129
        %p1131 = scmp.lt.s32.totalorder %s93, 1
        %s1132 = scalar_select %p1131, %s93, 1
        %s1133 = smul.addr %s1132, 2
        %s1134 = smul.addr %s1133, 4
        %s1135 = scalar_lea.vmem %s1, %s1134
        %v1136 = vld [vmem:[%s1135] sm:$0xff]
        %v1137 = vld [vmem:[%s3] sm:$0xff]
        %v1138 = vld [vmem:[%s3 + $0x8] sm:$0xff]
        %v1139 = vld [vmem:[%s3 + $0x10] sm:$0xff]
        %v1140 = vld [vmem:[%s3 + $0x18] sm:$0xff]
        %v1141 = vld [vmem:[%s3 + $0x20] sm:$0xff]
        %v1142 = vld [vmem:[%s3 + $0x28] sm:$0xff]
        %v1143 = vld [vmem:[%s3 + $0x30] sm:$0xff]
        %v1144 = vld [vmem:[%s3 + $0x38] sm:$0xff]
        %v1145 = vld [vmem:[%s3 + $0x40] sm:$0xff]
        %v1146 = vld [vmem:[%s3 + $0x48] sm:$0xff]
        %v1147 = vld [vmem:[%s3 + $0x50] sm:$0xff]
        %v1148 = vld [vmem:[%s3 + $0x58] sm:$0xff]
        %v1149 = vld [vmem:[%s3 + $0x60] sm:$0xff]
        %v1150 = vld [vmem:[%s3 + $0x68] sm:$0xff]
        %v1151 = vld [vmem:[%s3 + $0x70] sm:$0xff]
        %v1152 = vld [vmem:[%s3 + $0x78] sm:$0xff]
        %v1153 = vld [vmem:[%s3 + $0x80] sm:$0xff]
        %v1154 = vld [vmem:[%s3 + $0x88] sm:$0xff]
        %v1155 = vld [vmem:[%s3 + $0x90] sm:$0xff]
        %v1156 = vld [vmem:[%s3 + $0x98] sm:$0xff]
        %v1157 = vld [vmem:[%s3 + $0xa0] sm:$0xff]
        %v1158 = vld [vmem:[%s3 + $0xa8] sm:$0xff]
        %v1159 = vld [vmem:[%s3 + $0xb0] sm:$0xff]
        %v1160 = vld [vmem:[%s3 + $0xb8] sm:$0xff]
        %v1161 = vld [vmem:[%s3 + $0xc0] sm:$0xff]
        %v1162 = vld [vmem:[%s3 + $0xc8] sm:$0xff]
        %v1163 = vld [vmem:[%s3 + $0xd0] sm:$0xff]
        %v1164 = vld [vmem:[%s3 + $0xd8] sm:$0xff]
        %v1165 = vld [vmem:[%s3 + $0xe0] sm:$0xff]
        %v1166 = vld [vmem:[%s3 + $0xe8] sm:$0xff]
        %v1167 = vld [vmem:[%s3 + $0xf0] sm:$0xff]
        %v1168 = vld [vmem:[%s3 + $0xf8] sm:$0xff]
        %v1169 = vld [vmem:[%s5] sm:$0x1]
        %v1171 = vlaneseq
        %v1172 = vshrl.u32 %v1171, 7
        %v1173 = vsub.s32 0, %v1172
        %v1174 = vrot.slane %v1169, %v1173
        %v1177 = vcombine.high %v1136, %v1136
        %1179 = vmatprep.subr.mxu0 0.0
        %1180 = vmatpush1.msra.mxu0 %v1137
        %1181 = vmatprep.subr.mxu0 0.0
        %1182 = vmatpush1.msra.mxu0 %v1138
        %1183 = vmatprep.subr.mxu0 0.0
        %1184 = vmatpush1.msra.mxu0 %v1139
        %1185 = vmatprep.subr.mxu0 0.0
        %1186 = vmatpush1.msra.mxu0 %v1140
        %1187 = vmatprep.subr.mxu0 0.0
        %1188 = vmatpush1.msra.mxu0 %v1141
        %1189 = vmatprep.subr.mxu0 0.0
        %1190 = vmatpush1.msra.mxu0 %v1142
        %1191 = vmatprep.subr.mxu0 0.0
        %1192 = vmatpush1.msra.mxu0 %v1143
        %1193 = vmatprep.subr.mxu0 0.0
        %1194 = vmatpush1.msra.mxu0 %v1144
        %1195 = vmatprep.subr.mxu0 0.0
        %1196 = vmatpush1.msra.mxu0 %v1145
        %1197 = vmatprep.subr.mxu0 0.0
        %1198 = vmatpush1.msra.mxu0 %v1146
        %1199 = vmatprep.subr.mxu0 0.0
        %1200 = vmatpush1.msra.mxu0 %v1147
        %1201 = vmatprep.subr.mxu0 0.0
        %1202 = vmatpush1.msra.mxu0 %v1148
        %1203 = vmatprep.subr.mxu0 0.0
        %1204 = vmatpush1.msra.mxu0 %v1149
        %1205 = vmatprep.subr.mxu0 0.0
        %1206 = vmatpush1.msra.mxu0 %v1150
        %1207 = vmatprep.subr.mxu0 0.0
        %1208 = vmatpush1.msra.mxu0 %v1151
        %1209 = vmatprep.subr.mxu0 0.0
        %1210 = vmatpush1.msra.mxu0 %v1152
        %1211 = vmatprep.subr.mxu0 0.0
        %1212 = vmatpush1.msra.mxu0 %v1153
        %1213 = vmatprep.subr.mxu0 0.0
        %1214 = vmatpush1.msra.mxu0 %v1154
        %1215 = vmatprep.subr.mxu0 0.0
        %1216 = vmatpush1.msra.mxu0 %v1155
        %1217 = vmatprep.subr.mxu0 0.0
        %1218 = vmatpush1.msra.mxu0 %v1156
        %1219 = vmatprep.subr.mxu0 0.0
        %1220 = vmatpush1.msra.mxu0 %v1157
        %1221 = vmatprep.subr.mxu0 0.0
        %1222 = vmatpush1.msra.mxu0 %v1158
        %1223 = vmatprep.subr.mxu0 0.0
        %1224 = vmatpush1.msra.mxu0 %v1159
        %1225 = vmatprep.subr.mxu0 0.0
        %1226 = vmatpush1.msra.mxu0 %v1160
        %1227 = vmatprep.subr.mxu0 0.0
        %1228 = vmatpush1.msra.mxu0 %v1161
        %1229 = vmatprep.subr.mxu0 0.0
        %1230 = vmatpush1.msra.mxu0 %v1162
        %1231 = vmatprep.subr.mxu0 0.0
        %1232 = vmatpush1.msra.mxu0 %v1163
        %1233 = vmatprep.subr.mxu0 0.0
        %1234 = vmatpush1.msra.mxu0 %v1164
        %1235 = vmatprep.subr.mxu0 0.0
        %1236 = vmatpush1.msra.mxu0 %v1165
        %1237 = vmatprep.subr.mxu0 0.0
        %1238 = vmatpush1.msra.mxu0 %v1166
        %1239 = vmatprep.subr.mxu0 0.0
        %1240 = vmatpush1.msra.mxu0 %v1167
        %1241 = vmatprep.subr.mxu0 0.0
        %1242 = vmatpush1.msra.mxu0 %v1168
        %1243 = vmatprep.mubr.f32.mxu0 %v1177
        %1244 = vmatmul.mubr.f32.gmra.mrb[0].mxu0 %v1136
        %v1245 = vpop.f32.mrb[0].mxu0
        %v1246 = vadd.f32 %v1174, %v1245
        %v1247 = vpop.f32.mrb[0].mxu0
        %1248 = vdwg.mxu0
        %v1249 = vld [vmem:[%s7] sm:$0xf]
        %v1250 = vadd.f32 %v1246, %v1249
        %v1251 = vld [vmem:[%s9] sm:$0x1]
        %v1252 = vld [vmem:[%s11] sm:$0x1]
        %vm1253 = vcmask 257024
        %v1254 = vsel %vm1253, %v1250, 0.0
        %1255 = vadd.xlane.f32.xlu0 %v1254
        %v1256 = vpop.xlane.xlu0 %1255
        %v1257 = vrcp.pop 32.0
        %v1258 = vmul.f32 %v1256, %v1257
        %v1259 = vsub.f32 %v1250, %v1258
        %v1260 = vmul.f32 %v1259, %v1259
        %v1261 = vsel %vm1253, %v1260, 0.0
        %1262 = vadd.xlane.f32.xlu0 %v1261
        %v1263 = vpop.xlane.xlu0 %1262
        %v1264 = vmul.f32 %v1263, %v1257
        %v1265 = vadd.f32 %v1264, 1e-06
        %v1266 = vrsqrt.pop %v1265
        %v1267 = vmul.f32 %v1259, %v1266
        %v1269 = vlaneseq
        %v1270 = vshrl.u32 %v1269, 7
        %v1271 = vsub.s32 0, %v1270
        %v1272 = vrot.slane %v1251, %v1271
        %v1274 = vmul.f32 %v1267, %v1272
        %v1276 = vlaneseq
        %v1277 = vshrl.u32 %v1276, 7
        %v1278 = vsub.s32 0, %v1277
        %v1279 = vrot.slane %v1252, %v1278
        %v1281 = vadd.f32 %v1274, %v1279
        %v1282 = vld [vmem:[%s13] sm:$0xff]
        %v1283 = vld [vmem:[%s13 + $0x8] sm:$0xff]
        %v1284 = vld [vmem:[%s13 + $0x10] sm:$0xff]
        %v1285 = vld [vmem:[%s13 + $0x18] sm:$0xff]
        %v1286 = vld [vmem:[%s15] sm:$0x1]
        %v1288 = vlaneseq
        %v1289 = vshrl.u32 %v1288, 7
        %v1290 = vsub.s32 0, %v1289
        %v1291 = vrot.slane %v1286, %v1290
        %vm1293 = vcmask 261120
        %v1295 = vsel %vm1293, %v1281, 0
        %1297 = vmatprep.subr.mxu0 0.0
        %1298 = vmatpush1.msra.mxu0 %v1282
        %1299 = vmatprep.subr.mxu0 0.0
        %1300 = vmatpush1.msra.mxu0 %v1283
        %1301 = vmatprep.subr.mxu0 0.0
        %1302 = vmatpush1.msra.mxu0 %v1284
        %1303 = vmatprep.subr.mxu0 0.0
        %1304 = vmatpush1.msra.mxu0 %v1285
        %1305 = vmatprep.subr.mxu0 0.0
        %1306 = vmatpush1.msra.mxu0 0.0
        %1307 = vmatprep.subr.mxu0 0.0
        %1308 = vmatpush1.msra.mxu0 0.0
        %1309 = vmatprep.subr.mxu0 0.0
        %1310 = vmatpush1.msra.mxu0 0.0
        %1311 = vmatprep.subr.mxu0 0.0
        %1312 = vmatpush1.msra.mxu0 0.0
        %1313 = vmatprep.subr.mxu0 0.0
        %1314 = vmatpush1.msra.mxu0 0.0
        %1315 = vmatprep.subr.mxu0 0.0
        %1316 = vmatpush1.msra.mxu0 0.0
        %1317 = vmatprep.subr.mxu0 0.0
        %1318 = vmatpush1.msra.mxu0 0.0
        %1319 = vmatprep.subr.mxu0 0.0
        %1320 = vmatpush1.msra.mxu0 0.0
        %1321 = vmatprep.subr.mxu0 0.0
        %1322 = vmatpush1.msra.mxu0 0.0
        %1323 = vmatprep.subr.mxu0 0.0
        %1324 = vmatpush1.msra.mxu0 0.0
        %1325 = vmatprep.subr.mxu0 0.0
        %1326 = vmatpush1.msra.mxu0 0.0
        %1327 = vmatprep.subr.mxu0 0.0
        %1328 = vmatpush1.msra.mxu0 0.0
        %1329 = vmatprep.subr.mxu0 0.0
        %1330 = vmatpush1.msra.mxu0 0.0
        %1331 = vmatprep.subr.mxu0 0.0
        %1332 = vmatpush1.msra.mxu0 0.0
        %1333 = vmatprep.subr.mxu0 0.0
        %1334 = vmatpush1.msra.mxu0 0.0
        %1335 = vmatprep.subr.mxu0 0.0
        %1336 = vmatpush1.msra.mxu0 0.0
        %1337 = vmatprep.subr.mxu0 0.0
        %1338 = vmatpush1.msra.mxu0 0.0
        %1339 = vmatprep.subr.mxu0 0.0
        %1340 = vmatpush1.msra.mxu0 0.0
        %1341 = vmatprep.subr.mxu0 0.0
        %1342 = vmatpush1.msra.mxu0 0.0
        %1343 = vmatprep.subr.mxu0 0.0
        %1344 = vmatpush1.msra.mxu0 0.0
        %1345 = vmatprep.subr.mxu0 0.0
        %1346 = vmatpush1.msra.mxu0 0.0
        %1347 = vmatprep.subr.mxu0 0.0
        %1348 = vmatpush1.msra.mxu0 0.0
        %1349 = vmatprep.subr.mxu0 0.0
        %1350 = vmatpush1.msra.mxu0 0.0
        %1351 = vmatprep.subr.mxu0 0.0
        %1352 = vmatpush1.msra.mxu0 0.0
        %1353 = vmatprep.subr.mxu0 0.0
        %1354 = vmatpush1.msra.mxu0 0.0
        %1355 = vmatprep.subr.mxu0 0.0
        %1356 = vmatpush1.msra.mxu0 0.0
        %1357 = vmatprep.subr.mxu0 0.0
        %1358 = vmatpush1.msra.mxu0 0.0
        %1359 = vmatprep.subr.mxu0 0.0
        %1360 = vmatpush1.msra.mxu0 0.0
        %1361 = vmatprep.mubr.f32.mxu0 0.0
        %1362 = vmatmul.mubr.f32.gmra.mrb[0].mxu0 %v1295
        %v1363 = vpop.f32.mrb[0].mxu0
        %v1364 = vadd.f32 %v1291, %v1363
        %v1365 = vpop.f32.mrb[0].mxu0
        %1366 = vdwg.mxu0
        %v1367 = vld [vmem:[%s17] sm:$0xff]
        %v1368 = vld [vmem:[%s17 + $0x8] sm:$0xff]
        %v1369 = vld [vmem:[%s17 + $0x10] sm:$0xff]
        %v1370 = vld [vmem:[%s17 + $0x18] sm:$0xff]
        %v1371 = vld [vmem:[%s19] sm:$0x1]
        %1373 = vrot.lane.b32.xlu0 %v1364, 96
        %v1374 = vpop.permute.xlu0 %1373
        %vm1375 = vcmask 64512
        %v1376 = vsel %vm1375, %v1364, 0
        %v1378 = vsel %vm1375, %v1374, 0
        %1380 = vmatprep.subr.mxu0 0.0
        %1381 = vmatpush1.xpose.msra.mxu0 %v1378
        %1382 = vmatprep.subr.mxu0 0.0
        %1383 = vmatpush1.xpose.msra.mxu0 0.0
        %1384 = vmatprep.subr.mxu0 0.0
        %1385 = vmatpush1.xpose.msra.mxu0 0.0
        %1386 = vmatprep.subr.mxu0 0.0
        %1387 = vmatpush1.xpose.msra.mxu0 0.0
        %1388 = vmatprep.subr.mxu0 0.0
        %1389 = vmatpush1.xpose.msra.mxu0 0.0
        %1390 = vmatprep.subr.mxu0 0.0
        %1391 = vmatpush1.xpose.msra.mxu0 0.0
        %1392 = vmatprep.subr.mxu0 0.0
        %1393 = vmatpush1.xpose.msra.mxu0 0.0
        %1394 = vmatprep.subr.mxu0 0.0
        %1395 = vmatpush1.xpose.msra.mxu0 0.0
        %1396 = vmatprep.subr.mxu0 0.0
        %1397 = vmatpush1.xpose.msra.mxu0 0.0
        %1398 = vmatprep.subr.mxu0 0.0
        %1399 = vmatpush1.xpose.msra.mxu0 0.0
        %1400 = vmatprep.subr.mxu0 0.0
        %1401 = vmatpush1.xpose.msra.mxu0 0.0
        %1402 = vmatprep.subr.mxu0 0.0
        %1403 = vmatpush1.xpose.msra.mxu0 0.0
        %1404 = vmatprep.subr.mxu0 0.0
        %1405 = vmatpush1.xpose.msra.mxu0 0.0
        %1406 = vmatprep.subr.mxu0 0.0
        %1407 = vmatpush1.xpose.msra.mxu0 0.0
        %1408 = vmatprep.subr.mxu0 0.0
        %1409 = vmatpush1.xpose.msra.mxu0 0.0
        %1410 = vmatprep.subr.mxu0 0.0
        %1411 = vmatpush1.xpose.msra.mxu0 0.0
        %1412 = vmatprep.subr.mxu0 0.0
        %1413 = vmatpush1.xpose.msra.mxu0 0.0
        %1414 = vmatprep.subr.mxu0 0.0
        %1415 = vmatpush1.xpose.msra.mxu0 0.0
        %1416 = vmatprep.subr.mxu0 0.0
        %1417 = vmatpush1.xpose.msra.mxu0 0.0
        %1418 = vmatprep.subr.mxu0 0.0
        %1419 = vmatpush1.xpose.msra.mxu0 0.0
        %1420 = vmatprep.subr.mxu0 0.0
        %1421 = vmatpush1.xpose.msra.mxu0 0.0
        %1422 = vmatprep.subr.mxu0 0.0
        %1423 = vmatpush1.xpose.msra.mxu0 0.0
        %1424 = vmatprep.subr.mxu0 0.0
        %1425 = vmatpush1.xpose.msra.mxu0 0.0
        %1426 = vmatprep.subr.mxu0 0.0
        %1427 = vmatpush1.xpose.msra.mxu0 0.0
        %1428 = vmatprep.subr.mxu0 0.0
        %1429 = vmatpush1.xpose.msra.mxu0 0.0
        %1430 = vmatprep.subr.mxu0 0.0
        %1431 = vmatpush1.xpose.msra.mxu0 0.0
        %1432 = vmatprep.subr.mxu0 0.0
        %1433 = vmatpush1.xpose.msra.mxu0 0.0
        %1434 = vmatprep.subr.mxu0 0.0
        %1435 = vmatpush1.xpose.msra.mxu0 0.0
        %1436 = vmatprep.subr.mxu0 0.0
        %1437 = vmatpush1.xpose.msra.mxu0 0.0
        %1438 = vmatprep.subr.mxu0 0.0
        %1439 = vmatpush1.xpose.msra.mxu0 0.0
        %1440 = vmatprep.subr.mxu0 0.0
        %1441 = vmatpush1.xpose.msra.mxu0 0.0
        %1442 = vmatprep.subr.mxu0 0.0
        %1443 = vmatpush1.xpose.msra.mxu0 0.0
        %1444 = vmatprep.mubr.f32.mxu0 0.0
        %1445 = vmatmul.mubr.f32.gmra.mrb[0].mxu0 %v1376
        %v1446 = vpop.f32.mrb[0].mxu0
        %v1447 = vadd.f32 0.0, %v1446
        %v1448 = vpop.f32.mrb[0].mxu0
        %1449 = vdwg.mxu0
        %v1450 = vmul.f32 %v1447, 0.35355338
        %vm1451 = vcmask 27648
        %v1452 = vsel %vm1451, %v1450, -inf
        %1453 = vmax.xlane.f32.xlu0 %v1452
        %v1454 = vpop.xlane.xlu0 %1453
        %v1455 = vsub.f32 %v1450, %v1454
        %v1456 = vmul.f32 %v1455, 1.442695
        %v1457 = vpow.pop %v1456
        %v1458 = vsel %vm1451, %v1457, 0.0
        %1459 = vadd.xlane.f32.xlu0 %v1458
        %v1460 = vpop.xlane.xlu0 %1459
        %v1461 = vrcp.pop %v1460
        %v1462 = vmul.f32 %v1457, %v1461
        %1463 = vrot.lane.b32.xlu0 %v1364, 64
        %v1464 = vpop.permute.xlu0 %1463
        %vm1465 = vcmask 31744
        %v1467 = vsel %vm1465, %v1462, 0
        %vm1469 = vcmask 1043456
        %v1470 = vsel %vm1469, %v1464, 0
        %1472 = vmatprep.subr.mxu0 0.0
        %1473 = vmatpush1.msra.mxu0 %v1470
        %1474 = vmatprep.subr.mxu0 0.0
        %1475 = vmatpush1.msra.mxu0 0.0
        %1476 = vmatprep.subr.mxu0 0.0
        %1477 = vmatpush1.msra.mxu0 0.0
        %1478 = vmatprep.subr.mxu0 0.0
        %1479 = vmatpush1.msra.mxu0 0.0
        %1480 = vmatprep.subr.mxu0 0.0
        %1481 = vmatpush1.msra.mxu0 0.0
        %1482 = vmatprep.subr.mxu0 0.0
        %1483 = vmatpush1.msra.mxu0 0.0
        %1484 = vmatprep.subr.mxu0 0.0
        %1485 = vmatpush1.msra.mxu0 0.0
        %1486 = vmatprep.subr.mxu0 0.0
        %1487 = vmatpush1.msra.mxu0 0.0
        %1488 = vmatprep.subr.mxu0 0.0
        %1489 = vmatpush1.msra.mxu0 0.0
        %1490 = vmatprep.subr.mxu0 0.0
        %1491 = vmatpush1.msra.mxu0 0.0
        %1492 = vmatprep.subr.mxu0 0.0
        %1493 = vmatpush1.msra.mxu0 0.0
        %1494 = vmatprep.subr.mxu0 0.0
        %1495 = vmatpush1.msra.mxu0 0.0
        %1496 = vmatprep.subr.mxu0 0.0
        %1497 = vmatpush1.msra.mxu0 0.0
        %1498 = vmatprep.subr.mxu0 0.0
        %1499 = vmatpush1.msra.mxu0 0.0
        %1500 = vmatprep.subr.mxu0 0.0
        %1501 = vmatpush1.msra.mxu0 0.0
        %1502 = vmatprep.subr.mxu0 0.0
        %1503 = vmatpush1.msra.mxu0 0.0
        %1504 = vmatprep.subr.mxu0 0.0
        %1505 = vmatpush1.msra.mxu0 0.0
        %1506 = vmatprep.subr.mxu0 0.0
        %1507 = vmatpush1.msra.mxu0 0.0
        %1508 = vmatprep.subr.mxu0 0.0
        %1509 = vmatpush1.msra.mxu0 0.0
        %1510 = vmatprep.subr.mxu0 0.0
        %1511 = vmatpush1.msra.mxu0 0.0
        %1512 = vmatprep.subr.mxu0 0.0
        %1513 = vmatpush1.msra.mxu0 0.0
        %1514 = vmatprep.subr.mxu0 0.0
        %1515 = vmatpush1.msra.mxu0 0.0
        %1516 = vmatprep.subr.mxu0 0.0
        %1517 = vmatpush1.msra.mxu0 0.0
        %1518 = vmatprep.subr.mxu0 0.0
        %1519 = vmatpush1.msra.mxu0 0.0
        %1520 = vmatprep.subr.mxu0 0.0
        %1521 = vmatpush1.msra.mxu0 0.0
        %1522 = vmatprep.subr.mxu0 0.0
        %1523 = vmatpush1.msra.mxu0 0.0
        %1524 = vmatprep.subr.mxu0 0.0
        %1525 = vmatpush1.msra.mxu0 0.0
        %1526 = vmatprep.subr.mxu0 0.0
        %1527 = vmatpush1.msra.mxu0 0.0
        %1528 = vmatprep.subr.mxu0 0.0
        %1529 = vmatpush1.msra.mxu0 0.0
        %1530 = vmatprep.subr.mxu0 0.0
        %1531 = vmatpush1.msra.mxu0 0.0
        %1532 = vmatprep.subr.mxu0 0.0
        %1533 = vmatpush1.msra.mxu0 0.0
        %1534 = vmatprep.subr.mxu0 0.0
        %1535 = vmatpush1.msra.mxu0 0.0
        %1536 = vmatprep.mubr.f32.mxu0 0.0
        %1537 = vmatmul.mubr.f32.gmra.mrb[0].mxu0 %v1467
        %v1538 = vpop.f32.mrb[0].mxu0
        %v1539 = vadd.f32 0.0, %v1538
        %v1540 = vpop.f32.mrb[0].mxu0
        %1541 = vdwg.mxu0
        %v1543 = vsel %vm1375, %v1539, 0
        %1545 = vmatprep.subr.mxu0 0.0
        %1546 = vmatpush1.msra.mxu0 %v1367
        %1547 = vmatprep.subr.mxu0 0.0
        %1548 = vmatpush1.msra.mxu0 0.0
        %1549 = vmatprep.subr.mxu0 0.0
        %1550 = vmatpush1.msra.mxu0 0.0
        %1551 = vmatprep.subr.mxu0 0.0
        %1552 = vmatpush1.msra.mxu0 0.0
        %1553 = vmatprep.subr.mxu0 0.0
        %1554 = vmatpush1.msra.mxu0 0.0
        %1555 = vmatprep.subr.mxu0 0.0
        %1556 = vmatpush1.msra.mxu0 0.0
        %1557 = vmatprep.subr.mxu0 0.0
        %1558 = vmatpush1.msra.mxu0 0.0
        %1559 = vmatprep.subr.mxu0 0.0
        %1560 = vmatpush1.msra.mxu0 0.0
        %1561 = vmatprep.subr.mxu0 0.0
        %1562 = vmatpush1.msra.mxu0 0.0
        %1563 = vmatprep.subr.mxu0 0.0
        %1564 = vmatpush1.msra.mxu0 0.0
        %1565 = vmatprep.subr.mxu0 0.0
        %1566 = vmatpush1.msra.mxu0 0.0
        %1567 = vmatprep.subr.mxu0 0.0
        %1568 = vmatpush1.msra.mxu0 0.0
        %1569 = vmatprep.subr.mxu0 0.0
        %1570 = vmatpush1.msra.mxu0 0.0
        %1571 = vmatprep.subr.mxu0 0.0
        %1572 = vmatpush1.msra.mxu0 0.0
        %1573 = vmatprep.subr.mxu0 0.0
        %1574 = vmatpush1.msra.mxu0 0.0
        %1575 = vmatprep.subr.mxu0 0.0
        %1576 = vmatpush1.msra.mxu0 0.0
        %1577 = vmatprep.subr.mxu0 0.0
        %1578 = vmatpush1.msra.mxu0 0.0
        %1579 = vmatprep.subr.mxu0 0.0
        %1580 = vmatpush1.msra.mxu0 0.0
        %1581 = vmatprep.subr.mxu0 0.0
        %1582 = vmatpush1.msra.mxu0 0.0
        %1583 = vmatprep.subr.mxu0 0.0
        %1584 = vmatpush1.msra.mxu0 0.0
        %1585 = vmatprep.subr.mxu0 0.0
        %1586 = vmatpush1.msra.mxu0 0.0
        %1587 = vmatprep.subr.mxu0 0.0
        %1588 = vmatpush1.msra.mxu0 0.0
        %1589 = vmatprep.subr.mxu0 0.0
        %1590 = vmatpush1.msra.mxu0 0.0
        %1591 = vmatprep.subr.mxu0 0.0
        %1592 = vmatpush1.msra.mxu0 0.0
        %1593 = vmatprep.subr.mxu0 0.0
        %1594 = vmatpush1.msra.mxu0 0.0
        %1595 = vmatprep.subr.mxu0 0.0
        %1596 = vmatpush1.msra.mxu0 0.0
        %1597 = vmatprep.subr.mxu0 0.0
        %1598 = vmatpush1.msra.mxu0 0.0
        %1599 = vmatprep.subr.mxu0 0.0
        %1600 = vmatpush1.msra.mxu0 0.0
        %1601 = vmatprep.subr.mxu0 0.0
        %1602 = vmatpush1.msra.mxu0 0.0
        %1603 = vmatprep.subr.mxu0 0.0
        %1604 = vmatpush1.msra.mxu0 0.0
        %1605 = vmatprep.subr.mxu0 0.0
        %1606 = vmatpush1.msra.mxu0 0.0
        %1607 = vmatprep.subr.mxu0 0.0
        %1608 = vmatpush1.msra.mxu0 0.0
        %1609 = vmatprep.mubr.f32.mxu0 0.0
        %1610 = vmatmul.mubr.f32.gmra.mrb[0].mxu0 %v1543
        %v1611 = vpop.f32.mrb[0].mxu0
        %v1612 = vadd.f32 0.0, %v1611
        %v1613 = vpop.f32.mrb[0].mxu0
        %1614 = vdwg.mxu0
        %v1616 = vlaneseq
        %v1617 = vshrl.u32 %v1616, 7
        %v1618 = vsub.s32 0, %v1617
        %v1619 = vrot.slane %v1371, %v1618
        %v1621 = vadd.f32 %v1619, %v1612
        %1622 = vrot.lane.b32.xlu0 %v1364, 120
        %v1623 = vpop.permute.xlu0 %1622
        %1624 = vrot.lane.b32.xlu0 %v1364, 88
        %v1625 = vpop.permute.xlu0 %1624
        %v1626 = vsel %vm1375, %v1623, 0
        %v1628 = vsel %vm1375, %v1625, 0
        %1630 = vmatprep.subr.mxu0 0.0
        %1631 = vmatpush1.xpose.msra.mxu0 %v1628
        %1632 = vmatprep.subr.mxu0 0.0
        %1633 = vmatpush1.xpose.msra.mxu0 0.0
        %1634 = vmatprep.subr.mxu0 0.0
        %1635 = vmatpush1.xpose.msra.mxu0 0.0
        %1636 = vmatprep.subr.mxu0 0.0
        %1637 = vmatpush1.xpose.msra.mxu0 0.0
        %1638 = vmatprep.subr.mxu0 0.0
        %1639 = vmatpush1.xpose.msra.mxu0 0.0
        %1640 = vmatprep.subr.mxu0 0.0
        %1641 = vmatpush1.xpose.msra.mxu0 0.0
        %1642 = vmatprep.subr.mxu0 0.0
        %1643 = vmatpush1.xpose.msra.mxu0 0.0
        %1644 = vmatprep.subr.mxu0 0.0
        %1645 = vmatpush1.xpose.msra.mxu0 0.0
        %1646 = vmatprep.subr.mxu0 0.0
        %1647 = vmatpush1.xpose.msra.mxu0 0.0
        %1648 = vmatprep.subr.mxu0 0.0
        %1649 = vmatpush1.xpose.msra.mxu0 0.0
        %1650 = vmatprep.subr.mxu0 0.0
        %1651 = vmatpush1.xpose.msra.mxu0 0.0
        %1652 = vmatprep.subr.mxu0 0.0
        %1653 = vmatpush1.xpose.msra.mxu0 0.0
        %1654 = vmatprep.subr.mxu0 0.0
        %1655 = vmatpush1.xpose.msra.mxu0 0.0
        %1656 = vmatprep.subr.mxu0 0.0
        %1657 = vmatpush1.xpose.msra.mxu0 0.0
        %1658 = vmatprep.subr.mxu0 0.0
        %1659 = vmatpush1.xpose.msra.mxu0 0.0
        %1660 = vmatprep.subr.mxu0 0.0
        %1661 = vmatpush1.xpose.msra.mxu0 0.0
        %1662 = vmatprep.subr.mxu0 0.0
        %1663 = vmatpush1.xpose.msra.mxu0 0.0
        %1664 = vmatprep.subr.mxu0 0.0
        %1665 = vmatpush1.xpose.msra.mxu0 0.0
        %1666 = vmatprep.subr.mxu0 0.0
        %1667 = vmatpush1.xpose.msra.mxu0 0.0
        %1668 = vmatprep.subr.mxu0 0.0
        %1669 = vmatpush1.xpose.msra.mxu0 0.0
        %1670 = vmatprep.subr.mxu0 0.0
        %1671 = vmatpush1.xpose.msra.mxu0 0.0
        %1672 = vmatprep.subr.mxu0 0.0
        %1673 = vmatpush1.xpose.msra.mxu0 0.0
        %1674 = vmatprep.subr.mxu0 0.0
        %1675 = vmatpush1.xpose.msra.mxu0 0.0
        %1676 = vmatprep.subr.mxu0 0.0
        %1677 = vmatpush1.xpose.msra.mxu0 0.0
        %1678 = vmatprep.subr.mxu0 0.0
        %1679 = vmatpush1.xpose.msra.mxu0 0.0
        %1680 = vmatprep.subr.mxu0 0.0
        %1681 = vmatpush1.xpose.msra.mxu0 0.0
        %1682 = vmatprep.subr.mxu0 0.0
        %1683 = vmatpush1.xpose.msra.mxu0 0.0
        %1684 = vmatprep.subr.mxu0 0.0
        %1685 = vmatpush1.xpose.msra.mxu0 0.0
        %1686 = vmatprep.subr.mxu0 0.0
        %1687 = vmatpush1.xpose.msra.mxu0 0.0
        %1688 = vmatprep.subr.mxu0 0.0
        %1689 = vmatpush1.xpose.msra.mxu0 0.0
        %1690 = vmatprep.subr.mxu0 0.0
        %1691 = vmatpush1.xpose.msra.mxu0 0.0
        %1692 = vmatprep.subr.mxu0 0.0
        %1693 = vmatpush1.xpose.msra.mxu0 0.0
        %1694 = vmatprep.mubr.f32.mxu0 0.0
        %1695 = vmatmul.mubr.f32.gmra.mrb[0].mxu0 %v1626
        %v1696 = vpop.f32.mrb[0].mxu0
        %v1697 = vadd.f32 0.0, %v1696
        %v1698 = vpop.f32.mrb[0].mxu0
        %1699 = vdwg.mxu0
        %v1700 = vmul.f32 %v1697, 0.35355338
        %v1701 = vsel %vm1451, %v1700, -inf
        %1702 = vmax.xlane.f32.xlu0 %v1701
        %v1703 = vpop.xlane.xlu0 %1702
        %v1704 = vsub.f32 %v1700, %v1703
        %v1705 = vmul.f32 %v1704, 1.442695
        %v1706 = vpow.pop %v1705
        %v1707 = vsel %vm1451, %v1706, 0.0
        %1708 = vadd.xlane.f32.xlu0 %v1707
        %v1709 = vpop.xlane.xlu0 %1708
        %v1710 = vrcp.pop %v1709
        %v1711 = vmul.f32 %v1706, %v1710
        %1712 = vrot.lane.b32.xlu0 %v1364, 56
        %v1713 = vpop.permute.xlu0 %1712
        %v1715 = vsel %vm1465, %v1711, 0
        %v1717 = vsel %vm1469, %v1713, 0
        %1719 = vmatprep.subr.mxu0 0.0
        %1720 = vmatpush1.msra.mxu0 %v1717
        %1721 = vmatprep.subr.mxu0 0.0
        %1722 = vmatpush1.msra.mxu0 0.0
        %1723 = vmatprep.subr.mxu0 0.0
        %1724 = vmatpush1.msra.mxu0 0.0
        %1725 = vmatprep.subr.mxu0 0.0
        %1726 = vmatpush1.msra.mxu0 0.0
        %1727 = vmatprep.subr.mxu0 0.0
        %1728 = vmatpush1.msra.mxu0 0.0
        %1729 = vmatprep.subr.mxu0 0.0
        %1730 = vmatpush1.msra.mxu0 0.0
        %1731 = vmatprep.subr.mxu0 0.0
        %1732 = vmatpush1.msra.mxu0 0.0
        %1733 = vmatprep.subr.mxu0 0.0
        %1734 = vmatpush1.msra.mxu0 0.0
        %1735 = vmatprep.subr.mxu0 0.0
        %1736 = vmatpush1.msra.mxu0 0.0
        %1737 = vmatprep.subr.mxu0 0.0
        %1738 = vmatpush1.msra.mxu0 0.0
        %1739 = vmatprep.subr.mxu0 0.0
        %1740 = vmatpush1.msra.mxu0 0.0
        %1741 = vmatprep.subr.mxu0 0.0
        %1742 = vmatpush1.msra.mxu0 0.0
        %1743 = vmatprep.subr.mxu0 0.0
        %1744 = vmatpush1.msra.mxu0 0.0
        %1745 = vmatprep.subr.mxu0 0.0
        %1746 = vmatpush1.msra.mxu0 0.0
        %1747 = vmatprep.subr.mxu0 0.0
        %1748 = vmatpush1.msra.mxu0 0.0
        %1749 = vmatprep.subr.mxu0 0.0
        %1750 = vmatpush1.msra.mxu0 0.0
        %1751 = vmatprep.subr.mxu0 0.0
        %1752 = vmatpush1.msra.mxu0 0.0
        %1753 = vmatprep.subr.mxu0 0.0
        %1754 = vmatpush1.msra.mxu0 0.0
        %1755 = vmatprep.subr.mxu0 0.0
        %1756 = vmatpush1.msra.mxu0 0.0
        %1757 = vmatprep.subr.mxu0 0.0
        %1758 = vmatpush1.msra.mxu0 0.0
        %1759 = vmatprep.subr.mxu0 0.0
        %1760 = vmatpush1.msra.mxu0 0.0
        %1761 = vmatprep.subr.mxu0 0.0
        %1762 = vmatpush1.msra.mxu0 0.0
        %1763 = vmatprep.subr.mxu0 0.0
        %1764 = vmatpush1.msra.mxu0 0.0
        %1765 = vmatprep.subr.mxu0 0.0
        %1766 = vmatpush1.msra.mxu0 0.0
        %1767 = vmatprep.subr.mxu0 0.0
        %1768 = vmatpush1.msra.mxu0 0.0
        %1769 = vmatprep.subr.mxu0 0.0
        %1770 = vmatpush1.msra.mxu0 0.0
        %1771 = vmatprep.subr.mxu0 0.0
        %1772 = vmatpush1.msra.mxu0 0.0
        %1773 = vmatprep.subr.mxu0 0.0
        %1774 = vmatpush1.msra.mxu0 0.0
        %1775 = vmatprep.subr.mxu0 0.0
        %1776 = vmatpush1.msra.mxu0 0.0
        %1777 = vmatprep.subr.mxu0 0.0
        %1778 = vmatpush1.msra.mxu0 0.0
        %1779 = vmatprep.subr.mxu0 0.0
        %1780 = vmatpush1.msra.mxu0 0.0
        %1781 = vmatprep.subr.mxu0 0.0
        %1782 = vmatpush1.msra.mxu0 0.0
        %1783 = vmatprep.mubr.f32.mxu0 0.0
        %1784 = vmatmul.mubr.f32.gmra.mrb[0].mxu0 %v1715
        %v1785 = vpop.f32.mrb[0].mxu0
        %v1786 = vadd.f32 0.0, %v1785
        %v1787 = vpop.f32.mrb[0].mxu0
        %1788 = vdwg.mxu0
        %v1790 = vsel %vm1375, %v1786, 0
        %1792 = vmatprep.subr.mxu0 0.0
        %1793 = vmatpush1.msra.mxu0 %v1368
        %1794 = vmatprep.subr.mxu0 0.0
        %1795 = vmatpush1.msra.mxu0 0.0
        %1796 = vmatprep.subr.mxu0 0.0
        %1797 = vmatpush1.msra.mxu0 0.0
        %1798 = vmatprep.subr.mxu0 0.0
        %1799 = vmatpush1.msra.mxu0 0.0
        %1800 = vmatprep.subr.mxu0 0.0
        %1801 = vmatpush1.msra.mxu0 0.0
        %1802 = vmatprep.subr.mxu0 0.0
        %1803 = vmatpush1.msra.mxu0 0.0
        %1804 = vmatprep.subr.mxu0 0.0
        %1805 = vmatpush1.msra.mxu0 0.0
        %1806 = vmatprep.subr.mxu0 0.0
        %1807 = vmatpush1.msra.mxu0 0.0
        %1808 = vmatprep.subr.mxu0 0.0
        %1809 = vmatpush1.msra.mxu0 0.0
        %1810 = vmatprep.subr.mxu0 0.0
        %1811 = vmatpush1.msra.mxu0 0.0
        %1812 = vmatprep.subr.mxu0 0.0
        %1813 = vmatpush1.msra.mxu0 0.0
        %1814 = vmatprep.subr.mxu0 0.0
        %1815 = vmatpush1.msra.mxu0 0.0
        %1816 = vmatprep.subr.mxu0 0.0
        %1817 = vmatpush1.msra.mxu0 0.0
        %1818 = vmatprep.subr.mxu0 0.0
        %1819 = vmatpush1.msra.mxu0 0.0
        %1820 = vmatprep.subr.mxu0 0.0
        %1821 = vmatpush1.msra.mxu0 0.0
        %1822 = vmatprep.subr.mxu0 0.0
        %1823 = vmatpush1.msra.mxu0 0.0
        %1824 = vmatprep.subr.mxu0 0.0
        %1825 = vmatpush1.msra.mxu0 0.0
        %1826 = vmatprep.subr.mxu0 0.0
        %1827 = vmatpush1.msra.mxu0 0.0
        %1828 = vmatprep.subr.mxu0 0.0
        %1829 = vmatpush1.msra.mxu0 0.0
        %1830 = vmatprep.subr.mxu0 0.0
        %1831 = vmatpush1.msra.mxu0 0.0
        %1832 = vmatprep.subr.mxu0 0.0
        %1833 = vmatpush1.msra.mxu0 0.0
        %1834 = vmatprep.subr.mxu0 0.0
        %1835 = vmatpush1.msra.mxu0 0.0
        %1836 = vmatprep.subr.mxu0 0.0
        %1837 = vmatpush1.msra.mxu0 0.0
        %1838 = vmatprep.subr.mxu0 0.0
        %1839 = vmatpush1.msra.mxu0 0.0
        %1840 = vmatprep.subr.mxu0 0.0
        %1841 = vmatpush1.msra.mxu0 0.0
        %1842 = vmatprep.subr.mxu0 0.0
        %1843 = vmatpush1.msra.mxu0 0.0
        %1844 = vmatprep.subr.mxu0 0.0
        %1845 = vmatpush1.msra.mxu0 0.0
        %1846 = vmatprep.subr.mxu0 0.0
        %1847 = vmatpush1.msra.mxu0 0.0
        %1848 = vmatprep.subr.mxu0 0.0
        %1849 = vmatpush1.msra.mxu0 0.0
        %1850 = vmatprep.subr.mxu0 0.0
        %1851 = vmatpush1.msra.mxu0 0.0
        %1852 = vmatprep.subr.mxu0 0.0
        %1853 = vmatpush1.msra.mxu0 0.0
        %1854 = vmatprep.subr.mxu0 0.0
        %1855 = vmatpush1.msra.mxu0 0.0
        %1856 = vmatprep.mubr.f32.mxu0 0.0
        %1857 = vmatmul.mubr.f32.gmra.mrb[0].mxu0 %v1790
        %v1858 = vpop.f32.mrb[0].mxu0
        %v1859 = vadd.f32 0.0, %v1858
        %v1860 = vpop.f32.mrb[0].mxu0
        %1861 = vdwg.mxu0
        %v1862 = vadd.f32 %v1621, %v1859
        %1863 = vrot.lane.b32.xlu0 %v1364, 112
        %v1864 = vpop.permute.xlu0 %1863
        %1865 = vrot.lane.b32.xlu0 %v1364, 80
        %v1866 = vpop.permute.xlu0 %1865
        %v1867 = vsel %vm1375, %v1864, 0
        %v1869 = vsel %vm1375, %v1866, 0
        %1871 = vmatprep.subr.mxu0 0.0
        %1872 = vmatpush1.xpose.msra.mxu0 %v1869
        %1873 = vmatprep.subr.mxu0 0.0
        %1874 = vmatpush1.xpose.msra.mxu0 0.0
        %1875 = vmatprep.subr.mxu0 0.0
        %1876 = vmatpush1.xpose.msra.mxu0 0.0
        %1877 = vmatprep.subr.mxu0 0.0
        %1878 = vmatpush1.xpose.msra.mxu0 0.0
        %1879 = vmatprep.subr.mxu0 0.0
        %1880 = vmatpush1.xpose.msra.mxu0 0.0
        %1881 = vmatprep.subr.mxu0 0.0
        %1882 = vmatpush1.xpose.msra.mxu0 0.0
        %1883 = vmatprep.subr.mxu0 0.0
        %1884 = vmatpush1.xpose.msra.mxu0 0.0
        %1885 = vmatprep.subr.mxu0 0.0
        %1886 = vmatpush1.xpose.msra.mxu0 0.0
        %1887 = vmatprep.subr.mxu0 0.0
        %1888 = vmatpush1.xpose.msra.mxu0 0.0
        %1889 = vmatprep.subr.mxu0 0.0
        %1890 = vmatpush1.xpose.msra.mxu0 0.0
        %1891 = vmatprep.subr.mxu0 0.0
        %1892 = vmatpush1.xpose.msra.mxu0 0.0
        %1893 = vmatprep.subr.mxu0 0.0
        %1894 = vmatpush1.xpose.msra.mxu0 0.0
        %1895 = vmatprep.subr.mxu0 0.0
        %1896 = vmatpush1.xpose.msra.mxu0 0.0
        %1897 = vmatprep.subr.mxu0 0.0
        %1898 = vmatpush1.xpose.msra.mxu0 0.0
        %1899 = vmatprep.subr.mxu0 0.0
        %1900 = vmatpush1.xpose.msra.mxu0 0.0
        %1901 = vmatprep.subr.mxu0 0.0
        %1902 = vmatpush1.xpose.msra.mxu0 0.0
        %1903 = vmatprep.subr.mxu0 0.0
        %1904 = vmatpush1.xpose.msra.mxu0 0.0
        %1905 = vmatprep.subr.mxu0 0.0
        %1906 = vmatpush1.xpose.msra.mxu0 0.0
        %1907 = vmatprep.subr.mxu0 0.0
        %1908 = vmatpush1.xpose.msra.mxu0 0.0
        %1909 = vmatprep.subr.mxu0 0.0
        %1910 = vmatpush1.xpose.msra.mxu0 0.0
        %1911 = vmatprep.subr.mxu0 0.0
        %1912 = vmatpush1.xpose.msra.mxu0 0.0
        %1913 = vmatprep.subr.mxu0 0.0
        %1914 = vmatpush1.xpose.msra.mxu0 0.0
        %1915 = vmatprep.subr.mxu0 0.0
        %1916 = vmatpush1.xpose.msra.mxu0 0.0
        %1917 = vmatprep.subr.mxu0 0.0
        %1918 = vmatpush1.xpose.msra.mxu0 0.0
        %1919 = vmatprep.subr.mxu0 0.0
        %1920 = vmatpush1.xpose.msra.mxu0 0.0
        %1921 = vmatprep.subr.mxu0 0.0
        %1922 = vmatpush1.xpose.msra.mxu0 0.0
        %1923 = vmatprep.subr.mxu0 0.0
        %1924 = vmatpush1.xpose.msra.mxu0 0.0
        %1925 = vmatprep.subr.mxu0 0.0
        %1926 = vmatpush1.xpose.msra.mxu0 0.0
        %1927 = vmatprep.subr.mxu0 0.0
        %1928 = vmatpush1.xpose.msra.mxu0 0.0
        %1929 = vmatprep.subr.mxu0 0.0
        %1930 = vmatpush1.xpose.msra.mxu0 0.0
        %1931 = vmatprep.subr.mxu0 0.0
        %1932 = vmatpush1.xpose.msra.mxu0 0.0
        %1933 = vmatprep.subr.mxu0 0.0
        %1934 = vmatpush1.xpose.msra.mxu0 0.0
        %1935 = vmatprep.mubr.f32.mxu0 0.0
        %1936 = vmatmul.mubr.f32.gmra.mrb[0].mxu0 %v1867
        %v1937 = vpop.f32.mrb[0].mxu0
        %v1938 = vadd.f32 0.0, %v1937
        %v1939 = vpop.f32.mrb[0].mxu0
        %1940 = vdwg.mxu0
        %v1941 = vmul.f32 %v1938, 0.35355338
        %v1942 = vsel %vm1451, %v1941, -inf
        %1943 = vmax.xlane.f32.xlu0 %v1942
        %v1944 = vpop.xlane.xlu0 %1943
        %v1945 = vsub.f32 %v1941, %v1944
        %v1946 = vmul.f32 %v1945, 1.442695
        %v1947 = vpow.pop %v1946
        %v1948 = vsel %vm1451, %v1947, 0.0
        %1949 = vadd.xlane.f32.xlu0 %v1948
        %v1950 = vpop.xlane.xlu0 %1949
        %v1951 = vrcp.pop %v1950
        %v1952 = vmul.f32 %v1947, %v1951
        %1953 = vrot.lane.b32.xlu0 %v1364, 48
        %v1954 = vpop.permute.xlu0 %1953
        %v1956 = vsel %vm1465, %v1952, 0
        %v1958 = vsel %vm1469, %v1954, 0
        %1960 = vmatprep.subr.mxu0 0.0
        %1961 = vmatpush1.msra.mxu0 %v1958
        %1962 = vmatprep.subr.mxu0 0.0
        %1963 = vmatpush1.msra.mxu0 0.0
        %1964 = vmatprep.subr.mxu0 0.0
        %1965 = vmatpush1.msra.mxu0 0.0
        %1966 = vmatprep.subr.mxu0 0.0
        %1967 = vmatpush1.msra.mxu0 0.0
        %1968 = vmatprep.subr.mxu0 0.0
        %1969 = vmatpush1.msra.mxu0 0.0
        %1970 = vmatprep.subr.mxu0 0.0
        %1971 = vmatpush1.msra.mxu0 0.0
        %1972 = vmatprep.subr.mxu0 0.0
        %1973 = vmatpush1.msra.mxu0 0.0
        %1974 = vmatprep.subr.mxu0 0.0
        %1975 = vmatpush1.msra.mxu0 0.0
        %1976 = vmatprep.subr.mxu0 0.0
        %1977 = vmatpush1.msra.mxu0 0.0
        %1978 = vmatprep.subr.mxu0 0.0
        %1979 = vmatpush1.msra.mxu0 0.0
        %1980 = vmatprep.subr.mxu0 0.0
        %1981 = vmatpush1.msra.mxu0 0.0
        %1982 = vmatprep.subr.mxu0 0.0
        %1983 = vmatpush1.msra.mxu0 0.0
        %1984 = vmatprep.subr.mxu0 0.0
        %1985 = vmatpush1.msra.mxu0 0.0
        %1986 = vmatprep.subr.mxu0 0.0
        %1987 = vmatpush1.msra.mxu0 0.0
        %1988 = vmatprep.subr.mxu0 0.0
        %1989 = vmatpush1.msra.mxu0 0.0
        %1990 = vmatprep.subr.mxu0 0.0
        %1991 = vmatpush1.msra.mxu0 0.0
        %1992 = vmatprep.subr.mxu0 0.0
        %1993 = vmatpush1.msra.mxu0 0.0
        %1994 = vmatprep.subr.mxu0 0.0
        %1995 = vmatpush1.msra.mxu0 0.0
        %1996 = vmatprep.subr.mxu0 0.0
        %1997 = vmatpush1.msra.mxu0 0.0
        %1998 = vmatprep.subr.mxu0 0.0
        %1999 = vmatpush1.msra.mxu0 0.0
        %2000 = vmatprep.subr.mxu0 0.0
        %2001 = vmatpush1.msra.mxu0 0.0
        %2002 = vmatprep.subr.mxu0 0.0
        %2003 = vmatpush1.msra.mxu0 0.0
        %2004 = vmatprep.subr.mxu0 0.0
        %2005 = vmatpush1.msra.mxu0 0.0
        %2006 = vmatprep.subr.mxu0 0.0
        %2007 = vmatpush1.msra.mxu0 0.0
        %2008 = vmatprep.subr.mxu0 0.0
        %2009 = vmatpush1.msra.mxu0 0.0
        %2010 = vmatprep.subr.mxu0 0.0
        %2011 = vmatpush1.msra.mxu0 0.0
        %2012 = vmatprep.subr.mxu0 0.0
        %2013 = vmatpush1.msra.mxu0 0.0
        %2014 = vmatprep.subr.mxu0 0.0
        %2015 = vmatpush1.msra.mxu0 0.0
        %2016 = vmatprep.subr.mxu0 0.0
        %2017 = vmatpush1.msra.mxu0 0.0
        %2018 = vmatprep.subr.mxu0 0.0
        %2019 = vmatpush1.msra.mxu0 0.0
        %2020 = vmatprep.subr.mxu0 0.0
        %2021 = vmatpush1.msra.mxu0 0.0
        %2022 = vmatprep.subr.mxu0 0.0
        %2023 = vmatpush1.msra.mxu0 0.0
        %2024 = vmatprep.mubr.f32.mxu0 0.0
        %2025 = vmatmul.mubr.f32.gmra.mrb[0].mxu0 %v1956
        %v2026 = vpop.f32.mrb[0].mxu0
        %v2027 = vadd.f32 0.0, %v2026
        %v2028 = vpop.f32.mrb[0].mxu0
        %2029 = vdwg.mxu0
        %v2031 = vsel %vm1375, %v2027, 0
        %2033 = vmatprep.subr.mxu0 0.0
        %2034 = vmatpush1.msra.mxu0 %v1369
        %2035 = vmatprep.subr.mxu0 0.0
        %2036 = vmatpush1.msra.mxu0 0.0
        %2037 = vmatprep.subr.mxu0 0.0
        %2038 = vmatpush1.msra.mxu0 0.0
        %2039 = vmatprep.subr.mxu0 0.0
        %2040 = vmatpush1.msra.mxu0 0.0
        %2041 = vmatprep.subr.mxu0 0.0
        %2042 = vmatpush1.msra.mxu0 0.0
        %2043 = vmatprep.subr.mxu0 0.0
        %2044 = vmatpush1.msra.mxu0 0.0
        %2045 = vmatprep.subr.mxu0 0.0
        %2046 = vmatpush1.msra.mxu0 0.0
        %2047 = vmatprep.subr.mxu0 0.0
        %2048 = vmatpush1.msra.mxu0 0.0
        %2049 = vmatprep.subr.mxu0 0.0
        %2050 = vmatpush1.msra.mxu0 0.0
        %2051 = vmatprep.subr.mxu0 0.0
        %2052 = vmatpush1.msra.mxu0 0.0
        %2053 = vmatprep.subr.mxu0 0.0
        %2054 = vmatpush1.msra.mxu0 0.0
        %2055 = vmatprep.subr.mxu0 0.0
        %2056 = vmatpush1.msra.mxu0 0.0
        %2057 = vmatprep.subr.mxu0 0.0
        %2058 = vmatpush1.msra.mxu0 0.0
        %2059 = vmatprep.subr.mxu0 0.0
        %2060 = vmatpush1.msra.mxu0 0.0
        %2061 = vmatprep.subr.mxu0 0.0
        %2062 = vmatpush1.msra.mxu0 0.0
        %2063 = vmatprep.subr.mxu0 0.0
        %2064 = vmatpush1.msra.mxu0 0.0
        %2065 = vmatprep.subr.mxu0 0.0
        %2066 = vmatpush1.msra.mxu0 0.0
        %2067 = vmatprep.subr.mxu0 0.0
        %2068 = vmatpush1.msra.mxu0 0.0
        %2069 = vmatprep.subr.mxu0 0.0
        %2070 = vmatpush1.msra.mxu0 0.0
        %2071 = vmatprep.subr.mxu0 0.0
        %2072 = vmatpush1.msra.mxu0 0.0
        %2073 = vmatprep.subr.mxu0 0.0
        %2074 = vmatpush1.msra.mxu0 0.0
        %2075 = vmatprep.subr.mxu0 0.0
        %2076 = vmatpush1.msra.mxu0 0.0
        %2077 = vmatprep.subr.mxu0 0.0
        %2078 = vmatpush1.msra.mxu0 0.0
        %2079 = vmatprep.subr.mxu0 0.0
        %2080 = vmatpush1.msra.mxu0 0.0
        %2081 = vmatprep.subr.mxu0 0.0
        %2082 = vmatpush1.msra.mxu0 0.0
        %2083 = vmatprep.subr.mxu0 0.0
        %2084 = vmatpush1.msra.mxu0 0.0
        %2085 = vmatprep.subr.mxu0 0.0
        %2086 = vmatpush1.msra.mxu0 0.0
        %2087 = vmatprep.subr.mxu0 0.0
        %2088 = vmatpush1.msra.mxu0 0.0
        %2089 = vmatprep.subr.mxu0 0.0
        %2090 = vmatpush1.msra.mxu0 0.0
        %2091 = vmatprep.subr.mxu0 0.0
        %2092 = vmatpush1.msra.mxu0 0.0
        %2093 = vmatprep.subr.mxu0 0.0
        %2094 = vmatpush1.msra.mxu0 0.0
        %2095 = vmatprep.subr.mxu0 0.0
        %2096 = vmatpush1.msra.mxu0 0.0
        %2097 = vmatprep.mubr.f32.mxu0 0.0
        %2098 = vmatmul.mubr.f32.gmra.mrb[0].mxu0 %v2031
        %v2099 = vpop.f32.mrb[0].mxu0
        %v2100 = vadd.f32 0.0, %v2099
        %v2101 = vpop.f32.mrb[0].mxu0
        %2102 = vdwg.mxu0
        %v2103 = vadd.f32 %v1862, %v2100
        %2104 = vrot.lane.b32.xlu0 %v1364, 104
        %v2105 = vpop.permute.xlu0 %2104
        %2106 = vrot.lane.b32.xlu0 %v1364, 72
        %v2107 = vpop.permute.xlu0 %2106
        %v2108 = vsel %vm1375, %v2105, 0
        %v2110 = vsel %vm1375, %v2107, 0
        %2112 = vmatprep.subr.mxu0 0.0
        %2113 = vmatpush1.xpose.msra.mxu0 %v2110
        %2114 = vmatprep.subr.mxu0 0.0
        %2115 = vmatpush1.xpose.msra.mxu0 0.0
        %2116 = vmatprep.subr.mxu0 0.0
        %2117 = vmatpush1.xpose.msra.mxu0 0.0
        %2118 = vmatprep.subr.mxu0 0.0
        %2119 = vmatpush1.xpose.msra.mxu0 0.0
        %2120 = vmatprep.subr.mxu0 0.0
        %2121 = vmatpush1.xpose.msra.mxu0 0.0
        %2122 = vmatprep.subr.mxu0 0.0
        %2123 = vmatpush1.xpose.msra.mxu0 0.0
        %2124 = vmatprep.subr.mxu0 0.0
        %2125 = vmatpush1.xpose.msra.mxu0 0.0
        %2126 = vmatprep.subr.mxu0 0.0
        %2127 = vmatpush1.xpose.msra.mxu0 0.0
        %2128 = vmatprep.subr.mxu0 0.0
        %2129 = vmatpush1.xpose.msra.mxu0 0.0
        %2130 = vmatprep.subr.mxu0 0.0
        %2131 = vmatpush1.xpose.msra.mxu0 0.0
        %2132 = vmatprep.subr.mxu0 0.0
        %2133 = vmatpush1.xpose.msra.mxu0 0.0
        %2134 = vmatprep.subr.mxu0 0.0
        %2135 = vmatpush1.xpose.msra.mxu0 0.0
        %2136 = vmatprep.subr.mxu0 0.0
        %2137 = vmatpush1.xpose.msra.mxu0 0.0
        %2138 = vmatprep.subr.mxu0 0.0
        %2139 = vmatpush1.xpose.msra.mxu0 0.0
        %2140 = vmatprep.subr.mxu0 0.0
        %2141 = vmatpush1.xpose.msra.mxu0 0.0
        %2142 = vmatprep.subr.mxu0 0.0
        %2143 = vmatpush1.xpose.msra.mxu0 0.0
        %2144 = vmatprep.subr.mxu0 0.0
        %2145 = vmatpush1.xpose.msra.mxu0 0.0
        %2146 = vmatprep.subr.mxu0 0.0
        %2147 = vmatpush1.xpose.msra.mxu0 0.0
        %2148 = vmatprep.subr.mxu0 0.0
        %2149 = vmatpush1.xpose.msra.mxu0 0.0
        %2150 = vmatprep.subr.mxu0 0.0
        %2151 = vmatpush1.xpose.msra.mxu0 0.0
        %2152 = vmatprep.subr.mxu0 0.0
        %2153 = vmatpush1.xpose.msra.mxu0 0.0
        %2154 = vmatprep.subr.mxu0 0.0
        %2155 = vmatpush1.xpose.msra.mxu0 0.0
        %2156 = vmatprep.subr.mxu0 0.0
        %2157 = vmatpush1.xpose.msra.mxu0 0.0
        %2158 = vmatprep.subr.mxu0 0.0
        %2159 = vmatpush1.xpose.msra.mxu0 0.0
        %2160 = vmatprep.subr.mxu0 0.0
        %2161 = vmatpush1.xpose.msra.mxu0 0.0
        %2162 = vmatprep.subr.mxu0 0.0
        %2163 = vmatpush1.xpose.msra.mxu0 0.0
        %2164 = vmatprep.subr.mxu0 0.0
        %2165 = vmatpush1.xpose.msra.mxu0 0.0
        %2166 = vmatprep.subr.mxu0 0.0
        %2167 = vmatpush1.xpose.msra.mxu0 0.0
        %2168 = vmatprep.subr.mxu0 0.0
        %2169 = vmatpush1.xpose.msra.mxu0 0.0
        %2170 = vmatprep.subr.mxu0 0.0
        %2171 = vmatpush1.xpose.msra.mxu0 0.0
        %2172 = vmatprep.subr.mxu0 0.0
        %2173 = vmatpush1.xpose.msra.mxu0 0.0
        %2174 = vmatprep.subr.mxu0 0.0
        %2175 = vmatpush1.xpose.msra.mxu0 0.0
        %2176 = vmatprep.mubr.f32.mxu0 0.0
        %2177 = vmatmul.mubr.f32.gmra.mrb[0].mxu0 %v2108
        %v2178 = vpop.f32.mrb[0].mxu0
        %v2179 = vadd.f32 0.0, %v2178
        %v2180 = vpop.f32.mrb[0].mxu0
        %2181 = vdwg.mxu0
        %v2182 = vmul.f32 %v2179, 0.35355338
        %v2183 = vsel %vm1451, %v2182, -inf
        %2184 = vmax.xlane.f32.xlu0 %v2183
        %v2185 = vpop.xlane.xlu0 %2184
        %v2186 = vsub.f32 %v2182, %v2185
        %v2187 = vmul.f32 %v2186, 1.442695
        %v2188 = vpow.pop %v2187
        %v2189 = vsel %vm1451, %v2188, 0.0
        %2190 = vadd.xlane.f32.xlu0 %v2189
        %v2191 = vpop.xlane.xlu0 %2190
        %v2192 = vrcp.pop %v2191
        %v2193 = vmul.f32 %v2188, %v2192
        %2194 = vrot.lane.b32.xlu0 %v1364, 40
        %v2195 = vpop.permute.xlu0 %2194
        %v2197 = vsel %vm1465, %v2193, 0
        %v2199 = vsel %vm1469, %v2195, 0
        %2201 = vmatprep.subr.mxu0 0.0
        %2202 = vmatpush1.msra.mxu0 %v2199
        %2203 = vmatprep.subr.mxu0 0.0
        %2204 = vmatpush1.msra.mxu0 0.0
        %2205 = vmatprep.subr.mxu0 0.0
        %2206 = vmatpush1.msra.mxu0 0.0
        %2207 = vmatprep.subr.mxu0 0.0
        %2208 = vmatpush1.msra.mxu0 0.0
        %2209 = vmatprep.subr.mxu0 0.0
        %2210 = vmatpush1.msra.mxu0 0.0
        %2211 = vmatprep.subr.mxu0 0.0
        %2212 = vmatpush1.msra.mxu0 0.0
        %2213 = vmatprep.subr.mxu0 0.0
        %2214 = vmatpush1.msra.mxu0 0.0
        %2215 = vmatprep.subr.mxu0 0.0
        %2216 = vmatpush1.msra.mxu0 0.0
        %2217 = vmatprep.subr.mxu0 0.0
        %2218 = vmatpush1.msra.mxu0 0.0
        %2219 = vmatprep.subr.mxu0 0.0
        %2220 = vmatpush1.msra.mxu0 0.0
        %2221 = vmatprep.subr.mxu0 0.0
        %2222 = vmatpush1.msra.mxu0 0.0
        %2223 = vmatprep.subr.mxu0 0.0
        %2224 = vmatpush1.msra.mxu0 0.0
        %2225 = vmatprep.subr.mxu0 0.0
        %2226 = vmatpush1.msra.mxu0 0.0
        %2227 = vmatprep.subr.mxu0 0.0
        %2228 = vmatpush1.msra.mxu0 0.0
        %2229 = vmatprep.subr.mxu0 0.0
        %2230 = vmatpush1.msra.mxu0 0.0
        %2231 = vmatprep.subr.mxu0 0.0
        %2232 = vmatpush1.msra.mxu0 0.0
        %2233 = vmatprep.subr.mxu0 0.0
        %2234 = vmatpush1.msra.mxu0 0.0
        %2235 = vmatprep.subr.mxu0 0.0
        %2236 = vmatpush1.msra.mxu0 0.0
        %2237 = vmatprep.subr.mxu0 0.0
        %2238 = vmatpush1.msra.mxu0 0.0
        %2239 = vmatprep.subr.mxu0 0.0
        %2240 = vmatpush1.msra.mxu0 0.0
        %2241 = vmatprep.subr.mxu0 0.0
        %2242 = vmatpush1.msra.mxu0 0.0
        %2243 = vmatprep.subr.mxu0 0.0
        %2244 = vmatpush1.msra.mxu0 0.0
        %2245 = vmatprep.subr.mxu0 0.0
        %2246 = vmatpush1.msra.mxu0 0.0
        %2247 = vmatprep.subr.mxu0 0.0
        %2248 = vmatpush1.msra.mxu0 0.0
        %2249 = vmatprep.subr.mxu0 0.0
        %2250 = vmatpush1.msra.mxu0 0.0
        %2251 = vmatprep.subr.mxu0 0.0
        %2252 = vmatpush1.msra.mxu0 0.0
        %2253 = vmatprep.subr.mxu0 0.0
        %2254 = vmatpush1.msra.mxu0 0.0
        %2255 = vmatprep.subr.mxu0 0.0
        %2256 = vmatpush1.msra.mxu0 0.0
        %2257 = vmatprep.subr.mxu0 0.0
        %2258 = vmatpush1.msra.mxu0 0.0
        %2259 = vmatprep.subr.mxu0 0.0
        %2260 = vmatpush1.msra.mxu0 0.0
        %2261 = vmatprep.subr.mxu0 0.0
        %2262 = vmatpush1.msra.mxu0 0.0
        %2263 = vmatprep.subr.mxu0 0.0
        %2264 = vmatpush1.msra.mxu0 0.0
        %2265 = vmatprep.mubr.f32.mxu0 0.0
        %2266 = vmatmul.mubr.f32.gmra.mrb[0].mxu0 %v2197
        %v2267 = vpop.f32.mrb[0].mxu0
        %v2268 = vadd.f32 0.0, %v2267
        %v2269 = vpop.f32.mrb[0].mxu0
        %2270 = vdwg.mxu0
        %v2272 = vsel %vm1375, %v2268, 0
        %2274 = vmatprep.subr.mxu0 0.0
        %2275 = vmatpush1.msra.mxu0 %v1370
        %2276 = vmatprep.subr.mxu0 0.0
        %2277 = vmatpush1.msra.mxu0 0.0
        %2278 = vmatprep.subr.mxu0 0.0
        %2279 = vmatpush1.msra.mxu0 0.0
        %2280 = vmatprep.subr.mxu0 0.0
        %2281 = vmatpush1.msra.mxu0 0.0
        %2282 = vmatprep.subr.mxu0 0.0
        %2283 = vmatpush1.msra.mxu0 0.0
        %2284 = vmatprep.subr.mxu0 0.0
        %2285 = vmatpush1.msra.mxu0 0.0
        %2286 = vmatprep.subr.mxu0 0.0
        %2287 = vmatpush1.msra.mxu0 0.0
        %2288 = vmatprep.subr.mxu0 0.0
        %2289 = vmatpush1.msra.mxu0 0.0
        %2290 = vmatprep.subr.mxu0 0.0
        %2291 = vmatpush1.msra.mxu0 0.0
        %2292 = vmatprep.subr.mxu0 0.0
        %2293 = vmatpush1.msra.mxu0 0.0
        %2294 = vmatprep.subr.mxu0 0.0
        %2295 = vmatpush1.msra.mxu0 0.0
        %2296 = vmatprep.subr.mxu0 0.0
        %2297 = vmatpush1.msra.mxu0 0.0
        %2298 = vmatprep.subr.mxu0 0.0
        %2299 = vmatpush1.msra.mxu0 0.0
        %2300 = vmatprep.subr.mxu0 0.0
        %2301 = vmatpush1.msra.mxu0 0.0
        %2302 = vmatprep.subr.mxu0 0.0
        %2303 = vmatpush1.msra.mxu0 0.0
        %2304 = vmatprep.subr.mxu0 0.0
        %2305 = vmatpush1.msra.mxu0 0.0
        %2306 = vmatprep.subr.mxu0 0.0
        %2307 = vmatpush1.msra.mxu0 0.0
        %2308 = vmatprep.subr.mxu0 0.0
        %2309 = vmatpush1.msra.mxu0 0.0
        %2310 = vmatprep.subr.mxu0 0.0
        %2311 = vmatpush1.msra.mxu0 0.0
        %2312 = vmatprep.subr.mxu0 0.0
        %2313 = vmatpush1.msra.mxu0 0.0
        %2314 = vmatprep.subr.mxu0 0.0
        %2315 = vmatpush1.msra.mxu0 0.0
        %2316 = vmatprep.subr.mxu0 0.0
        %2317 = vmatpush1.msra.mxu0 0.0
        %2318 = vmatprep.subr.mxu0 0.0
        %2319 = vmatpush1.msra.mxu0 0.0
        %2320 = vmatprep.subr.mxu0 0.0
        %2321 = vmatpush1.msra.mxu0 0.0
        %2322 = vmatprep.subr.mxu0 0.0
        %2323 = vmatpush1.msra.mxu0 0.0
        %2324 = vmatprep.subr.mxu0 0.0
        %2325 = vmatpush1.msra.mxu0 0.0
        %2326 = vmatprep.subr.mxu0 0.0
        %2327 = vmatpush1.msra.mxu0 0.0
        %2328 = vmatprep.subr.mxu0 0.0
        %2329 = vmatpush1.msra.mxu0 0.0
        %2330 = vmatprep.subr.mxu0 0.0
        %2331 = vmatpush1.msra.mxu0 0.0
        %2332 = vmatprep.subr.mxu0 0.0
        %2333 = vmatpush1.msra.mxu0 0.0
        %2334 = vmatprep.subr.mxu0 0.0
        %2335 = vmatpush1.msra.mxu0 0.0
        %2336 = vmatprep.subr.mxu0 0.0
        %2337 = vmatpush1.msra.mxu0 0.0
        %2338 = vmatprep.mubr.f32.mxu0 0.0
        %2339 = vmatmul.mubr.f32.gmra.mrb[0].mxu0 %v2272
        %v2340 = vpop.f32.mrb[0].mxu0
        %v2341 = vadd.f32 0.0, %v2340
        %v2342 = vpop.f32.mrb[0].mxu0
        %2343 = vdwg.mxu0
        %v2344 = vadd.f32 %v2103, %v2341
        %v2345 = vadd.f32 %v1250, %v2344
        %v2346 = vld [vmem:[%s21] sm:$0x1]
        %v2347 = vld [vmem:[%s23] sm:$0x1]
        %v2348 = vsel %vm1253, %v2345, 0.0
        %2349 = vadd.xlane.f32.xlu0 %v2348
        %v2350 = vpop.xlane.xlu0 %2349
        %v2351 = vmul.f32 %v2350, %v1257
        %v2352 = vsub.f32 %v2345, %v2351
        %v2353 = vmul.f32 %v2352, %v2352
        %v2354 = vsel %vm1253, %v2353, 0.0
        %2355 = vadd.xlane.f32.xlu0 %v2354
        %v2356 = vpop.xlane.xlu0 %2355
        %v2357 = vmul.f32 %v2356, %v1257
        %v2358 = vadd.f32 %v2357, 1e-06
        %v2359 = vrsqrt.pop %v2358
        %v2360 = vmul.f32 %v2352, %v2359
        %v2362 = vlaneseq
        %v2363 = vshrl.u32 %v2362, 7
        %v2364 = vsub.s32 0, %v2363
        %v2365 = vrot.slane %v2346, %v2364
        %v2367 = vmul.f32 %v2360, %v2365
        %v2369 = vlaneseq
        %v2370 = vshrl.u32 %v2369, 7
        %v2371 = vsub.s32 0, %v2370
        %v2372 = vrot.slane %v2347, %v2371
        %v2374 = vadd.f32 %v2367, %v2372
        %v2375 = vld [vmem:[%s25] sm:$0xff]
        %v2376 = vld [vmem:[%s25 + $0x8] sm:$0xff]
        %v2377 = vld [vmem:[%s25 + $0x10] sm:$0xff]
        %v2378 = vld [vmem:[%s25 + $0x18] sm:$0xff]
        %v2379 = vld [vmem:[%s27] sm:$0x1]
        %v2381 = vlaneseq
        %v2382 = vshrl.u32 %v2381, 7
        %v2383 = vsub.s32 0, %v2382
        %v2384 = vrot.slane %v2379, %v2383
        %v2387 = vsel %vm1293, %v2374, 0
        %2389 = vmatprep.subr.mxu0 0.0
        %2390 = vmatpush1.msra.mxu0 %v2375
        %2391 = vmatprep.subr.mxu0 0.0
        %2392 = vmatpush1.msra.mxu0 %v2376
        %2393 = vmatprep.subr.mxu0 0.0
        %2394 = vmatpush1.msra.mxu0 %v2377
        %2395 = vmatprep.subr.mxu0 0.0
        %2396 = vmatpush1.msra.mxu0 %v2378
        %2397 = vmatprep.subr.mxu0 0.0
        %2398 = vmatpush1.msra.mxu0 0.0
        %2399 = vmatprep.subr.mxu0 0.0
        %2400 = vmatpush1.msra.mxu0 0.0
        %2401 = vmatprep.subr.mxu0 0.0
        %2402 = vmatpush1.msra.mxu0 0.0
        %2403 = vmatprep.subr.mxu0 0.0
        %2404 = vmatpush1.msra.mxu0 0.0
        %2405 = vmatprep.subr.mxu0 0.0
        %2406 = vmatpush1.msra.mxu0 0.0
        %2407 = vmatprep.subr.mxu0 0.0
        %2408 = vmatpush1.msra.mxu0 0.0
        %2409 = vmatprep.subr.mxu0 0.0
        %2410 = vmatpush1.msra.mxu0 0.0
        %2411 = vmatprep.subr.mxu0 0.0
        %2412 = vmatpush1.msra.mxu0 0.0
        %2413 = vmatprep.subr.mxu0 0.0
        %2414 = vmatpush1.msra.mxu0 0.0
        %2415 = vmatprep.subr.mxu0 0.0
        %2416 = vmatpush1.msra.mxu0 0.0
        %2417 = vmatprep.subr.mxu0 0.0
        %2418 = vmatpush1.msra.mxu0 0.0
        %2419 = vmatprep.subr.mxu0 0.0
        %2420 = vmatpush1.msra.mxu0 0.0
        %2421 = vmatprep.subr.mxu0 0.0
        %2422 = vmatpush1.msra.mxu0 0.0
        %2423 = vmatprep.subr.mxu0 0.0
        %2424 = vmatpush1.msra.mxu0 0.0
        %2425 = vmatprep.subr.mxu0 0.0
        %2426 = vmatpush1.msra.mxu0 0.0
        %2427 = vmatprep.subr.mxu0 0.0
        %2428 = vmatpush1.msra.mxu0 0.0
        %2429 = vmatprep.subr.mxu0 0.0
        %2430 = vmatpush1.msra.mxu0 0.0
        %2431 = vmatprep.subr.mxu0 0.0
        %2432 = vmatpush1.msra.mxu0 0.0
        %2433 = vmatprep.subr.mxu0 0.0
        %2434 = vmatpush1.msra.mxu0 0.0
        %2435 = vmatprep.subr.mxu0 0.0
        %2436 = vmatpush1.msra.mxu0 0.0
        %2437 = vmatprep.subr.mxu0 0.0
        %2438 = vmatpush1.msra.mxu0 0.0
        %2439 = vmatprep.subr.mxu0 0.0
        %2440 = vmatpush1.msra.mxu0 0.0
        %2441 = vmatprep.subr.mxu0 0.0
        %2442 = vmatpush1.msra.mxu0 0.0
        %2443 = vmatprep.subr.mxu0 0.0
        %2444 = vmatpush1.msra.mxu0 0.0
        %2445 = vmatprep.subr.mxu0 0.0
        %2446 = vmatpush1.msra.mxu0 0.0
        %2447 = vmatprep.subr.mxu0 0.0
        %2448 = vmatpush1.msra.mxu0 0.0
        %2449 = vmatprep.subr.mxu0 0.0
        %2450 = vmatpush1.msra.mxu0 0.0
        %2451 = vmatprep.subr.mxu0 0.0
        %2452 = vmatpush1.msra.mxu0 0.0
        %2453 = vmatprep.mubr.f32.mxu0 0.0
        %2454 = vmatmul.mubr.f32.gmra.mrb[0].mxu0 %v2387
        %v2455 = vpop.f32.mrb[0].mxu0
        %v2456 = vadd.f32 %v2384, %v2455
        %v2457 = vpop.f32.mrb[0].mxu0
        %2458 = vdwg.mxu0
        %v2459 = vmul.f32 %v2456, %v2456
        %v2460 = vmul.f32 %v2456, %v2459
        %v2461 = vmul.f32 %v2460, 0.044715
        %v2462 = vadd.f32 %v2456, %v2461
        %v2463 = vmul.f32 %v2462, 0.7978846
        %v2464 = vtanh.pop %v2463
        %v2465 = vadd.f32 %v2464, 1.0
        %v2466 = vmul.f32 %v2465, 0.5
        %v2467 = vmul.f32 %v2456, %v2466
        %v2468 = vld [vmem:[%s29] sm:$0xff]
        %v2469 = vld [vmem:[%s29 + $0x8] sm:$0xff]
        %v2470 = vld [vmem:[%s29 + $0x10] sm:$0xff]
        %v2471 = vld [vmem:[%s29 + $0x18] sm:$0xff]
        %v2472 = vld [vmem:[%s29 + $0x20] sm:$0xff]
        %v2473 = vld [vmem:[%s29 + $0x28] sm:$0xff]
        %v2474 = vld [vmem:[%s29 + $0x30] sm:$0xff]
        %v2475 = vld [vmem:[%s29 + $0x38] sm:$0xff]
        %v2476 = vld [vmem:[%s31] sm:$0x1]
        %v2478 = vlaneseq
        %v2479 = vshrl.u32 %v2478, 7
        %v2480 = vsub.s32 0, %v2479
        %v2481 = vrot.slane %v2476, %v2480
        %vm2483 = vcmask 523264
        %v2485 = vsel %vm2483, %v2467, 0
        %2487 = vmatprep.subr.mxu0 0.0
        %2488 = vmatpush1.msra.mxu0 %v2468
        %2489 = vmatprep.subr.mxu0 0.0
        %2490 = vmatpush1.msra.mxu0 %v2469
        %2491 = vmatprep.subr.mxu0 0.0
        %2492 = vmatpush1.msra.mxu0 %v2470
        %2493 = vmatprep.subr.mxu0 0.0
        %2494 = vmatpush1.msra.mxu0 %v2471
        %2495 = vmatprep.subr.mxu0 0.0
        %2496 = vmatpush1.msra.mxu0 %v2472
        %2497 = vmatprep.subr.mxu0 0.0
        %2498 = vmatpush1.msra.mxu0 %v2473
        %2499 = vmatprep.subr.mxu0 0.0
        %2500 = vmatpush1.msra.mxu0 %v2474
        %2501 = vmatprep.subr.mxu0 0.0
        %2502 = vmatpush1.msra.mxu0 %v2475
        %2503 = vmatprep.subr.mxu0 0.0
        %2504 = vmatpush1.msra.mxu0 0.0
        %2505 = vmatprep.subr.mxu0 0.0
        %2506 = vmatpush1.msra.mxu0 0.0
        %2507 = vmatprep.subr.mxu0 0.0
        %2508 = vmatpush1.msra.mxu0 0.0
        %2509 = vmatprep.subr.mxu0 0.0
        %2510 = vmatpush1.msra.mxu0 0.0
        %2511 = vmatprep.subr.mxu0 0.0
        %2512 = vmatpush1.msra.mxu0 0.0
        %2513 = vmatprep.subr.mxu0 0.0
        %2514 = vmatpush1.msra.mxu0 0.0
        %2515 = vmatprep.subr.mxu0 0.0
        %2516 = vmatpush1.msra.mxu0 0.0
        %2517 = vmatprep.subr.mxu0 0.0
        %2518 = vmatpush1.msra.mxu0 0.0
        %2519 = vmatprep.subr.mxu0 0.0
        %2520 = vmatpush1.msra.mxu0 0.0
        %2521 = vmatprep.subr.mxu0 0.0
        %2522 = vmatpush1.msra.mxu0 0.0
        %2523 = vmatprep.subr.mxu0 0.0
        %2524 = vmatpush1.msra.mxu0 0.0
        %2525 = vmatprep.subr.mxu0 0.0
        %2526 = vmatpush1.msra.mxu0 0.0
        %2527 = vmatprep.subr.mxu0 0.0
        %2528 = vmatpush1.msra.mxu0 0.0
        %2529 = vmatprep.subr.mxu0 0.0
        %2530 = vmatpush1.msra.mxu0 0.0
        %2531 = vmatprep.subr.mxu0 0.0
        %2532 = vmatpush1.msra.mxu0 0.0
        %2533 = vmatprep.subr.mxu0 0.0
        %2534 = vmatpush1.msra.mxu0 0.0
        %2535 = vmatprep.subr.mxu0 0.0
        %2536 = vmatpush1.msra.mxu0 0.0
        %2537 = vmatprep.subr.mxu0 0.0
        %2538 = vmatpush1.msra.mxu0 0.0
        %2539 = vmatprep.subr.mxu0 0.0
        %2540 = vmatpush1.msra.mxu0 0.0
        %2541 = vmatprep.subr.mxu0 0.0
        %2542 = vmatpush1.msra.mxu0 0.0
        %2543 = vmatprep.subr.mxu0 0.0
        %2544 = vmatpush1.msra.mxu0 0.0
        %2545 = vmatprep.subr.mxu0 0.0
        %2546 = vmatpush1.msra.mxu0 0.0
        %2547 = vmatprep.subr.mxu0 0.0
        %2548 = vmatpush1.msra.mxu0 0.0
        %2549 = vmatprep.subr.mxu0 0.0
        %2550 = vmatpush1.msra.mxu0 0.0
        %2551 = vmatprep.mubr.f32.mxu0 0.0
        %2552 = vmatmul.mubr.f32.gmra.mrb[0].mxu0 %v2485
        %v2553 = vpop.f32.mrb[0].mxu0
        %v2554 = vadd.f32 %v2481, %v2553
        %v2555 = vpop.f32.mrb[0].mxu0
        %2556 = vdwg.mxu0
        %v2557 = vadd.f32 %v2345, %v2554
        %v2558 = vsel %vm1253, %v2557, 0.0
        %2559 = vadd.xlane.f32.xlu0 %v2558
        %v2560 = vpop.xlane.xlu0 %2559
        %v2561 = vmul.f32 %v2560, %v1257
        %v2562 = vsub.f32 %v2557, %v2561
        %v2563 = vmul.f32 %v2562, %v2562
        %v2564 = vsel %vm1253, %v2563, 0.0
        %2565 = vadd.xlane.f32.xlu0 %v2564
        %v2566 = vpop.xlane.xlu0 %2565
        %v2567 = vmul.f32 %v2566, %v1257
        %v2568 = vadd.f32 %v2567, 1e-06
        %v2569 = vrsqrt.pop %v2568
        %v2570 = vmul.f32 %v2562, %v2569
        %v2571 = vmul.f32 %v2570, %v1272
        %v2572 = vadd.f32 %v2571, %v1279
        %v2574 = vsel %vm1293, %v2572, 0
        %2576 = vmatprep.subr.mxu0 0.0
        %2577 = vmatpush1.msra.mxu0 %v1282
        %2578 = vmatprep.subr.mxu0 0.0
        %2579 = vmatpush1.msra.mxu0 %v1283
        %2580 = vmatprep.subr.mxu0 0.0
        %2581 = vmatpush1.msra.mxu0 %v1284
        %2582 = vmatprep.subr.mxu0 0.0
        %2583 = vmatpush1.msra.mxu0 %v1285
        %2584 = vmatprep.subr.mxu0 0.0
        %2585 = vmatpush1.msra.mxu0 0.0
        %2586 = vmatprep.subr.mxu0 0.0
        %2587 = vmatpush1.msra.mxu0 0.0
        %2588 = vmatprep.subr.mxu0 0.0
        %2589 = vmatpush1.msra.mxu0 0.0
        %2590 = vmatprep.subr.mxu0 0.0
        %2591 = vmatpush1.msra.mxu0 0.0
        %2592 = vmatprep.subr.mxu0 0.0
        %2593 = vmatpush1.msra.mxu0 0.0
        %2594 = vmatprep.subr.mxu0 0.0
        %2595 = vmatpush1.msra.mxu0 0.0
        %2596 = vmatprep.subr.mxu0 0.0
        %2597 = vmatpush1.msra.mxu0 0.0
        %2598 = vmatprep.subr.mxu0 0.0
        %2599 = vmatpush1.msra.mxu0 0.0
        %2600 = vmatprep.subr.mxu0 0.0
        %2601 = vmatpush1.msra.mxu0 0.0
        %2602 = vmatprep.subr.mxu0 0.0
        %2603 = vmatpush1.msra.mxu0 0.0
        %2604 = vmatprep.subr.mxu0 0.0
        %2605 = vmatpush1.msra.mxu0 0.0
        %2606 = vmatprep.subr.mxu0 0.0
        %2607 = vmatpush1.msra.mxu0 0.0
        %2608 = vmatprep.subr.mxu0 0.0
        %2609 = vmatpush1.msra.mxu0 0.0
        %2610 = vmatprep.subr.mxu0 0.0
        %2611 = vmatpush1.msra.mxu0 0.0
        %2612 = vmatprep.subr.mxu0 0.0
        %2613 = vmatpush1.msra.mxu0 0.0
        %2614 = vmatprep.subr.mxu0 0.0
        %2615 = vmatpush1.msra.mxu0 0.0
        %2616 = vmatprep.subr.mxu0 0.0
        %2617 = vmatpush1.msra.mxu0 0.0
        %2618 = vmatprep.subr.mxu0 0.0
        %2619 = vmatpush1.msra.mxu0 0.0
        %2620 = vmatprep.subr.mxu0 0.0
        %2621 = vmatpush1.msra.mxu0 0.0
        %2622 = vmatprep.subr.mxu0 0.0
        %2623 = vmatpush1.msra.mxu0 0.0
        %2624 = vmatprep.subr.mxu0 0.0
        %2625 = vmatpush1.msra.mxu0 0.0
        %2626 = vmatprep.subr.mxu0 0.0
        %2627 = vmatpush1.msra.mxu0 0.0
        %2628 = vmatprep.subr.mxu0 0.0
        %2629 = vmatpush1.msra.mxu0 0.0
        %2630 = vmatprep.subr.mxu0 0.0
        %2631 = vmatpush1.msra.mxu0 0.0
        %2632 = vmatprep.subr.mxu0 0.0
        %2633 = vmatpush1.msra.mxu0 0.0
        %2634 = vmatprep.subr.mxu0 0.0
        %2635 = vmatpush1.msra.mxu0 0.0
        %2636 = vmatprep.subr.mxu0 0.0
        %2637 = vmatpush1.msra.mxu0 0.0
        %2638 = vmatprep.subr.mxu0 0.0
        %2639 = vmatpush1.msra.mxu0 0.0
        %2640 = vmatprep.mubr.f32.mxu0 0.0
        %2641 = vmatmul.mubr.f32.gmra.mrb[0].mxu0 %v2574
        %v2642 = vpop.f32.mrb[0].mxu0
        %v2643 = vadd.f32 %v1291, %v2642
        %v2644 = vpop.f32.mrb[0].mxu0
        %2645 = vdwg.mxu0
        %2647 = vrot.lane.b32.xlu0 %v2643, 96
        %v2648 = vpop.permute.xlu0 %2647
        %v2649 = vsel %vm1375, %v2643, 0
        %v2651 = vsel %vm1375, %v2648, 0
        %2653 = vmatprep.subr.mxu0 0.0
        %2654 = vmatpush1.xpose.msra.mxu0 %v2651
        %2655 = vmatprep.subr.mxu0 0.0
        %2656 = vmatpush1.xpose.msra.mxu0 0.0
        %2657 = vmatprep.subr.mxu0 0.0
        %2658 = vmatpush1.xpose.msra.mxu0 0.0
        %2659 = vmatprep.subr.mxu0 0.0
        %2660 = vmatpush1.xpose.msra.mxu0 0.0
        %2661 = vmatprep.subr.mxu0 0.0
        %2662 = vmatpush1.xpose.msra.mxu0 0.0
        %2663 = vmatprep.subr.mxu0 0.0
        %2664 = vmatpush1.xpose.msra.mxu0 0.0
        %2665 = vmatprep.subr.mxu0 0.0
        %2666 = vmatpush1.xpose.msra.mxu0 0.0
        %2667 = vmatprep.subr.mxu0 0.0
        %2668 = vmatpush1.xpose.msra.mxu0 0.0
        %2669 = vmatprep.subr.mxu0 0.0
        %2670 = vmatpush1.xpose.msra.mxu0 0.0
        %2671 = vmatprep.subr.mxu0 0.0
        %2672 = vmatpush1.xpose.msra.mxu0 0.0
        %2673 = vmatprep.subr.mxu0 0.0
        %2674 = vmatpush1.xpose.msra.mxu0 0.0
        %2675 = vmatprep.subr.mxu0 0.0
        %2676 = vmatpush1.xpose.msra.mxu0 0.0
        %2677 = vmatprep.subr.mxu0 0.0
        %2678 = vmatpush1.xpose.msra.mxu0 0.0
        %2679 = vmatprep.subr.mxu0 0.0
        %2680 = vmatpush1.xpose.msra.mxu0 0.0
        %2681 = vmatprep.subr.mxu0 0.0
        %2682 = vmatpush1.xpose.msra.mxu0 0.0
        %2683 = vmatprep.subr.mxu0 0.0
        %2684 = vmatpush1.xpose.msra.mxu0 0.0
        %2685 = vmatprep.subr.mxu0 0.0
        %2686 = vmatpush1.xpose.msra.mxu0 0.0
        %2687 = vmatprep.subr.mxu0 0.0
        %2688 = vmatpush1.xpose.msra.mxu0 0.0
        %2689 = vmatprep.subr.mxu0 0.0
        %2690 = vmatpush1.xpose.msra.mxu0 0.0
        %2691 = vmatprep.subr.mxu0 0.0
        %2692 = vmatpush1.xpose.msra.mxu0 0.0
        %2693 = vmatprep.subr.mxu0 0.0
        %2694 = vmatpush1.xpose.msra.mxu0 0.0
        %2695 = vmatprep.subr.mxu0 0.0
        %2696 = vmatpush1.xpose.msra.mxu0 0.0
        %2697 = vmatprep.subr.mxu0 0.0
        %2698 = vmatpush1.xpose.msra.mxu0 0.0
        %2699 = vmatprep.subr.mxu0 0.0
        %2700 = vmatpush1.xpose.msra.mxu0 0.0
        %2701 = vmatprep.subr.mxu0 0.0
        %2702 = vmatpush1.xpose.msra.mxu0 0.0
        %2703 = vmatprep.subr.mxu0 0.0
        %2704 = vmatpush1.xpose.msra.mxu0 0.0
        %2705 = vmatprep.subr.mxu0 0.0
        %2706 = vmatpush1.xpose.msra.mxu0 0.0
        %2707 = vmatprep.subr.mxu0 0.0
        %2708 = vmatpush1.xpose.msra.mxu0 0.0
        %2709 = vmatprep.subr.mxu0 0.0
        %2710 = vmatpush1.xpose.msra.mxu0 0.0
        %2711 = vmatprep.subr.mxu0 0.0
        %2712 = vmatpush1.xpose.msra.mxu0 0.0
        %2713 = vmatprep.subr.mxu0 0.0
        %2714 = vmatpush1.xpose.msra.mxu0 0.0
        %2715 = vmatprep.subr.mxu0 0.0
        %2716 = vmatpush1.xpose.msra.mxu0 0.0
        %2717 = vmatprep.mubr.f32.mxu0 0.0
        %2718 = vmatmul.mubr.f32.gmra.mrb[0].mxu0 %v2649
        %v2719 = vpop.f32.mrb[0].mxu0
        %v2720 = vadd.f32 0.0, %v2719
        %v2721 = vpop.f32.mrb[0].mxu0
        %2722 = vdwg.mxu0
        %v2723 = vmul.f32 %v2720, 0.35355338
        %v2724 = vsel %vm1451, %v2723, -inf
        %2725 = vmax.xlane.f32.xlu0 %v2724
        %v2726 = vpop.xlane.xlu0 %2725
        %v2727 = vsub.f32 %v2723, %v2726
        %v2728 = vmul.f32 %v2727, 1.442695
        %v2729 = vpow.pop %v2728
        %v2730 = vsel %vm1451, %v2729, 0.0
        %2731 = vadd.xlane.f32.xlu0 %v2730
        %v2732 = vpop.xlane.xlu0 %2731
        %v2733 = vrcp.pop %v2732
        %v2734 = vmul.f32 %v2729, %v2733
        %2735 = vrot.lane.b32.xlu0 %v2643, 64
        %v2736 = vpop.permute.xlu0 %2735
        %v2738 = vsel %vm1465, %v2734, 0
        %v2740 = vsel %vm1469, %v2736, 0
        %2742 = vmatprep.subr.mxu0 0.0
        %2743 = vmatpush1.msra.mxu0 %v2740
        %2744 = vmatprep.subr.mxu0 0.0
        %2745 = vmatpush1.msra.mxu0 0.0
        %2746 = vmatprep.subr.mxu0 0.0
        %2747 = vmatpush1.msra.mxu0 0.0
        %2748 = vmatprep.subr.mxu0 0.0
        %2749 = vmatpush1.msra.mxu0 0.0
        %2750 = vmatprep.subr.mxu0 0.0
        %2751 = vmatpush1.msra.mxu0 0.0
        %2752 = vmatprep.subr.mxu0 0.0
        %2753 = vmatpush1.msra.mxu0 0.0
        %2754 = vmatprep.subr.mxu0 0.0
        %2755 = vmatpush1.msra.mxu0 0.0
        %2756 = vmatprep.subr.mxu0 0.0
        %2757 = vmatpush1.msra.mxu0 0.0
        %2758 = vmatprep.subr.mxu0 0.0
        %2759 = vmatpush1.msra.mxu0 0.0
        %2760 = vmatprep.subr.mxu0 0.0
        %2761 = vmatpush1.msra.mxu0 0.0
        %2762 = vmatprep.subr.mxu0 0.0
        %2763 = vmatpush1.msra.mxu0 0.0
        %2764 = vmatprep.subr.mxu0 0.0
        %2765 = vmatpush1.msra.mxu0 0.0
        %2766 = vmatprep.subr.mxu0 0.0
        %2767 = vmatpush1.msra.mxu0 0.0
        %2768 = vmatprep.subr.mxu0 0.0
        %2769 = vmatpush1.msra.mxu0 0.0
        %2770 = vmatprep.subr.mxu0 0.0
        %2771 = vmatpush1.msra.mxu0 0.0
        %2772 = vmatprep.subr.mxu0 0.0
        %2773 = vmatpush1.msra.mxu0 0.0
        %2774 = vmatprep.subr.mxu0 0.0
        %2775 = vmatpush1.msra.mxu0 0.0
        %2776 = vmatprep.subr.mxu0 0.0
        %2777 = vmatpush1.msra.mxu0 0.0
        %2778 = vmatprep.subr.mxu0 0.0
        %2779 = vmatpush1.msra.mxu0 0.0
        %2780 = vmatprep.subr.mxu0 0.0
        %2781 = vmatpush1.msra.mxu0 0.0
        %2782 = vmatprep.subr.mxu0 0.0
        %2783 = vmatpush1.msra.mxu0 0.0
        %2784 = vmatprep.subr.mxu0 0.0
        %2785 = vmatpush1.msra.mxu0 0.0
        %2786 = vmatprep.subr.mxu0 0.0
        %2787 = vmatpush1.msra.mxu0 0.0
        %2788 = vmatprep.subr.mxu0 0.0
        %2789 = vmatpush1.msra.mxu0 0.0
        %2790 = vmatprep.subr.mxu0 0.0
        %2791 = vmatpush1.msra.mxu0 0.0
        %2792 = vmatprep.subr.mxu0 0.0
        %2793 = vmatpush1.msra.mxu0 0.0
        %2794 = vmatprep.subr.mxu0 0.0
        %2795 = vmatpush1.msra.mxu0 0.0
        %2796 = vmatprep.subr.mxu0 0.0
        %2797 = vmatpush1.msra.mxu0 0.0
        %2798 = vmatprep.subr.mxu0 0.0
        %2799 = vmatpush1.msra.mxu0 0.0
        %2800 = vmatprep.subr.mxu0 0.0
        %2801 = vmatpush1.msra.mxu0 0.0
        %2802 = vmatprep.subr.mxu0 0.0
        %2803 = vmatpush1.msra.mxu0 0.0
        %2804 = vmatprep.subr.mxu0 0.0
        %2805 = vmatpush1.msra.mxu0 0.0
        %2806 = vmatprep.mubr.f32.mxu0 0.0
        %2807 = vmatmul.mubr.f32.gmra.mrb[0].mxu0 %v2738
        %v2808 = vpop.f32.mrb[0].mxu0
        %v2809 = vadd.f32 0.0, %v2808
        %v2810 = vpop.f32.mrb[0].mxu0
        %2811 = vdwg.mxu0
        %v2813 = vsel %vm1375, %v2809, 0
        %2815 = vmatprep.subr.mxu0 0.0
        %2816 = vmatpush1.msra.mxu0 %v1367
        %2817 = vmatprep.subr.mxu0 0.0
        %2818 = vmatpush1.msra.mxu0 0.0
        %2819 = vmatprep.subr.mxu0 0.0
        %2820 = vmatpush1.msra.mxu0 0.0
        %2821 = vmatprep.subr.mxu0 0.0
        %2822 = vmatpush1.msra.mxu0 0.0
        %2823 = vmatprep.subr.mxu0 0.0
        %2824 = vmatpush1.msra.mxu0 0.0
        %2825 = vmatprep.subr.mxu0 0.0
        %2826 = vmatpush1.msra.mxu0 0.0
        %2827 = vmatprep.subr.mxu0 0.0
        %2828 = vmatpush1.msra.mxu0 0.0
        %2829 = vmatprep.subr.mxu0 0.0
        %2830 = vmatpush1.msra.mxu0 0.0
        %2831 = vmatprep.subr.mxu0 0.0
        %2832 = vmatpush1.msra.mxu0 0.0
        %2833 = vmatprep.subr.mxu0 0.0
        %2834 = vmatpush1.msra.mxu0 0.0
        %2835 = vmatprep.subr.mxu0 0.0
        %2836 = vmatpush1.msra.mxu0 0.0
        %2837 = vmatprep.subr.mxu0 0.0
        %2838 = vmatpush1.msra.mxu0 0.0
        %2839 = vmatprep.subr.mxu0 0.0
        %2840 = vmatpush1.msra.mxu0 0.0
        %2841 = vmatprep.subr.mxu0 0.0
        %2842 = vmatpush1.msra.mxu0 0.0
        %2843 = vmatprep.subr.mxu0 0.0
        %2844 = vmatpush1.msra.mxu0 0.0
        %2845 = vmatprep.subr.mxu0 0.0
        %2846 = vmatpush1.msra.mxu0 0.0
        %2847 = vmatprep.subr.mxu0 0.0
        %2848 = vmatpush1.msra.mxu0 0.0
        %2849 = vmatprep.subr.mxu0 0.0
        %2850 = vmatpush1.msra.mxu0 0.0
        %2851 = vmatprep.subr.mxu0 0.0
        %2852 = vmatpush1.msra.mxu0 0.0
        %2853 = vmatprep.subr.mxu0 0.0
        %2854 = vmatpush1.msra.mxu0 0.0
        %2855 = vmatprep.subr.mxu0 0.0
        %2856 = vmatpush1.msra.mxu0 0.0
        %2857 = vmatprep.subr.mxu0 0.0
        %2858 = vmatpush1.msra.mxu0 0.0
        %2859 = vmatprep.subr.mxu0 0.0
        %2860 = vmatpush1.msra.mxu0 0.0
        %2861 = vmatprep.subr.mxu0 0.0
        %2862 = vmatpush1.msra.mxu0 0.0
        %2863 = vmatprep.subr.mxu0 0.0
        %2864 = vmatpush1.msra.mxu0 0.0
        %2865 = vmatprep.subr.mxu0 0.0
        %2866 = vmatpush1.msra.mxu0 0.0
        %2867 = vmatprep.subr.mxu0 0.0
        %2868 = vmatpush1.msra.mxu0 0.0
        %2869 = vmatprep.subr.mxu0 0.0
        %2870 = vmatpush1.msra.mxu0 0.0
        %2871 = vmatprep.subr.mxu0 0.0
        %2872 = vmatpush1.msra.mxu0 0.0
        %2873 = vmatprep.subr.mxu0 0.0
        %2874 = vmatpush1.msra.mxu0 0.0
        %2875 = vmatprep.subr.mxu0 0.0
        %2876 = vmatpush1.msra.mxu0 0.0
        %2877 = vmatprep.subr.mxu0 0.0
        %2878 = vmatpush1.msra.mxu0 0.0
        %2879 = vmatprep.mubr.f32.mxu0 0.0
        %2880 = vmatmul.mubr.f32.gmra.mrb[0].mxu0 %v2813
        %v2881 = vpop.f32.mrb[0].mxu0
        %v2882 = vadd.f32 0.0, %v2881
        %v2883 = vpop.f32.mrb[0].mxu0
        %2884 = vdwg.mxu0
        %v2885 = vadd.f32 %v1619, %v2882
        %2886 = vrot.lane.b32.xlu0 %v2643, 120
        %v2887 = vpop.permute.xlu0 %2886
        %2888 = vrot.lane.b32.xlu0 %v2643, 88
        %v2889 = vpop.permute.xlu0 %2888
        %v2890 = vsel %vm1375, %v2887, 0
        %v2892 = vsel %vm1375, %v2889, 0
        %2894 = vmatprep.subr.mxu0 0.0
        %2895 = vmatpush1.xpose.msra.mxu0 %v2892
        %2896 = vmatprep.subr.mxu0 0.0
        %2897 = vmatpush1.xpose.msra.mxu0 0.0
        %2898 = vmatprep.subr.mxu0 0.0
        %2899 = vmatpush1.xpose.msra.mxu0 0.0
        %2900 = vmatprep.subr.mxu0 0.0
        %2901 = vmatpush1.xpose.msra.mxu0 0.0
        %2902 = vmatprep.subr.mxu0 0.0
        %2903 = vmatpush1.xpose.msra.mxu0 0.0
        %2904 = vmatprep.subr.mxu0 0.0
        %2905 = vmatpush1.xpose.msra.mxu0 0.0
        %2906 = vmatprep.subr.mxu0 0.0
        %2907 = vmatpush1.xpose.msra.mxu0 0.0
        %2908 = vmatprep.subr.mxu0 0.0
        %2909 = vmatpush1.xpose.msra.mxu0 0.0
        %2910 = vmatprep.subr.mxu0 0.0
        %2911 = vmatpush1.xpose.msra.mxu0 0.0
        %2912 = vmatprep.subr.mxu0 0.0
        %2913 = vmatpush1.xpose.msra.mxu0 0.0
        %2914 = vmatprep.subr.mxu0 0.0
        %2915 = vmatpush1.xpose.msra.mxu0 0.0
        %2916 = vmatprep.subr.mxu0 0.0
        %2917 = vmatpush1.xpose.msra.mxu0 0.0
        %2918 = vmatprep.subr.mxu0 0.0
        %2919 = vmatpush1.xpose.msra.mxu0 0.0
        %2920 = vmatprep.subr.mxu0 0.0
        %2921 = vmatpush1.xpose.msra.mxu0 0.0
        %2922 = vmatprep.subr.mxu0 0.0
        %2923 = vmatpush1.xpose.msra.mxu0 0.0
        %2924 = vmatprep.subr.mxu0 0.0
        %2925 = vmatpush1.xpose.msra.mxu0 0.0
        %2926 = vmatprep.subr.mxu0 0.0
        %2927 = vmatpush1.xpose.msra.mxu0 0.0
        %2928 = vmatprep.subr.mxu0 0.0
        %2929 = vmatpush1.xpose.msra.mxu0 0.0
        %2930 = vmatprep.subr.mxu0 0.0
        %2931 = vmatpush1.xpose.msra.mxu0 0.0
        %2932 = vmatprep.subr.mxu0 0.0
        %2933 = vmatpush1.xpose.msra.mxu0 0.0
        %2934 = vmatprep.subr.mxu0 0.0
        %2935 = vmatpush1.xpose.msra.mxu0 0.0
        %2936 = vmatprep.subr.mxu0 0.0
        %2937 = vmatpush1.xpose.msra.mxu0 0.0
        %2938 = vmatprep.subr.mxu0 0.0
        %2939 = vmatpush1.xpose.msra.mxu0 0.0
        %2940 = vmatprep.subr.mxu0 0.0
        %2941 = vmatpush1.xpose.msra.mxu0 0.0
        %2942 = vmatprep.subr.mxu0 0.0
        %2943 = vmatpush1.xpose.msra.mxu0 0.0
        %2944 = vmatprep.subr.mxu0 0.0
        %2945 = vmatpush1.xpose.msra.mxu0 0.0
        %2946 = vmatprep.subr.mxu0 0.0
        %2947 = vmatpush1.xpose.msra.mxu0 0.0
        %2948 = vmatprep.subr.mxu0 0.0
        %2949 = vmatpush1.xpose.msra.mxu0 0.0
        %2950 = vmatprep.subr.mxu0 0.0
        %2951 = vmatpush1.xpose.msra.mxu0 0.0
        %2952 = vmatprep.subr.mxu0 0.0
        %2953 = vmatpush1.xpose.msra.mxu0 0.0
        %2954 = vmatprep.subr.mxu0 0.0
        %2955 = vmatpush1.xpose.msra.mxu0 0.0
        %2956 = vmatprep.subr.mxu0 0.0
        %2957 = vmatpush1.xpose.msra.mxu0 0.0
        %2958 = vmatprep.mubr.f32.mxu0 0.0
        %2959 = vmatmul.mubr.f32.gmra.mrb[0].mxu0 %v2890
        %v2960 = vpop.f32.mrb[0].mxu0
        %v2961 = vadd.f32 0.0, %v2960
        %v2962 = vpop.f32.mrb[0].mxu0
        %2963 = vdwg.mxu0
        %v2964 = vmul.f32 %v2961, 0.35355338
        %v2965 = vsel %vm1451, %v2964, -inf
        %2966 = vmax.xlane.f32.xlu0 %v2965
        %v2967 = vpop.xlane.xlu0 %2966
        %v2968 = vsub.f32 %v2964, %v2967
        %v2969 = vmul.f32 %v2968, 1.442695
        %v2970 = vpow.pop %v2969
        %v2971 = vsel %vm1451, %v2970, 0.0
        %2972 = vadd.xlane.f32.xlu0 %v2971
        %v2973 = vpop.xlane.xlu0 %2972
        %v2974 = vrcp.pop %v2973
        %v2975 = vmul.f32 %v2970, %v2974
        %2976 = vrot.lane.b32.xlu0 %v2643, 56
        %v2977 = vpop.permute.xlu0 %2976
        %v2979 = vsel %vm1465, %v2975, 0
        %v2981 = vsel %vm1469, %v2977, 0
        %2983 = vmatprep.subr.mxu0 0.0
        %2984 = vmatpush1.msra.mxu0 %v2981
        %2985 = vmatprep.subr.mxu0 0.0
        %2986 = vmatpush1.msra.mxu0 0.0
        %2987 = vmatprep.subr.mxu0 0.0
        %2988 = vmatpush1.msra.mxu0 0.0
        %2989 = vmatprep.subr.mxu0 0.0
        %2990 = vmatpush1.msra.mxu0 0.0
        %2991 = vmatprep.subr.mxu0 0.0
        %2992 = vmatpush1.msra.mxu0 0.0
        %2993 = vmatprep.subr.mxu0 0.0
        %2994 = vmatpush1.msra.mxu0 0.0
        %2995 = vmatprep.subr.mxu0 0.0
        %2996 = vmatpush1.msra.mxu0 0.0
        %2997 = vmatprep.subr.mxu0 0.0
        %2998 = vmatpush1.msra.mxu0 0.0
        %2999 = vmatprep.subr.mxu0 0.0
        %3000 = vmatpush1.msra.mxu0 0.0
        %3001 = vmatprep.subr.mxu0 0.0
        %3002 = vmatpush1.msra.mxu0 0.0
        %3003 = vmatprep.subr.mxu0 0.0
        %3004 = vmatpush1.msra.mxu0 0.0
        %3005 = vmatprep.subr.mxu0 0.0
        %3006 = vmatpush1.msra.mxu0 0.0
        %3007 = vmatprep.subr.mxu0 0.0
        %3008 = vmatpush1.msra.mxu0 0.0
        %3009 = vmatprep.subr.mxu0 0.0
        %3010 = vmatpush1.msra.mxu0 0.0
        %3011 = vmatprep.subr.mxu0 0.0
        %3012 = vmatpush1.msra.mxu0 0.0
        %3013 = vmatprep.subr.mxu0 0.0
        %3014 = vmatpush1.msra.mxu0 0.0
        %3015 = vmatprep.subr.mxu0 0.0
        %3016 = vmatpush1.msra.mxu0 0.0
        %3017 = vmatprep.subr.mxu0 0.0
        %3018 = vmatpush1.msra.mxu0 0.0
        %3019 = vmatprep.subr.mxu0 0.0
        %3020 = vmatpush1.msra.mxu0 0.0
        %3021 = vmatprep.subr.mxu0 0.0
        %3022 = vmatpush1.msra.mxu0 0.0
        %3023 = vmatprep.subr.mxu0 0.0
        %3024 = vmatpush1.msra.mxu0 0.0
        %3025 = vmatprep.subr.mxu0 0.0
        %3026 = vmatpush1.msra.mxu0 0.0
        %3027 = vmatprep.subr.mxu0 0.0
        %3028 = vmatpush1.msra.mxu0 0.0
        %3029 = vmatprep.subr.mxu0 0.0
        %3030 = vmatpush1.msra.mxu0 0.0
        %3031 = vmatprep.subr.mxu0 0.0
        %3032 = vmatpush1.msra.mxu0 0.0
        %3033 = vmatprep.subr.mxu0 0.0
        %3034 = vmatpush1.msra.mxu0 0.0
        %3035 = vmatprep.subr.mxu0 0.0
        %3036 = vmatpush1.msra.mxu0 0.0
        %3037 = vmatprep.subr.mxu0 0.0
        %3038 = vmatpush1.msra.mxu0 0.0
        %3039 = vmatprep.subr.mxu0 0.0
        %3040 = vmatpush1.msra.mxu0 0.0
        %3041 = vmatprep.subr.mxu0 0.0
        %3042 = vmatpush1.msra.mxu0 0.0
        %3043 = vmatprep.subr.mxu0 0.0
        %3044 = vmatpush1.msra.mxu0 0.0
        %3045 = vmatprep.subr.mxu0 0.0
        %3046 = vmatpush1.msra.mxu0 0.0
        %3047 = vmatprep.mubr.f32.mxu0 0.0
        %3048 = vmatmul.mubr.f32.gmra.mrb[0].mxu0 %v2979
        %v3049 = vpop.f32.mrb[0].mxu0
        %v3050 = vadd.f32 0.0, %v3049
        %v3051 = vpop.f32.mrb[0].mxu0
        %3052 = vdwg.mxu0
        %v3054 = vsel %vm1375, %v3050, 0
        %3056 = vmatprep.subr.mxu0 0.0
        %3057 = vmatpush1.msra.mxu0 %v1368
        %3058 = vmatprep.subr.mxu0 0.0
        %3059 = vmatpush1.msra.mxu0 0.0
        %3060 = vmatprep.subr.mxu0 0.0
        %3061 = vmatpush1.msra.mxu0 0.0
        %3062 = vmatprep.subr.mxu0 0.0
        %3063 = vmatpush1.msra.mxu0 0.0
        %3064 = vmatprep.subr.mxu0 0.0
        %3065 = vmatpush1.msra.mxu0 0.0
        %3066 = vmatprep.subr.mxu0 0.0
        %3067 = vmatpush1.msra.mxu0 0.0
        %3068 = vmatprep.subr.mxu0 0.0
        %3069 = vmatpush1.msra.mxu0 0.0
        %3070 = vmatprep.subr.mxu0 0.0
        %3071 = vmatpush1.msra.mxu0 0.0
        %3072 = vmatprep.subr.mxu0 0.0
        %3073 = vmatpush1.msra.mxu0 0.0
        %3074 = vmatprep.subr.mxu0 0.0
        %3075 = vmatpush1.msra.mxu0 0.0
        %3076 = vmatprep.subr.mxu0 0.0
        %3077 = vmatpush1.msra.mxu0 0.0
        %3078 = vmatprep.subr.mxu0 0.0
        %3079 = vmatpush1.msra.mxu0 0.0
        %3080 = vmatprep.subr.mxu0 0.0
        %3081 = vmatpush1.msra.mxu0 0.0
        %3082 = vmatprep.subr.mxu0 0.0
        %3083 = vmatpush1.msra.mxu0 0.0
        %3084 = vmatprep.subr.mxu0 0.0
        %3085 = vmatpush1.msra.mxu0 0.0
        %3086 = vmatprep.subr.mxu0 0.0
        %3087 = vmatpush1.msra.mxu0 0.0
        %3088 = vmatprep.subr.mxu0 0.0
        %3089 = vmatpush1.msra.mxu0 0.0
        %3090 = vmatprep.subr.mxu0 0.0
        %3091 = vmatpush1.msra.mxu0 0.0
        %3092 = vmatprep.subr.mxu0 0.0
        %3093 = vmatpush1.msra.mxu0 0.0
        %3094 = vmatprep.subr.mxu0 0.0
        %3095 = vmatpush1.msra.mxu0 0.0
        %3096 = vmatprep.subr.mxu0 0.0
        %3097 = vmatpush1.msra.mxu0 0.0
        %3098 = vmatprep.subr.mxu0 0.0
        %3099 = vmatpush1.msra.mxu0 0.0
        %3100 = vmatprep.subr.mxu0 0.0
        %3101 = vmatpush1.msra.mxu0 0.0
        %3102 = vmatprep.subr.mxu0 0.0
        %3103 = vmatpush1.msra.mxu0 0.0
        %3104 = vmatprep.subr.mxu0 0.0
        %3105 = vmatpush1.msra.mxu0 0.0
        %3106 = vmatprep.subr.mxu0 0.0
        %3107 = vmatpush1.msra.mxu0 0.0
        %3108 = vmatprep.subr.mxu0 0.0
        %3109 = vmatpush1.msra.mxu0 0.0
        %3110 = vmatprep.subr.mxu0 0.0
        %3111 = vmatpush1.msra.mxu0 0.0
        %3112 = vmatprep.subr.mxu0 0.0
        %3113 = vmatpush1.msra.mxu0 0.0
        %3114 = vmatprep.subr.mxu0 0.0
        %3115 = vmatpush1.msra.mxu0 0.0
        %3116 = vmatprep.subr.mxu0 0.0
        %3117 = vmatpush1.msra.mxu0 0.0
        %3118 = vmatprep.subr.mxu0 0.0
        %3119 = vmatpush1.msra.mxu0 0.0
        %3120 = vmatprep.mubr.f32.mxu0 0.0
        %3121 = vmatmul.mubr.f32.gmra.mrb[0].mxu0 %v3054
        %v3122 = vpop.f32.mrb[0].mxu0
        %v3123 = vadd.f32 0.0, %v3122
        %v3124 = vpop.f32.mrb[0].mxu0
        %3125 = vdwg.mxu0
        %v3126 = vadd.f32 %v2885, %v3123
        %3127 = vrot.lane.b32.xlu0 %v2643, 112
        %v3128 = vpop.permute.xlu0 %3127
        %3129 = vrot.lane.b32.xlu0 %v2643, 80
        %v3130 = vpop.permute.xlu0 %3129
        %v3131 = vsel %vm1375, %v3128, 0
        %v3133 = vsel %vm1375, %v3130, 0
        %3135 = vmatprep.subr.mxu0 0.0
        %3136 = vmatpush1.xpose.msra.mxu0 %v3133
        %3137 = vmatprep.subr.mxu0 0.0
        %3138 = vmatpush1.xpose.msra.mxu0 0.0
        %3139 = vmatprep.subr.mxu0 0.0
        %3140 = vmatpush1.xpose.msra.mxu0 0.0
        %3141 = vmatprep.subr.mxu0 0.0
        %3142 = vmatpush1.xpose.msra.mxu0 0.0
        %3143 = vmatprep.subr.mxu0 0.0
        %3144 = vmatpush1.xpose.msra.mxu0 0.0
        %3145 = vmatprep.subr.mxu0 0.0
        %3146 = vmatpush1.xpose.msra.mxu0 0.0
        %3147 = vmatprep.subr.mxu0 0.0
        %3148 = vmatpush1.xpose.msra.mxu0 0.0
        %3149 = vmatprep.subr.mxu0 0.0
        %3150 = vmatpush1.xpose.msra.mxu0 0.0
        %3151 = vmatprep.subr.mxu0 0.0
        %3152 = vmatpush1.xpose.msra.mxu0 0.0
        %3153 = vmatprep.subr.mxu0 0.0
        %3154 = vmatpush1.xpose.msra.mxu0 0.0
        %3155 = vmatprep.subr.mxu0 0.0
        %3156 = vmatpush1.xpose.msra.mxu0 0.0
        %3157 = vmatprep.subr.mxu0 0.0
        %3158 = vmatpush1.xpose.msra.mxu0 0.0
        %3159 = vmatprep.subr.mxu0 0.0
        %3160 = vmatpush1.xpose.msra.mxu0 0.0
        %3161 = vmatprep.subr.mxu0 0.0
        %3162 = vmatpush1.xpose.msra.mxu0 0.0
        %3163 = vmatprep.subr.mxu0 0.0
        %3164 = vmatpush1.xpose.msra.mxu0 0.0
        %3165 = vmatprep.subr.mxu0 0.0
        %3166 = vmatpush1.xpose.msra.mxu0 0.0
        %3167 = vmatprep.subr.mxu0 0.0
        %3168 = vmatpush1.xpose.msra.mxu0 0.0
        %3169 = vmatprep.subr.mxu0 0.0
        %3170 = vmatpush1.xpose.msra.mxu0 0.0
        %3171 = vmatprep.subr.mxu0 0.0
        %3172 = vmatpush1.xpose.msra.mxu0 0.0
        %3173 = vmatprep.subr.mxu0 0.0
        %3174 = vmatpush1.xpose.msra.mxu0 0.0
        %3175 = vmatprep.subr.mxu0 0.0
        %3176 = vmatpush1.xpose.msra.mxu0 0.0
        %3177 = vmatprep.subr.mxu0 0.0
        %3178 = vmatpush1.xpose.msra.mxu0 0.0
        %3179 = vmatprep.subr.mxu0 0.0
        %3180 = vmatpush1.xpose.msra.mxu0 0.0
        %3181 = vmatprep.subr.mxu0 0.0
        %3182 = vmatpush1.xpose.msra.mxu0 0.0
        %3183 = vmatprep.subr.mxu0 0.0
        %3184 = vmatpush1.xpose.msra.mxu0 0.0
        %3185 = vmatprep.subr.mxu0 0.0
        %3186 = vmatpush1.xpose.msra.mxu0 0.0
        %3187 = vmatprep.subr.mxu0 0.0
        %3188 = vmatpush1.xpose.msra.mxu0 0.0
        %3189 = vmatprep.subr.mxu0 0.0
        %3190 = vmatpush1.xpose.msra.mxu0 0.0
        %3191 = vmatprep.subr.mxu0 0.0
        %3192 = vmatpush1.xpose.msra.mxu0 0.0
        %3193 = vmatprep.subr.mxu0 0.0
        %3194 = vmatpush1.xpose.msra.mxu0 0.0
        %3195 = vmatprep.subr.mxu0 0.0
        %3196 = vmatpush1.xpose.msra.mxu0 0.0
        %3197 = vmatprep.subr.mxu0 0.0
        %3198 = vmatpush1.xpose.msra.mxu0 0.0
        %3199 = vmatprep.mubr.f32.mxu0 0.0
        %3200 = vmatmul.mubr.f32.gmra.mrb[0].mxu0 %v3131
        %v3201 = vpop.f32.mrb[0].mxu0
        %v3202 = vadd.f32 0.0, %v3201
        %v3203 = vpop.f32.mrb[0].mxu0
        %3204 = vdwg.mxu0
        %v3205 = vmul.f32 %v3202, 0.35355338
        %v3206 = vsel %vm1451, %v3205, -inf
        %3207 = vmax.xlane.f32.xlu0 %v3206
        %v3208 = vpop.xlane.xlu0 %3207
        %v3209 = vsub.f32 %v3205, %v3208
        %v3210 = vmul.f32 %v3209, 1.442695
        %v3211 = vpow.pop %v3210
        %v3212 = vsel %vm1451, %v3211, 0.0
        %3213 = vadd.xlane.f32.xlu0 %v3212
        %v3214 = vpop.xlane.xlu0 %3213
        %v3215 = vrcp.pop %v3214
        %v3216 = vmul.f32 %v3211, %v3215
        %3217 = vrot.lane.b32.xlu0 %v2643, 48
        %v3218 = vpop.permute.xlu0 %3217
        %v3220 = vsel %vm1465, %v3216, 0
        %v3222 = vsel %vm1469, %v3218, 0
        %3224 = vmatprep.subr.mxu0 0.0
        %3225 = vmatpush1.msra.mxu0 %v3222
        %3226 = vmatprep.subr.mxu0 0.0
        %3227 = vmatpush1.msra.mxu0 0.0
        %3228 = vmatprep.subr.mxu0 0.0
        %3229 = vmatpush1.msra.mxu0 0.0
        %3230 = vmatprep.subr.mxu0 0.0
        %3231 = vmatpush1.msra.mxu0 0.0
        %3232 = vmatprep.subr.mxu0 0.0
        %3233 = vmatpush1.msra.mxu0 0.0
        %3234 = vmatprep.subr.mxu0 0.0
        %3235 = vmatpush1.msra.mxu0 0.0
        %3236 = vmatprep.subr.mxu0 0.0
        %3237 = vmatpush1.msra.mxu0 0.0
        %3238 = vmatprep.subr.mxu0 0.0
        %3239 = vmatpush1.msra.mxu0 0.0
        %3240 = vmatprep.subr.mxu0 0.0
        %3241 = vmatpush1.msra.mxu0 0.0
        %3242 = vmatprep.subr.mxu0 0.0
        %3243 = vmatpush1.msra.mxu0 0.0
        %3244 = vmatprep.subr.mxu0 0.0
        %3245 = vmatpush1.msra.mxu0 0.0
        %3246 = vmatprep.subr.mxu0 0.0
        %3247 = vmatpush1.msra.mxu0 0.0
        %3248 = vmatprep.subr.mxu0 0.0
        %3249 = vmatpush1.msra.mxu0 0.0
        %3250 = vmatprep.subr.mxu0 0.0
        %3251 = vmatpush1.msra.mxu0 0.0
        %3252 = vmatprep.subr.mxu0 0.0
        %3253 = vmatpush1.msra.mxu0 0.0
        %3254 = vmatprep.subr.mxu0 0.0
        %3255 = vmatpush1.msra.mxu0 0.0
        %3256 = vmatprep.subr.mxu0 0.0
        %3257 = vmatpush1.msra.mxu0 0.0
        %3258 = vmatprep.subr.mxu0 0.0
        %3259 = vmatpush1.msra.mxu0 0.0
        %3260 = vmatprep.subr.mxu0 0.0
        %3261 = vmatpush1.msra.mxu0 0.0
        %3262 = vmatprep.subr.mxu0 0.0
        %3263 = vmatpush1.msra.mxu0 0.0
        %3264 = vmatprep.subr.mxu0 0.0
        %3265 = vmatpush1.msra.mxu0 0.0
        %3266 = vmatprep.subr.mxu0 0.0
        %3267 = vmatpush1.msra.mxu0 0.0
        %3268 = vmatprep.subr.mxu0 0.0
        %3269 = vmatpush1.msra.mxu0 0.0
        %3270 = vmatprep.subr.mxu0 0.0
        %3271 = vmatpush1.msra.mxu0 0.0
        %3272 = vmatprep.subr.mxu0 0.0
        %3273 = vmatpush1.msra.mxu0 0.0
        %3274 = vmatprep.subr.mxu0 0.0
        %3275 = vmatpush1.msra.mxu0 0.0
        %3276 = vmatprep.subr.mxu0 0.0
        %3277 = vmatpush1.msra.mxu0 0.0
        %3278 = vmatprep.subr.mxu0 0.0
        %3279 = vmatpush1.msra.mxu0 0.0
        %3280 = vmatprep.subr.mxu0 0.0
        %3281 = vmatpush1.msra.mxu0 0.0
        %3282 = vmatprep.subr.mxu0 0.0
        %3283 = vmatpush1.msra.mxu0 0.0
        %3284 = vmatprep.subr.mxu0 0.0
        %3285 = vmatpush1.msra.mxu0 0.0
        %3286 = vmatprep.subr.mxu0 0.0
        %3287 = vmatpush1.msra.mxu0 0.0
        %3288 = vmatprep.mubr.f32.mxu0 0.0
        %3289 = vmatmul.mubr.f32.gmra.mrb[0].mxu0 %v3220
        %v3290 = vpop.f32.mrb[0].mxu0
        %v3291 = vadd.f32 0.0, %v3290
        %v3292 = vpop.f32.mrb[0].mxu0
        %3293 = vdwg.mxu0
        %v3295 = vsel %vm1375, %v3291, 0
        %3297 = vmatprep.subr.mxu0 0.0
        %3298 = vmatpush1.msra.mxu0 %v1369
        %3299 = vmatprep.subr.mxu0 0.0
        %3300 = vmatpush1.msra.mxu0 0.0
        %3301 = vmatprep.subr.mxu0 0.0
        %3302 = vmatpush1.msra.mxu0 0.0
        %3303 = vmatprep.subr.mxu0 0.0
        %3304 = vmatpush1.msra.mxu0 0.0
        %3305 = vmatprep.subr.mxu0 0.0
        %3306 = vmatpush1.msra.mxu0 0.0
        %3307 = vmatprep.subr.mxu0 0.0
        %3308 = vmatpush1.msra.mxu0 0.0
        %3309 = vmatprep.subr.mxu0 0.0
        %3310 = vmatpush1.msra.mxu0 0.0
        %3311 = vmatprep.subr.mxu0 0.0
        %3312 = vmatpush1.msra.mxu0 0.0
        %3313 = vmatprep.subr.mxu0 0.0
        %3314 = vmatpush1.msra.mxu0 0.0
        %3315 = vmatprep.subr.mxu0 0.0
        %3316 = vmatpush1.msra.mxu0 0.0
        %3317 = vmatprep.subr.mxu0 0.0
        %3318 = vmatpush1.msra.mxu0 0.0
        %3319 = vmatprep.subr.mxu0 0.0
        %3320 = vmatpush1.msra.mxu0 0.0
        %3321 = vmatprep.subr.mxu0 0.0
        %3322 = vmatpush1.msra.mxu0 0.0
        %3323 = vmatprep.subr.mxu0 0.0
        %3324 = vmatpush1.msra.mxu0 0.0
        %3325 = vmatprep.subr.mxu0 0.0
        %3326 = vmatpush1.msra.mxu0 0.0
        %3327 = vmatprep.subr.mxu0 0.0
        %3328 = vmatpush1.msra.mxu0 0.0
        %3329 = vmatprep.subr.mxu0 0.0
        %3330 = vmatpush1.msra.mxu0 0.0
        %3331 = vmatprep.subr.mxu0 0.0
        %3332 = vmatpush1.msra.mxu0 0.0
        %3333 = vmatprep.subr.mxu0 0.0
        %3334 = vmatpush1.msra.mxu0 0.0
        %3335 = vmatprep.subr.mxu0 0.0
        %3336 = vmatpush1.msra.mxu0 0.0
        %3337 = vmatprep.subr.mxu0 0.0
        %3338 = vmatpush1.msra.mxu0 0.0
        %3339 = vmatprep.subr.mxu0 0.0
        %3340 = vmatpush1.msra.mxu0 0.0
        %3341 = vmatprep.subr.mxu0 0.0
        %3342 = vmatpush1.msra.mxu0 0.0
        %3343 = vmatprep.subr.mxu0 0.0
        %3344 = vmatpush1.msra.mxu0 0.0
        %3345 = vmatprep.subr.mxu0 0.0
        %3346 = vmatpush1.msra.mxu0 0.0
        %3347 = vmatprep.subr.mxu0 0.0
        %3348 = vmatpush1.msra.mxu0 0.0
        %3349 = vmatprep.subr.mxu0 0.0
        %3350 = vmatpush1.msra.mxu0 0.0
        %3351 = vmatprep.subr.mxu0 0.0
        %3352 = vmatpush1.msra.mxu0 0.0
        %3353 = vmatprep.subr.mxu0 0.0
        %3354 = vmatpush1.msra.mxu0 0.0
        %3355 = vmatprep.subr.mxu0 0.0
        %3356 = vmatpush1.msra.mxu0 0.0
        %3357 = vmatprep.subr.mxu0 0.0
        %3358 = vmatpush1.msra.mxu0 0.0
        %3359 = vmatprep.subr.mxu0 0.0
        %3360 = vmatpush1.msra.mxu0 0.0
        %3361 = vmatprep.mubr.f32.mxu0 0.0
        %3362 = vmatmul.mubr.f32.gmra.mrb[0].mxu0 %v3295
        %v3363 = vpop.f32.mrb[0].mxu0
        %v3364 = vadd.f32 0.0, %v3363
        %v3365 = vpop.f32.mrb[0].mxu0
        %3366 = vdwg.mxu0
        %v3367 = vadd.f32 %v3126, %v3364
        %3368 = vrot.lane.b32.xlu0 %v2643, 104
        %v3369 = vpop.permute.xlu0 %3368
        %3370 = vrot.lane.b32.xlu0 %v2643, 72
        %v3371 = vpop.permute.xlu0 %3370
        %v3372 = vsel %vm1375, %v3369, 0
        %v3374 = vsel %vm1375, %v3371, 0
        %3376 = vmatprep.subr.mxu0 0.0
        %3377 = vmatpush1.xpose.msra.mxu0 %v3374
        %3378 = vmatprep.subr.mxu0 0.0
        %3379 = vmatpush1.xpose.msra.mxu0 0.0
        %3380 = vmatprep.subr.mxu0 0.0
        %3381 = vmatpush1.xpose.msra.mxu0 0.0
        %3382 = vmatprep.subr.mxu0 0.0
        %3383 = vmatpush1.xpose.msra.mxu0 0.0
        %3384 = vmatprep.subr.mxu0 0.0
        %3385 = vmatpush1.xpose.msra.mxu0 0.0
        %3386 = vmatprep.subr.mxu0 0.0
        %3387 = vmatpush1.xpose.msra.mxu0 0.0
        %3388 = vmatprep.subr.mxu0 0.0
        %3389 = vmatpush1.xpose.msra.mxu0 0.0
        %3390 = vmatprep.subr.mxu0 0.0
        %3391 = vmatpush1.xpose.msra.mxu0 0.0
        %3392 = vmatprep.subr.mxu0 0.0
        %3393 = vmatpush1.xpose.msra.mxu0 0.0
        %3394 = vmatprep.subr.mxu0 0.0
        %3395 = vmatpush1.xpose.msra.mxu0 0.0
        %3396 = vmatprep.subr.mxu0 0.0
        %3397 = vmatpush1.xpose.msra.mxu0 0.0
        %3398 = vmatprep.subr.mxu0 0.0
        %3399 = vmatpush1.xpose.msra.mxu0 0.0
        %3400 = vmatprep.subr.mxu0 0.0
        %3401 = vmatpush1.xpose.msra.mxu0 0.0
        %3402 = vmatprep.subr.mxu0 0.0
        %3403 = vmatpush1.xpose.msra.mxu0 0.0
        %3404 = vmatprep.subr.mxu0 0.0
        %3405 = vmatpush1.xpose.msra.mxu0 0.0
        %3406 = vmatprep.subr.mxu0 0.0
        %3407 = vmatpush1.xpose.msra.mxu0 0.0
        %3408 = vmatprep.subr.mxu0 0.0
        %3409 = vmatpush1.xpose.msra.mxu0 0.0
        %3410 = vmatprep.subr.mxu0 0.0
        %3411 = vmatpush1.xpose.msra.mxu0 0.0
        %3412 = vmatprep.subr.mxu0 0.0
        %3413 = vmatpush1.xpose.msra.mxu0 0.0
        %3414 = vmatprep.subr.mxu0 0.0
        %3415 = vmatpush1.xpose.msra.mxu0 0.0
        %3416 = vmatprep.subr.mxu0 0.0
        %3417 = vmatpush1.xpose.msra.mxu0 0.0
        %3418 = vmatprep.subr.mxu0 0.0
        %3419 = vmatpush1.xpose.msra.mxu0 0.0
        %3420 = vmatprep.subr.mxu0 0.0
        %3421 = vmatpush1.xpose.msra.mxu0 0.0
        %3422 = vmatprep.subr.mxu0 0.0
        %3423 = vmatpush1.xpose.msra.mxu0 0.0
        %3424 = vmatprep.subr.mxu0 0.0
        %3425 = vmatpush1.xpose.msra.mxu0 0.0
        %3426 = vmatprep.subr.mxu0 0.0
        %3427 = vmatpush1.xpose.msra.mxu0 0.0
        %3428 = vmatprep.subr.mxu0 0.0
        %3429 = vmatpush1.xpose.msra.mxu0 0.0
        %3430 = vmatprep.subr.mxu0 0.0
        %3431 = vmatpush1.xpose.msra.mxu0 0.0
        %3432 = vmatprep.subr.mxu0 0.0
        %3433 = vmatpush1.xpose.msra.mxu0 0.0
        %3434 = vmatprep.subr.mxu0 0.0
        %3435 = vmatpush1.xpose.msra.mxu0 0.0
        %3436 = vmatprep.subr.mxu0 0.0
        %3437 = vmatpush1.xpose.msra.mxu0 0.0
        %3438 = vmatprep.subr.mxu0 0.0
        %3439 = vmatpush1.xpose.msra.mxu0 0.0
        %3440 = vmatprep.mubr.f32.mxu0 0.0
        %3441 = vmatmul.mubr.f32.gmra.mrb[0].mxu0 %v3372
        %v3442 = vpop.f32.mrb[0].mxu0
        %v3443 = vadd.f32 0.0, %v3442
        %v3444 = vpop.f32.mrb[0].mxu0
        %3445 = vdwg.mxu0
        %v3446 = vmul.f32 %v3443, 0.35355338
        %v3447 = vsel %vm1451, %v3446, -inf
        %3448 = vmax.xlane.f32.xlu0 %v3447
        %v3449 = vpop.xlane.xlu0 %3448
        %v3450 = vsub.f32 %v3446, %v3449
        %v3451 = vmul.f32 %v3450, 1.442695
        %v3452 = vpow.pop %v3451
        %v3453 = vsel %vm1451, %v3452, 0.0
        %3454 = vadd.xlane.f32.xlu0 %v3453
        %v3455 = vpop.xlane.xlu0 %3454
        %v3456 = vrcp.pop %v3455
        %v3457 = vmul.f32 %v3452, %v3456
        %3458 = vrot.lane.b32.xlu0 %v2643, 40
        %v3459 = vpop.permute.xlu0 %3458
        %v3461 = vsel %vm1465, %v3457, 0
        %v3463 = vsel %vm1469, %v3459, 0
        %3465 = vmatprep.subr.mxu0 0.0
        %3466 = vmatpush1.msra.mxu0 %v3463
        %3467 = vmatprep.subr.mxu0 0.0
        %3468 = vmatpush1.msra.mxu0 0.0
        %3469 = vmatprep.subr.mxu0 0.0
        %3470 = vmatpush1.msra.mxu0 0.0
        %3471 = vmatprep.subr.mxu0 0.0
        %3472 = vmatpush1.msra.mxu0 0.0
        %3473 = vmatprep.subr.mxu0 0.0
        %3474 = vmatpush1.msra.mxu0 0.0
        %3475 = vmatprep.subr.mxu0 0.0
        %3476 = vmatpush1.msra.mxu0 0.0
        %3477 = vmatprep.subr.mxu0 0.0
        %3478 = vmatpush1.msra.mxu0 0.0
        %3479 = vmatprep.subr.mxu0 0.0
        %3480 = vmatpush1.msra.mxu0 0.0
        %3481 = vmatprep.subr.mxu0 0.0
        %3482 = vmatpush1.msra.mxu0 0.0
        %3483 = vmatprep.subr.mxu0 0.0
        %3484 = vmatpush1.msra.mxu0 0.0
        %3485 = vmatprep.subr.mxu0 0.0
        %3486 = vmatpush1.msra.mxu0 0.0
        %3487 = vmatprep.subr.mxu0 0.0
        %3488 = vmatpush1.msra.mxu0 0.0
        %3489 = vmatprep.subr.mxu0 0.0
        %3490 = vmatpush1.msra.mxu0 0.0
        %3491 = vmatprep.subr.mxu0 0.0
        %3492 = vmatpush1.msra.mxu0 0.0
        %3493 = vmatprep.subr.mxu0 0.0
        %3494 = vmatpush1.msra.mxu0 0.0
        %3495 = vmatprep.subr.mxu0 0.0
        %3496 = vmatpush1.msra.mxu0 0.0
        %3497 = vmatprep.subr.mxu0 0.0
        %3498 = vmatpush1.msra.mxu0 0.0
        %3499 = vmatprep.subr.mxu0 0.0
        %3500 = vmatpush1.msra.mxu0 0.0
        %3501 = vmatprep.subr.mxu0 0.0
        %3502 = vmatpush1.msra.mxu0 0.0
        %3503 = vmatprep.subr.mxu0 0.0
        %3504 = vmatpush1.msra.mxu0 0.0
        %3505 = vmatprep.subr.mxu0 0.0
        %3506 = vmatpush1.msra.mxu0 0.0
        %3507 = vmatprep.subr.mxu0 0.0
        %3508 = vmatpush1.msra.mxu0 0.0
        %3509 = vmatprep.subr.mxu0 0.0
        %3510 = vmatpush1.msra.mxu0 0.0
        %3511 = vmatprep.subr.mxu0 0.0
        %3512 = vmatpush1.msra.mxu0 0.0
        %3513 = vmatprep.subr.mxu0 0.0
        %3514 = vmatpush1.msra.mxu0 0.0
        %3515 = vmatprep.subr.mxu0 0.0
        %3516 = vmatpush1.msra.mxu0 0.0
        %3517 = vmatprep.subr.mxu0 0.0
        %3518 = vmatpush1.msra.mxu0 0.0
        %3519 = vmatprep.subr.mxu0 0.0
        %3520 = vmatpush1.msra.mxu0 0.0
        %3521 = vmatprep.subr.mxu0 0.0
        %3522 = vmatpush1.msra.mxu0 0.0
        %3523 = vmatprep.subr.mxu0 0.0
        %3524 = vmatpush1.msra.mxu0 0.0
        %3525 = vmatprep.subr.mxu0 0.0
        %3526 = vmatpush1.msra.mxu0 0.0
        %3527 = vmatprep.subr.mxu0 0.0
        %3528 = vmatpush1.msra.mxu0 0.0
        %3529 = vmatprep.mubr.f32.mxu0 0.0
        %3530 = vmatmul.mubr.f32.gmra.mrb[0].mxu0 %v3461
        %v3531 = vpop.f32.mrb[0].mxu0
        %v3532 = vadd.f32 0.0, %v3531
        %v3533 = vpop.f32.mrb[0].mxu0
        %3534 = vdwg.mxu0
        %v3536 = vsel %vm1375, %v3532, 0
        %3538 = vmatprep.subr.mxu0 0.0
        %3539 = vmatpush1.msra.mxu0 %v1370
        %3540 = vmatprep.subr.mxu0 0.0
        %3541 = vmatpush1.msra.mxu0 0.0
        %3542 = vmatprep.subr.mxu0 0.0
        %3543 = vmatpush1.msra.mxu0 0.0
        %3544 = vmatprep.subr.mxu0 0.0
        %3545 = vmatpush1.msra.mxu0 0.0
        %3546 = vmatprep.subr.mxu0 0.0
        %3547 = vmatpush1.msra.mxu0 0.0
        %3548 = vmatprep.subr.mxu0 0.0
        %3549 = vmatpush1.msra.mxu0 0.0
        %3550 = vmatprep.subr.mxu0 0.0
        %3551 = vmatpush1.msra.mxu0 0.0
        %3552 = vmatprep.subr.mxu0 0.0
        %3553 = vmatpush1.msra.mxu0 0.0
        %3554 = vmatprep.subr.mxu0 0.0
        %3555 = vmatpush1.msra.mxu0 0.0
        %3556 = vmatprep.subr.mxu0 0.0
        %3557 = vmatpush1.msra.mxu0 0.0
        %3558 = vmatprep.subr.mxu0 0.0
        %3559 = vmatpush1.msra.mxu0 0.0
        %3560 = vmatprep.subr.mxu0 0.0
        %3561 = vmatpush1.msra.mxu0 0.0
        %3562 = vmatprep.subr.mxu0 0.0
        %3563 = vmatpush1.msra.mxu0 0.0
        %3564 = vmatprep.subr.mxu0 0.0
        %3565 = vmatpush1.msra.mxu0 0.0
        %3566 = vmatprep.subr.mxu0 0.0
        %3567 = vmatpush1.msra.mxu0 0.0
        %3568 = vmatprep.subr.mxu0 0.0
        %3569 = vmatpush1.msra.mxu0 0.0
        %3570 = vmatprep.subr.mxu0 0.0
        %3571 = vmatpush1.msra.mxu0 0.0
        %3572 = vmatprep.subr.mxu0 0.0
        %3573 = vmatpush1.msra.mxu0 0.0
        %3574 = vmatprep.subr.mxu0 0.0
        %3575 = vmatpush1.msra.mxu0 0.0
        %3576 = vmatprep.subr.mxu0 0.0
        %3577 = vmatpush1.msra.mxu0 0.0
        %3578 = vmatprep.subr.mxu0 0.0
        %3579 = vmatpush1.msra.mxu0 0.0
        %3580 = vmatprep.subr.mxu0 0.0
        %3581 = vmatpush1.msra.mxu0 0.0
        %3582 = vmatprep.subr.mxu0 0.0
        %3583 = vmatpush1.msra.mxu0 0.0
        %3584 = vmatprep.subr.mxu0 0.0
        %3585 = vmatpush1.msra.mxu0 0.0
        %3586 = vmatprep.subr.mxu0 0.0
        %3587 = vmatpush1.msra.mxu0 0.0
        %3588 = vmatprep.subr.mxu0 0.0
        %3589 = vmatpush1.msra.mxu0 0.0
        %3590 = vmatprep.subr.mxu0 0.0
        %3591 = vmatpush1.msra.mxu0 0.0
        %3592 = vmatprep.subr.mxu0 0.0
        %3593 = vmatpush1.msra.mxu0 0.0
        %3594 = vmatprep.subr.mxu0 0.0
        %3595 = vmatpush1.msra.mxu0 0.0
        %3596 = vmatprep.subr.mxu0 0.0
        %3597 = vmatpush1.msra.mxu0 0.0
        %3598 = vmatprep.subr.mxu0 0.0
        %3599 = vmatpush1.msra.mxu0 0.0
        %3600 = vmatprep.subr.mxu0 0.0
        %3601 = vmatpush1.msra.mxu0 0.0
        %3602 = vmatprep.mubr.f32.mxu0 0.0
        %3603 = vmatmul.mubr.f32.gmra.mrb[0].mxu0 %v3536
        %v3604 = vpop.f32.mrb[0].mxu0
        %v3605 = vadd.f32 0.0, %v3604
        %v3606 = vpop.f32.mrb[0].mxu0
        %3607 = vdwg.mxu0
        %v3608 = vadd.f32 %v3367, %v3605
        %v3609 = vadd.f32 %v2557, %v3608
        %v3610 = vsel %vm1253, %v3609, 0.0
        %3611 = vadd.xlane.f32.xlu0 %v3610
        %v3612 = vpop.xlane.xlu0 %3611
        %v3613 = vmul.f32 %v3612, %v1257
        %v3614 = vsub.f32 %v3609, %v3613
        %v3615 = vmul.f32 %v3614, %v3614
        %v3616 = vsel %vm1253, %v3615, 0.0
        %3617 = vadd.xlane.f32.xlu0 %v3616
        %v3618 = vpop.xlane.xlu0 %3617
        %v3619 = vmul.f32 %v3618, %v1257
        %v3620 = vadd.f32 %v3619, 1e-06
        %v3621 = vrsqrt.pop %v3620
        %v3622 = vmul.f32 %v3614, %v3621
        %v3623 = vmul.f32 %v3622, %v2365
        %v3624 = vadd.f32 %v3623, %v2372
        %v3626 = vsel %vm1293, %v3624, 0
        %3628 = vmatprep.subr.mxu0 0.0
        %3629 = vmatpush1.msra.mxu0 %v2375
        %3630 = vmatprep.subr.mxu0 0.0
        %3631 = vmatpush1.msra.mxu0 %v2376
        %3632 = vmatprep.subr.mxu0 0.0
        %3633 = vmatpush1.msra.mxu0 %v2377
        %3634 = vmatprep.subr.mxu0 0.0
        %3635 = vmatpush1.msra.mxu0 %v2378
        %3636 = vmatprep.subr.mxu0 0.0
        %3637 = vmatpush1.msra.mxu0 0.0
        %3638 = vmatprep.subr.mxu0 0.0
        %3639 = vmatpush1.msra.mxu0 0.0
        %3640 = vmatprep.subr.mxu0 0.0
        %3641 = vmatpush1.msra.mxu0 0.0
        %3642 = vmatprep.subr.mxu0 0.0
        %3643 = vmatpush1.msra.mxu0 0.0
        %3644 = vmatprep.subr.mxu0 0.0
        %3645 = vmatpush1.msra.mxu0 0.0
        %3646 = vmatprep.subr.mxu0 0.0
        %3647 = vmatpush1.msra.mxu0 0.0
        %3648 = vmatprep.subr.mxu0 0.0
        %3649 = vmatpush1.msra.mxu0 0.0
        %3650 = vmatprep.subr.mxu0 0.0
        %3651 = vmatpush1.msra.mxu0 0.0
        %3652 = vmatprep.subr.mxu0 0.0
        %3653 = vmatpush1.msra.mxu0 0.0
        %3654 = vmatprep.subr.mxu0 0.0
        %3655 = vmatpush1.msra.mxu0 0.0
        %3656 = vmatprep.subr.mxu0 0.0
        %3657 = vmatpush1.msra.mxu0 0.0
        %3658 = vmatprep.subr.mxu0 0.0
        %3659 = vmatpush1.msra.mxu0 0.0
        %3660 = vmatprep.subr.mxu0 0.0
        %3661 = vmatpush1.msra.mxu0 0.0
        %3662 = vmatprep.subr.mxu0 0.0
        %3663 = vmatpush1.msra.mxu0 0.0
        %3664 = vmatprep.subr.mxu0 0.0
        %3665 = vmatpush1.msra.mxu0 0.0
        %3666 = vmatprep.subr.mxu0 0.0
        %3667 = vmatpush1.msra.mxu0 0.0
        %3668 = vmatprep.subr.mxu0 0.0
        %3669 = vmatpush1.msra.mxu0 0.0
        %3670 = vmatprep.subr.mxu0 0.0
        %3671 = vmatpush1.msra.mxu0 0.0
        %3672 = vmatprep.subr.mxu0 0.0
        %3673 = vmatpush1.msra.mxu0 0.0
        %3674 = vmatprep.subr.mxu0 0.0
        %3675 = vmatpush1.msra.mxu0 0.0
        %3676 = vmatprep.subr.mxu0 0.0
        %3677 = vmatpush1.msra.mxu0 0.0
        %3678 = vmatprep.subr.mxu0 0.0
        %3679 = vmatpush1.msra.mxu0 0.0
        %3680 = vmatprep.subr.mxu0 0.0
        %3681 = vmatpush1.msra.mxu0 0.0
        %3682 = vmatprep.subr.mxu0 0.0
        %3683 = vmatpush1.msra.mxu0 0.0
        %3684 = vmatprep.subr.mxu0 0.0
        %3685 = vmatpush1.msra.mxu0 0.0
        %3686 = vmatprep.subr.mxu0 0.0
        %3687 = vmatpush1.msra.mxu0 0.0
        %3688 = vmatprep.subr.mxu0 0.0
        %3689 = vmatpush1.msra.mxu0 0.0
        %3690 = vmatprep.subr.mxu0 0.0
        %3691 = vmatpush1.msra.mxu0 0.0
        %3692 = vmatprep.mubr.f32.mxu0 0.0
        %3693 = vmatmul.mubr.f32.gmra.mrb[0].mxu0 %v3626
        %v3694 = vpop.f32.mrb[0].mxu0
        %v3695 = vadd.f32 %v2384, %v3694
        %v3696 = vpop.f32.mrb[0].mxu0
        %3697 = vdwg.mxu0
        %v3698 = vmul.f32 %v3695, %v3695
        %v3699 = vmul.f32 %v3695, %v3698
        %v3700 = vmul.f32 %v3699, 0.044715
        %v3701 = vadd.f32 %v3695, %v3700
        %v3702 = vmul.f32 %v3701, 0.7978846
        %v3703 = vtanh.pop %v3702
        %v3704 = vadd.f32 %v3703, 1.0
        %v3705 = vmul.f32 %v3704, 0.5
        %v3706 = vmul.f32 %v3695, %v3705
        %v3708 = vsel %vm2483, %v3706, 0
        %3710 = vmatprep.subr.mxu0 0.0
        %3711 = vmatpush1.msra.mxu0 %v2468
        %3712 = vmatprep.subr.mxu0 0.0
        %3713 = vmatpush1.msra.mxu0 %v2469
        %3714 = vmatprep.subr.mxu0 0.0
        %3715 = vmatpush1.msra.mxu0 %v2470
        %3716 = vmatprep.subr.mxu0 0.0
        %3717 = vmatpush1.msra.mxu0 %v2471
        %3718 = vmatprep.subr.mxu0 0.0
        %3719 = vmatpush1.msra.mxu0 %v2472
        %3720 = vmatprep.subr.mxu0 0.0
        %3721 = vmatpush1.msra.mxu0 %v2473
        %3722 = vmatprep.subr.mxu0 0.0
        %3723 = vmatpush1.msra.mxu0 %v2474
        %3724 = vmatprep.subr.mxu0 0.0
        %3725 = vmatpush1.msra.mxu0 %v2475
        %3726 = vmatprep.subr.mxu0 0.0
        %3727 = vmatpush1.msra.mxu0 0.0
        %3728 = vmatprep.subr.mxu0 0.0
        %3729 = vmatpush1.msra.mxu0 0.0
        %3730 = vmatprep.subr.mxu0 0.0
        %3731 = vmatpush1.msra.mxu0 0.0
        %3732 = vmatprep.subr.mxu0 0.0
        %3733 = vmatpush1.msra.mxu0 0.0
        %3734 = vmatprep.subr.mxu0 0.0
        %3735 = vmatpush1.msra.mxu0 0.0
        %3736 = vmatprep.subr.mxu0 0.0
        %3737 = vmatpush1.msra.mxu0 0.0
        %3738 = vmatprep.subr.mxu0 0.0
        %3739 = vmatpush1.msra.mxu0 0.0
        %3740 = vmatprep.subr.mxu0 0.0
        %3741 = vmatpush1.msra.mxu0 0.0
        %3742 = vmatprep.subr.mxu0 0.0
        %3743 = vmatpush1.msra.mxu0 0.0
        %3744 = vmatprep.subr.mxu0 0.0
        %3745 = vmatpush1.msra.mxu0 0.0
        %3746 = vmatprep.subr.mxu0 0.0
        %3747 = vmatpush1.msra.mxu0 0.0
        %3748 = vmatprep.subr.mxu0 0.0
        %3749 = vmatpush1.msra.mxu0 0.0
        %3750 = vmatprep.subr.mxu0 0.0
        %3751 = vmatpush1.msra.mxu0 0.0
        %3752 = vmatprep.subr.mxu0 0.0
        %3753 = vmatpush1.msra.mxu0 0.0
        %3754 = vmatprep.subr.mxu0 0.0
        %3755 = vmatpush1.msra.mxu0 0.0
        %3756 = vmatprep.subr.mxu0 0.0
        %3757 = vmatpush1.msra.mxu0 0.0
        %3758 = vmatprep.subr.mxu0 0.0
        %3759 = vmatpush1.msra.mxu0 0.0
        %3760 = vmatprep.subr.mxu0 0.0
        %3761 = vmatpush1.msra.mxu0 0.0
        %3762 = vmatprep.subr.mxu0 0.0
        %3763 = vmatpush1.msra.mxu0 0.0
        %3764 = vmatprep.subr.mxu0 0.0
        %3765 = vmatpush1.msra.mxu0 0.0
        %3766 = vmatprep.subr.mxu0 0.0
        %3767 = vmatpush1.msra.mxu0 0.0
        %3768 = vmatprep.subr.mxu0 0.0
        %3769 = vmatpush1.msra.mxu0 0.0
        %3770 = vmatprep.subr.mxu0 0.0
        %3771 = vmatpush1.msra.mxu0 0.0
        %3772 = vmatprep.subr.mxu0 0.0
        %3773 = vmatpush1.msra.mxu0 0.0
        %3774 = vmatprep.mubr.f32.mxu0 0.0
        %3775 = vmatmul.mubr.f32.gmra.mrb[0].mxu0 %v3708
        %v3776 = vpop.f32.mrb[0].mxu0
        %v3777 = vadd.f32 %v2481, %v3776
        %v3778 = vpop.f32.mrb[0].mxu0
        %3779 = vdwg.mxu0
        %v3780 = vadd.f32 %v3609, %v3777
        %v3781 = vld [vmem:[%s33] sm:$0x1]
        %v3782 = vld [vmem:[%s35] sm:$0x1]
        %v3784 = vlaneseq
        %v3785 = vshrl.u32 %v3784, 7
        %v3786 = vsub.s32 0, %v3785
        %v3787 = vrot.slane %v3781, %v3786
        %v3789 = vmul.f32 %v1267, %v3787
        %v3791 = vlaneseq
        %v3792 = vshrl.u32 %v3791, 7
        %v3793 = vsub.s32 0, %v3792
        %v3794 = vrot.slane %v3782, %v3793
        %v3796 = vadd.f32 %v3789, %v3794
        %v3797 = vld [vmem:[%s37] sm:$0xff]
        %v3798 = vld [vmem:[%s37 + $0x8] sm:$0xff]
        %v3799 = vld [vmem:[%s37 + $0x10] sm:$0xff]
        %v3800 = vld [vmem:[%s37 + $0x18] sm:$0xff]
        %v3801 = vld [vmem:[%s39] sm:$0x1]
        %v3803 = vlaneseq
        %v3804 = vshrl.u32 %v3803, 7
        %v3805 = vsub.s32 0, %v3804
        %v3806 = vrot.slane %v3801, %v3805
        %v3809 = vsel %vm1293, %v3796, 0
        %3811 = vmatprep.subr.mxu0 0.0
        %3812 = vmatpush1.msra.mxu0 %v3797
        %3813 = vmatprep.subr.mxu0 0.0
        %3814 = vmatpush1.msra.mxu0 %v3798
        %3815 = vmatprep.subr.mxu0 0.0
        %3816 = vmatpush1.msra.mxu0 %v3799
        %3817 = vmatprep.subr.mxu0 0.0
        %3818 = vmatpush1.msra.mxu0 %v3800
        %3819 = vmatprep.subr.mxu0 0.0
        %3820 = vmatpush1.msra.mxu0 0.0
        %3821 = vmatprep.subr.mxu0 0.0
        %3822 = vmatpush1.msra.mxu0 0.0
        %3823 = vmatprep.subr.mxu0 0.0
        %3824 = vmatpush1.msra.mxu0 0.0
        %3825 = vmatprep.subr.mxu0 0.0
        %3826 = vmatpush1.msra.mxu0 0.0
        %3827 = vmatprep.subr.mxu0 0.0
        %3828 = vmatpush1.msra.mxu0 0.0
        %3829 = vmatprep.subr.mxu0 0.0
        %3830 = vmatpush1.msra.mxu0 0.0
        %3831 = vmatprep.subr.mxu0 0.0
        %3832 = vmatpush1.msra.mxu0 0.0
        %3833 = vmatprep.subr.mxu0 0.0
        %3834 = vmatpush1.msra.mxu0 0.0
        %3835 = vmatprep.subr.mxu0 0.0
        %3836 = vmatpush1.msra.mxu0 0.0
        %3837 = vmatprep.subr.mxu0 0.0
        %3838 = vmatpush1.msra.mxu0 0.0
        %3839 = vmatprep.subr.mxu0 0.0
        %3840 = vmatpush1.msra.mxu0 0.0
        %3841 = vmatprep.subr.mxu0 0.0
        %3842 = vmatpush1.msra.mxu0 0.0
        %3843 = vmatprep.subr.mxu0 0.0
        %3844 = vmatpush1.msra.mxu0 0.0
        %3845 = vmatprep.subr.mxu0 0.0
        %3846 = vmatpush1.msra.mxu0 0.0
        %3847 = vmatprep.subr.mxu0 0.0
        %3848 = vmatpush1.msra.mxu0 0.0
        %3849 = vmatprep.subr.mxu0 0.0
        %3850 = vmatpush1.msra.mxu0 0.0
        %3851 = vmatprep.subr.mxu0 0.0
        %3852 = vmatpush1.msra.mxu0 0.0
        %3853 = vmatprep.subr.mxu0 0.0
        %3854 = vmatpush1.msra.mxu0 0.0
        %3855 = vmatprep.subr.mxu0 0.0
        %3856 = vmatpush1.msra.mxu0 0.0
        %3857 = vmatprep.subr.mxu0 0.0
        %3858 = vmatpush1.msra.mxu0 0.0
        %3859 = vmatprep.subr.mxu0 0.0
        %3860 = vmatpush1.msra.mxu0 0.0
        %3861 = vmatprep.subr.mxu0 0.0
        %3862 = vmatpush1.msra.mxu0 0.0
        %3863 = vmatprep.subr.mxu0 0.0
        %3864 = vmatpush1.msra.mxu0 0.0
        %3865 = vmatprep.subr.mxu0 0.0
        %3866 = vmatpush1.msra.mxu0 0.0
        %3867 = vmatprep.subr.mxu0 0.0
        %3868 = vmatpush1.msra.mxu0 0.0
        %3869 = vmatprep.subr.mxu0 0.0
        %3870 = vmatpush1.msra.mxu0 0.0
        %3871 = vmatprep.subr.mxu0 0.0
        %3872 = vmatpush1.msra.mxu0 0.0
        %3873 = vmatprep.subr.mxu0 0.0
        %3874 = vmatpush1.msra.mxu0 0.0
        %3875 = vmatprep.mubr.f32.mxu0 0.0
        %3876 = vmatmul.mubr.f32.gmra.mrb[0].mxu0 %v3809
        %v3877 = vpop.f32.mrb[0].mxu0
        %v3878 = vadd.f32 %v3806, %v3877
        %v3879 = vpop.f32.mrb[0].mxu0
        %3880 = vdwg.mxu0
        %v3881 = vld [vmem:[%s41] sm:$0xff]
        %v3882 = vld [vmem:[%s41 + $0x8] sm:$0xff]
        %v3883 = vld [vmem:[%s41 + $0x10] sm:$0xff]
        %v3884 = vld [vmem:[%s41 + $0x18] sm:$0xff]
        %v3885 = vld [vmem:[%s43] sm:$0x1]
        %3887 = vrot.lane.b32.xlu0 %v3878, 96
        %v3888 = vpop.permute.xlu0 %3887
        %v3889 = vsel %vm1375, %v3878, 0
        %v3891 = vsel %vm1375, %v3888, 0
        %3893 = vmatprep.subr.mxu0 0.0
        %3894 = vmatpush1.xpose.msra.mxu0 %v3891
        %3895 = vmatprep.subr.mxu0 0.0
        %3896 = vmatpush1.xpose.msra.mxu0 0.0
        %3897 = vmatprep.subr.mxu0 0.0
        %3898 = vmatpush1.xpose.msra.mxu0 0.0
        %3899 = vmatprep.subr.mxu0 0.0
        %3900 = vmatpush1.xpose.msra.mxu0 0.0
        %3901 = vmatprep.subr.mxu0 0.0
        %3902 = vmatpush1.xpose.msra.mxu0 0.0
        %3903 = vmatprep.subr.mxu0 0.0
        %3904 = vmatpush1.xpose.msra.mxu0 0.0
        %3905 = vmatprep.subr.mxu0 0.0
        %3906 = vmatpush1.xpose.msra.mxu0 0.0
        %3907 = vmatprep.subr.mxu0 0.0
        %3908 = vmatpush1.xpose.msra.mxu0 0.0
        %3909 = vmatprep.subr.mxu0 0.0
        %3910 = vmatpush1.xpose.msra.mxu0 0.0
        %3911 = vmatprep.subr.mxu0 0.0
        %3912 = vmatpush1.xpose.msra.mxu0 0.0
        %3913 = vmatprep.subr.mxu0 0.0
        %3914 = vmatpush1.xpose.msra.mxu0 0.0
        %3915 = vmatprep.subr.mxu0 0.0
        %3916 = vmatpush1.xpose.msra.mxu0 0.0
        %3917 = vmatprep.subr.mxu0 0.0
        %3918 = vmatpush1.xpose.msra.mxu0 0.0
        %3919 = vmatprep.subr.mxu0 0.0
        %3920 = vmatpush1.xpose.msra.mxu0 0.0
        %3921 = vmatprep.subr.mxu0 0.0
        %3922 = vmatpush1.xpose.msra.mxu0 0.0
        %3923 = vmatprep.subr.mxu0 0.0
        %3924 = vmatpush1.xpose.msra.mxu0 0.0
        %3925 = vmatprep.subr.mxu0 0.0
        %3926 = vmatpush1.xpose.msra.mxu0 0.0
        %3927 = vmatprep.subr.mxu0 0.0
        %3928 = vmatpush1.xpose.msra.mxu0 0.0
        %3929 = vmatprep.subr.mxu0 0.0
        %3930 = vmatpush1.xpose.msra.mxu0 0.0
        %3931 = vmatprep.subr.mxu0 0.0
        %3932 = vmatpush1.xpose.msra.mxu0 0.0
        %3933 = vmatprep.subr.mxu0 0.0
        %3934 = vmatpush1.xpose.msra.mxu0 0.0
        %3935 = vmatprep.subr.mxu0 0.0
        %3936 = vmatpush1.xpose.msra.mxu0 0.0
        %3937 = vmatprep.subr.mxu0 0.0
        %3938 = vmatpush1.xpose.msra.mxu0 0.0
        %3939 = vmatprep.subr.mxu0 0.0
        %3940 = vmatpush1.xpose.msra.mxu0 0.0
        %3941 = vmatprep.subr.mxu0 0.0
        %3942 = vmatpush1.xpose.msra.mxu0 0.0
        %3943 = vmatprep.subr.mxu0 0.0
        %3944 = vmatpush1.xpose.msra.mxu0 0.0
        %3945 = vmatprep.subr.mxu0 0.0
        %3946 = vmatpush1.xpose.msra.mxu0 0.0
        %3947 = vmatprep.subr.mxu0 0.0
        %3948 = vmatpush1.xpose.msra.mxu0 0.0
        %3949 = vmatprep.subr.mxu0 0.0
        %3950 = vmatpush1.xpose.msra.mxu0 0.0
        %3951 = vmatprep.subr.mxu0 0.0
        %3952 = vmatpush1.xpose.msra.mxu0 0.0
        %3953 = vmatprep.subr.mxu0 0.0
        %3954 = vmatpush1.xpose.msra.mxu0 0.0
        %3955 = vmatprep.subr.mxu0 0.0
        %3956 = vmatpush1.xpose.msra.mxu0 0.0
        %3957 = vmatprep.mubr.f32.mxu0 0.0
        %3958 = vmatmul.mubr.f32.gmra.mrb[0].mxu0 %v3889
        %v3959 = vpop.f32.mrb[0].mxu0
        %v3960 = vadd.f32 0.0, %v3959
        %v3961 = vpop.f32.mrb[0].mxu0
        %3962 = vdwg.mxu0
        %v3963 = vmul.f32 %v3960, 0.35355338
        %v3964 = vsel %vm1451, %v3963, -inf
        %3965 = vmax.xlane.f32.xlu0 %v3964
        %v3966 = vpop.xlane.xlu0 %3965
        %v3967 = vsub.f32 %v3963, %v3966
        %v3968 = vmul.f32 %v3967, 1.442695
        %v3969 = vpow.pop %v3968
        %v3970 = vsel %vm1451, %v3969, 0.0
        %3971 = vadd.xlane.f32.xlu0 %v3970
        %v3972 = vpop.xlane.xlu0 %3971
        %v3973 = vrcp.pop %v3972
        %v3974 = vmul.f32 %v3969, %v3973
        %3975 = vrot.lane.b32.xlu0 %v3878, 64
        %v3976 = vpop.permute.xlu0 %3975
        %v3978 = vsel %vm1465, %v3974, 0
        %v3980 = vsel %vm1469, %v3976, 0
        %3982 = vmatprep.subr.mxu0 0.0
        %3983 = vmatpush1.msra.mxu0 %v3980
        %3984 = vmatprep.subr.mxu0 0.0
        %3985 = vmatpush1.msra.mxu0 0.0
        %3986 = vmatprep.subr.mxu0 0.0
        %3987 = vmatpush1.msra.mxu0 0.0
        %3988 = vmatprep.subr.mxu0 0.0
        %3989 = vmatpush1.msra.mxu0 0.0
        %3990 = vmatprep.subr.mxu0 0.0
        %3991 = vmatpush1.msra.mxu0 0.0
        %3992 = vmatprep.subr.mxu0 0.0
        %3993 = vmatpush1.msra.mxu0 0.0
        %3994 = vmatprep.subr.mxu0 0.0
        %3995 = vmatpush1.msra.mxu0 0.0
        %3996 = vmatprep.subr.mxu0 0.0
        %3997 = vmatpush1.msra.mxu0 0.0
        %3998 = vmatprep.subr.mxu0 0.0
        %3999 = vmatpush1.msra.mxu0 0.0
        %4000 = vmatprep.subr.mxu0 0.0
        %4001 = vmatpush1.msra.mxu0 0.0
        %4002 = vmatprep.subr.mxu0 0.0
        %4003 = vmatpush1.msra.mxu0 0.0
        %4004 = vmatprep.subr.mxu0 0.0
        %4005 = vmatpush1.msra.mxu0 0.0
        %4006 = vmatprep.subr.mxu0 0.0
        %4007 = vmatpush1.msra.mxu0 0.0
        %4008 = vmatprep.subr.mxu0 0.0
        %4009 = vmatpush1.msra.mxu0 0.0
        %4010 = vmatprep.subr.mxu0 0.0
        %4011 = vmatpush1.msra.mxu0 0.0
        %4012 = vmatprep.subr.mxu0 0.0
        %4013 = vmatpush1.msra.mxu0 0.0
        %4014 = vmatprep.subr.mxu0 0.0
        %4015 = vmatpush1.msra.mxu0 0.0
        %4016 = vmatprep.subr.mxu0 0.0
        %4017 = vmatpush1.msra.mxu0 0.0
        %4018 = vmatprep.subr.mxu0 0.0
        %4019 = vmatpush1.msra.mxu0 0.0
        %4020 = vmatprep.subr.mxu0 0.0
        %4021 = vmatpush1.msra.mxu0 0.0
        %4022 = vmatprep.subr.mxu0 0.0
        %4023 = vmatpush1.msra.mxu0 0.0
        %4024 = vmatprep.subr.mxu0 0.0
        %4025 = vmatpush1.msra.mxu0 0.0
        %4026 = vmatprep.subr.mxu0 0.0
        %4027 = vmatpush1.msra.mxu0 0.0
        %4028 = vmatprep.subr.mxu0 0.0
        %4029 = vmatpush1.msra.mxu0 0.0
        %4030 = vmatprep.subr.mxu0 0.0
        %4031 = vmatpush1.msra.mxu0 0.0
        %4032 = vmatprep.subr.mxu0 0.0
        %4033 = vmatpush1.msra.mxu0 0.0
        %4034 = vmatprep.subr.mxu0 0.0
        %4035 = vmatpush1.msra.mxu0 0.0
        %4036 = vmatprep.subr.mxu0 0.0
        %4037 = vmatpush1.msra.mxu0 0.0
        %4038 = vmatprep.subr.mxu0 0.0
        %4039 = vmatpush1.msra.mxu0 0.0
        %4040 = vmatprep.subr.mxu0 0.0
        %4041 = vmatpush1.msra.mxu0 0.0
        %4042 = vmatprep.subr.mxu0 0.0
        %4043 = vmatpush1.msra.mxu0 0.0
        %4044 = vmatprep.subr.mxu0 0.0
        %4045 = vmatpush1.msra.mxu0 0.0
        %4046 = vmatprep.mubr.f32.mxu0 0.0
        %4047 = vmatmul.mubr.f32.gmra.mrb[0].mxu0 %v3978
        %v4048 = vpop.f32.mrb[0].mxu0
        %v4049 = vadd.f32 0.0, %v4048
        %v4050 = vpop.f32.mrb[0].mxu0
        %4051 = vdwg.mxu0
        %v4053 = vsel %vm1375, %v4049, 0
        %4055 = vmatprep.subr.mxu0 0.0
        %4056 = vmatpush1.msra.mxu0 %v3881
        %4057 = vmatprep.subr.mxu0 0.0
        %4058 = vmatpush1.msra.mxu0 0.0
        %4059 = vmatprep.subr.mxu0 0.0
        %4060 = vmatpush1.msra.mxu0 0.0
        %4061 = vmatprep.subr.mxu0 0.0
        %4062 = vmatpush1.msra.mxu0 0.0
        %4063 = vmatprep.subr.mxu0 0.0
        %4064 = vmatpush1.msra.mxu0 0.0
        %4065 = vmatprep.subr.mxu0 0.0
        %4066 = vmatpush1.msra.mxu0 0.0
        %4067 = vmatprep.subr.mxu0 0.0
        %4068 = vmatpush1.msra.mxu0 0.0
        %4069 = vmatprep.subr.mxu0 0.0
        %4070 = vmatpush1.msra.mxu0 0.0
        %4071 = vmatprep.subr.mxu0 0.0
        %4072 = vmatpush1.msra.mxu0 0.0
        %4073 = vmatprep.subr.mxu0 0.0
        %4074 = vmatpush1.msra.mxu0 0.0
        %4075 = vmatprep.subr.mxu0 0.0
        %4076 = vmatpush1.msra.mxu0 0.0
        %4077 = vmatprep.subr.mxu0 0.0
        %4078 = vmatpush1.msra.mxu0 0.0
        %4079 = vmatprep.subr.mxu0 0.0
        %4080 = vmatpush1.msra.mxu0 0.0
        %4081 = vmatprep.subr.mxu0 0.0
        %4082 = vmatpush1.msra.mxu0 0.0
        %4083 = vmatprep.subr.mxu0 0.0
        %4084 = vmatpush1.msra.mxu0 0.0
        %4085 = vmatprep.subr.mxu0 0.0
        %4086 = vmatpush1.msra.mxu0 0.0
        %4087 = vmatprep.subr.mxu0 0.0
        %4088 = vmatpush1.msra.mxu0 0.0
        %4089 = vmatprep.subr.mxu0 0.0
        %4090 = vmatpush1.msra.mxu0 0.0
        %4091 = vmatprep.subr.mxu0 0.0
        %4092 = vmatpush1.msra.mxu0 0.0
        %4093 = vmatprep.subr.mxu0 0.0
        %4094 = vmatpush1.msra.mxu0 0.0
        %4095 = vmatprep.subr.mxu0 0.0
        %4096 = vmatpush1.msra.mxu0 0.0
        %4097 = vmatprep.subr.mxu0 0.0
        %4098 = vmatpush1.msra.mxu0 0.0
        %4099 = vmatprep.subr.mxu0 0.0
        %4100 = vmatpush1.msra.mxu0 0.0
        %4101 = vmatprep.subr.mxu0 0.0
        %4102 = vmatpush1.msra.mxu0 0.0
        %4103 = vmatprep.subr.mxu0 0.0
        %4104 = vmatpush1.msra.mxu0 0.0
        %4105 = vmatprep.subr.mxu0 0.0
        %4106 = vmatpush1.msra.mxu0 0.0
        %4107 = vmatprep.subr.mxu0 0.0
        %4108 = vmatpush1.msra.mxu0 0.0
        %4109 = vmatprep.subr.mxu0 0.0
        %4110 = vmatpush1.msra.mxu0 0.0
        %4111 = vmatprep.subr.mxu0 0.0
        %4112 = vmatpush1.msra.mxu0 0.0
        %4113 = vmatprep.subr.mxu0 0.0
        %4114 = vmatpush1.msra.mxu0 0.0
        %4115 = vmatprep.subr.mxu0 0.0
        %4116 = vmatpush1.msra.mxu0 0.0
        %4117 = vmatprep.subr.mxu0 0.0
        %4118 = vmatpush1.msra.mxu0 0.0
        %4119 = vmatprep.mubr.f32.mxu0 0.0
        %4120 = vmatmul.mubr.f32.gmra.mrb[0].mxu0 %v4053
        %v4121 = vpop.f32.mrb[0].mxu0
        %v4122 = vadd.f32 0.0, %v4121
        %v4123 = vpop.f32.mrb[0].mxu0
        %4124 = vdwg.mxu0
        %v4126 = vlaneseq
        %v4127 = vshrl.u32 %v4126, 7
        %v4128 = vsub.s32 0, %v4127
        %v4129 = vrot.slane %v3885, %v4128
        %v4131 = vadd.f32 %v4129, %v4122
        %4132 = vrot.lane.b32.xlu0 %v3878, 120
        %v4133 = vpop.permute.xlu0 %4132
        %4134 = vrot.lane.b32.xlu0 %v3878, 88
        %v4135 = vpop.permute.xlu0 %4134
        %v4136 = vsel %vm1375, %v4133, 0
        %v4138 = vsel %vm1375, %v4135, 0
        %4140 = vmatprep.subr.mxu0 0.0
        %4141 = vmatpush1.xpose.msra.mxu0 %v4138
        %4142 = vmatprep.subr.mxu0 0.0
        %4143 = vmatpush1.xpose.msra.mxu0 0.0
        %4144 = vmatprep.subr.mxu0 0.0
        %4145 = vmatpush1.xpose.msra.mxu0 0.0
        %4146 = vmatprep.subr.mxu0 0.0
        %4147 = vmatpush1.xpose.msra.mxu0 0.0
        %4148 = vmatprep.subr.mxu0 0.0
        %4149 = vmatpush1.xpose.msra.mxu0 0.0
        %4150 = vmatprep.subr.mxu0 0.0
        %4151 = vmatpush1.xpose.msra.mxu0 0.0
        %4152 = vmatprep.subr.mxu0 0.0
        %4153 = vmatpush1.xpose.msra.mxu0 0.0
        %4154 = vmatprep.subr.mxu0 0.0
        %4155 = vmatpush1.xpose.msra.mxu0 0.0
        %4156 = vmatprep.subr.mxu0 0.0
        %4157 = vmatpush1.xpose.msra.mxu0 0.0
        %4158 = vmatprep.subr.mxu0 0.0
        %4159 = vmatpush1.xpose.msra.mxu0 0.0
        %4160 = vmatprep.subr.mxu0 0.0
        %4161 = vmatpush1.xpose.msra.mxu0 0.0
        %4162 = vmatprep.subr.mxu0 0.0
        %4163 = vmatpush1.xpose.msra.mxu0 0.0
        %4164 = vmatprep.subr.mxu0 0.0
        %4165 = vmatpush1.xpose.msra.mxu0 0.0
        %4166 = vmatprep.subr.mxu0 0.0
        %4167 = vmatpush1.xpose.msra.mxu0 0.0
        %4168 = vmatprep.subr.mxu0 0.0
        %4169 = vmatpush1.xpose.msra.mxu0 0.0
        %4170 = vmatprep.subr.mxu0 0.0
        %4171 = vmatpush1.xpose.msra.mxu0 0.0
        %4172 = vmatprep.subr.mxu0 0.0
        %4173 = vmatpush1.xpose.msra.mxu0 0.0
        %4174 = vmatprep.subr.mxu0 0.0
        %4175 = vmatpush1.xpose.msra.mxu0 0.0
        %4176 = vmatprep.subr.mxu0 0.0
        %4177 = vmatpush1.xpose.msra.mxu0 0.0
        %4178 = vmatprep.subr.mxu0 0.0
        %4179 = vmatpush1.xpose.msra.mxu0 0.0
        %4180 = vmatprep.subr.mxu0 0.0
        %4181 = vmatpush1.xpose.msra.mxu0 0.0
        %4182 = vmatprep.subr.mxu0 0.0
        %4183 = vmatpush1.xpose.msra.mxu0 0.0
        %4184 = vmatprep.subr.mxu0 0.0
        %4185 = vmatpush1.xpose.msra.mxu0 0.0
        %4186 = vmatprep.subr.mxu0 0.0
        %4187 = vmatpush1.xpose.msra.mxu0 0.0
        %4188 = vmatprep.subr.mxu0 0.0
        %4189 = vmatpush1.xpose.msra.mxu0 0.0
        %4190 = vmatprep.subr.mxu0 0.0
        %4191 = vmatpush1.xpose.msra.mxu0 0.0
        %4192 = vmatprep.subr.mxu0 0.0
        %4193 = vmatpush1.xpose.msra.mxu0 0.0
        %4194 = vmatprep.subr.mxu0 0.0
        %4195 = vmatpush1.xpose.msra.mxu0 0.0
        %4196 = vmatprep.subr.mxu0 0.0
        %4197 = vmatpush1.xpose.msra.mxu0 0.0
        %4198 = vmatprep.subr.mxu0 0.0
        %4199 = vmatpush1.xpose.msra.mxu0 0.0
        %4200 = vmatprep.subr.mxu0 0.0
        %4201 = vmatpush1.xpose.msra.mxu0 0.0
        %4202 = vmatprep.subr.mxu0 0.0
        %4203 = vmatpush1.xpose.msra.mxu0 0.0
        %4204 = vmatprep.mubr.f32.mxu0 0.0
        %4205 = vmatmul.mubr.f32.gmra.mrb[0].mxu0 %v4136
        %v4206 = vpop.f32.mrb[0].mxu0
        %v4207 = vadd.f32 0.0, %v4206
        %v4208 = vpop.f32.mrb[0].mxu0
        %4209 = vdwg.mxu0
        %v4210 = vmul.f32 %v4207, 0.35355338
        %v4211 = vsel %vm1451, %v4210, -inf
        %4212 = vmax.xlane.f32.xlu0 %v4211
        %v4213 = vpop.xlane.xlu0 %4212
        %v4214 = vsub.f32 %v4210, %v4213
        %v4215 = vmul.f32 %v4214, 1.442695
        %v4216 = vpow.pop %v4215
        %v4217 = vsel %vm1451, %v4216, 0.0
        %4218 = vadd.xlane.f32.xlu0 %v4217
        %v4219 = vpop.xlane.xlu0 %4218
        %v4220 = vrcp.pop %v4219
        %v4221 = vmul.f32 %v4216, %v4220
        %4222 = vrot.lane.b32.xlu0 %v3878, 56
        %v4223 = vpop.permute.xlu0 %4222
        %v4225 = vsel %vm1465, %v4221, 0
        %v4227 = vsel %vm1469, %v4223, 0
        %4229 = vmatprep.subr.mxu0 0.0
        %4230 = vmatpush1.msra.mxu0 %v4227
        %4231 = vmatprep.subr.mxu0 0.0
        %4232 = vmatpush1.msra.mxu0 0.0
        %4233 = vmatprep.subr.mxu0 0.0
        %4234 = vmatpush1.msra.mxu0 0.0
        %4235 = vmatprep.subr.mxu0 0.0
        %4236 = vmatpush1.msra.mxu0 0.0
        %4237 = vmatprep.subr.mxu0 0.0
        %4238 = vmatpush1.msra.mxu0 0.0
        %4239 = vmatprep.subr.mxu0 0.0
        %4240 = vmatpush1.msra.mxu0 0.0
        %4241 = vmatprep.subr.mxu0 0.0
        %4242 = vmatpush1.msra.mxu0 0.0
        %4243 = vmatprep.subr.mxu0 0.0
        %4244 = vmatpush1.msra.mxu0 0.0
        %4245 = vmatprep.subr.mxu0 0.0
        %4246 = vmatpush1.msra.mxu0 0.0
        %4247 = vmatprep.subr.mxu0 0.0
        %4248 = vmatpush1.msra.mxu0 0.0
        %4249 = vmatprep.subr.mxu0 0.0
        %4250 = vmatpush1.msra.mxu0 0.0
        %4251 = vmatprep.subr.mxu0 0.0
        %4252 = vmatpush1.msra.mxu0 0.0
        %4253 = vmatprep.subr.mxu0 0.0
        %4254 = vmatpush1.msra.mxu0 0.0
        %4255 = vmatprep.subr.mxu0 0.0
        %4256 = vmatpush1.msra.mxu0 0.0
        %4257 = vmatprep.subr.mxu0 0.0
        %4258 = vmatpush1.msra.mxu0 0.0
        %4259 = vmatprep.subr.mxu0 0.0
        %4260 = vmatpush1.msra.mxu0 0.0
        %4261 = vmatprep.subr.mxu0 0.0
        %4262 = vmatpush1.msra.mxu0 0.0
        %4263 = vmatprep.subr.mxu0 0.0
        %4264 = vmatpush1.msra.mxu0 0.0
        %4265 = vmatprep.subr.mxu0 0.0
        %4266 = vmatpush1.msra.mxu0 0.0
        %4267 = vmatprep.subr.mxu0 0.0
        %4268 = vmatpush1.msra.mxu0 0.0
        %4269 = vmatprep.subr.mxu0 0.0
        %4270 = vmatpush1.msra.mxu0 0.0
        %4271 = vmatprep.subr.mxu0 0.0
        %4272 = vmatpush1.msra.mxu0 0.0
        %4273 = vmatprep.subr.mxu0 0.0
        %4274 = vmatpush1.msra.mxu0 0.0
        %4275 = vmatprep.subr.mxu0 0.0
        %4276 = vmatpush1.msra.mxu0 0.0
        %4277 = vmatprep.subr.mxu0 0.0
        %4278 = vmatpush1.msra.mxu0 0.0
        %4279 = vmatprep.subr.mxu0 0.0
        %4280 = vmatpush1.msra.mxu0 0.0
        %4281 = vmatprep.subr.mxu0 0.0
        %4282 = vmatpush1.msra.mxu0 0.0
        %4283 = vmatprep.subr.mxu0 0.0
        %4284 = vmatpush1.msra.mxu0 0.0
        %4285 = vmatprep.subr.mxu0 0.0
        %4286 = vmatpush1.msra.mxu0 0.0
        %4287 = vmatprep.subr.mxu0 0.0
        %4288 = vmatpush1.msra.mxu0 0.0
        %4289 = vmatprep.subr.mxu0 0.0
        %4290 = vmatpush1.msra.mxu0 0.0
        %4291 = vmatprep.subr.mxu0 0.0
        %4292 = vmatpush1.msra.mxu0 0.0
        %4293 = vmatprep.mubr.f32.mxu0 0.0
        %4294 = vmatmul.mubr.f32.gmra.mrb[0].mxu0 %v4225
        %v4295 = vpop.f32.mrb[0].mxu0
        %v4296 = vadd.f32 0.0, %v4295
        %v4297 = vpop.f32.mrb[0].mxu0
        %4298 = vdwg.mxu0
        %v4300 = vsel %vm1375, %v4296, 0
        %4302 = vmatprep.subr.mxu0 0.0
        %4303 = vmatpush1.msra.mxu0 %v3882
        %4304 = vmatprep.subr.mxu0 0.0
        %4305 = vmatpush1.msra.mxu0 0.0
        %4306 = vmatprep.subr.mxu0 0.0
        %4307 = vmatpush1.msra.mxu0 0.0
        %4308 = vmatprep.subr.mxu0 0.0
        %4309 = vmatpush1.msra.mxu0 0.0
        %4310 = vmatprep.subr.mxu0 0.0
        %4311 = vmatpush1.msra.mxu0 0.0
        %4312 = vmatprep.subr.mxu0 0.0
        %4313 = vmatpush1.msra.mxu0 0.0
        %4314 = vmatprep.subr.mxu0 0.0
        %4315 = vmatpush1.msra.mxu0 0.0
        %4316 = vmatprep.subr.mxu0 0.0
        %4317 = vmatpush1.msra.mxu0 0.0
        %4318 = vmatprep.subr.mxu0 0.0
        %4319 = vmatpush1.msra.mxu0 0.0
        %4320 = vmatprep.subr.mxu0 0.0
        %4321 = vmatpush1.msra.mxu0 0.0
        %4322 = vmatprep.subr.mxu0 0.0
        %4323 = vmatpush1.msra.mxu0 0.0
        %4324 = vmatprep.subr.mxu0 0.0
        %4325 = vmatpush1.msra.mxu0 0.0
        %4326 = vmatprep.subr.mxu0 0.0
        %4327 = vmatpush1.msra.mxu0 0.0
        %4328 = vmatprep.subr.mxu0 0.0
        %4329 = vmatpush1.msra.mxu0 0.0
        %4330 = vmatprep.subr.mxu0 0.0
        %4331 = vmatpush1.msra.mxu0 0.0
        %4332 = vmatprep.subr.mxu0 0.0
        %4333 = vmatpush1.msra.mxu0 0.0
        %4334 = vmatprep.subr.mxu0 0.0
        %4335 = vmatpush1.msra.mxu0 0.0
        %4336 = vmatprep.subr.mxu0 0.0
        %4337 = vmatpush1.msra.mxu0 0.0
        %4338 = vmatprep.subr.mxu0 0.0
        %4339 = vmatpush1.msra.mxu0 0.0
        %4340 = vmatprep.subr.mxu0 0.0
        %4341 = vmatpush1.msra.mxu0 0.0
        %4342 = vmatprep.subr.mxu0 0.0
        %4343 = vmatpush1.msra.mxu0 0.0
        %4344 = vmatprep.subr.mxu0 0.0
        %4345 = vmatpush1.msra.mxu0 0.0
        %4346 = vmatprep.subr.mxu0 0.0
        %4347 = vmatpush1.msra.mxu0 0.0
        %4348 = vmatprep.subr.mxu0 0.0
        %4349 = vmatpush1.msra.mxu0 0.0
        %4350 = vmatprep.subr.mxu0 0.0
        %4351 = vmatpush1.msra.mxu0 0.0
        %4352 = vmatprep.subr.mxu0 0.0
        %4353 = vmatpush1.msra.mxu0 0.0
        %4354 = vmatprep.subr.mxu0 0.0
        %4355 = vmatpush1.msra.mxu0 0.0
        %4356 = vmatprep.subr.mxu0 0.0
        %4357 = vmatpush1.msra.mxu0 0.0
        %4358 = vmatprep.subr.mxu0 0.0
        %4359 = vmatpush1.msra.mxu0 0.0
        %4360 = vmatprep.subr.mxu0 0.0
        %4361 = vmatpush1.msra.mxu0 0.0
        %4362 = vmatprep.subr.mxu0 0.0
        %4363 = vmatpush1.msra.mxu0 0.0
        %4364 = vmatprep.subr.mxu0 0.0
        %4365 = vmatpush1.msra.mxu0 0.0
        %4366 = vmatprep.mubr.f32.mxu0 0.0
        %4367 = vmatmul.mubr.f32.gmra.mrb[0].mxu0 %v4300
        %v4368 = vpop.f32.mrb[0].mxu0
        %v4369 = vadd.f32 0.0, %v4368
        %v4370 = vpop.f32.mrb[0].mxu0
        %4371 = vdwg.mxu0
        %v4372 = vadd.f32 %v4131, %v4369
        %4373 = vrot.lane.b32.xlu0 %v3878, 112
        %v4374 = vpop.permute.xlu0 %4373
        %4375 = vrot.lane.b32.xlu0 %v3878, 80
        %v4376 = vpop.permute.xlu0 %4375
        %v4377 = vsel %vm1375, %v4374, 0
        %v4379 = vsel %vm1375, %v4376, 0
        %4381 = vmatprep.subr.mxu0 0.0
        %4382 = vmatpush1.xpose.msra.mxu0 %v4379
        %4383 = vmatprep.subr.mxu0 0.0
        %4384 = vmatpush1.xpose.msra.mxu0 0.0
        %4385 = vmatprep.subr.mxu0 0.0
        %4386 = vmatpush1.xpose.msra.mxu0 0.0
        %4387 = vmatprep.subr.mxu0 0.0
        %4388 = vmatpush1.xpose.msra.mxu0 0.0
        %4389 = vmatprep.subr.mxu0 0.0
        %4390 = vmatpush1.xpose.msra.mxu0 0.0
        %4391 = vmatprep.subr.mxu0 0.0
        %4392 = vmatpush1.xpose.msra.mxu0 0.0
        %4393 = vmatprep.subr.mxu0 0.0
        %4394 = vmatpush1.xpose.msra.mxu0 0.0
        %4395 = vmatprep.subr.mxu0 0.0
        %4396 = vmatpush1.xpose.msra.mxu0 0.0
        %4397 = vmatprep.subr.mxu0 0.0
        %4398 = vmatpush1.xpose.msra.mxu0 0.0
        %4399 = vmatprep.subr.mxu0 0.0
        %4400 = vmatpush1.xpose.msra.mxu0 0.0
        %4401 = vmatprep.subr.mxu0 0.0
        %4402 = vmatpush1.xpose.msra.mxu0 0.0
        %4403 = vmatprep.subr.mxu0 0.0
        %4404 = vmatpush1.xpose.msra.mxu0 0.0
        %4405 = vmatprep.subr.mxu0 0.0
        %4406 = vmatpush1.xpose.msra.mxu0 0.0
        %4407 = vmatprep.subr.mxu0 0.0
        %4408 = vmatpush1.xpose.msra.mxu0 0.0
        %4409 = vmatprep.subr.mxu0 0.0
        %4410 = vmatpush1.xpose.msra.mxu0 0.0
        %4411 = vmatprep.subr.mxu0 0.0
        %4412 = vmatpush1.xpose.msra.mxu0 0.0
        %4413 = vmatprep.subr.mxu0 0.0
        %4414 = vmatpush1.xpose.msra.mxu0 0.0
        %4415 = vmatprep.subr.mxu0 0.0
        %4416 = vmatpush1.xpose.msra.mxu0 0.0
        %4417 = vmatprep.subr.mxu0 0.0
        %4418 = vmatpush1.xpose.msra.mxu0 0.0
        %4419 = vmatprep.subr.mxu0 0.0
        %4420 = vmatpush1.xpose.msra.mxu0 0.0
        %4421 = vmatprep.subr.mxu0 0.0
        %4422 = vmatpush1.xpose.msra.mxu0 0.0
        %4423 = vmatprep.subr.mxu0 0.0
        %4424 = vmatpush1.xpose.msra.mxu0 0.0
        %4425 = vmatprep.subr.mxu0 0.0
        %4426 = vmatpush1.xpose.msra.mxu0 0.0
        %4427 = vmatprep.subr.mxu0 0.0
        %4428 = vmatpush1.xpose.msra.mxu0 0.0
        %4429 = vmatprep.subr.mxu0 0.0
        %4430 = vmatpush1.xpose.msra.mxu0 0.0
        %4431 = vmatprep.subr.mxu0 0.0
        %4432 = vmatpush1.xpose.msra.mxu0 0.0
        %4433 = vmatprep.subr.mxu0 0.0
        %4434 = vmatpush1.xpose.msra.mxu0 0.0
        %4435 = vmatprep.subr.mxu0 0.0
        %4436 = vmatpush1.xpose.msra.mxu0 0.0
        %4437 = vmatprep.subr.mxu0 0.0
        %4438 = vmatpush1.xpose.msra.mxu0 0.0
        %4439 = vmatprep.subr.mxu0 0.0
        %4440 = vmatpush1.xpose.msra.mxu0 0.0
        %4441 = vmatprep.subr.mxu0 0.0
        %4442 = vmatpush1.xpose.msra.mxu0 0.0
        %4443 = vmatprep.subr.mxu0 0.0
        %4444 = vmatpush1.xpose.msra.mxu0 0.0
        %4445 = vmatprep.mubr.f32.mxu0 0.0
        %4446 = vmatmul.mubr.f32.gmra.mrb[0].mxu0 %v4377
        %v4447 = vpop.f32.mrb[0].mxu0
        %v4448 = vadd.f32 0.0, %v4447
        %v4449 = vpop.f32.mrb[0].mxu0
        %4450 = vdwg.mxu0
        %v4451 = vmul.f32 %v4448, 0.35355338
        %v4452 = vsel %vm1451, %v4451, -inf
        %4453 = vmax.xlane.f32.xlu0 %v4452
        %v4454 = vpop.xlane.xlu0 %4453
        %v4455 = vsub.f32 %v4451, %v4454
        %v4456 = vmul.f32 %v4455, 1.442695
        %v4457 = vpow.pop %v4456
        %v4458 = vsel %vm1451, %v4457, 0.0
        %4459 = vadd.xlane.f32.xlu0 %v4458
        %v4460 = vpop.xlane.xlu0 %4459
        %v4461 = vrcp.pop %v4460
        %v4462 = vmul.f32 %v4457, %v4461
        %4463 = vrot.lane.b32.xlu0 %v3878, 48
        %v4464 = vpop.permute.xlu0 %4463
        %v4466 = vsel %vm1465, %v4462, 0
        %v4468 = vsel %vm1469, %v4464, 0
        %4470 = vmatprep.subr.mxu0 0.0
        %4471 = vmatpush1.msra.mxu0 %v4468
        %4472 = vmatprep.subr.mxu0 0.0
        %4473 = vmatpush1.msra.mxu0 0.0
        %4474 = vmatprep.subr.mxu0 0.0
        %4475 = vmatpush1.msra.mxu0 0.0
        %4476 = vmatprep.subr.mxu0 0.0
        %4477 = vmatpush1.msra.mxu0 0.0
        %4478 = vmatprep.subr.mxu0 0.0
        %4479 = vmatpush1.msra.mxu0 0.0
        %4480 = vmatprep.subr.mxu0 0.0
        %4481 = vmatpush1.msra.mxu0 0.0
        %4482 = vmatprep.subr.mxu0 0.0
        %4483 = vmatpush1.msra.mxu0 0.0
        %4484 = vmatprep.subr.mxu0 0.0
        %4485 = vmatpush1.msra.mxu0 0.0
        %4486 = vmatprep.subr.mxu0 0.0
        %4487 = vmatpush1.msra.mxu0 0.0
        %4488 = vmatprep.subr.mxu0 0.0
        %4489 = vmatpush1.msra.mxu0 0.0
        %4490 = vmatprep.subr.mxu0 0.0
        %4491 = vmatpush1.msra.mxu0 0.0
        %4492 = vmatprep.subr.mxu0 0.0
        %4493 = vmatpush1.msra.mxu0 0.0
        %4494 = vmatprep.subr.mxu0 0.0
        %4495 = vmatpush1.msra.mxu0 0.0
        %4496 = vmatprep.subr.mxu0 0.0
        %4497 = vmatpush1.msra.mxu0 0.0
        %4498 = vmatprep.subr.mxu0 0.0
        %4499 = vmatpush1.msra.mxu0 0.0
        %4500 = vmatprep.subr.mxu0 0.0
        %4501 = vmatpush1.msra.mxu0 0.0
        %4502 = vmatprep.subr.mxu0 0.0
        %4503 = vmatpush1.msra.mxu0 0.0
        %4504 = vmatprep.subr.mxu0 0.0
        %4505 = vmatpush1.msra.mxu0 0.0
        %4506 = vmatprep.subr.mxu0 0.0
        %4507 = vmatpush1.msra.mxu0 0.0
        %4508 = vmatprep.subr.mxu0 0.0
        %4509 = vmatpush1.msra.mxu0 0.0
        %4510 = vmatprep.subr.mxu0 0.0
        %4511 = vmatpush1.msra.mxu0 0.0
        %4512 = vmatprep.subr.mxu0 0.0
        %4513 = vmatpush1.msra.mxu0 0.0
        %4514 = vmatprep.subr.mxu0 0.0
        %4515 = vmatpush1.msra.mxu0 0.0
        %4516 = vmatprep.subr.mxu0 0.0
        %4517 = vmatpush1.msra.mxu0 0.0
        %4518 = vmatprep.subr.mxu0 0.0
        %4519 = vmatpush1.msra.mxu0 0.0
        %4520 = vmatprep.subr.mxu0 0.0
        %4521 = vmatpush1.msra.mxu0 0.0
        %4522 = vmatprep.subr.mxu0 0.0
        %4523 = vmatpush1.msra.mxu0 0.0
        %4524 = vmatprep.subr.mxu0 0.0
        %4525 = vmatpush1.msra.mxu0 0.0
        %4526 = vmatprep.subr.mxu0 0.0
        %4527 = vmatpush1.msra.mxu0 0.0
        %4528 = vmatprep.subr.mxu0 0.0
        %4529 = vmatpush1.msra.mxu0 0.0
        %4530 = vmatprep.subr.mxu0 0.0
        %4531 = vmatpush1.msra.mxu0 0.0
        %4532 = vmatprep.subr.mxu0 0.0
        %4533 = vmatpush1.msra.mxu0 0.0
        %4534 = vmatprep.mubr.f32.mxu0 0.0
        %4535 = vmatmul.mubr.f32.gmra.mrb[0].mxu0 %v4466
        %v4536 = vpop.f32.mrb[0].mxu0
        %v4537 = vadd.f32 0.0, %v4536
        %v4538 = vpop.f32.mrb[0].mxu0
        %4539 = vdwg.mxu0
        %v4541 = vsel %vm1375, %v4537, 0
        %4543 = vmatprep.subr.mxu0 0.0
        %4544 = vmatpush1.msra.mxu0 %v3883
        %4545 = vmatprep.subr.mxu0 0.0
        %4546 = vmatpush1.msra.mxu0 0.0
        %4547 = vmatprep.subr.mxu0 0.0
        %4548 = vmatpush1.msra.mxu0 0.0
        %4549 = vmatprep.subr.mxu0 0.0
        %4550 = vmatpush1.msra.mxu0 0.0
        %4551 = vmatprep.subr.mxu0 0.0
        %4552 = vmatpush1.msra.mxu0 0.0
        %4553 = vmatprep.subr.mxu0 0.0
        %4554 = vmatpush1.msra.mxu0 0.0
        %4555 = vmatprep.subr.mxu0 0.0
        %4556 = vmatpush1.msra.mxu0 0.0
        %4557 = vmatprep.subr.mxu0 0.0
        %4558 = vmatpush1.msra.mxu0 0.0
        %4559 = vmatprep.subr.mxu0 0.0
        %4560 = vmatpush1.msra.mxu0 0.0
        %4561 = vmatprep.subr.mxu0 0.0
        %4562 = vmatpush1.msra.mxu0 0.0
        %4563 = vmatprep.subr.mxu0 0.0
        %4564 = vmatpush1.msra.mxu0 0.0
        %4565 = vmatprep.subr.mxu0 0.0
        %4566 = vmatpush1.msra.mxu0 0.0
        %4567 = vmatprep.subr.mxu0 0.0
        %4568 = vmatpush1.msra.mxu0 0.0
        %4569 = vmatprep.subr.mxu0 0.0
        %4570 = vmatpush1.msra.mxu0 0.0
        %4571 = vmatprep.subr.mxu0 0.0
        %4572 = vmatpush1.msra.mxu0 0.0
        %4573 = vmatprep.subr.mxu0 0.0
        %4574 = vmatpush1.msra.mxu0 0.0
        %4575 = vmatprep.subr.mxu0 0.0
        %4576 = vmatpush1.msra.mxu0 0.0
        %4577 = vmatprep.subr.mxu0 0.0
        %4578 = vmatpush1.msra.mxu0 0.0
        %4579 = vmatprep.subr.mxu0 0.0
        %4580 = vmatpush1.msra.mxu0 0.0
        %4581 = vmatprep.subr.mxu0 0.0
        %4582 = vmatpush1.msra.mxu0 0.0
        %4583 = vmatprep.subr.mxu0 0.0
        %4584 = vmatpush1.msra.mxu0 0.0
        %4585 = vmatprep.subr.mxu0 0.0
        %4586 = vmatpush1.msra.mxu0 0.0
        %4587 = vmatprep.subr.mxu0 0.0
        %4588 = vmatpush1.msra.mxu0 0.0
        %4589 = vmatprep.subr.mxu0 0.0
        %4590 = vmatpush1.msra.mxu0 0.0
        %4591 = vmatprep.subr.mxu0 0.0
        %4592 = vmatpush1.msra.mxu0 0.0
        %4593 = vmatprep.subr.mxu0 0.0
        %4594 = vmatpush1.msra.mxu0 0.0
        %4595 = vmatprep.subr.mxu0 0.0
        %4596 = vmatpush1.msra.mxu0 0.0
        %4597 = vmatprep.subr.mxu0 0.0
        %4598 = vmatpush1.msra.mxu0 0.0
        %4599 = vmatprep.subr.mxu0 0.0
        %4600 = vmatpush1.msra.mxu0 0.0
        %4601 = vmatprep.subr.mxu0 0.0
        %4602 = vmatpush1.msra.mxu0 0.0
        %4603 = vmatprep.subr.mxu0 0.0
        %4604 = vmatpush1.msra.mxu0 0.0
        %4605 = vmatprep.subr.mxu0 0.0
        %4606 = vmatpush1.msra.mxu0 0.0
        %4607 = vmatprep.mubr.f32.mxu0 0.0
        %4608 = vmatmul.mubr.f32.gmra.mrb[0].mxu0 %v4541
        %v4609 = vpop.f32.mrb[0].mxu0
        %v4610 = vadd.f32 0.0, %v4609
        %v4611 = vpop.f32.mrb[0].mxu0
        %4612 = vdwg.mxu0
        %v4613 = vadd.f32 %v4372, %v4610
        %4614 = vrot.lane.b32.xlu0 %v3878, 104
        %v4615 = vpop.permute.xlu0 %4614
        %4616 = vrot.lane.b32.xlu0 %v3878, 72
        %v4617 = vpop.permute.xlu0 %4616
        %v4618 = vsel %vm1375, %v4615, 0
        %v4620 = vsel %vm1375, %v4617, 0
        %4622 = vmatprep.subr.mxu0 0.0
        %4623 = vmatpush1.xpose.msra.mxu0 %v4620
        %4624 = vmatprep.subr.mxu0 0.0
        %4625 = vmatpush1.xpose.msra.mxu0 0.0
        %4626 = vmatprep.subr.mxu0 0.0
        %4627 = vmatpush1.xpose.msra.mxu0 0.0
        %4628 = vmatprep.subr.mxu0 0.0
        %4629 = vmatpush1.xpose.msra.mxu0 0.0
        %4630 = vmatprep.subr.mxu0 0.0
        %4631 = vmatpush1.xpose.msra.mxu0 0.0
        %4632 = vmatprep.subr.mxu0 0.0
        %4633 = vmatpush1.xpose.msra.mxu0 0.0
        %4634 = vmatprep.subr.mxu0 0.0
        %4635 = vmatpush1.xpose.msra.mxu0 0.0
        %4636 = vmatprep.subr.mxu0 0.0
        %4637 = vmatpush1.xpose.msra.mxu0 0.0
        %4638 = vmatprep.subr.mxu0 0.0
        %4639 = vmatpush1.xpose.msra.mxu0 0.0
        %4640 = vmatprep.subr.mxu0 0.0
        %4641 = vmatpush1.xpose.msra.mxu0 0.0
        %4642 = vmatprep.subr.mxu0 0.0
        %4643 = vmatpush1.xpose.msra.mxu0 0.0
        %4644 = vmatprep.subr.mxu0 0.0
        %4645 = vmatpush1.xpose.msra.mxu0 0.0
        %4646 = vmatprep.subr.mxu0 0.0
        %4647 = vmatpush1.xpose.msra.mxu0 0.0
        %4648 = vmatprep.subr.mxu0 0.0
        %4649 = vmatpush1.xpose.msra.mxu0 0.0
        %4650 = vmatprep.subr.mxu0 0.0
        %4651 = vmatpush1.xpose.msra.mxu0 0.0
        %4652 = vmatprep.subr.mxu0 0.0
        %4653 = vmatpush1.xpose.msra.mxu0 0.0
        %4654 = vmatprep.subr.mxu0 0.0
        %4655 = vmatpush1.xpose.msra.mxu0 0.0
        %4656 = vmatprep.subr.mxu0 0.0
        %4657 = vmatpush1.xpose.msra.mxu0 0.0
        %4658 = vmatprep.subr.mxu0 0.0
        %4659 = vmatpush1.xpose.msra.mxu0 0.0
        %4660 = vmatprep.subr.mxu0 0.0
        %4661 = vmatpush1.xpose.msra.mxu0 0.0
        %4662 = vmatprep.subr.mxu0 0.0
        %4663 = vmatpush1.xpose.msra.mxu0 0.0
        %4664 = vmatprep.subr.mxu0 0.0
        %4665 = vmatpush1.xpose.msra.mxu0 0.0
        %4666 = vmatprep.subr.mxu0 0.0
        %4667 = vmatpush1.xpose.msra.mxu0 0.0
        %4668 = vmatprep.subr.mxu0 0.0
        %4669 = vmatpush1.xpose.msra.mxu0 0.0
        %4670 = vmatprep.subr.mxu0 0.0
        %4671 = vmatpush1.xpose.msra.mxu0 0.0
        %4672 = vmatprep.subr.mxu0 0.0
        %4673 = vmatpush1.xpose.msra.mxu0 0.0
        %4674 = vmatprep.subr.mxu0 0.0
        %4675 = vmatpush1.xpose.msra.mxu0 0.0
        %4676 = vmatprep.subr.mxu0 0.0
        %4677 = vmatpush1.xpose.msra.mxu0 0.0
        %4678 = vmatprep.subr.mxu0 0.0
        %4679 = vmatpush1.xpose.msra.mxu0 0.0
        %4680 = vmatprep.subr.mxu0 0.0
        %4681 = vmatpush1.xpose.msra.mxu0 0.0
        %4682 = vmatprep.subr.mxu0 0.0
        %4683 = vmatpush1.xpose.msra.mxu0 0.0
        %4684 = vmatprep.subr.mxu0 0.0
        %4685 = vmatpush1.xpose.msra.mxu0 0.0
        %4686 = vmatprep.mubr.f32.mxu0 0.0
        %4687 = vmatmul.mubr.f32.gmra.mrb[0].mxu0 %v4618
        %v4688 = vpop.f32.mrb[0].mxu0
        %v4689 = vadd.f32 0.0, %v4688
        %v4690 = vpop.f32.mrb[0].mxu0
        %4691 = vdwg.mxu0
        %v4692 = vmul.f32 %v4689, 0.35355338
        %v4693 = vsel %vm1451, %v4692, -inf
        %4694 = vmax.xlane.f32.xlu0 %v4693
        %v4695 = vpop.xlane.xlu0 %4694
        %v4696 = vsub.f32 %v4692, %v4695
        %v4697 = vmul.f32 %v4696, 1.442695
        %v4698 = vpow.pop %v4697
        %v4699 = vsel %vm1451, %v4698, 0.0
        %4700 = vadd.xlane.f32.xlu0 %v4699
        %v4701 = vpop.xlane.xlu0 %4700
        %v4702 = vrcp.pop %v4701
        %v4703 = vmul.f32 %v4698, %v4702
        %4704 = vrot.lane.b32.xlu0 %v3878, 40
        %v4705 = vpop.permute.xlu0 %4704
        %v4707 = vsel %vm1465, %v4703, 0
        %v4709 = vsel %vm1469, %v4705, 0
        %4711 = vmatprep.subr.mxu0 0.0
        %4712 = vmatpush1.msra.mxu0 %v4709
        %4713 = vmatprep.subr.mxu0 0.0
        %4714 = vmatpush1.msra.mxu0 0.0
        %4715 = vmatprep.subr.mxu0 0.0
        %4716 = vmatpush1.msra.mxu0 0.0
        %4717 = vmatprep.subr.mxu0 0.0
        %4718 = vmatpush1.msra.mxu0 0.0
        %4719 = vmatprep.subr.mxu0 0.0
        %4720 = vmatpush1.msra.mxu0 0.0
        %4721 = vmatprep.subr.mxu0 0.0
        %4722 = vmatpush1.msra.mxu0 0.0
        %4723 = vmatprep.subr.mxu0 0.0
        %4724 = vmatpush1.msra.mxu0 0.0
        %4725 = vmatprep.subr.mxu0 0.0
        %4726 = vmatpush1.msra.mxu0 0.0
        %4727 = vmatprep.subr.mxu0 0.0
        %4728 = vmatpush1.msra.mxu0 0.0
        %4729 = vmatprep.subr.mxu0 0.0
        %4730 = vmatpush1.msra.mxu0 0.0
        %4731 = vmatprep.subr.mxu0 0.0
        %4732 = vmatpush1.msra.mxu0 0.0
        %4733 = vmatprep.subr.mxu0 0.0
        %4734 = vmatpush1.msra.mxu0 0.0
        %4735 = vmatprep.subr.mxu0 0.0
        %4736 = vmatpush1.msra.mxu0 0.0
        %4737 = vmatprep.subr.mxu0 0.0
        %4738 = vmatpush1.msra.mxu0 0.0
        %4739 = vmatprep.subr.mxu0 0.0
        %4740 = vmatpush1.msra.mxu0 0.0
        %4741 = vmatprep.subr.mxu0 0.0
        %4742 = vmatpush1.msra.mxu0 0.0
        %4743 = vmatprep.subr.mxu0 0.0
        %4744 = vmatpush1.msra.mxu0 0.0
        %4745 = vmatprep.subr.mxu0 0.0
        %4746 = vmatpush1.msra.mxu0 0.0
        %4747 = vmatprep.subr.mxu0 0.0
        %4748 = vmatpush1.msra.mxu0 0.0
        %4749 = vmatprep.subr.mxu0 0.0
        %4750 = vmatpush1.msra.mxu0 0.0
        %4751 = vmatprep.subr.mxu0 0.0
        %4752 = vmatpush1.msra.mxu0 0.0
        %4753 = vmatprep.subr.mxu0 0.0
        %4754 = vmatpush1.msra.mxu0 0.0
        %4755 = vmatprep.subr.mxu0 0.0
        %4756 = vmatpush1.msra.mxu0 0.0
        %4757 = vmatprep.subr.mxu0 0.0
        %4758 = vmatpush1.msra.mxu0 0.0
        %4759 = vmatprep.subr.mxu0 0.0
        %4760 = vmatpush1.msra.mxu0 0.0
        %4761 = vmatprep.subr.mxu0 0.0
        %4762 = vmatpush1.msra.mxu0 0.0
        %4763 = vmatprep.subr.mxu0 0.0
        %4764 = vmatpush1.msra.mxu0 0.0
        %4765 = vmatprep.subr.mxu0 0.0
        %4766 = vmatpush1.msra.mxu0 0.0
        %4767 = vmatprep.subr.mxu0 0.0
        %4768 = vmatpush1.msra.mxu0 0.0
        %4769 = vmatprep.subr.mxu0 0.0
        %4770 = vmatpush1.msra.mxu0 0.0
        %4771 = vmatprep.subr.mxu0 0.0
        %4772 = vmatpush1.msra.mxu0 0.0
        %4773 = vmatprep.subr.mxu0 0.0
        %4774 = vmatpush1.msra.mxu0 0.0
        %4775 = vmatprep.mubr.f32.mxu0 0.0
        %4776 = vmatmul.mubr.f32.gmra.mrb[0].mxu0 %v4707
        %v4777 = vpop.f32.mrb[0].mxu0
        %v4778 = vadd.f32 0.0, %v4777
        %v4779 = vpop.f32.mrb[0].mxu0
        %4780 = vdwg.mxu0
        %v4782 = vsel %vm1375, %v4778, 0
        %4784 = vmatprep.subr.mxu0 0.0
        %4785 = vmatpush1.msra.mxu0 %v3884
        %4786 = vmatprep.subr.mxu0 0.0
        %4787 = vmatpush1.msra.mxu0 0.0
        %4788 = vmatprep.subr.mxu0 0.0
        %4789 = vmatpush1.msra.mxu0 0.0
        %4790 = vmatprep.subr.mxu0 0.0
        %4791 = vmatpush1.msra.mxu0 0.0
        %4792 = vmatprep.subr.mxu0 0.0
        %4793 = vmatpush1.msra.mxu0 0.0
        %4794 = vmatprep.subr.mxu0 0.0
        %4795 = vmatpush1.msra.mxu0 0.0
        %4796 = vmatprep.subr.mxu0 0.0
        %4797 = vmatpush1.msra.mxu0 0.0
        %4798 = vmatprep.subr.mxu0 0.0
        %4799 = vmatpush1.msra.mxu0 0.0
        %4800 = vmatprep.subr.mxu0 0.0
        %4801 = vmatpush1.msra.mxu0 0.0
        %4802 = vmatprep.subr.mxu0 0.0
        %4803 = vmatpush1.msra.mxu0 0.0
        %4804 = vmatprep.subr.mxu0 0.0
        %4805 = vmatpush1.msra.mxu0 0.0
        %4806 = vmatprep.subr.mxu0 0.0
        %4807 = vmatpush1.msra.mxu0 0.0
        %4808 = vmatprep.subr.mxu0 0.0
        %4809 = vmatpush1.msra.mxu0 0.0
        %4810 = vmatprep.subr.mxu0 0.0
        %4811 = vmatpush1.msra.mxu0 0.0
        %4812 = vmatprep.subr.mxu0 0.0
        %4813 = vmatpush1.msra.mxu0 0.0
        %4814 = vmatprep.subr.mxu0 0.0
        %4815 = vmatpush1.msra.mxu0 0.0
        %4816 = vmatprep.subr.mxu0 0.0
        %4817 = vmatpush1.msra.mxu0 0.0
        %4818 = vmatprep.subr.mxu0 0.0
        %4819 = vmatpush1.msra.mxu0 0.0
        %4820 = vmatprep.subr.mxu0 0.0
        %4821 = vmatpush1.msra.mxu0 0.0
        %4822 = vmatprep.subr.mxu0 0.0
        %4823 = vmatpush1.msra.mxu0 0.0
        %4824 = vmatprep.subr.mxu0 0.0
        %4825 = vmatpush1.msra.mxu0 0.0
        %4826 = vmatprep.subr.mxu0 0.0
        %4827 = vmatpush1.msra.mxu0 0.0
        %4828 = vmatprep.subr.mxu0 0.0
        %4829 = vmatpush1.msra.mxu0 0.0
        %4830 = vmatprep.subr.mxu0 0.0
        %4831 = vmatpush1.msra.mxu0 0.0
        %4832 = vmatprep.subr.mxu0 0.0
        %4833 = vmatpush1.msra.mxu0 0.0
        %4834 = vmatprep.subr.mxu0 0.0
        %4835 = vmatpush1.msra.mxu0 0.0
        %4836 = vmatprep.subr.mxu0 0.0
        %4837 = vmatpush1.msra.mxu0 0.0
        %4838 = vmatprep.subr.mxu0 0.0
        %4839 = vmatpush1.msra.mxu0 0.0
        %4840 = vmatprep.subr.mxu0 0.0
        %4841 = vmatpush1.msra.mxu0 0.0
        %4842 = vmatprep.subr.mxu0 0.0
        %4843 = vmatpush1.msra.mxu0 0.0
        %4844 = vmatprep.subr.mxu0 0.0
        %4845 = vmatpush1.msra.mxu0 0.0
        %4846 = vmatprep.subr.mxu0 0.0
        %4847 = vmatpush1.msra.mxu0 0.0
        %4848 = vmatprep.mubr.f32.mxu0 0.0
        %4849 = vmatmul.mubr.f32.gmra.mrb[0].mxu0 %v4782
        %v4850 = vpop.f32.mrb[0].mxu0
        %v4851 = vadd.f32 0.0, %v4850
        %v4852 = vpop.f32.mrb[0].mxu0
        %4853 = vdwg.mxu0
        %v4854 = vadd.f32 %v4613, %v4851
        %v4855 = vadd.f32 %v1250, %v4854
        %v4856 = vld [vmem:[%s45] sm:$0x1]
        %v4857 = vld [vmem:[%s47] sm:$0x1]
        %v4858 = vsel %vm1253, %v4855, 0.0
        %4859 = vadd.xlane.f32.xlu0 %v4858
        %v4860 = vpop.xlane.xlu0 %4859
        %v4861 = vmul.f32 %v4860, %v1257
        %v4862 = vsub.f32 %v4855, %v4861
        %v4863 = vmul.f32 %v4862, %v4862
        %v4864 = vsel %vm1253, %v4863, 0.0
        %4865 = vadd.xlane.f32.xlu0 %v4864
        %v4866 = vpop.xlane.xlu0 %4865
        %v4867 = vmul.f32 %v4866, %v1257
        %v4868 = vadd.f32 %v4867, 1e-06
        %v4869 = vrsqrt.pop %v4868
        %v4870 = vmul.f32 %v4862, %v4869
        %v4872 = vlaneseq
        %v4873 = vshrl.u32 %v4872, 7
        %v4874 = vsub.s32 0, %v4873
        %v4875 = vrot.slane %v4856, %v4874
        %v4877 = vmul.f32 %v4870, %v4875
        %v4879 = vlaneseq
        %v4880 = vshrl.u32 %v4879, 7
        %v4881 = vsub.s32 0, %v4880
        %v4882 = vrot.slane %v4857, %v4881
        %v4884 = vadd.f32 %v4877, %v4882
        %v4885 = vld [vmem:[%s49] sm:$0xff]
        %v4886 = vld [vmem:[%s49 + $0x8] sm:$0xff]
        %v4887 = vld [vmem:[%s49 + $0x10] sm:$0xff]
        %v4888 = vld [vmem:[%s49 + $0x18] sm:$0xff]
        %v4889 = vld [vmem:[%s51] sm:$0x1]
        %v4891 = vlaneseq
        %v4892 = vshrl.u32 %v4891, 7
        %v4893 = vsub.s32 0, %v4892
        %v4894 = vrot.slane %v4889, %v4893
        %v4897 = vsel %vm1293, %v4884, 0
        %4899 = vmatprep.subr.mxu0 0.0
        %4900 = vmatpush1.msra.mxu0 %v4885
        %4901 = vmatprep.subr.mxu0 0.0
        %4902 = vmatpush1.msra.mxu0 %v4886
        %4903 = vmatprep.subr.mxu0 0.0
        %4904 = vmatpush1.msra.mxu0 %v4887
        %4905 = vmatprep.subr.mxu0 0.0
        %4906 = vmatpush1.msra.mxu0 %v4888
        %4907 = vmatprep.subr.mxu0 0.0
        %4908 = vmatpush1.msra.mxu0 0.0
        %4909 = vmatprep.subr.mxu0 0.0
        %4910 = vmatpush1.msra.mxu0 0.0
        %4911 = vmatprep.subr.mxu0 0.0
        %4912 = vmatpush1.msra.mxu0 0.0
        %4913 = vmatprep.subr.mxu0 0.0
        %4914 = vmatpush1.msra.mxu0 0.0
        %4915 = vmatprep.subr.mxu0 0.0
        %4916 = vmatpush1.msra.mxu0 0.0
        %4917 = vmatprep.subr.mxu0 0.0
        %4918 = vmatpush1.msra.mxu0 0.0
        %4919 = vmatprep.subr.mxu0 0.0
        %4920 = vmatpush1.msra.mxu0 0.0
        %4921 = vmatprep.subr.mxu0 0.0
        %4922 = vmatpush1.msra.mxu0 0.0
        %4923 = vmatprep.subr.mxu0 0.0
        %4924 = vmatpush1.msra.mxu0 0.0
        %4925 = vmatprep.subr.mxu0 0.0
        %4926 = vmatpush1.msra.mxu0 0.0
        %4927 = vmatprep.subr.mxu0 0.0
        %4928 = vmatpush1.msra.mxu0 0.0
        %4929 = vmatprep.subr.mxu0 0.0
        %4930 = vmatpush1.msra.mxu0 0.0
        %4931 = vmatprep.subr.mxu0 0.0
        %4932 = vmatpush1.msra.mxu0 0.0
        %4933 = vmatprep.subr.mxu0 0.0
        %4934 = vmatpush1.msra.mxu0 0.0
        %4935 = vmatprep.subr.mxu0 0.0
        %4936 = vmatpush1.msra.mxu0 0.0
        %4937 = vmatprep.subr.mxu0 0.0
        %4938 = vmatpush1.msra.mxu0 0.0
        %4939 = vmatprep.subr.mxu0 0.0
        %4940 = vmatpush1.msra.mxu0 0.0
        %4941 = vmatprep.subr.mxu0 0.0
        %4942 = vmatpush1.msra.mxu0 0.0
        %4943 = vmatprep.subr.mxu0 0.0
        %4944 = vmatpush1.msra.mxu0 0.0
        %4945 = vmatprep.subr.mxu0 0.0
        %4946 = vmatpush1.msra.mxu0 0.0
        %4947 = vmatprep.subr.mxu0 0.0
        %4948 = vmatpush1.msra.mxu0 0.0
        %4949 = vmatprep.subr.mxu0 0.0
        %4950 = vmatpush1.msra.mxu0 0.0
        %4951 = vmatprep.subr.mxu0 0.0
        %4952 = vmatpush1.msra.mxu0 0.0
        %4953 = vmatprep.subr.mxu0 0.0
        %4954 = vmatpush1.msra.mxu0 0.0
        %4955 = vmatprep.subr.mxu0 0.0
        %4956 = vmatpush1.msra.mxu0 0.0
        %4957 = vmatprep.subr.mxu0 0.0
        %4958 = vmatpush1.msra.mxu0 0.0
        %4959 = vmatprep.subr.mxu0 0.0
        %4960 = vmatpush1.msra.mxu0 0.0
        %4961 = vmatprep.subr.mxu0 0.0
        %4962 = vmatpush1.msra.mxu0 0.0
        %4963 = vmatprep.mubr.f32.mxu0 0.0
        %4964 = vmatmul.mubr.f32.gmra.mrb[0].mxu0 %v4897
        %v4965 = vpop.f32.mrb[0].mxu0
        %v4966 = vadd.f32 %v4894, %v4965
        %v4967 = vpop.f32.mrb[0].mxu0
        %4968 = vdwg.mxu0
        %v4969 = vld [vmem:[%s53] sm:$0xff]
        %v4970 = vld [vmem:[%s53 + $0x8] sm:$0xff]
        %v4971 = vld [vmem:[%s53 + $0x10] sm:$0xff]
        %v4972 = vld [vmem:[%s53 + $0x18] sm:$0xff]
        %v4973 = vld [vmem:[%s55] sm:$0x1]
        %v4975 = vlaneseq
        %v4976 = vshrl.u32 %v4975, 7
        %v4977 = vsub.s32 0, %v4976
        %v4978 = vrot.slane %v4973, %v4977
        %v4981 = vsel %vm1293, %v3780, 0
        %4983 = vmatprep.subr.mxu0 0.0
        %4984 = vmatpush1.msra.mxu0 %v4969
        %4985 = vmatprep.subr.mxu0 0.0
        %4986 = vmatpush1.msra.mxu0 %v4970
        %4987 = vmatprep.subr.mxu0 0.0
        %4988 = vmatpush1.msra.mxu0 %v4971
        %4989 = vmatprep.subr.mxu0 0.0
        %4990 = vmatpush1.msra.mxu0 %v4972
        %4991 = vmatprep.subr.mxu0 0.0
        %4992 = vmatpush1.msra.mxu0 0.0
        %4993 = vmatprep.subr.mxu0 0.0
        %4994 = vmatpush1.msra.mxu0 0.0
        %4995 = vmatprep.subr.mxu0 0.0
        %4996 = vmatpush1.msra.mxu0 0.0
        %4997 = vmatprep.subr.mxu0 0.0
        %4998 = vmatpush1.msra.mxu0 0.0
        %4999 = vmatprep.subr.mxu0 0.0
        %5000 = vmatpush1.msra.mxu0 0.0
        %5001 = vmatprep.subr.mxu0 0.0
        %5002 = vmatpush1.msra.mxu0 0.0
        %5003 = vmatprep.subr.mxu0 0.0
        %5004 = vmatpush1.msra.mxu0 0.0
        %5005 = vmatprep.subr.mxu0 0.0
        %5006 = vmatpush1.msra.mxu0 0.0
        %5007 = vmatprep.subr.mxu0 0.0
        %5008 = vmatpush1.msra.mxu0 0.0
        %5009 = vmatprep.subr.mxu0 0.0
        %5010 = vmatpush1.msra.mxu0 0.0
        %5011 = vmatprep.subr.mxu0 0.0
        %5012 = vmatpush1.msra.mxu0 0.0
        %5013 = vmatprep.subr.mxu0 0.0
        %5014 = vmatpush1.msra.mxu0 0.0
        %5015 = vmatprep.subr.mxu0 0.0
        %5016 = vmatpush1.msra.mxu0 0.0
        %5017 = vmatprep.subr.mxu0 0.0
        %5018 = vmatpush1.msra.mxu0 0.0
        %5019 = vmatprep.subr.mxu0 0.0
        %5020 = vmatpush1.msra.mxu0 0.0
        %5021 = vmatprep.subr.mxu0 0.0
        %5022 = vmatpush1.msra.mxu0 0.0
        %5023 = vmatprep.subr.mxu0 0.0
        %5024 = vmatpush1.msra.mxu0 0.0
        %5025 = vmatprep.subr.mxu0 0.0
        %5026 = vmatpush1.msra.mxu0 0.0
        %5027 = vmatprep.subr.mxu0 0.0
        %5028 = vmatpush1.msra.mxu0 0.0
        %5029 = vmatprep.subr.mxu0 0.0
        %5030 = vmatpush1.msra.mxu0 0.0
        %5031 = vmatprep.subr.mxu0 0.0
        %5032 = vmatpush1.msra.mxu0 0.0
        %5033 = vmatprep.subr.mxu0 0.0
        %5034 = vmatpush1.msra.mxu0 0.0
        %5035 = vmatprep.subr.mxu0 0.0
        %5036 = vmatpush1.msra.mxu0 0.0
        %5037 = vmatprep.subr.mxu0 0.0
        %5038 = vmatpush1.msra.mxu0 0.0
        %5039 = vmatprep.subr.mxu0 0.0
        %5040 = vmatpush1.msra.mxu0 0.0
        %5041 = vmatprep.subr.mxu0 0.0
        %5042 = vmatpush1.msra.mxu0 0.0
        %5043 = vmatprep.subr.mxu0 0.0
        %5044 = vmatpush1.msra.mxu0 0.0
        %5045 = vmatprep.subr.mxu0 0.0
        %5046 = vmatpush1.msra.mxu0 0.0
        %5047 = vmatprep.mubr.f32.mxu0 0.0
        %5048 = vmatmul.mubr.f32.gmra.mrb[0].mxu0 %v4981
        %v5049 = vpop.f32.mrb[0].mxu0
        %v5050 = vadd.f32 %v4978, %v5049
        %v5051 = vpop.f32.mrb[0].mxu0
        %5052 = vdwg.mxu0
        %v5053 = vld [vmem:[%s57] sm:$0xff]
        %v5054 = vld [vmem:[%s57 + $0x8] sm:$0xff]
        %v5055 = vld [vmem:[%s57 + $0x10] sm:$0xff]
        %v5056 = vld [vmem:[%s57 + $0x18] sm:$0xff]
        %v5057 = vld [vmem:[%s59] sm:$0x1]
        %v5059 = vsel %vm1375, %v4966, 0
        %v5062 = vsel %vm1375, %v5050, 0
        %5064 = vmatprep.subr.mxu0 0.0
        %5065 = vmatpush1.xpose.msra.mxu0 %v5062
        %5066 = vmatprep.subr.mxu0 0.0
        %5067 = vmatpush1.xpose.msra.mxu0 0.0
        %5068 = vmatprep.subr.mxu0 0.0
        %5069 = vmatpush1.xpose.msra.mxu0 0.0
        %5070 = vmatprep.subr.mxu0 0.0
        %5071 = vmatpush1.xpose.msra.mxu0 0.0
        %5072 = vmatprep.subr.mxu0 0.0
        %5073 = vmatpush1.xpose.msra.mxu0 0.0
        %5074 = vmatprep.subr.mxu0 0.0
        %5075 = vmatpush1.xpose.msra.mxu0 0.0
        %5076 = vmatprep.subr.mxu0 0.0
        %5077 = vmatpush1.xpose.msra.mxu0 0.0
        %5078 = vmatprep.subr.mxu0 0.0
        %5079 = vmatpush1.xpose.msra.mxu0 0.0
        %5080 = vmatprep.subr.mxu0 0.0
        %5081 = vmatpush1.xpose.msra.mxu0 0.0
        %5082 = vmatprep.subr.mxu0 0.0
        %5083 = vmatpush1.xpose.msra.mxu0 0.0
        %5084 = vmatprep.subr.mxu0 0.0
        %5085 = vmatpush1.xpose.msra.mxu0 0.0
        %5086 = vmatprep.subr.mxu0 0.0
        %5087 = vmatpush1.xpose.msra.mxu0 0.0
        %5088 = vmatprep.subr.mxu0 0.0
        %5089 = vmatpush1.xpose.msra.mxu0 0.0
        %5090 = vmatprep.subr.mxu0 0.0
        %5091 = vmatpush1.xpose.msra.mxu0 0.0
        %5092 = vmatprep.subr.mxu0 0.0
        %5093 = vmatpush1.xpose.msra.mxu0 0.0
        %5094 = vmatprep.subr.mxu0 0.0
        %5095 = vmatpush1.xpose.msra.mxu0 0.0
        %5096 = vmatprep.subr.mxu0 0.0
        %5097 = vmatpush1.xpose.msra.mxu0 0.0
        %5098 = vmatprep.subr.mxu0 0.0
        %5099 = vmatpush1.xpose.msra.mxu0 0.0
        %5100 = vmatprep.subr.mxu0 0.0
        %5101 = vmatpush1.xpose.msra.mxu0 0.0
        %5102 = vmatprep.subr.mxu0 0.0
        %5103 = vmatpush1.xpose.msra.mxu0 0.0
        %5104 = vmatprep.subr.mxu0 0.0
        %5105 = vmatpush1.xpose.msra.mxu0 0.0
        %5106 = vmatprep.subr.mxu0 0.0
        %5107 = vmatpush1.xpose.msra.mxu0 0.0
        %5108 = vmatprep.subr.mxu0 0.0
        %5109 = vmatpush1.xpose.msra.mxu0 0.0
        %5110 = vmatprep.subr.mxu0 0.0
        %5111 = vmatpush1.xpose.msra.mxu0 0.0
        %5112 = vmatprep.subr.mxu0 0.0
        %5113 = vmatpush1.xpose.msra.mxu0 0.0
        %5114 = vmatprep.subr.mxu0 0.0
        %5115 = vmatpush1.xpose.msra.mxu0 0.0
        %5116 = vmatprep.subr.mxu0 0.0
        %5117 = vmatpush1.xpose.msra.mxu0 0.0
        %5118 = vmatprep.subr.mxu0 0.0
        %5119 = vmatpush1.xpose.msra.mxu0 0.0
        %5120 = vmatprep.subr.mxu0 0.0
        %5121 = vmatpush1.xpose.msra.mxu0 0.0
        %5122 = vmatprep.subr.mxu0 0.0
        %5123 = vmatpush1.xpose.msra.mxu0 0.0
        %5124 = vmatprep.subr.mxu0 0.0
        %5125 = vmatpush1.xpose.msra.mxu0 0.0
        %5126 = vmatprep.subr.mxu0 0.0
        %5127 = vmatpush1.xpose.msra.mxu0 0.0
        %5128 = vmatprep.mubr.f32.mxu0 0.0
        %5129 = vmatmul.mubr.f32.gmra.mrb[0].mxu0 %v5059
        %v5130 = vpop.f32.mrb[0].mxu0
        %v5131 = vadd.f32 0.0, %v5130
        %v5132 = vpop.f32.mrb[0].mxu0
        %5133 = vdwg.mxu0
        %v5134 = vmul.f32 %v5131, 0.35355338
        %v5135 = vsel %vm1451, %v5134, -inf
        %5136 = vmax.xlane.f32.xlu0 %v5135
        %v5137 = vpop.xlane.xlu0 %5136
        %v5138 = vsub.f32 %v5134, %v5137
        %v5139 = vmul.f32 %v5138, 1.442695
        %v5140 = vpow.pop %v5139
        %v5141 = vsel %vm1451, %v5140, 0.0
        %5142 = vadd.xlane.f32.xlu0 %v5141
        %v5143 = vpop.xlane.xlu0 %5142
        %v5144 = vrcp.pop %v5143
        %v5145 = vmul.f32 %v5140, %v5144
        %5146 = vrot.lane.b32.xlu0 %v5050, 96
        %v5147 = vpop.permute.xlu0 %5146
        %v5149 = vsel %vm1465, %v5145, 0
        %v5151 = vsel %vm1469, %v5147, 0
        %5153 = vmatprep.subr.mxu0 0.0
        %5154 = vmatpush1.msra.mxu0 %v5151
        %5155 = vmatprep.subr.mxu0 0.0
        %5156 = vmatpush1.msra.mxu0 0.0
        %5157 = vmatprep.subr.mxu0 0.0
        %5158 = vmatpush1.msra.mxu0 0.0
        %5159 = vmatprep.subr.mxu0 0.0
        %5160 = vmatpush1.msra.mxu0 0.0
        %5161 = vmatprep.subr.mxu0 0.0
        %5162 = vmatpush1.msra.mxu0 0.0
        %5163 = vmatprep.subr.mxu0 0.0
        %5164 = vmatpush1.msra.mxu0 0.0
        %5165 = vmatprep.subr.mxu0 0.0
        %5166 = vmatpush1.msra.mxu0 0.0
        %5167 = vmatprep.subr.mxu0 0.0
        %5168 = vmatpush1.msra.mxu0 0.0
        %5169 = vmatprep.subr.mxu0 0.0
        %5170 = vmatpush1.msra.mxu0 0.0
        %5171 = vmatprep.subr.mxu0 0.0
        %5172 = vmatpush1.msra.mxu0 0.0
        %5173 = vmatprep.subr.mxu0 0.0
        %5174 = vmatpush1.msra.mxu0 0.0
        %5175 = vmatprep.subr.mxu0 0.0
        %5176 = vmatpush1.msra.mxu0 0.0
        %5177 = vmatprep.subr.mxu0 0.0
        %5178 = vmatpush1.msra.mxu0 0.0
        %5179 = vmatprep.subr.mxu0 0.0
        %5180 = vmatpush1.msra.mxu0 0.0
        %5181 = vmatprep.subr.mxu0 0.0
        %5182 = vmatpush1.msra.mxu0 0.0
        %5183 = vmatprep.subr.mxu0 0.0
        %5184 = vmatpush1.msra.mxu0 0.0
        %5185 = vmatprep.subr.mxu0 0.0
        %5186 = vmatpush1.msra.mxu0 0.0
        %5187 = vmatprep.subr.mxu0 0.0
        %5188 = vmatpush1.msra.mxu0 0.0
        %5189 = vmatprep.subr.mxu0 0.0
        %5190 = vmatpush1.msra.mxu0 0.0
        %5191 = vmatprep.subr.mxu0 0.0
        %5192 = vmatpush1.msra.mxu0 0.0
        %5193 = vmatprep.subr.mxu0 0.0
        %5194 = vmatpush1.msra.mxu0 0.0
        %5195 = vmatprep.subr.mxu0 0.0
        %5196 = vmatpush1.msra.mxu0 0.0
        %5197 = vmatprep.subr.mxu0 0.0
        %5198 = vmatpush1.msra.mxu0 0.0
        %5199 = vmatprep.subr.mxu0 0.0
        %5200 = vmatpush1.msra.mxu0 0.0
        %5201 = vmatprep.subr.mxu0 0.0
        %5202 = vmatpush1.msra.mxu0 0.0
        %5203 = vmatprep.subr.mxu0 0.0
        %5204 = vmatpush1.msra.mxu0 0.0
        %5205 = vmatprep.subr.mxu0 0.0
        %5206 = vmatpush1.msra.mxu0 0.0
        %5207 = vmatprep.subr.mxu0 0.0
        %5208 = vmatpush1.msra.mxu0 0.0
        %5209 = vmatprep.subr.mxu0 0.0
        %5210 = vmatpush1.msra.mxu0 0.0
        %5211 = vmatprep.subr.mxu0 0.0
        %5212 = vmatpush1.msra.mxu0 0.0
        %5213 = vmatprep.subr.mxu0 0.0
        %5214 = vmatpush1.msra.mxu0 0.0
        %5215 = vmatprep.subr.mxu0 0.0
        %5216 = vmatpush1.msra.mxu0 0.0
        %5217 = vmatprep.mubr.f32.mxu0 0.0
        %5218 = vmatmul.mubr.f32.gmra.mrb[0].mxu0 %v5149
        %v5219 = vpop.f32.mrb[0].mxu0
        %v5220 = vadd.f32 0.0, %v5219
        %v5221 = vpop.f32.mrb[0].mxu0
        %5222 = vdwg.mxu0
        %v5224 = vsel %vm1375, %v5220, 0
        %5226 = vmatprep.subr.mxu0 0.0
        %5227 = vmatpush1.msra.mxu0 %v5053
        %5228 = vmatprep.subr.mxu0 0.0
        %5229 = vmatpush1.msra.mxu0 0.0
        %5230 = vmatprep.subr.mxu0 0.0
        %5231 = vmatpush1.msra.mxu0 0.0
        %5232 = vmatprep.subr.mxu0 0.0
        %5233 = vmatpush1.msra.mxu0 0.0
        %5234 = vmatprep.subr.mxu0 0.0
        %5235 = vmatpush1.msra.mxu0 0.0
        %5236 = vmatprep.subr.mxu0 0.0
        %5237 = vmatpush1.msra.mxu0 0.0
        %5238 = vmatprep.subr.mxu0 0.0
        %5239 = vmatpush1.msra.mxu0 0.0
        %5240 = vmatprep.subr.mxu0 0.0
        %5241 = vmatpush1.msra.mxu0 0.0
        %5242 = vmatprep.subr.mxu0 0.0
        %5243 = vmatpush1.msra.mxu0 0.0
        %5244 = vmatprep.subr.mxu0 0.0
        %5245 = vmatpush1.msra.mxu0 0.0
        %5246 = vmatprep.subr.mxu0 0.0
        %5247 = vmatpush1.msra.mxu0 0.0
        %5248 = vmatprep.subr.mxu0 0.0
        %5249 = vmatpush1.msra.mxu0 0.0
        %5250 = vmatprep.subr.mxu0 0.0
        %5251 = vmatpush1.msra.mxu0 0.0
        %5252 = vmatprep.subr.mxu0 0.0
        %5253 = vmatpush1.msra.mxu0 0.0
        %5254 = vmatprep.subr.mxu0 0.0
        %5255 = vmatpush1.msra.mxu0 0.0
        %5256 = vmatprep.subr.mxu0 0.0
        %5257 = vmatpush1.msra.mxu0 0.0
        %5258 = vmatprep.subr.mxu0 0.0
        %5259 = vmatpush1.msra.mxu0 0.0
        %5260 = vmatprep.subr.mxu0 0.0
        %5261 = vmatpush1.msra.mxu0 0.0
        %5262 = vmatprep.subr.mxu0 0.0
        %5263 = vmatpush1.msra.mxu0 0.0
        %5264 = vmatprep.subr.mxu0 0.0
        %5265 = vmatpush1.msra.mxu0 0.0
        %5266 = vmatprep.subr.mxu0 0.0
        %5267 = vmatpush1.msra.mxu0 0.0
        %5268 = vmatprep.subr.mxu0 0.0
        %5269 = vmatpush1.msra.mxu0 0.0
        %5270 = vmatprep.subr.mxu0 0.0
        %5271 = vmatpush1.msra.mxu0 0.0
        %5272 = vmatprep.subr.mxu0 0.0
        %5273 = vmatpush1.msra.mxu0 0.0
        %5274 = vmatprep.subr.mxu0 0.0
        %5275 = vmatpush1.msra.mxu0 0.0
        %5276 = vmatprep.subr.mxu0 0.0
        %5277 = vmatpush1.msra.mxu0 0.0
        %5278 = vmatprep.subr.mxu0 0.0
        %5279 = vmatpush1.msra.mxu0 0.0
        %5280 = vmatprep.subr.mxu0 0.0
        %5281 = vmatpush1.msra.mxu0 0.0
        %5282 = vmatprep.subr.mxu0 0.0
        %5283 = vmatpush1.msra.mxu0 0.0
        %5284 = vmatprep.subr.mxu0 0.0
        %5285 = vmatpush1.msra.mxu0 0.0
        %5286 = vmatprep.subr.mxu0 0.0
        %5287 = vmatpush1.msra.mxu0 0.0
        %5288 = vmatprep.subr.mxu0 0.0
        %5289 = vmatpush1.msra.mxu0 0.0
        %5290 = vmatprep.mubr.f32.mxu0 0.0
        %5291 = vmatmul.mubr.f32.gmra.mrb[0].mxu0 %v5224
        %v5292 = vpop.f32.mrb[0].mxu0
        %v5293 = vadd.f32 0.0, %v5292
        %v5294 = vpop.f32.mrb[0].mxu0
        %5295 = vdwg.mxu0
        %v5297 = vlaneseq
        %v5298 = vshrl.u32 %v5297, 7
        %v5299 = vsub.s32 0, %v5298
        %v5300 = vrot.slane %v5057, %v5299
        %v5302 = vadd.f32 %v5300, %v5293
        %5303 = vrot.lane.b32.xlu0 %v4966, 120
        %v5304 = vpop.permute.xlu0 %5303
        %5305 = vrot.lane.b32.xlu0 %v5050, 120
        %v5306 = vpop.permute.xlu0 %5305
        %v5307 = vsel %vm1375, %v5304, 0
        %v5309 = vsel %vm1375, %v5306, 0
        %5311 = vmatprep.subr.mxu0 0.0
        %5312 = vmatpush1.xpose.msra.mxu0 %v5309
        %5313 = vmatprep.subr.mxu0 0.0
        %5314 = vmatpush1.xpose.msra.mxu0 0.0
        %5315 = vmatprep.subr.mxu0 0.0
        %5316 = vmatpush1.xpose.msra.mxu0 0.0
        %5317 = vmatprep.subr.mxu0 0.0
        %5318 = vmatpush1.xpose.msra.mxu0 0.0
        %5319 = vmatprep.subr.mxu0 0.0
        %5320 = vmatpush1.xpose.msra.mxu0 0.0
        %5321 = vmatprep.subr.mxu0 0.0
        %5322 = vmatpush1.xpose.msra.mxu0 0.0
        %5323 = vmatprep.subr.mxu0 0.0
        %5324 = vmatpush1.xpose.msra.mxu0 0.0
        %5325 = vmatprep.subr.mxu0 0.0
        %5326 = vmatpush1.xpose.msra.mxu0 0.0
        %5327 = vmatprep.subr.mxu0 0.0
        %5328 = vmatpush1.xpose.msra.mxu0 0.0
        %5329 = vmatprep.subr.mxu0 0.0
        %5330 = vmatpush1.xpose.msra.mxu0 0.0
        %5331 = vmatprep.subr.mxu0 0.0
        %5332 = vmatpush1.xpose.msra.mxu0 0.0
        %5333 = vmatprep.subr.mxu0 0.0
        %5334 = vmatpush1.xpose.msra.mxu0 0.0
        %5335 = vmatprep.subr.mxu0 0.0
        %5336 = vmatpush1.xpose.msra.mxu0 0.0
        %5337 = vmatprep.subr.mxu0 0.0
        %5338 = vmatpush1.xpose.msra.mxu0 0.0
        %5339 = vmatprep.subr.mxu0 0.0
        %5340 = vmatpush1.xpose.msra.mxu0 0.0
        %5341 = vmatprep.subr.mxu0 0.0
        %5342 = vmatpush1.xpose.msra.mxu0 0.0
        %5343 = vmatprep.subr.mxu0 0.0
        %5344 = vmatpush1.xpose.msra.mxu0 0.0
        %5345 = vmatprep.subr.mxu0 0.0
        %5346 = vmatpush1.xpose.msra.mxu0 0.0
        %5347 = vmatprep.subr.mxu0 0.0
        %5348 = vmatpush1.xpose.msra.mxu0 0.0
        %5349 = vmatprep.subr.mxu0 0.0
        %5350 = vmatpush1.xpose.msra.mxu0 0.0
        %5351 = vmatprep.subr.mxu0 0.0
        %5352 = vmatpush1.xpose.msra.mxu0 0.0
        %5353 = vmatprep.subr.mxu0 0.0
        %5354 = vmatpush1.xpose.msra.mxu0 0.0
        %5355 = vmatprep.subr.mxu0 0.0
        %5356 = vmatpush1.xpose.msra.mxu0 0.0
        %5357 = vmatprep.subr.mxu0 0.0
        %5358 = vmatpush1.xpose.msra.mxu0 0.0
        %5359 = vmatprep.subr.mxu0 0.0
        %5360 = vmatpush1.xpose.msra.mxu0 0.0
        %5361 = vmatprep.subr.mxu0 0.0
        %5362 = vmatpush1.xpose.msra.mxu0 0.0
        %5363 = vmatprep.subr.mxu0 0.0
        %5364 = vmatpush1.xpose.msra.mxu0 0.0
        %5365 = vmatprep.subr.mxu0 0.0
        %5366 = vmatpush1.xpose.msra.mxu0 0.0
        %5367 = vmatprep.subr.mxu0 0.0
        %5368 = vmatpush1.xpose.msra.mxu0 0.0
        %5369 = vmatprep.subr.mxu0 0.0
        %5370 = vmatpush1.xpose.msra.mxu0 0.0
        %5371 = vmatprep.subr.mxu0 0.0
        %5372 = vmatpush1.xpose.msra.mxu0 0.0
        %5373 = vmatprep.subr.mxu0 0.0
        %5374 = vmatpush1.xpose.msra.mxu0 0.0
        %5375 = vmatprep.mubr.f32.mxu0 0.0
        %5376 = vmatmul.mubr.f32.gmra.mrb[0].mxu0 %v5307
        %v5377 = vpop.f32.mrb[0].mxu0
        %v5378 = vadd.f32 0.0, %v5377
        %v5379 = vpop.f32.mrb[0].mxu0
        %5380 = vdwg.mxu0
        %v5381 = vmul.f32 %v5378, 0.35355338
        %v5382 = vsel %vm1451, %v5381, -inf
        %5383 = vmax.xlane.f32.xlu0 %v5382
        %v5384 = vpop.xlane.xlu0 %5383
        %v5385 = vsub.f32 %v5381, %v5384
        %v5386 = vmul.f32 %v5385, 1.442695
        %v5387 = vpow.pop %v5386
        %v5388 = vsel %vm1451, %v5387, 0.0
        %5389 = vadd.xlane.f32.xlu0 %v5388
        %v5390 = vpop.xlane.xlu0 %5389
        %v5391 = vrcp.pop %v5390
        %v5392 = vmul.f32 %v5387, %v5391
        %5393 = vrot.lane.b32.xlu0 %v5050, 88
        %v5394 = vpop.permute.xlu0 %5393
        %v5396 = vsel %vm1465, %v5392, 0
        %v5398 = vsel %vm1469, %v5394, 0
        %5400 = vmatprep.subr.mxu0 0.0
        %5401 = vmatpush1.msra.mxu0 %v5398
        %5402 = vmatprep.subr.mxu0 0.0
        %5403 = vmatpush1.msra.mxu0 0.0
        %5404 = vmatprep.subr.mxu0 0.0
        %5405 = vmatpush1.msra.mxu0 0.0
        %5406 = vmatprep.subr.mxu0 0.0
        %5407 = vmatpush1.msra.mxu0 0.0
        %5408 = vmatprep.subr.mxu0 0.0
        %5409 = vmatpush1.msra.mxu0 0.0
        %5410 = vmatprep.subr.mxu0 0.0
        %5411 = vmatpush1.msra.mxu0 0.0
        %5412 = vmatprep.subr.mxu0 0.0
        %5413 = vmatpush1.msra.mxu0 0.0
        %5414 = vmatprep.subr.mxu0 0.0
        %5415 = vmatpush1.msra.mxu0 0.0
        %5416 = vmatprep.subr.mxu0 0.0
        %5417 = vmatpush1.msra.mxu0 0.0
        %5418 = vmatprep.subr.mxu0 0.0
        %5419 = vmatpush1.msra.mxu0 0.0
        %5420 = vmatprep.subr.mxu0 0.0
        %5421 = vmatpush1.msra.mxu0 0.0
        %5422 = vmatprep.subr.mxu0 0.0
        %5423 = vmatpush1.msra.mxu0 0.0
        %5424 = vmatprep.subr.mxu0 0.0
        %5425 = vmatpush1.msra.mxu0 0.0
        %5426 = vmatprep.subr.mxu0 0.0
        %5427 = vmatpush1.msra.mxu0 0.0
        %5428 = vmatprep.subr.mxu0 0.0
        %5429 = vmatpush1.msra.mxu0 0.0
        %5430 = vmatprep.subr.mxu0 0.0
        %5431 = vmatpush1.msra.mxu0 0.0
        %5432 = vmatprep.subr.mxu0 0.0
        %5433 = vmatpush1.msra.mxu0 0.0
        %5434 = vmatprep.subr.mxu0 0.0
        %5435 = vmatpush1.msra.mxu0 0.0
        %5436 = vmatprep.subr.mxu0 0.0
        %5437 = vmatpush1.msra.mxu0 0.0
        %5438 = vmatprep.subr.mxu0 0.0
        %5439 = vmatpush1.msra.mxu0 0.0
        %5440 = vmatprep.subr.mxu0 0.0
        %5441 = vmatpush1.msra.mxu0 0.0
        %5442 = vmatprep.subr.mxu0 0.0
        %5443 = vmatpush1.msra.mxu0 0.0
        %5444 = vmatprep.subr.mxu0 0.0
        %5445 = vmatpush1.msra.mxu0 0.0
        %5446 = vmatprep.subr.mxu0 0.0
        %5447 = vmatpush1.msra.mxu0 0.0
        %5448 = vmatprep.subr.mxu0 0.0
        %5449 = vmatpush1.msra.mxu0 0.0
        %5450 = vmatprep.subr.mxu0 0.0
        %5451 = vmatpush1.msra.mxu0 0.0
        %5452 = vmatprep.subr.mxu0 0.0
        %5453 = vmatpush1.msra.mxu0 0.0
        %5454 = vmatprep.subr.mxu0 0.0
        %5455 = vmatpush1.msra.mxu0 0.0
        %5456 = vmatprep.subr.mxu0 0.0
        %5457 = vmatpush1.msra.mxu0 0.0
        %5458 = vmatprep.subr.mxu0 0.0
        %5459 = vmatpush1.msra.mxu0 0.0
        %5460 = vmatprep.subr.mxu0 0.0
        %5461 = vmatpush1.msra.mxu0 0.0
        %5462 = vmatprep.subr.mxu0 0.0
        %5463 = vmatpush1.msra.mxu0 0.0
        %5464 = vmatprep.mubr.f32.mxu0 0.0
        %5465 = vmatmul.mubr.f32.gmra.mrb[0].mxu0 %v5396
        %v5466 = vpop.f32.mrb[0].mxu0
        %v5467 = vadd.f32 0.0, %v5466
        %v5468 = vpop.f32.mrb[0].mxu0
        %5469 = vdwg.mxu0
        %v5471 = vsel %vm1375, %v5467, 0
        %5473 = vmatprep.subr.mxu0 0.0
        %5474 = vmatpush1.msra.mxu0 %v5054
        %5475 = vmatprep.subr.mxu0 0.0
        %5476 = vmatpush1.msra.mxu0 0.0
        %5477 = vmatprep.subr.mxu0 0.0
        %5478 = vmatpush1.msra.mxu0 0.0
        %5479 = vmatprep.subr.mxu0 0.0
        %5480 = vmatpush1.msra.mxu0 0.0
        %5481 = vmatprep.subr.mxu0 0.0
        %5482 = vmatpush1.msra.mxu0 0.0
        %5483 = vmatprep.subr.mxu0 0.0
        %5484 = vmatpush1.msra.mxu0 0.0
        %5485 = vmatprep.subr.mxu0 0.0
        %5486 = vmatpush1.msra.mxu0 0.0
        %5487 = vmatprep.subr.mxu0 0.0
        %5488 = vmatpush1.msra.mxu0 0.0
        %5489 = vmatprep.subr.mxu0 0.0
        %5490 = vmatpush1.msra.mxu0 0.0
        %5491 = vmatprep.subr.mxu0 0.0
        %5492 = vmatpush1.msra.mxu0 0.0
        %5493 = vmatprep.subr.mxu0 0.0
        %5494 = vmatpush1.msra.mxu0 0.0
        %5495 = vmatprep.subr.mxu0 0.0
        %5496 = vmatpush1.msra.mxu0 0.0
        %5497 = vmatprep.subr.mxu0 0.0
        %5498 = vmatpush1.msra.mxu0 0.0
        %5499 = vmatprep.subr.mxu0 0.0
        %5500 = vmatpush1.msra.mxu0 0.0
        %5501 = vmatprep.subr.mxu0 0.0
        %5502 = vmatpush1.msra.mxu0 0.0
        %5503 = vmatprep.subr.mxu0 0.0
        %5504 = vmatpush1.msra.mxu0 0.0
        %5505 = vmatprep.subr.mxu0 0.0
        %5506 = vmatpush1.msra.mxu0 0.0
        %5507 = vmatprep.subr.mxu0 0.0
        %5508 = vmatpush1.msra.mxu0 0.0
        %5509 = vmatprep.subr.mxu0 0.0
        %5510 = vmatpush1.msra.mxu0 0.0
        %5511 = vmatprep.subr.mxu0 0.0
        %5512 = vmatpush1.msra.mxu0 0.0
        %5513 = vmatprep.subr.mxu0 0.0
        %5514 = vmatpush1.msra.mxu0 0.0
        %5515 = vmatprep.subr.mxu0 0.0
        %5516 = vmatpush1.msra.mxu0 0.0
        %5517 = vmatprep.subr.mxu0 0.0
        %5518 = vmatpush1.msra.mxu0 0.0
        %5519 = vmatprep.subr.mxu0 0.0
        %5520 = vmatpush1.msra.mxu0 0.0
        %5521 = vmatprep.subr.mxu0 0.0
        %5522 = vmatpush1.msra.mxu0 0.0
        %5523 = vmatprep.subr.mxu0 0.0
        %5524 = vmatpush1.msra.mxu0 0.0
        %5525 = vmatprep.subr.mxu0 0.0
        %5526 = vmatpush1.msra.mxu0 0.0
        %5527 = vmatprep.subr.mxu0 0.0
        %5528 = vmatpush1.msra.mxu0 0.0
        %5529 = vmatprep.subr.mxu0 0.0
        %5530 = vmatpush1.msra.mxu0 0.0
        %5531 = vmatprep.subr.mxu0 0.0
        %5532 = vmatpush1.msra.mxu0 0.0
        %5533 = vmatprep.subr.mxu0 0.0
        %5534 = vmatpush1.msra.mxu0 0.0
        %5535 = vmatprep.subr.mxu0 0.0
        %5536 = vmatpush1.msra.mxu0 0.0
        %5537 = vmatprep.mubr.f32.mxu0 0.0
        %5538 = vmatmul.mubr.f32.gmra.mrb[0].mxu0 %v5471
        %v5539 = vpop.f32.mrb[0].mxu0
        %v5540 = vadd.f32 0.0, %v5539
        %v5541 = vpop.f32.mrb[0].mxu0
        %5542 = vdwg.mxu0
        %v5543 = vadd.f32 %v5302, %v5540
        %5544 = vrot.lane.b32.xlu0 %v4966, 112
        %v5545 = vpop.permute.xlu0 %5544
        %5546 = vrot.lane.b32.xlu0 %v5050, 112
        %v5547 = vpop.permute.xlu0 %5546
        %v5548 = vsel %vm1375, %v5545, 0
        %v5550 = vsel %vm1375, %v5547, 0
        %5552 = vmatprep.subr.mxu0 0.0
        %5553 = vmatpush1.xpose.msra.mxu0 %v5550
        %5554 = vmatprep.subr.mxu0 0.0
        %5555 = vmatpush1.xpose.msra.mxu0 0.0
        %5556 = vmatprep.subr.mxu0 0.0
        %5557 = vmatpush1.xpose.msra.mxu0 0.0
        %5558 = vmatprep.subr.mxu0 0.0
        %5559 = vmatpush1.xpose.msra.mxu0 0.0
        %5560 = vmatprep.subr.mxu0 0.0
        %5561 = vmatpush1.xpose.msra.mxu0 0.0
        %5562 = vmatprep.subr.mxu0 0.0
        %5563 = vmatpush1.xpose.msra.mxu0 0.0
        %5564 = vmatprep.subr.mxu0 0.0
        %5565 = vmatpush1.xpose.msra.mxu0 0.0
        %5566 = vmatprep.subr.mxu0 0.0
        %5567 = vmatpush1.xpose.msra.mxu0 0.0
        %5568 = vmatprep.subr.mxu0 0.0
        %5569 = vmatpush1.xpose.msra.mxu0 0.0
        %5570 = vmatprep.subr.mxu0 0.0
        %5571 = vmatpush1.xpose.msra.mxu0 0.0
        %5572 = vmatprep.subr.mxu0 0.0
        %5573 = vmatpush1.xpose.msra.mxu0 0.0
        %5574 = vmatprep.subr.mxu0 0.0
        %5575 = vmatpush1.xpose.msra.mxu0 0.0
        %5576 = vmatprep.subr.mxu0 0.0
        %5577 = vmatpush1.xpose.msra.mxu0 0.0
        %5578 = vmatprep.subr.mxu0 0.0
        %5579 = vmatpush1.xpose.msra.mxu0 0.0
        %5580 = vmatprep.subr.mxu0 0.0
        %5581 = vmatpush1.xpose.msra.mxu0 0.0
        %5582 = vmatprep.subr.mxu0 0.0
        %5583 = vmatpush1.xpose.msra.mxu0 0.0
        %5584 = vmatprep.subr.mxu0 0.0
        %5585 = vmatpush1.xpose.msra.mxu0 0.0
        %5586 = vmatprep.subr.mxu0 0.0
        %5587 = vmatpush1.xpose.msra.mxu0 0.0
        %5588 = vmatprep.subr.mxu0 0.0
        %5589 = vmatpush1.xpose.msra.mxu0 0.0
        %5590 = vmatprep.subr.mxu0 0.0
        %5591 = vmatpush1.xpose.msra.mxu0 0.0
        %5592 = vmatprep.subr.mxu0 0.0
        %5593 = vmatpush1.xpose.msra.mxu0 0.0
        %5594 = vmatprep.subr.mxu0 0.0
        %5595 = vmatpush1.xpose.msra.mxu0 0.0
        %5596 = vmatprep.subr.mxu0 0.0
        %5597 = vmatpush1.xpose.msra.mxu0 0.0
        %5598 = vmatprep.subr.mxu0 0.0
        %5599 = vmatpush1.xpose.msra.mxu0 0.0
        %5600 = vmatprep.subr.mxu0 0.0
        %5601 = vmatpush1.xpose.msra.mxu0 0.0
        %5602 = vmatprep.subr.mxu0 0.0
        %5603 = vmatpush1.xpose.msra.mxu0 0.0
        %5604 = vmatprep.subr.mxu0 0.0
        %5605 = vmatpush1.xpose.msra.mxu0 0.0
        %5606 = vmatprep.subr.mxu0 0.0
        %5607 = vmatpush1.xpose.msra.mxu0 0.0
        %5608 = vmatprep.subr.mxu0 0.0
        %5609 = vmatpush1.xpose.msra.mxu0 0.0
        %5610 = vmatprep.subr.mxu0 0.0
        %5611 = vmatpush1.xpose.msra.mxu0 0.0
        %5612 = vmatprep.subr.mxu0 0.0
        %5613 = vmatpush1.xpose.msra.mxu0 0.0
        %5614 = vmatprep.subr.mxu0 0.0
        %5615 = vmatpush1.xpose.msra.mxu0 0.0
        %5616 = vmatprep.mubr.f32.mxu0 0.0
        %5617 = vmatmul.mubr.f32.gmra.mrb[0].mxu0 %v5548
        %v5618 = vpop.f32.mrb[0].mxu0
        %v5619 = vadd.f32 0.0, %v5618
        %v5620 = vpop.f32.mrb[0].mxu0
        %5621 = vdwg.mxu0
        %v5622 = vmul.f32 %v5619, 0.35355338
        %v5623 = vsel %vm1451, %v5622, -inf
        %5624 = vmax.xlane.f32.xlu0 %v5623
        %v5625 = vpop.xlane.xlu0 %5624
        %v5626 = vsub.f32 %v5622, %v5625
        %v5627 = vmul.f32 %v5626, 1.442695
        %v5628 = vpow.pop %v5627
        %v5629 = vsel %vm1451, %v5628, 0.0
        %5630 = vadd.xlane.f32.xlu0 %v5629
        %v5631 = vpop.xlane.xlu0 %5630
        %v5632 = vrcp.pop %v5631
        %v5633 = vmul.f32 %v5628, %v5632
        %5634 = vrot.lane.b32.xlu0 %v5050, 80
        %v5635 = vpop.permute.xlu0 %5634
        %v5637 = vsel %vm1465, %v5633, 0
        %v5639 = vsel %vm1469, %v5635, 0
        %5641 = vmatprep.subr.mxu0 0.0
        %5642 = vmatpush1.msra.mxu0 %v5639
        %5643 = vmatprep.subr.mxu0 0.0
        %5644 = vmatpush1.msra.mxu0 0.0
        %5645 = vmatprep.subr.mxu0 0.0
        %5646 = vmatpush1.msra.mxu0 0.0
        %5647 = vmatprep.subr.mxu0 0.0
        %5648 = vmatpush1.msra.mxu0 0.0
        %5649 = vmatprep.subr.mxu0 0.0
        %5650 = vmatpush1.msra.mxu0 0.0
        %5651 = vmatprep.subr.mxu0 0.0
        %5652 = vmatpush1.msra.mxu0 0.0
        %5653 = vmatprep.subr.mxu0 0.0
        %5654 = vmatpush1.msra.mxu0 0.0
        %5655 = vmatprep.subr.mxu0 0.0
        %5656 = vmatpush1.msra.mxu0 0.0
        %5657 = vmatprep.subr.mxu0 0.0
        %5658 = vmatpush1.msra.mxu0 0.0
        %5659 = vmatprep.subr.mxu0 0.0
        %5660 = vmatpush1.msra.mxu0 0.0
        %5661 = vmatprep.subr.mxu0 0.0
        %5662 = vmatpush1.msra.mxu0 0.0
        %5663 = vmatprep.subr.mxu0 0.0
        %5664 = vmatpush1.msra.mxu0 0.0
        %5665 = vmatprep.subr.mxu0 0.0
        %5666 = vmatpush1.msra.mxu0 0.0
        %5667 = vmatprep.subr.mxu0 0.0
        %5668 = vmatpush1.msra.mxu0 0.0
        %5669 = vmatprep.subr.mxu0 0.0
        %5670 = vmatpush1.msra.mxu0 0.0
        %5671 = vmatprep.subr.mxu0 0.0
        %5672 = vmatpush1.msra.mxu0 0.0
        %5673 = vmatprep.subr.mxu0 0.0
        %5674 = vmatpush1.msra.mxu0 0.0
        %5675 = vmatprep.subr.mxu0 0.0
        %5676 = vmatpush1.msra.mxu0 0.0
        %5677 = vmatprep.subr.mxu0 0.0
        %5678 = vmatpush1.msra.mxu0 0.0
        %5679 = vmatprep.subr.mxu0 0.0
        %5680 = vmatpush1.msra.mxu0 0.0
        %5681 = vmatprep.subr.mxu0 0.0
        %5682 = vmatpush1.msra.mxu0 0.0
        %5683 = vmatprep.subr.mxu0 0.0
        %5684 = vmatpush1.msra.mxu0 0.0
        %5685 = vmatprep.subr.mxu0 0.0
        %5686 = vmatpush1.msra.mxu0 0.0
        %5687 = vmatprep.subr.mxu0 0.0
        %5688 = vmatpush1.msra.mxu0 0.0
        %5689 = vmatprep.subr.mxu0 0.0
        %5690 = vmatpush1.msra.mxu0 0.0
        %5691 = vmatprep.subr.mxu0 0.0
        %5692 = vmatpush1.msra.mxu0 0.0
        %5693 = vmatprep.subr.mxu0 0.0
        %5694 = vmatpush1.msra.mxu0 0.0
        %5695 = vmatprep.subr.mxu0 0.0
        %5696 = vmatpush1.msra.mxu0 0.0
        %5697 = vmatprep.subr.mxu0 0.0
        %5698 = vmatpush1.msra.mxu0 0.0
        %5699 = vmatprep.subr.mxu0 0.0
        %5700 = vmatpush1.msra.mxu0 0.0
        %5701 = vmatprep.subr.mxu0 0.0
        %5702 = vmatpush1.msra.mxu0 0.0
        %5703 = vmatprep.subr.mxu0 0.0
        %5704 = vmatpush1.msra.mxu0 0.0
        %5705 = vmatprep.mubr.f32.mxu0 0.0
        %5706 = vmatmul.mubr.f32.gmra.mrb[0].mxu0 %v5637
        %v5707 = vpop.f32.mrb[0].mxu0
        %v5708 = vadd.f32 0.0, %v5707
        %v5709 = vpop.f32.mrb[0].mxu0
        %5710 = vdwg.mxu0
        %v5712 = vsel %vm1375, %v5708, 0
        %5714 = vmatprep.subr.mxu0 0.0
        %5715 = vmatpush1.msra.mxu0 %v5055
        %5716 = vmatprep.subr.mxu0 0.0
        %5717 = vmatpush1.msra.mxu0 0.0
        %5718 = vmatprep.subr.mxu0 0.0
        %5719 = vmatpush1.msra.mxu0 0.0
        %5720 = vmatprep.subr.mxu0 0.0
        %5721 = vmatpush1.msra.mxu0 0.0
        %5722 = vmatprep.subr.mxu0 0.0
        %5723 = vmatpush1.msra.mxu0 0.0
        %5724 = vmatprep.subr.mxu0 0.0
        %5725 = vmatpush1.msra.mxu0 0.0
        %5726 = vmatprep.subr.mxu0 0.0
        %5727 = vmatpush1.msra.mxu0 0.0
        %5728 = vmatprep.subr.mxu0 0.0
        %5729 = vmatpush1.msra.mxu0 0.0
        %5730 = vmatprep.subr.mxu0 0.0
        %5731 = vmatpush1.msra.mxu0 0.0
        %5732 = vmatprep.subr.mxu0 0.0
        %5733 = vmatpush1.msra.mxu0 0.0
        %5734 = vmatprep.subr.mxu0 0.0
        %5735 = vmatpush1.msra.mxu0 0.0
        %5736 = vmatprep.subr.mxu0 0.0
        %5737 = vmatpush1.msra.mxu0 0.0
        %5738 = vmatprep.subr.mxu0 0.0
        %5739 = vmatpush1.msra.mxu0 0.0
        %5740 = vmatprep.subr.mxu0 0.0
        %5741 = vmatpush1.msra.mxu0 0.0
        %5742 = vmatprep.subr.mxu0 0.0
        %5743 = vmatpush1.msra.mxu0 0.0
        %5744 = vmatprep.subr.mxu0 0.0
        %5745 = vmatpush1.msra.mxu0 0.0
        %5746 = vmatprep.subr.mxu0 0.0
        %5747 = vmatpush1.msra.mxu0 0.0
        %5748 = vmatprep.subr.mxu0 0.0
        %5749 = vmatpush1.msra.mxu0 0.0
        %5750 = vmatprep.subr.mxu0 0.0
        %5751 = vmatpush1.msra.mxu0 0.0
        %5752 = vmatprep.subr.mxu0 0.0
        %5753 = vmatpush1.msra.mxu0 0.0
        %5754 = vmatprep.subr.mxu0 0.0
        %5755 = vmatpush1.msra.mxu0 0.0
        %5756 = vmatprep.subr.mxu0 0.0
        %5757 = vmatpush1.msra.mxu0 0.0
        %5758 = vmatprep.subr.mxu0 0.0
        %5759 = vmatpush1.msra.mxu0 0.0
        %5760 = vmatprep.subr.mxu0 0.0
        %5761 = vmatpush1.msra.mxu0 0.0
        %5762 = vmatprep.subr.mxu0 0.0
        %5763 = vmatpush1.msra.mxu0 0.0
        %5764 = vmatprep.subr.mxu0 0.0
        %5765 = vmatpush1.msra.mxu0 0.0
        %5766 = vmatprep.subr.mxu0 0.0
        %5767 = vmatpush1.msra.mxu0 0.0
        %5768 = vmatprep.subr.mxu0 0.0
        %5769 = vmatpush1.msra.mxu0 0.0
        %5770 = vmatprep.subr.mxu0 0.0
        %5771 = vmatpush1.msra.mxu0 0.0
        %5772 = vmatprep.subr.mxu0 0.0
        %5773 = vmatpush1.msra.mxu0 0.0
        %5774 = vmatprep.subr.mxu0 0.0
        %5775 = vmatpush1.msra.mxu0 0.0
        %5776 = vmatprep.subr.mxu0 0.0
        %5777 = vmatpush1.msra.mxu0 0.0
        %5778 = vmatprep.mubr.f32.mxu0 0.0
        %5779 = vmatmul.mubr.f32.gmra.mrb[0].mxu0 %v5712
        %v5780 = vpop.f32.mrb[0].mxu0
        %v5781 = vadd.f32 0.0, %v5780
        %v5782 = vpop.f32.mrb[0].mxu0
        %5783 = vdwg.mxu0
        %v5784 = vadd.f32 %v5543, %v5781
        %5785 = vrot.lane.b32.xlu0 %v4966, 104
        %v5786 = vpop.permute.xlu0 %5785
        %5787 = vrot.lane.b32.xlu0 %v5050, 104
        %v5788 = vpop.permute.xlu0 %5787
        %v5789 = vsel %vm1375, %v5786, 0
        %v5791 = vsel %vm1375, %v5788, 0
        %5793 = vmatprep.subr.mxu0 0.0
        %5794 = vmatpush1.xpose.msra.mxu0 %v5791
        %5795 = vmatprep.subr.mxu0 0.0
        %5796 = vmatpush1.xpose.msra.mxu0 0.0
        %5797 = vmatprep.subr.mxu0 0.0
        %5798 = vmatpush1.xpose.msra.mxu0 0.0
        %5799 = vmatprep.subr.mxu0 0.0
        %5800 = vmatpush1.xpose.msra.mxu0 0.0
        %5801 = vmatprep.subr.mxu0 0.0
        %5802 = vmatpush1.xpose.msra.mxu0 0.0
        %5803 = vmatprep.subr.mxu0 0.0
        %5804 = vmatpush1.xpose.msra.mxu0 0.0
        %5805 = vmatprep.subr.mxu0 0.0
        %5806 = vmatpush1.xpose.msra.mxu0 0.0
        %5807 = vmatprep.subr.mxu0 0.0
        %5808 = vmatpush1.xpose.msra.mxu0 0.0
        %5809 = vmatprep.subr.mxu0 0.0
        %5810 = vmatpush1.xpose.msra.mxu0 0.0
        %5811 = vmatprep.subr.mxu0 0.0
        %5812 = vmatpush1.xpose.msra.mxu0 0.0
        %5813 = vmatprep.subr.mxu0 0.0
        %5814 = vmatpush1.xpose.msra.mxu0 0.0
        %5815 = vmatprep.subr.mxu0 0.0
        %5816 = vmatpush1.xpose.msra.mxu0 0.0
        %5817 = vmatprep.subr.mxu0 0.0
        %5818 = vmatpush1.xpose.msra.mxu0 0.0
        %5819 = vmatprep.subr.mxu0 0.0
        %5820 = vmatpush1.xpose.msra.mxu0 0.0
        %5821 = vmatprep.subr.mxu0 0.0
        %5822 = vmatpush1.xpose.msra.mxu0 0.0
        %5823 = vmatprep.subr.mxu0 0.0
        %5824 = vmatpush1.xpose.msra.mxu0 0.0
        %5825 = vmatprep.subr.mxu0 0.0
        %5826 = vmatpush1.xpose.msra.mxu0 0.0
        %5827 = vmatprep.subr.mxu0 0.0
        %5828 = vmatpush1.xpose.msra.mxu0 0.0
        %5829 = vmatprep.subr.mxu0 0.0
        %5830 = vmatpush1.xpose.msra.mxu0 0.0
        %5831 = vmatprep.subr.mxu0 0.0
        %5832 = vmatpush1.xpose.msra.mxu0 0.0
        %5833 = vmatprep.subr.mxu0 0.0
        %5834 = vmatpush1.xpose.msra.mxu0 0.0
        %5835 = vmatprep.subr.mxu0 0.0
        %5836 = vmatpush1.xpose.msra.mxu0 0.0
        %5837 = vmatprep.subr.mxu0 0.0
        %5838 = vmatpush1.xpose.msra.mxu0 0.0
        %5839 = vmatprep.subr.mxu0 0.0
        %5840 = vmatpush1.xpose.msra.mxu0 0.0
        %5841 = vmatprep.subr.mxu0 0.0
        %5842 = vmatpush1.xpose.msra.mxu0 0.0
        %5843 = vmatprep.subr.mxu0 0.0
        %5844 = vmatpush1.xpose.msra.mxu0 0.0
        %5845 = vmatprep.subr.mxu0 0.0
        %5846 = vmatpush1.xpose.msra.mxu0 0.0
        %5847 = vmatprep.subr.mxu0 0.0
        %5848 = vmatpush1.xpose.msra.mxu0 0.0
        %5849 = vmatprep.subr.mxu0 0.0
        %5850 = vmatpush1.xpose.msra.mxu0 0.0
        %5851 = vmatprep.subr.mxu0 0.0
        %5852 = vmatpush1.xpose.msra.mxu0 0.0
        %5853 = vmatprep.subr.mxu0 0.0
        %5854 = vmatpush1.xpose.msra.mxu0 0.0
        %5855 = vmatprep.subr.mxu0 0.0
        %5856 = vmatpush1.xpose.msra.mxu0 0.0
        %5857 = vmatprep.mubr.f32.mxu0 0.0
        %5858 = vmatmul.mubr.f32.gmra.mrb[0].mxu0 %v5789
        %v5859 = vpop.f32.mrb[0].mxu0
        %v5860 = vadd.f32 0.0, %v5859
        %v5861 = vpop.f32.mrb[0].mxu0
        %5862 = vdwg.mxu0
        %v5863 = vmul.f32 %v5860, 0.35355338
        %v5864 = vsel %vm1451, %v5863, -inf
        %5865 = vmax.xlane.f32.xlu0 %v5864
        %v5866 = vpop.xlane.xlu0 %5865
        %v5867 = vsub.f32 %v5863, %v5866
        %v5868 = vmul.f32 %v5867, 1.442695
        %v5869 = vpow.pop %v5868
        %v5870 = vsel %vm1451, %v5869, 0.0
        %5871 = vadd.xlane.f32.xlu0 %v5870
        %v5872 = vpop.xlane.xlu0 %5871
        %v5873 = vrcp.pop %v5872
        %v5874 = vmul.f32 %v5869, %v5873
        %5875 = vrot.lane.b32.xlu0 %v5050, 72
        %v5876 = vpop.permute.xlu0 %5875
        %v5878 = vsel %vm1465, %v5874, 0
        %v5880 = vsel %vm1469, %v5876, 0
        %5882 = vmatprep.subr.mxu0 0.0
        %5883 = vmatpush1.msra.mxu0 %v5880
        %5884 = vmatprep.subr.mxu0 0.0
        %5885 = vmatpush1.msra.mxu0 0.0
        %5886 = vmatprep.subr.mxu0 0.0
        %5887 = vmatpush1.msra.mxu0 0.0
        %5888 = vmatprep.subr.mxu0 0.0
        %5889 = vmatpush1.msra.mxu0 0.0
        %5890 = vmatprep.subr.mxu0 0.0
        %5891 = vmatpush1.msra.mxu0 0.0
        %5892 = vmatprep.subr.mxu0 0.0
        %5893 = vmatpush1.msra.mxu0 0.0
        %5894 = vmatprep.subr.mxu0 0.0
        %5895 = vmatpush1.msra.mxu0 0.0
        %5896 = vmatprep.subr.mxu0 0.0
        %5897 = vmatpush1.msra.mxu0 0.0
        %5898 = vmatprep.subr.mxu0 0.0
        %5899 = vmatpush1.msra.mxu0 0.0
        %5900 = vmatprep.subr.mxu0 0.0
        %5901 = vmatpush1.msra.mxu0 0.0
        %5902 = vmatprep.subr.mxu0 0.0
        %5903 = vmatpush1.msra.mxu0 0.0
        %5904 = vmatprep.subr.mxu0 0.0
        %5905 = vmatpush1.msra.mxu0 0.0
        %5906 = vmatprep.subr.mxu0 0.0
        %5907 = vmatpush1.msra.mxu0 0.0
        %5908 = vmatprep.subr.mxu0 0.0
        %5909 = vmatpush1.msra.mxu0 0.0
        %5910 = vmatprep.subr.mxu0 0.0
        %5911 = vmatpush1.msra.mxu0 0.0
        %5912 = vmatprep.subr.mxu0 0.0
        %5913 = vmatpush1.msra.mxu0 0.0
        %5914 = vmatprep.subr.mxu0 0.0
        %5915 = vmatpush1.msra.mxu0 0.0
        %5916 = vmatprep.subr.mxu0 0.0
        %5917 = vmatpush1.msra.mxu0 0.0
        %5918 = vmatprep.subr.mxu0 0.0
        %5919 = vmatpush1.msra.mxu0 0.0
        %5920 = vmatprep.subr.mxu0 0.0
        %5921 = vmatpush1.msra.mxu0 0.0
        %5922 = vmatprep.subr.mxu0 0.0
        %5923 = vmatpush1.msra.mxu0 0.0
        %5924 = vmatprep.subr.mxu0 0.0
        %5925 = vmatpush1.msra.mxu0 0.0
        %5926 = vmatprep.subr.mxu0 0.0
        %5927 = vmatpush1.msra.mxu0 0.0
        %5928 = vmatprep.subr.mxu0 0.0
        %5929 = vmatpush1.msra.mxu0 0.0
        %5930 = vmatprep.subr.mxu0 0.0
        %5931 = vmatpush1.msra.mxu0 0.0
        %5932 = vmatprep.subr.mxu0 0.0
        %5933 = vmatpush1.msra.mxu0 0.0
        %5934 = vmatprep.subr.mxu0 0.0
        %5935 = vmatpush1.msra.mxu0 0.0
        %5936 = vmatprep.subr.mxu0 0.0
        %5937 = vmatpush1.msra.mxu0 0.0
        %5938 = vmatprep.subr.mxu0 0.0
        %5939 = vmatpush1.msra.mxu0 0.0
        %5940 = vmatprep.subr.mxu0 0.0
        %5941 = vmatpush1.msra.mxu0 0.0
        %5942 = vmatprep.subr.mxu0 0.0
        %5943 = vmatpush1.msra.mxu0 0.0
        %5944 = vmatprep.subr.mxu0 0.0
        %5945 = vmatpush1.msra.mxu0 0.0
        %5946 = vmatprep.mubr.f32.mxu0 0.0
        %5947 = vmatmul.mubr.f32.gmra.mrb[0].mxu0 %v5878
        %v5948 = vpop.f32.mrb[0].mxu0
        %v5949 = vadd.f32 0.0, %v5948
        %v5950 = vpop.f32.mrb[0].mxu0
        %5951 = vdwg.mxu0
        %v5953 = vsel %vm1375, %v5949, 0
        %5955 = vmatprep.subr.mxu0 0.0
        %5956 = vmatpush1.msra.mxu0 %v5056
        %5957 = vmatprep.subr.mxu0 0.0
        %5958 = vmatpush1.msra.mxu0 0.0
        %5959 = vmatprep.subr.mxu0 0.0
        %5960 = vmatpush1.msra.mxu0 0.0
        %5961 = vmatprep.subr.mxu0 0.0
        %5962 = vmatpush1.msra.mxu0 0.0
        %5963 = vmatprep.subr.mxu0 0.0
        %5964 = vmatpush1.msra.mxu0 0.0
        %5965 = vmatprep.subr.mxu0 0.0
        %5966 = vmatpush1.msra.mxu0 0.0
        %5967 = vmatprep.subr.mxu0 0.0
        %5968 = vmatpush1.msra.mxu0 0.0
        %5969 = vmatprep.subr.mxu0 0.0
        %5970 = vmatpush1.msra.mxu0 0.0
        %5971 = vmatprep.subr.mxu0 0.0
        %5972 = vmatpush1.msra.mxu0 0.0
        %5973 = vmatprep.subr.mxu0 0.0
        %5974 = vmatpush1.msra.mxu0 0.0
        %5975 = vmatprep.subr.mxu0 0.0
        %5976 = vmatpush1.msra.mxu0 0.0
        %5977 = vmatprep.subr.mxu0 0.0
        %5978 = vmatpush1.msra.mxu0 0.0
        %5979 = vmatprep.subr.mxu0 0.0
        %5980 = vmatpush1.msra.mxu0 0.0
        %5981 = vmatprep.subr.mxu0 0.0
        %5982 = vmatpush1.msra.mxu0 0.0
        %5983 = vmatprep.subr.mxu0 0.0
        %5984 = vmatpush1.msra.mxu0 0.0
        %5985 = vmatprep.subr.mxu0 0.0
        %5986 = vmatpush1.msra.mxu0 0.0
        %5987 = vmatprep.subr.mxu0 0.0
        %5988 = vmatpush1.msra.mxu0 0.0
        %5989 = vmatprep.subr.mxu0 0.0
        %5990 = vmatpush1.msra.mxu0 0.0
        %5991 = vmatprep.subr.mxu0 0.0
        %5992 = vmatpush1.msra.mxu0 0.0
        %5993 = vmatprep.subr.mxu0 0.0
        %5994 = vmatpush1.msra.mxu0 0.0
        %5995 = vmatprep.subr.mxu0 0.0
        %5996 = vmatpush1.msra.mxu0 0.0
        %5997 = vmatprep.subr.mxu0 0.0
        %5998 = vmatpush1.msra.mxu0 0.0
        %5999 = vmatprep.subr.mxu0 0.0
        %6000 = vmatpush1.msra.mxu0 0.0
        %6001 = vmatprep.subr.mxu0 0.0
        %6002 = vmatpush1.msra.mxu0 0.0
        %6003 = vmatprep.subr.mxu0 0.0
        %6004 = vmatpush1.msra.mxu0 0.0
        %6005 = vmatprep.subr.mxu0 0.0
        %6006 = vmatpush1.msra.mxu0 0.0
        %6007 = vmatprep.subr.mxu0 0.0
        %6008 = vmatpush1.msra.mxu0 0.0
        %6009 = vmatprep.subr.mxu0 0.0
        %6010 = vmatpush1.msra.mxu0 0.0
        %6011 = vmatprep.subr.mxu0 0.0
        %6012 = vmatpush1.msra.mxu0 0.0
        %6013 = vmatprep.subr.mxu0 0.0
        %6014 = vmatpush1.msra.mxu0 0.0
        %6015 = vmatprep.subr.mxu0 0.0
        %6016 = vmatpush1.msra.mxu0 0.0
        %6017 = vmatprep.subr.mxu0 0.0
        %6018 = vmatpush1.msra.mxu0 0.0
        %6019 = vmatprep.mubr.f32.mxu0 0.0
        %6020 = vmatmul.mubr.f32.gmra.mrb[0].mxu0 %v5953
        %v6021 = vpop.f32.mrb[0].mxu0
        %v6022 = vadd.f32 0.0, %v6021
        %v6023 = vpop.f32.mrb[0].mxu0
        %6024 = vdwg.mxu0
        %v6025 = vadd.f32 %v5784, %v6022
        %v6026 = vadd.f32 %v4855, %v6025
        %v6027 = vld [vmem:[%s61] sm:$0x1]
        %v6028 = vld [vmem:[%s63] sm:$0x1]
        %v6029 = vsel %vm1253, %v6026, 0.0
        %6030 = vadd.xlane.f32.xlu0 %v6029
        %v6031 = vpop.xlane.xlu0 %6030
        %v6032 = vmul.f32 %v6031, %v1257
        %v6033 = vsub.f32 %v6026, %v6032
        %v6034 = vmul.f32 %v6033, %v6033
        %v6035 = vsel %vm1253, %v6034, 0.0
        %6036 = vadd.xlane.f32.xlu0 %v6035
        %v6037 = vpop.xlane.xlu0 %6036
        %v6038 = vmul.f32 %v6037, %v1257
        %v6039 = vadd.f32 %v6038, 1e-06
        %v6040 = vrsqrt.pop %v6039
        %v6041 = vmul.f32 %v6033, %v6040
        %v6043 = vlaneseq
        %v6044 = vshrl.u32 %v6043, 7
        %v6045 = vsub.s32 0, %v6044
        %v6046 = vrot.slane %v6027, %v6045
        %v6048 = vmul.f32 %v6041, %v6046
        %v6050 = vlaneseq
        %v6051 = vshrl.u32 %v6050, 7
        %v6052 = vsub.s32 0, %v6051
        %v6053 = vrot.slane %v6028, %v6052
        %v6055 = vadd.f32 %v6048, %v6053
        %v6056 = vld [vmem:[%s65] sm:$0xff]
        %v6057 = vld [vmem:[%s65 + $0x8] sm:$0xff]
        %v6058 = vld [vmem:[%s65 + $0x10] sm:$0xff]
        %v6059 = vld [vmem:[%s65 + $0x18] sm:$0xff]
        %v6060 = vld [vmem:[%s67] sm:$0x1]
        %v6062 = vlaneseq
        %v6063 = vshrl.u32 %v6062, 7
        %v6064 = vsub.s32 0, %v6063
        %v6065 = vrot.slane %v6060, %v6064
        %v6068 = vsel %vm1293, %v6055, 0
        %6070 = vmatprep.subr.mxu0 0.0
        %6071 = vmatpush1.msra.mxu0 %v6056
        %6072 = vmatprep.subr.mxu0 0.0
        %6073 = vmatpush1.msra.mxu0 %v6057
        %6074 = vmatprep.subr.mxu0 0.0
        %6075 = vmatpush1.msra.mxu0 %v6058
        %6076 = vmatprep.subr.mxu0 0.0
        %6077 = vmatpush1.msra.mxu0 %v6059
        %6078 = vmatprep.subr.mxu0 0.0
        %6079 = vmatpush1.msra.mxu0 0.0
        %6080 = vmatprep.subr.mxu0 0.0
        %6081 = vmatpush1.msra.mxu0 0.0
        %6082 = vmatprep.subr.mxu0 0.0
        %6083 = vmatpush1.msra.mxu0 0.0
        %6084 = vmatprep.subr.mxu0 0.0
        %6085 = vmatpush1.msra.mxu0 0.0
        %6086 = vmatprep.subr.mxu0 0.0
        %6087 = vmatpush1.msra.mxu0 0.0
        %6088 = vmatprep.subr.mxu0 0.0
        %6089 = vmatpush1.msra.mxu0 0.0
        %6090 = vmatprep.subr.mxu0 0.0
        %6091 = vmatpush1.msra.mxu0 0.0
        %6092 = vmatprep.subr.mxu0 0.0
        %6093 = vmatpush1.msra.mxu0 0.0
        %6094 = vmatprep.subr.mxu0 0.0
        %6095 = vmatpush1.msra.mxu0 0.0
        %6096 = vmatprep.subr.mxu0 0.0
        %6097 = vmatpush1.msra.mxu0 0.0
        %6098 = vmatprep.subr.mxu0 0.0
        %6099 = vmatpush1.msra.mxu0 0.0
        %6100 = vmatprep.subr.mxu0 0.0
        %6101 = vmatpush1.msra.mxu0 0.0
        %6102 = vmatprep.subr.mxu0 0.0
        %6103 = vmatpush1.msra.mxu0 0.0
        %6104 = vmatprep.subr.mxu0 0.0
        %6105 = vmatpush1.msra.mxu0 0.0
        %6106 = vmatprep.subr.mxu0 0.0
        %6107 = vmatpush1.msra.mxu0 0.0
        %6108 = vmatprep.subr.mxu0 0.0
        %6109 = vmatpush1.msra.mxu0 0.0
        %6110 = vmatprep.subr.mxu0 0.0
        %6111 = vmatpush1.msra.mxu0 0.0
        %6112 = vmatprep.subr.mxu0 0.0
        %6113 = vmatpush1.msra.mxu0 0.0
        %6114 = vmatprep.subr.mxu0 0.0
        %6115 = vmatpush1.msra.mxu0 0.0
        %6116 = vmatprep.subr.mxu0 0.0
        %6117 = vmatpush1.msra.mxu0 0.0
        %6118 = vmatprep.subr.mxu0 0.0
        %6119 = vmatpush1.msra.mxu0 0.0
        %6120 = vmatprep.subr.mxu0 0.0
        %6121 = vmatpush1.msra.mxu0 0.0
        %6122 = vmatprep.subr.mxu0 0.0
        %6123 = vmatpush1.msra.mxu0 0.0
        %6124 = vmatprep.subr.mxu0 0.0
        %6125 = vmatpush1.msra.mxu0 0.0
        %6126 = vmatprep.subr.mxu0 0.0
        %6127 = vmatpush1.msra.mxu0 0.0
        %6128 = vmatprep.subr.mxu0 0.0
        %6129 = vmatpush1.msra.mxu0 0.0
        %6130 = vmatprep.subr.mxu0 0.0
        %6131 = vmatpush1.msra.mxu0 0.0
        %6132 = vmatprep.subr.mxu0 0.0
        %6133 = vmatpush1.msra.mxu0 0.0
        %6134 = vmatprep.mubr.f32.mxu0 0.0
        %6135 = vmatmul.mubr.f32.gmra.mrb[0].mxu0 %v6068
        %v6136 = vpop.f32.mrb[0].mxu0
        %v6137 = vadd.f32 %v6065, %v6136
        %v6138 = vpop.f32.mrb[0].mxu0
        %6139 = vdwg.mxu0
        %v6140 = vmul.f32 %v6137, %v6137
        %v6141 = vmul.f32 %v6137, %v6140
        %v6142 = vmul.f32 %v6141, 0.044715
        %v6143 = vadd.f32 %v6137, %v6142
        %v6144 = vmul.f32 %v6143, 0.7978846
        %v6145 = vtanh.pop %v6144
        %v6146 = vadd.f32 %v6145, 1.0
        %v6147 = vmul.f32 %v6146, 0.5
        %v6148 = vmul.f32 %v6137, %v6147
        %v6149 = vld [vmem:[%s69] sm:$0xff]
        %v6150 = vld [vmem:[%s69 + $0x8] sm:$0xff]
        %v6151 = vld [vmem:[%s69 + $0x10] sm:$0xff]
        %v6152 = vld [vmem:[%s69 + $0x18] sm:$0xff]
        %v6153 = vld [vmem:[%s69 + $0x20] sm:$0xff]
        %v6154 = vld [vmem:[%s69 + $0x28] sm:$0xff]
        %v6155 = vld [vmem:[%s69 + $0x30] sm:$0xff]
        %v6156 = vld [vmem:[%s69 + $0x38] sm:$0xff]
        %v6157 = vld [vmem:[%s71] sm:$0x1]
        %v6159 = vlaneseq
        %v6160 = vshrl.u32 %v6159, 7
        %v6161 = vsub.s32 0, %v6160
        %v6162 = vrot.slane %v6157, %v6161
        %v6165 = vsel %vm2483, %v6148, 0
        %6167 = vmatprep.subr.mxu0 0.0
        %6168 = vmatpush1.msra.mxu0 %v6149
        %6169 = vmatprep.subr.mxu0 0.0
        %6170 = vmatpush1.msra.mxu0 %v6150
        %6171 = vmatprep.subr.mxu0 0.0
        %6172 = vmatpush1.msra.mxu0 %v6151
        %6173 = vmatprep.subr.mxu0 0.0
        %6174 = vmatpush1.msra.mxu0 %v6152
        %6175 = vmatprep.subr.mxu0 0.0
        %6176 = vmatpush1.msra.mxu0 %v6153
        %6177 = vmatprep.subr.mxu0 0.0
        %6178 = vmatpush1.msra.mxu0 %v6154
        %6179 = vmatprep.subr.mxu0 0.0
        %6180 = vmatpush1.msra.mxu0 %v6155
        %6181 = vmatprep.subr.mxu0 0.0
        %6182 = vmatpush1.msra.mxu0 %v6156
        %6183 = vmatprep.subr.mxu0 0.0
        %6184 = vmatpush1.msra.mxu0 0.0
        %6185 = vmatprep.subr.mxu0 0.0
        %6186 = vmatpush1.msra.mxu0 0.0
        %6187 = vmatprep.subr.mxu0 0.0
        %6188 = vmatpush1.msra.mxu0 0.0
        %6189 = vmatprep.subr.mxu0 0.0
        %6190 = vmatpush1.msra.mxu0 0.0
        %6191 = vmatprep.subr.mxu0 0.0
        %6192 = vmatpush1.msra.mxu0 0.0
        %6193 = vmatprep.subr.mxu0 0.0
        %6194 = vmatpush1.msra.mxu0 0.0
        %6195 = vmatprep.subr.mxu0 0.0
        %6196 = vmatpush1.msra.mxu0 0.0
        %6197 = vmatprep.subr.mxu0 0.0
        %6198 = vmatpush1.msra.mxu0 0.0
        %6199 = vmatprep.subr.mxu0 0.0
        %6200 = vmatpush1.msra.mxu0 0.0
        %6201 = vmatprep.subr.mxu0 0.0
        %6202 = vmatpush1.msra.mxu0 0.0
        %6203 = vmatprep.subr.mxu0 0.0
        %6204 = vmatpush1.msra.mxu0 0.0
        %6205 = vmatprep.subr.mxu0 0.0
        %6206 = vmatpush1.msra.mxu0 0.0
        %6207 = vmatprep.subr.mxu0 0.0
        %6208 = vmatpush1.msra.mxu0 0.0
        %6209 = vmatprep.subr.mxu0 0.0
        %6210 = vmatpush1.msra.mxu0 0.0
        %6211 = vmatprep.subr.mxu0 0.0
        %6212 = vmatpush1.msra.mxu0 0.0
        %6213 = vmatprep.subr.mxu0 0.0
        %6214 = vmatpush1.msra.mxu0 0.0
        %6215 = vmatprep.subr.mxu0 0.0
        %6216 = vmatpush1.msra.mxu0 0.0
        %6217 = vmatprep.subr.mxu0 0.0
        %6218 = vmatpush1.msra.mxu0 0.0
        %6219 = vmatprep.subr.mxu0 0.0
        %6220 = vmatpush1.msra.mxu0 0.0
        %6221 = vmatprep.subr.mxu0 0.0
        %6222 = vmatpush1.msra.mxu0 0.0
        %6223 = vmatprep.subr.mxu0 0.0
        %6224 = vmatpush1.msra.mxu0 0.0
        %6225 = vmatprep.subr.mxu0 0.0
        %6226 = vmatpush1.msra.mxu0 0.0
        %6227 = vmatprep.subr.mxu0 0.0
        %6228 = vmatpush1.msra.mxu0 0.0
        %6229 = vmatprep.subr.mxu0 0.0
        %6230 = vmatpush1.msra.mxu0 0.0
        %6231 = vmatprep.mubr.f32.mxu0 0.0
        %6232 = vmatmul.mubr.f32.gmra.mrb[0].mxu0 %v6165
        %v6233 = vpop.f32.mrb[0].mxu0
        %v6234 = vadd.f32 %v6162, %v6233
        %v6235 = vpop.f32.mrb[0].mxu0
        %6236 = vdwg.mxu0
        %v6237 = vadd.f32 %v6026, %v6234
        %v6238 = vsel %vm1253, %v6237, 0.0
        %6239 = vadd.xlane.f32.xlu0 %v6238
        %v6240 = vpop.xlane.xlu0 %6239
        %v6241 = vmul.f32 %v6240, %v1257
        %v6242 = vsub.f32 %v6237, %v6241
        %v6243 = vmul.f32 %v6242, %v6242
        %v6244 = vsel %vm1253, %v6243, 0.0
        %6245 = vadd.xlane.f32.xlu0 %v6244
        %v6246 = vpop.xlane.xlu0 %6245
        %v6247 = vmul.f32 %v6246, %v1257
        %v6248 = vadd.f32 %v6247, 1e-06
        %v6249 = vrsqrt.pop %v6248
        %v6250 = vmul.f32 %v6242, %v6249
        %v6251 = vmul.f32 %v6250, %v3787
        %v6252 = vadd.f32 %v6251, %v3794
        %v6254 = vsel %vm1293, %v6252, 0
        %6256 = vmatprep.subr.mxu0 0.0
        %6257 = vmatpush1.msra.mxu0 %v3797
        %6258 = vmatprep.subr.mxu0 0.0
        %6259 = vmatpush1.msra.mxu0 %v3798
        %6260 = vmatprep.subr.mxu0 0.0
        %6261 = vmatpush1.msra.mxu0 %v3799
        %6262 = vmatprep.subr.mxu0 0.0
        %6263 = vmatpush1.msra.mxu0 %v3800
        %6264 = vmatprep.subr.mxu0 0.0
        %6265 = vmatpush1.msra.mxu0 0.0
        %6266 = vmatprep.subr.mxu0 0.0
        %6267 = vmatpush1.msra.mxu0 0.0
        %6268 = vmatprep.subr.mxu0 0.0
        %6269 = vmatpush1.msra.mxu0 0.0
        %6270 = vmatprep.subr.mxu0 0.0
        %6271 = vmatpush1.msra.mxu0 0.0
        %6272 = vmatprep.subr.mxu0 0.0
        %6273 = vmatpush1.msra.mxu0 0.0
        %6274 = vmatprep.subr.mxu0 0.0
        %6275 = vmatpush1.msra.mxu0 0.0
        %6276 = vmatprep.subr.mxu0 0.0
        %6277 = vmatpush1.msra.mxu0 0.0
        %6278 = vmatprep.subr.mxu0 0.0
        %6279 = vmatpush1.msra.mxu0 0.0
        %6280 = vmatprep.subr.mxu0 0.0
        %6281 = vmatpush1.msra.mxu0 0.0
        %6282 = vmatprep.subr.mxu0 0.0
        %6283 = vmatpush1.msra.mxu0 0.0
        %6284 = vmatprep.subr.mxu0 0.0
        %6285 = vmatpush1.msra.mxu0 0.0
        %6286 = vmatprep.subr.mxu0 0.0
        %6287 = vmatpush1.msra.mxu0 0.0
        %6288 = vmatprep.subr.mxu0 0.0
        %6289 = vmatpush1.msra.mxu0 0.0
        %6290 = vmatprep.subr.mxu0 0.0
        %6291 = vmatpush1.msra.mxu0 0.0
        %6292 = vmatprep.subr.mxu0 0.0
        %6293 = vmatpush1.msra.mxu0 0.0
        %6294 = vmatprep.subr.mxu0 0.0
        %6295 = vmatpush1.msra.mxu0 0.0
        %6296 = vmatprep.subr.mxu0 0.0
        %6297 = vmatpush1.msra.mxu0 0.0
        %6298 = vmatprep.subr.mxu0 0.0
        %6299 = vmatpush1.msra.mxu0 0.0
        %6300 = vmatprep.subr.mxu0 0.0
        %6301 = vmatpush1.msra.mxu0 0.0
        %6302 = vmatprep.subr.mxu0 0.0
        %6303 = vmatpush1.msra.mxu0 0.0
        %6304 = vmatprep.subr.mxu0 0.0
        %6305 = vmatpush1.msra.mxu0 0.0
        %6306 = vmatprep.subr.mxu0 0.0
        %6307 = vmatpush1.msra.mxu0 0.0
        %6308 = vmatprep.subr.mxu0 0.0
        %6309 = vmatpush1.msra.mxu0 0.0
        %6310 = vmatprep.subr.mxu0 0.0
        %6311 = vmatpush1.msra.mxu0 0.0
        %6312 = vmatprep.subr.mxu0 0.0
        %6313 = vmatpush1.msra.mxu0 0.0
        %6314 = vmatprep.subr.mxu0 0.0
        %6315 = vmatpush1.msra.mxu0 0.0
        %6316 = vmatprep.subr.mxu0 0.0
        %6317 = vmatpush1.msra.mxu0 0.0
        %6318 = vmatprep.subr.mxu0 0.0
        %6319 = vmatpush1.msra.mxu0 0.0
        %6320 = vmatprep.mubr.f32.mxu0 0.0
        %6321 = vmatmul.mubr.f32.gmra.mrb[0].mxu0 %v6254
        %v6322 = vpop.f32.mrb[0].mxu0
        %v6323 = vadd.f32 %v3806, %v6322
        %v6324 = vpop.f32.mrb[0].mxu0
        %6325 = vdwg.mxu0
        %6327 = vrot.lane.b32.xlu0 %v6323, 96
        %v6328 = vpop.permute.xlu0 %6327
        %v6329 = vsel %vm1375, %v6323, 0
        %v6331 = vsel %vm1375, %v6328, 0
        %6333 = vmatprep.subr.mxu0 0.0
        %6334 = vmatpush1.xpose.msra.mxu0 %v6331
        %6335 = vmatprep.subr.mxu0 0.0
        %6336 = vmatpush1.xpose.msra.mxu0 0.0
        %6337 = vmatprep.subr.mxu0 0.0
        %6338 = vmatpush1.xpose.msra.mxu0 0.0
        %6339 = vmatprep.subr.mxu0 0.0
        %6340 = vmatpush1.xpose.msra.mxu0 0.0
        %6341 = vmatprep.subr.mxu0 0.0
        %6342 = vmatpush1.xpose.msra.mxu0 0.0
        %6343 = vmatprep.subr.mxu0 0.0
        %6344 = vmatpush1.xpose.msra.mxu0 0.0
        %6345 = vmatprep.subr.mxu0 0.0
        %6346 = vmatpush1.xpose.msra.mxu0 0.0
        %6347 = vmatprep.subr.mxu0 0.0
        %6348 = vmatpush1.xpose.msra.mxu0 0.0
        %6349 = vmatprep.subr.mxu0 0.0
        %6350 = vmatpush1.xpose.msra.mxu0 0.0
        %6351 = vmatprep.subr.mxu0 0.0
        %6352 = vmatpush1.xpose.msra.mxu0 0.0
        %6353 = vmatprep.subr.mxu0 0.0
        %6354 = vmatpush1.xpose.msra.mxu0 0.0
        %6355 = vmatprep.subr.mxu0 0.0
        %6356 = vmatpush1.xpose.msra.mxu0 0.0
        %6357 = vmatprep.subr.mxu0 0.0
        %6358 = vmatpush1.xpose.msra.mxu0 0.0
        %6359 = vmatprep.subr.mxu0 0.0
        %6360 = vmatpush1.xpose.msra.mxu0 0.0
        %6361 = vmatprep.subr.mxu0 0.0
        %6362 = vmatpush1.xpose.msra.mxu0 0.0
        %6363 = vmatprep.subr.mxu0 0.0
        %6364 = vmatpush1.xpose.msra.mxu0 0.0
        %6365 = vmatprep.subr.mxu0 0.0
        %6366 = vmatpush1.xpose.msra.mxu0 0.0
        %6367 = vmatprep.subr.mxu0 0.0
        %6368 = vmatpush1.xpose.msra.mxu0 0.0
        %6369 = vmatprep.subr.mxu0 0.0
        %6370 = vmatpush1.xpose.msra.mxu0 0.0
        %6371 = vmatprep.subr.mxu0 0.0
        %6372 = vmatpush1.xpose.msra.mxu0 0.0
        %6373 = vmatprep.subr.mxu0 0.0
        %6374 = vmatpush1.xpose.msra.mxu0 0.0
        %6375 = vmatprep.subr.mxu0 0.0
        %6376 = vmatpush1.xpose.msra.mxu0 0.0
        %6377 = vmatprep.subr.mxu0 0.0
        %6378 = vmatpush1.xpose.msra.mxu0 0.0
        %6379 = vmatprep.subr.mxu0 0.0
        %6380 = vmatpush1.xpose.msra.mxu0 0.0
        %6381 = vmatprep.subr.mxu0 0.0
        %6382 = vmatpush1.xpose.msra.mxu0 0.0
        %6383 = vmatprep.subr.mxu0 0.0
        %6384 = vmatpush1.xpose.msra.mxu0 0.0
        %6385 = vmatprep.subr.mxu0 0.0
        %6386 = vmatpush1.xpose.msra.mxu0 0.0
        %6387 = vmatprep.subr.mxu0 0.0
        %6388 = vmatpush1.xpose.msra.mxu0 0.0
        %6389 = vmatprep.subr.mxu0 0.0
        %6390 = vmatpush1.xpose.msra.mxu0 0.0
        %6391 = vmatprep.subr.mxu0 0.0
        %6392 = vmatpush1.xpose.msra.mxu0 0.0
        %6393 = vmatprep.subr.mxu0 0.0
        %6394 = vmatpush1.xpose.msra.mxu0 0.0
        %6395 = vmatprep.subr.mxu0 0.0
        %6396 = vmatpush1.xpose.msra.mxu0 0.0
        %6397 = vmatprep.mubr.f32.mxu0 0.0
        %6398 = vmatmul.mubr.f32.gmra.mrb[0].mxu0 %v6329
        %v6399 = vpop.f32.mrb[0].mxu0
        %v6400 = vadd.f32 0.0, %v6399
        %v6401 = vpop.f32.mrb[0].mxu0
        %6402 = vdwg.mxu0
        %v6403 = vmul.f32 %v6400, 0.35355338
        %v6404 = vsel %vm1451, %v6403, -inf
        %6405 = vmax.xlane.f32.xlu0 %v6404
        %v6406 = vpop.xlane.xlu0 %6405
        %v6407 = vsub.f32 %v6403, %v6406
        %v6408 = vmul.f32 %v6407, 1.442695
        %v6409 = vpow.pop %v6408
        %v6410 = vsel %vm1451, %v6409, 0.0
        %6411 = vadd.xlane.f32.xlu0 %v6410
        %v6412 = vpop.xlane.xlu0 %6411
        %v6413 = vrcp.pop %v6412
        %v6414 = vmul.f32 %v6409, %v6413
        %6415 = vrot.lane.b32.xlu0 %v6323, 64
        %v6416 = vpop.permute.xlu0 %6415
        %v6418 = vsel %vm1465, %v6414, 0
        %v6420 = vsel %vm1469, %v6416, 0
        %6422 = vmatprep.subr.mxu0 0.0
        %6423 = vmatpush1.msra.mxu0 %v6420
        %6424 = vmatprep.subr.mxu0 0.0
        %6425 = vmatpush1.msra.mxu0 0.0
        %6426 = vmatprep.subr.mxu0 0.0
        %6427 = vmatpush1.msra.mxu0 0.0
        %6428 = vmatprep.subr.mxu0 0.0
        %6429 = vmatpush1.msra.mxu0 0.0
        %6430 = vmatprep.subr.mxu0 0.0
        %6431 = vmatpush1.msra.mxu0 0.0
        %6432 = vmatprep.subr.mxu0 0.0
        %6433 = vmatpush1.msra.mxu0 0.0
        %6434 = vmatprep.subr.mxu0 0.0
        %6435 = vmatpush1.msra.mxu0 0.0
        %6436 = vmatprep.subr.mxu0 0.0
        %6437 = vmatpush1.msra.mxu0 0.0
        %6438 = vmatprep.subr.mxu0 0.0
        %6439 = vmatpush1.msra.mxu0 0.0
        %6440 = vmatprep.subr.mxu0 0.0
        %6441 = vmatpush1.msra.mxu0 0.0
        %6442 = vmatprep.subr.mxu0 0.0
        %6443 = vmatpush1.msra.mxu0 0.0
        %6444 = vmatprep.subr.mxu0 0.0
        %6445 = vmatpush1.msra.mxu0 0.0
        %6446 = vmatprep.subr.mxu0 0.0
        %6447 = vmatpush1.msra.mxu0 0.0
        %6448 = vmatprep.subr.mxu0 0.0
        %6449 = vmatpush1.msra.mxu0 0.0
        %6450 = vmatprep.subr.mxu0 0.0
        %6451 = vmatpush1.msra.mxu0 0.0
        %6452 = vmatprep.subr.mxu0 0.0
        %6453 = vmatpush1.msra.mxu0 0.0
        %6454 = vmatprep.subr.mxu0 0.0
        %6455 = vmatpush1.msra.mxu0 0.0
        %6456 = vmatprep.subr.mxu0 0.0
        %6457 = vmatpush1.msra.mxu0 0.0
        %6458 = vmatprep.subr.mxu0 0.0
        %6459 = vmatpush1.msra.mxu0 0.0
        %6460 = vmatprep.subr.mxu0 0.0
        %6461 = vmatpush1.msra.mxu0 0.0
        %6462 = vmatprep.subr.mxu0 0.0
        %6463 = vmatpush1.msra.mxu0 0.0
        %6464 = vmatprep.subr.mxu0 0.0
        %6465 = vmatpush1.msra.mxu0 0.0
        %6466 = vmatprep.subr.mxu0 0.0
        %6467 = vmatpush1.msra.mxu0 0.0
        %6468 = vmatprep.subr.mxu0 0.0
        %6469 = vmatpush1.msra.mxu0 0.0
        %6470 = vmatprep.subr.mxu0 0.0
        %6471 = vmatpush1.msra.mxu0 0.0
        %6472 = vmatprep.subr.mxu0 0.0
        %6473 = vmatpush1.msra.mxu0 0.0
        %6474 = vmatprep.subr.mxu0 0.0
        %6475 = vmatpush1.msra.mxu0 0.0
        %6476 = vmatprep.subr.mxu0 0.0
        %6477 = vmatpush1.msra.mxu0 0.0
        %6478 = vmatprep.subr.mxu0 0.0
        %6479 = vmatpush1.msra.mxu0 0.0
        %6480 = vmatprep.subr.mxu0 0.0
        %6481 = vmatpush1.msra.mxu0 0.0
        %6482 = vmatprep.subr.mxu0 0.0
        %6483 = vmatpush1.msra.mxu0 0.0
        %6484 = vmatprep.subr.mxu0 0.0
        %6485 = vmatpush1.msra.mxu0 0.0
        %6486 = vmatprep.mubr.f32.mxu0 0.0
        %6487 = vmatmul.mubr.f32.gmra.mrb[0].mxu0 %v6418
        %v6488 = vpop.f32.mrb[0].mxu0
        %v6489 = vadd.f32 0.0, %v6488
        %v6490 = vpop.f32.mrb[0].mxu0
        %6491 = vdwg.mxu0
        %v6493 = vsel %vm1375, %v6489, 0
        %6495 = vmatprep.subr.mxu0 0.0
        %6496 = vmatpush1.msra.mxu0 %v3881
        %6497 = vmatprep.subr.mxu0 0.0
        %6498 = vmatpush1.msra.mxu0 0.0
        %6499 = vmatprep.subr.mxu0 0.0
        %6500 = vmatpush1.msra.mxu0 0.0
        %6501 = vmatprep.subr.mxu0 0.0
        %6502 = vmatpush1.msra.mxu0 0.0
        %6503 = vmatprep.subr.mxu0 0.0
        %6504 = vmatpush1.msra.mxu0 0.0
        %6505 = vmatprep.subr.mxu0 0.0
        %6506 = vmatpush1.msra.mxu0 0.0
        %6507 = vmatprep.subr.mxu0 0.0
        %6508 = vmatpush1.msra.mxu0 0.0
        %6509 = vmatprep.subr.mxu0 0.0
        %6510 = vmatpush1.msra.mxu0 0.0
        %6511 = vmatprep.subr.mxu0 0.0
        %6512 = vmatpush1.msra.mxu0 0.0
        %6513 = vmatprep.subr.mxu0 0.0
        %6514 = vmatpush1.msra.mxu0 0.0
        %6515 = vmatprep.subr.mxu0 0.0
        %6516 = vmatpush1.msra.mxu0 0.0
        %6517 = vmatprep.subr.mxu0 0.0
        %6518 = vmatpush1.msra.mxu0 0.0
        %6519 = vmatprep.subr.mxu0 0.0
        %6520 = vmatpush1.msra.mxu0 0.0
        %6521 = vmatprep.subr.mxu0 0.0
        %6522 = vmatpush1.msra.mxu0 0.0
        %6523 = vmatprep.subr.mxu0 0.0
        %6524 = vmatpush1.msra.mxu0 0.0
        %6525 = vmatprep.subr.mxu0 0.0
        %6526 = vmatpush1.msra.mxu0 0.0
        %6527 = vmatprep.subr.mxu0 0.0
        %6528 = vmatpush1.msra.mxu0 0.0
        %6529 = vmatprep.subr.mxu0 0.0
        %6530 = vmatpush1.msra.mxu0 0.0
        %6531 = vmatprep.subr.mxu0 0.0
        %6532 = vmatpush1.msra.mxu0 0.0
        %6533 = vmatprep.subr.mxu0 0.0
        %6534 = vmatpush1.msra.mxu0 0.0
        %6535 = vmatprep.subr.mxu0 0.0
        %6536 = vmatpush1.msra.mxu0 0.0
        %6537 = vmatprep.subr.mxu0 0.0
        %6538 = vmatpush1.msra.mxu0 0.0
        %6539 = vmatprep.subr.mxu0 0.0
        %6540 = vmatpush1.msra.mxu0 0.0
        %6541 = vmatprep.subr.mxu0 0.0
        %6542 = vmatpush1.msra.mxu0 0.0
        %6543 = vmatprep.subr.mxu0 0.0
        %6544 = vmatpush1.msra.mxu0 0.0
        %6545 = vmatprep.subr.mxu0 0.0
        %6546 = vmatpush1.msra.mxu0 0.0
        %6547 = vmatprep.subr.mxu0 0.0
        %6548 = vmatpush1.msra.mxu0 0.0
        %6549 = vmatprep.subr.mxu0 0.0
        %6550 = vmatpush1.msra.mxu0 0.0
        %6551 = vmatprep.subr.mxu0 0.0
        %6552 = vmatpush1.msra.mxu0 0.0
        %6553 = vmatprep.subr.mxu0 0.0
        %6554 = vmatpush1.msra.mxu0 0.0
        %6555 = vmatprep.subr.mxu0 0.0
        %6556 = vmatpush1.msra.mxu0 0.0
        %6557 = vmatprep.subr.mxu0 0.0
        %6558 = vmatpush1.msra.mxu0 0.0
        %6559 = vmatprep.mubr.f32.mxu0 0.0
        %6560 = vmatmul.mubr.f32.gmra.mrb[0].mxu0 %v6493
        %v6561 = vpop.f32.mrb[0].mxu0
        %v6562 = vadd.f32 0.0, %v6561
        %v6563 = vpop.f32.mrb[0].mxu0
        %6564 = vdwg.mxu0
        %v6565 = vadd.f32 %v4129, %v6562
        %6566 = vrot.lane.b32.xlu0 %v6323, 120
        %v6567 = vpop.permute.xlu0 %6566
        %6568 = vrot.lane.b32.xlu0 %v6323, 88
        %v6569 = vpop.permute.xlu0 %6568
        %v6570 = vsel %vm1375, %v6567, 0
        %v6572 = vsel %vm1375, %v6569, 0
        %6574 = vmatprep.subr.mxu0 0.0
        %6575 = vmatpush1.xpose.msra.mxu0 %v6572
        %6576 = vmatprep.subr.mxu0 0.0
        %6577 = vmatpush1.xpose.msra.mxu0 0.0
        %6578 = vmatprep.subr.mxu0 0.0
        %6579 = vmatpush1.xpose.msra.mxu0 0.0
        %6580 = vmatprep.subr.mxu0 0.0
        %6581 = vmatpush1.xpose.msra.mxu0 0.0
        %6582 = vmatprep.subr.mxu0 0.0
        %6583 = vmatpush1.xpose.msra.mxu0 0.0
        %6584 = vmatprep.subr.mxu0 0.0
        %6585 = vmatpush1.xpose.msra.mxu0 0.0
        %6586 = vmatprep.subr.mxu0 0.0
        %6587 = vmatpush1.xpose.msra.mxu0 0.0
        %6588 = vmatprep.subr.mxu0 0.0
        %6589 = vmatpush1.xpose.msra.mxu0 0.0
        %6590 = vmatprep.subr.mxu0 0.0
        %6591 = vmatpush1.xpose.msra.mxu0 0.0
        %6592 = vmatprep.subr.mxu0 0.0
        %6593 = vmatpush1.xpose.msra.mxu0 0.0
        %6594 = vmatprep.subr.mxu0 0.0
        %6595 = vmatpush1.xpose.msra.mxu0 0.0
        %6596 = vmatprep.subr.mxu0 0.0
        %6597 = vmatpush1.xpose.msra.mxu0 0.0
        %6598 = vmatprep.subr.mxu0 0.0
        %6599 = vmatpush1.xpose.msra.mxu0 0.0
        %6600 = vmatprep.subr.mxu0 0.0
        %6601 = vmatpush1.xpose.msra.mxu0 0.0
        %6602 = vmatprep.subr.mxu0 0.0
        %6603 = vmatpush1.xpose.msra.mxu0 0.0
        %6604 = vmatprep.subr.mxu0 0.0
        %6605 = vmatpush1.xpose.msra.mxu0 0.0
        %6606 = vmatprep.subr.mxu0 0.0
        %6607 = vmatpush1.xpose.msra.mxu0 0.0
        %6608 = vmatprep.subr.mxu0 0.0
        %6609 = vmatpush1.xpose.msra.mxu0 0.0
        %6610 = vmatprep.subr.mxu0 0.0
        %6611 = vmatpush1.xpose.msra.mxu0 0.0
        %6612 = vmatprep.subr.mxu0 0.0
        %6613 = vmatpush1.xpose.msra.mxu0 0.0
        %6614 = vmatprep.subr.mxu0 0.0
        %6615 = vmatpush1.xpose.msra.mxu0 0.0
        %6616 = vmatprep.subr.mxu0 0.0
        %6617 = vmatpush1.xpose.msra.mxu0 0.0
        %6618 = vmatprep.subr.mxu0 0.0
        %6619 = vmatpush1.xpose.msra.mxu0 0.0
        %6620 = vmatprep.subr.mxu0 0.0
        %6621 = vmatpush1.xpose.msra.mxu0 0.0
        %6622 = vmatprep.subr.mxu0 0.0
        %6623 = vmatpush1.xpose.msra.mxu0 0.0
        %6624 = vmatprep.subr.mxu0 0.0
        %6625 = vmatpush1.xpose.msra.mxu0 0.0
        %6626 = vmatprep.subr.mxu0 0.0
        %6627 = vmatpush1.xpose.msra.mxu0 0.0
        %6628 = vmatprep.subr.mxu0 0.0
        %6629 = vmatpush1.xpose.msra.mxu0 0.0
        %6630 = vmatprep.subr.mxu0 0.0
        %6631 = vmatpush1.xpose.msra.mxu0 0.0
        %6632 = vmatprep.subr.mxu0 0.0
        %6633 = vmatpush1.xpose.msra.mxu0 0.0
        %6634 = vmatprep.subr.mxu0 0.0
        %6635 = vmatpush1.xpose.msra.mxu0 0.0
        %6636 = vmatprep.subr.mxu0 0.0
        %6637 = vmatpush1.xpose.msra.mxu0 0.0
        %6638 = vmatprep.mubr.f32.mxu0 0.0
        %6639 = vmatmul.mubr.f32.gmra.mrb[0].mxu0 %v6570
        %v6640 = vpop.f32.mrb[0].mxu0
        %v6641 = vadd.f32 0.0, %v6640
        %v6642 = vpop.f32.mrb[0].mxu0
        %6643 = vdwg.mxu0
        %v6644 = vmul.f32 %v6641, 0.35355338
        %v6645 = vsel %vm1451, %v6644, -inf
        %6646 = vmax.xlane.f32.xlu0 %v6645
        %v6647 = vpop.xlane.xlu0 %6646
        %v6648 = vsub.f32 %v6644, %v6647
        %v6649 = vmul.f32 %v6648, 1.442695
        %v6650 = vpow.pop %v6649
        %v6651 = vsel %vm1451, %v6650, 0.0
        %6652 = vadd.xlane.f32.xlu0 %v6651
        %v6653 = vpop.xlane.xlu0 %6652
        %v6654 = vrcp.pop %v6653
        %v6655 = vmul.f32 %v6650, %v6654
        %6656 = vrot.lane.b32.xlu0 %v6323, 56
        %v6657 = vpop.permute.xlu0 %6656
        %v6659 = vsel %vm1465, %v6655, 0
        %v6661 = vsel %vm1469, %v6657, 0
        %6663 = vmatprep.subr.mxu0 0.0
        %6664 = vmatpush1.msra.mxu0 %v6661
        %6665 = vmatprep.subr.mxu0 0.0
        %6666 = vmatpush1.msra.mxu0 0.0
        %6667 = vmatprep.subr.mxu0 0.0
        %6668 = vmatpush1.msra.mxu0 0.0
        %6669 = vmatprep.subr.mxu0 0.0
        %6670 = vmatpush1.msra.mxu0 0.0
        %6671 = vmatprep.subr.mxu0 0.0
        %6672 = vmatpush1.msra.mxu0 0.0
        %6673 = vmatprep.subr.mxu0 0.0
        %6674 = vmatpush1.msra.mxu0 0.0
        %6675 = vmatprep.subr.mxu0 0.0
        %6676 = vmatpush1.msra.mxu0 0.0
        %6677 = vmatprep.subr.mxu0 0.0
        %6678 = vmatpush1.msra.mxu0 0.0
        %6679 = vmatprep.subr.mxu0 0.0
        %6680 = vmatpush1.msra.mxu0 0.0
        %6681 = vmatprep.subr.mxu0 0.0
        %6682 = vmatpush1.msra.mxu0 0.0
        %6683 = vmatprep.subr.mxu0 0.0
        %6684 = vmatpush1.msra.mxu0 0.0
        %6685 = vmatprep.subr.mxu0 0.0
        %6686 = vmatpush1.msra.mxu0 0.0
        %6687 = vmatprep.subr.mxu0 0.0
        %6688 = vmatpush1.msra.mxu0 0.0
        %6689 = vmatprep.subr.mxu0 0.0
        %6690 = vmatpush1.msra.mxu0 0.0
        %6691 = vmatprep.subr.mxu0 0.0
        %6692 = vmatpush1.msra.mxu0 0.0
        %6693 = vmatprep.subr.mxu0 0.0
        %6694 = vmatpush1.msra.mxu0 0.0
        %6695 = vmatprep.subr.mxu0 0.0
        %6696 = vmatpush1.msra.mxu0 0.0
        %6697 = vmatprep.subr.mxu0 0.0
        %6698 = vmatpush1.msra.mxu0 0.0
        %6699 = vmatprep.subr.mxu0 0.0
        %6700 = vmatpush1.msra.mxu0 0.0
        %6701 = vmatprep.subr.mxu0 0.0
        %6702 = vmatpush1.msra.mxu0 0.0
        %6703 = vmatprep.subr.mxu0 0.0
        %6704 = vmatpush1.msra.mxu0 0.0
        %6705 = vmatprep.subr.mxu0 0.0
        %6706 = vmatpush1.msra.mxu0 0.0
        %6707 = vmatprep.subr.mxu0 0.0
        %6708 = vmatpush1.msra.mxu0 0.0
        %6709 = vmatprep.subr.mxu0 0.0
        %6710 = vmatpush1.msra.mxu0 0.0
        %6711 = vmatprep.subr.mxu0 0.0
        %6712 = vmatpush1.msra.mxu0 0.0
        %6713 = vmatprep.subr.mxu0 0.0
        %6714 = vmatpush1.msra.mxu0 0.0
        %6715 = vmatprep.subr.mxu0 0.0
        %6716 = vmatpush1.msra.mxu0 0.0
        %6717 = vmatprep.subr.mxu0 0.0
        %6718 = vmatpush1.msra.mxu0 0.0
        %6719 = vmatprep.subr.mxu0 0.0
        %6720 = vmatpush1.msra.mxu0 0.0
        %6721 = vmatprep.subr.mxu0 0.0
        %6722 = vmatpush1.msra.mxu0 0.0
        %6723 = vmatprep.subr.mxu0 0.0
        %6724 = vmatpush1.msra.mxu0 0.0
        %6725 = vmatprep.subr.mxu0 0.0
        %6726 = vmatpush1.msra.mxu0 0.0
        %6727 = vmatprep.mubr.f32.mxu0 0.0
        %6728 = vmatmul.mubr.f32.gmra.mrb[0].mxu0 %v6659
        %v6729 = vpop.f32.mrb[0].mxu0
        %v6730 = vadd.f32 0.0, %v6729
        %v6731 = vpop.f32.mrb[0].mxu0
        %6732 = vdwg.mxu0
        %v6734 = vsel %vm1375, %v6730, 0
        %6736 = vmatprep.subr.mxu0 0.0
        %6737 = vmatpush1.msra.mxu0 %v3882
        %6738 = vmatprep.subr.mxu0 0.0
        %6739 = vmatpush1.msra.mxu0 0.0
        %6740 = vmatprep.subr.mxu0 0.0
        %6741 = vmatpush1.msra.mxu0 0.0
        %6742 = vmatprep.subr.mxu0 0.0
        %6743 = vmatpush1.msra.mxu0 0.0
        %6744 = vmatprep.subr.mxu0 0.0
        %6745 = vmatpush1.msra.mxu0 0.0
        %6746 = vmatprep.subr.mxu0 0.0
        %6747 = vmatpush1.msra.mxu0 0.0
        %6748 = vmatprep.subr.mxu0 0.0
        %6749 = vmatpush1.msra.mxu0 0.0
        %6750 = vmatprep.subr.mxu0 0.0
        %6751 = vmatpush1.msra.mxu0 0.0
        %6752 = vmatprep.subr.mxu0 0.0
        %6753 = vmatpush1.msra.mxu0 0.0
        %6754 = vmatprep.subr.mxu0 0.0
        %6755 = vmatpush1.msra.mxu0 0.0
        %6756 = vmatprep.subr.mxu0 0.0
        %6757 = vmatpush1.msra.mxu0 0.0
        %6758 = vmatprep.subr.mxu0 0.0
        %6759 = vmatpush1.msra.mxu0 0.0
        %6760 = vmatprep.subr.mxu0 0.0
        %6761 = vmatpush1.msra.mxu0 0.0
        %6762 = vmatprep.subr.mxu0 0.0
        %6763 = vmatpush1.msra.mxu0 0.0
        %6764 = vmatprep.subr.mxu0 0.0
        %6765 = vmatpush1.msra.mxu0 0.0
        %6766 = vmatprep.subr.mxu0 0.0
        %6767 = vmatpush1.msra.mxu0 0.0
        %6768 = vmatprep.subr.mxu0 0.0
        %6769 = vmatpush1.msra.mxu0 0.0
        %6770 = vmatprep.subr.mxu0 0.0
        %6771 = vmatpush1.msra.mxu0 0.0
        %6772 = vmatprep.subr.mxu0 0.0
        %6773 = vmatpush1.msra.mxu0 0.0
        %6774 = vmatprep.subr.mxu0 0.0
        %6775 = vmatpush1.msra.mxu0 0.0
        %6776 = vmatprep.subr.mxu0 0.0
        %6777 = vmatpush1.msra.mxu0 0.0
        %6778 = vmatprep.subr.mxu0 0.0
        %6779 = vmatpush1.msra.mxu0 0.0
        %6780 = vmatprep.subr.mxu0 0.0
        %6781 = vmatpush1.msra.mxu0 0.0
        %6782 = vmatprep.subr.mxu0 0.0
        %6783 = vmatpush1.msra.mxu0 0.0
        %6784 = vmatprep.subr.mxu0 0.0
        %6785 = vmatpush1.msra.mxu0 0.0
        %6786 = vmatprep.subr.mxu0 0.0
        %6787 = vmatpush1.msra.mxu0 0.0
        %6788 = vmatprep.subr.mxu0 0.0
        %6789 = vmatpush1.msra.mxu0 0.0
        %6790 = vmatprep.subr.mxu0 0.0
        %6791 = vmatpush1.msra.mxu0 0.0
        %6792 = vmatprep.subr.mxu0 0.0
        %6793 = vmatpush1.msra.mxu0 0.0
        %6794 = vmatprep.subr.mxu0 0.0
        %6795 = vmatpush1.msra.mxu0 0.0
        %6796 = vmatprep.subr.mxu0 0.0
        %6797 = vmatpush1.msra.mxu0 0.0
        %6798 = vmatprep.subr.mxu0 0.0
        %6799 = vmatpush1.msra.mxu0 0.0
        %6800 = vmatprep.mubr.f32.mxu0 0.0
        %6801 = vmatmul.mubr.f32.gmra.mrb[0].mxu0 %v6734
        %v6802 = vpop.f32.mrb[0].mxu0
        %v6803 = vadd.f32 0.0, %v6802
        %v6804 = vpop.f32.mrb[0].mxu0
        %6805 = vdwg.mxu0
        %v6806 = vadd.f32 %v6565, %v6803
        %6807 = vrot.lane.b32.xlu0 %v6323, 112
        %v6808 = vpop.permute.xlu0 %6807
        %6809 = vrot.lane.b32.xlu0 %v6323, 80
        %v6810 = vpop.permute.xlu0 %6809
        %v6811 = vsel %vm1375, %v6808, 0
        %v6813 = vsel %vm1375, %v6810, 0
        %6815 = vmatprep.subr.mxu0 0.0
        %6816 = vmatpush1.xpose.msra.mxu0 %v6813
        %6817 = vmatprep.subr.mxu0 0.0
        %6818 = vmatpush1.xpose.msra.mxu0 0.0
        %6819 = vmatprep.subr.mxu0 0.0
        %6820 = vmatpush1.xpose.msra.mxu0 0.0
        %6821 = vmatprep.subr.mxu0 0.0
        %6822 = vmatpush1.xpose.msra.mxu0 0.0
        %6823 = vmatprep.subr.mxu0 0.0
        %6824 = vmatpush1.xpose.msra.mxu0 0.0
        %6825 = vmatprep.subr.mxu0 0.0
        %6826 = vmatpush1.xpose.msra.mxu0 0.0
        %6827 = vmatprep.subr.mxu0 0.0
        %6828 = vmatpush1.xpose.msra.mxu0 0.0
        %6829 = vmatprep.subr.mxu0 0.0
        %6830 = vmatpush1.xpose.msra.mxu0 0.0
        %6831 = vmatprep.subr.mxu0 0.0
        %6832 = vmatpush1.xpose.msra.mxu0 0.0
        %6833 = vmatprep.subr.mxu0 0.0
        %6834 = vmatpush1.xpose.msra.mxu0 0.0
        %6835 = vmatprep.subr.mxu0 0.0
        %6836 = vmatpush1.xpose.msra.mxu0 0.0
        %6837 = vmatprep.subr.mxu0 0.0
        %6838 = vmatpush1.xpose.msra.mxu0 0.0
        %6839 = vmatprep.subr.mxu0 0.0
        %6840 = vmatpush1.xpose.msra.mxu0 0.0
        %6841 = vmatprep.subr.mxu0 0.0
        %6842 = vmatpush1.xpose.msra.mxu0 0.0
        %6843 = vmatprep.subr.mxu0 0.0
        %6844 = vmatpush1.xpose.msra.mxu0 0.0
        %6845 = vmatprep.subr.mxu0 0.0
        %6846 = vmatpush1.xpose.msra.mxu0 0.0
        %6847 = vmatprep.subr.mxu0 0.0
        %6848 = vmatpush1.xpose.msra.mxu0 0.0
        %6849 = vmatprep.subr.mxu0 0.0
        %6850 = vmatpush1.xpose.msra.mxu0 0.0
        %6851 = vmatprep.subr.mxu0 0.0
        %6852 = vmatpush1.xpose.msra.mxu0 0.0
        %6853 = vmatprep.subr.mxu0 0.0
        %6854 = vmatpush1.xpose.msra.mxu0 0.0
        %6855 = vmatprep.subr.mxu0 0.0
        %6856 = vmatpush1.xpose.msra.mxu0 0.0
        %6857 = vmatprep.subr.mxu0 0.0
        %6858 = vmatpush1.xpose.msra.mxu0 0.0
        %6859 = vmatprep.subr.mxu0 0.0
        %6860 = vmatpush1.xpose.msra.mxu0 0.0
        %6861 = vmatprep.subr.mxu0 0.0
        %6862 = vmatpush1.xpose.msra.mxu0 0.0
        %6863 = vmatprep.subr.mxu0 0.0
        %6864 = vmatpush1.xpose.msra.mxu0 0.0
        %6865 = vmatprep.subr.mxu0 0.0
        %6866 = vmatpush1.xpose.msra.mxu0 0.0
        %6867 = vmatprep.subr.mxu0 0.0
        %6868 = vmatpush1.xpose.msra.mxu0 0.0
        %6869 = vmatprep.subr.mxu0 0.0
        %6870 = vmatpush1.xpose.msra.mxu0 0.0
        %6871 = vmatprep.subr.mxu0 0.0
        %6872 = vmatpush1.xpose.msra.mxu0 0.0
        %6873 = vmatprep.subr.mxu0 0.0
        %6874 = vmatpush1.xpose.msra.mxu0 0.0
        %6875 = vmatprep.subr.mxu0 0.0
        %6876 = vmatpush1.xpose.msra.mxu0 0.0
        %6877 = vmatprep.subr.mxu0 0.0
        %6878 = vmatpush1.xpose.msra.mxu0 0.0
        %6879 = vmatprep.mubr.f32.mxu0 0.0
        %6880 = vmatmul.mubr.f32.gmra.mrb[0].mxu0 %v6811
        %v6881 = vpop.f32.mrb[0].mxu0
        %v6882 = vadd.f32 0.0, %v6881
        %v6883 = vpop.f32.mrb[0].mxu0
        %6884 = vdwg.mxu0
        %v6885 = vmul.f32 %v6882, 0.35355338
        %v6886 = vsel %vm1451, %v6885, -inf
        %6887 = vmax.xlane.f32.xlu0 %v6886
        %v6888 = vpop.xlane.xlu0 %6887
        %v6889 = vsub.f32 %v6885, %v6888
        %v6890 = vmul.f32 %v6889, 1.442695
        %v6891 = vpow.pop %v6890
        %v6892 = vsel %vm1451, %v6891, 0.0
        %6893 = vadd.xlane.f32.xlu0 %v6892
        %v6894 = vpop.xlane.xlu0 %6893
        %v6895 = vrcp.pop %v6894
        %v6896 = vmul.f32 %v6891, %v6895
        %6897 = vrot.lane.b32.xlu0 %v6323, 48
        %v6898 = vpop.permute.xlu0 %6897
        %v6900 = vsel %vm1465, %v6896, 0
        %v6902 = vsel %vm1469, %v6898, 0
        %6904 = vmatprep.subr.mxu0 0.0
        %6905 = vmatpush1.msra.mxu0 %v6902
        %6906 = vmatprep.subr.mxu0 0.0
        %6907 = vmatpush1.msra.mxu0 0.0
        %6908 = vmatprep.subr.mxu0 0.0
        %6909 = vmatpush1.msra.mxu0 0.0
        %6910 = vmatprep.subr.mxu0 0.0
        %6911 = vmatpush1.msra.mxu0 0.0
        %6912 = vmatprep.subr.mxu0 0.0
        %6913 = vmatpush1.msra.mxu0 0.0
        %6914 = vmatprep.subr.mxu0 0.0
        %6915 = vmatpush1.msra.mxu0 0.0
        %6916 = vmatprep.subr.mxu0 0.0
        %6917 = vmatpush1.msra.mxu0 0.0
        %6918 = vmatprep.subr.mxu0 0.0
        %6919 = vmatpush1.msra.mxu0 0.0
        %6920 = vmatprep.subr.mxu0 0.0
        %6921 = vmatpush1.msra.mxu0 0.0
        %6922 = vmatprep.subr.mxu0 0.0
        %6923 = vmatpush1.msra.mxu0 0.0
        %6924 = vmatprep.subr.mxu0 0.0
        %6925 = vmatpush1.msra.mxu0 0.0
        %6926 = vmatprep.subr.mxu0 0.0
        %6927 = vmatpush1.msra.mxu0 0.0
        %6928 = vmatprep.subr.mxu0 0.0
        %6929 = vmatpush1.msra.mxu0 0.0
        %6930 = vmatprep.subr.mxu0 0.0
        %6931 = vmatpush1.msra.mxu0 0.0
        %6932 = vmatprep.subr.mxu0 0.0
        %6933 = vmatpush1.msra.mxu0 0.0
        %6934 = vmatprep.subr.mxu0 0.0
        %6935 = vmatpush1.msra.mxu0 0.0
        %6936 = vmatprep.subr.mxu0 0.0
        %6937 = vmatpush1.msra.mxu0 0.0
        %6938 = vmatprep.subr.mxu0 0.0
        %6939 = vmatpush1.msra.mxu0 0.0
        %6940 = vmatprep.subr.mxu0 0.0
        %6941 = vmatpush1.msra.mxu0 0.0
        %6942 = vmatprep.subr.mxu0 0.0
        %6943 = vmatpush1.msra.mxu0 0.0
        %6944 = vmatprep.subr.mxu0 0.0
        %6945 = vmatpush1.msra.mxu0 0.0
        %6946 = vmatprep.subr.mxu0 0.0
        %6947 = vmatpush1.msra.mxu0 0.0
        %6948 = vmatprep.subr.mxu0 0.0
        %6949 = vmatpush1.msra.mxu0 0.0
        %6950 = vmatprep.subr.mxu0 0.0
        %6951 = vmatpush1.msra.mxu0 0.0
        %6952 = vmatprep.subr.mxu0 0.0
        %6953 = vmatpush1.msra.mxu0 0.0
        %6954 = vmatprep.subr.mxu0 0.0
        %6955 = vmatpush1.msra.mxu0 0.0
        %6956 = vmatprep.subr.mxu0 0.0
        %6957 = vmatpush1.msra.mxu0 0.0
        %6958 = vmatprep.subr.mxu0 0.0
        %6959 = vmatpush1.msra.mxu0 0.0
        %6960 = vmatprep.subr.mxu0 0.0
        %6961 = vmatpush1.msra.mxu0 0.0
        %6962 = vmatprep.subr.mxu0 0.0
        %6963 = vmatpush1.msra.mxu0 0.0
        %6964 = vmatprep.subr.mxu0 0.0
        %6965 = vmatpush1.msra.mxu0 0.0
        %6966 = vmatprep.subr.mxu0 0.0
        %6967 = vmatpush1.msra.mxu0 0.0
        %6968 = vmatprep.mubr.f32.mxu0 0.0
        %6969 = vmatmul.mubr.f32.gmra.mrb[0].mxu0 %v6900
        %v6970 = vpop.f32.mrb[0].mxu0
        %v6971 = vadd.f32 0.0, %v6970
        %v6972 = vpop.f32.mrb[0].mxu0
        %6973 = vdwg.mxu0
        %v6975 = vsel %vm1375, %v6971, 0
        %6977 = vmatprep.subr.mxu0 0.0
        %6978 = vmatpush1.msra.mxu0 %v3883
        %6979 = vmatprep.subr.mxu0 0.0
        %6980 = vmatpush1.msra.mxu0 0.0
        %6981 = vmatprep.subr.mxu0 0.0
        %6982 = vmatpush1.msra.mxu0 0.0
        %6983 = vmatprep.subr.mxu0 0.0
        %6984 = vmatpush1.msra.mxu0 0.0
        %6985 = vmatprep.subr.mxu0 0.0
        %6986 = vmatpush1.msra.mxu0 0.0
        %6987 = vmatprep.subr.mxu0 0.0
        %6988 = vmatpush1.msra.mxu0 0.0
        %6989 = vmatprep.subr.mxu0 0.0
        %6990 = vmatpush1.msra.mxu0 0.0
        %6991 = vmatprep.subr.mxu0 0.0
        %6992 = vmatpush1.msra.mxu0 0.0
        %6993 = vmatprep.subr.mxu0 0.0
        %6994 = vmatpush1.msra.mxu0 0.0
        %6995 = vmatprep.subr.mxu0 0.0
        %6996 = vmatpush1.msra.mxu0 0.0
        %6997 = vmatprep.subr.mxu0 0.0
        %6998 = vmatpush1.msra.mxu0 0.0
        %6999 = vmatprep.subr.mxu0 0.0
        %7000 = vmatpush1.msra.mxu0 0.0
        %7001 = vmatprep.subr.mxu0 0.0
        %7002 = vmatpush1.msra.mxu0 0.0
        %7003 = vmatprep.subr.mxu0 0.0
        %7004 = vmatpush1.msra.mxu0 0.0
        %7005 = vmatprep.subr.mxu0 0.0
        %7006 = vmatpush1.msra.mxu0 0.0
        %7007 = vmatprep.subr.mxu0 0.0
        %7008 = vmatpush1.msra.mxu0 0.0
        %7009 = vmatprep.subr.mxu0 0.0
        %7010 = vmatpush1.msra.mxu0 0.0
        %7011 = vmatprep.subr.mxu0 0.0
        %7012 = vmatpush1.msra.mxu0 0.0
        %7013 = vmatprep.subr.mxu0 0.0
        %7014 = vmatpush1.msra.mxu0 0.0
        %7015 = vmatprep.subr.mxu0 0.0
        %7016 = vmatpush1.msra.mxu0 0.0
        %7017 = vmatprep.subr.mxu0 0.0
        %7018 = vmatpush1.msra.mxu0 0.0
        %7019 = vmatprep.subr.mxu0 0.0
        %7020 = vmatpush1.msra.mxu0 0.0
        %7021 = vmatprep.subr.mxu0 0.0
        %7022 = vmatpush1.msra.mxu0 0.0
        %7023 = vmatprep.subr.mxu0 0.0
        %7024 = vmatpush1.msra.mxu0 0.0
        %7025 = vmatprep.subr.mxu0 0.0
        %7026 = vmatpush1.msra.mxu0 0.0
        %7027 = vmatprep.subr.mxu0 0.0
        %7028 = vmatpush1.msra.mxu0 0.0
        %7029 = vmatprep.subr.mxu0 0.0
        %7030 = vmatpush1.msra.mxu0 0.0
        %7031 = vmatprep.subr.mxu0 0.0
        %7032 = vmatpush1.msra.mxu0 0.0
        %7033 = vmatprep.subr.mxu0 0.0
        %7034 = vmatpush1.msra.mxu0 0.0
        %7035 = vmatprep.subr.mxu0 0.0
        %7036 = vmatpush1.msra.mxu0 0.0
        %7037 = vmatprep.subr.mxu0 0.0
        %7038 = vmatpush1.msra.mxu0 0.0
        %7039 = vmatprep.subr.mxu0 0.0
        %7040 = vmatpush1.msra.mxu0 0.0
        %7041 = vmatprep.mubr.f32.mxu0 0.0
        %7042 = vmatmul.mubr.f32.gmra.mrb[0].mxu0 %v6975
        %v7043 = vpop.f32.mrb[0].mxu0
        %v7044 = vadd.f32 0.0, %v7043
        %v7045 = vpop.f32.mrb[0].mxu0
        %7046 = vdwg.mxu0
        %v7047 = vadd.f32 %v6806, %v7044
        %7048 = vrot.lane.b32.xlu0 %v6323, 104
        %v7049 = vpop.permute.xlu0 %7048
        %7050 = vrot.lane.b32.xlu0 %v6323, 72
        %v7051 = vpop.permute.xlu0 %7050
        %v7052 = vsel %vm1375, %v7049, 0
        %v7054 = vsel %vm1375, %v7051, 0
        %7056 = vmatprep.subr.mxu0 0.0
        %7057 = vmatpush1.xpose.msra.mxu0 %v7054
        %7058 = vmatprep.subr.mxu0 0.0
        %7059 = vmatpush1.xpose.msra.mxu0 0.0
        %7060 = vmatprep.subr.mxu0 0.0
        %7061 = vmatpush1.xpose.msra.mxu0 0.0
        %7062 = vmatprep.subr.mxu0 0.0
        %7063 = vmatpush1.xpose.msra.mxu0 0.0
        %7064 = vmatprep.subr.mxu0 0.0
        %7065 = vmatpush1.xpose.msra.mxu0 0.0
        %7066 = vmatprep.subr.mxu0 0.0
        %7067 = vmatpush1.xpose.msra.mxu0 0.0
        %7068 = vmatprep.subr.mxu0 0.0
        %7069 = vmatpush1.xpose.msra.mxu0 0.0
        %7070 = vmatprep.subr.mxu0 0.0
        %7071 = vmatpush1.xpose.msra.mxu0 0.0
        %7072 = vmatprep.subr.mxu0 0.0
        %7073 = vmatpush1.xpose.msra.mxu0 0.0
        %7074 = vmatprep.subr.mxu0 0.0
        %7075 = vmatpush1.xpose.msra.mxu0 0.0
        %7076 = vmatprep.subr.mxu0 0.0
        %7077 = vmatpush1.xpose.msra.mxu0 0.0
        %7078 = vmatprep.subr.mxu0 0.0
        %7079 = vmatpush1.xpose.msra.mxu0 0.0
        %7080 = vmatprep.subr.mxu0 0.0
        %7081 = vmatpush1.xpose.msra.mxu0 0.0
        %7082 = vmatprep.subr.mxu0 0.0
        %7083 = vmatpush1.xpose.msra.mxu0 0.0
        %7084 = vmatprep.subr.mxu0 0.0
        %7085 = vmatpush1.xpose.msra.mxu0 0.0
        %7086 = vmatprep.subr.mxu0 0.0
        %7087 = vmatpush1.xpose.msra.mxu0 0.0
        %7088 = vmatprep.subr.mxu0 0.0
        %7089 = vmatpush1.xpose.msra.mxu0 0.0
        %7090 = vmatprep.subr.mxu0 0.0
        %7091 = vmatpush1.xpose.msra.mxu0 0.0
        %7092 = vmatprep.subr.mxu0 0.0
        %7093 = vmatpush1.xpose.msra.mxu0 0.0
        %7094 = vmatprep.subr.mxu0 0.0
        %7095 = vmatpush1.xpose.msra.mxu0 0.0
        %7096 = vmatprep.subr.mxu0 0.0
        %7097 = vmatpush1.xpose.msra.mxu0 0.0
        %7098 = vmatprep.subr.mxu0 0.0
        %7099 = vmatpush1.xpose.msra.mxu0 0.0
        %7100 = vmatprep.subr.mxu0 0.0
        %7101 = vmatpush1.xpose.msra.mxu0 0.0
        %7102 = vmatprep.subr.mxu0 0.0
        %7103 = vmatpush1.xpose.msra.mxu0 0.0
        %7104 = vmatprep.subr.mxu0 0.0
        %7105 = vmatpush1.xpose.msra.mxu0 0.0
        %7106 = vmatprep.subr.mxu0 0.0
        %7107 = vmatpush1.xpose.msra.mxu0 0.0
        %7108 = vmatprep.subr.mxu0 0.0
        %7109 = vmatpush1.xpose.msra.mxu0 0.0
        %7110 = vmatprep.subr.mxu0 0.0
        %7111 = vmatpush1.xpose.msra.mxu0 0.0
        %7112 = vmatprep.subr.mxu0 0.0
        %7113 = vmatpush1.xpose.msra.mxu0 0.0
        %7114 = vmatprep.subr.mxu0 0.0
        %7115 = vmatpush1.xpose.msra.mxu0 0.0
        %7116 = vmatprep.subr.mxu0 0.0
        %7117 = vmatpush1.xpose.msra.mxu0 0.0
        %7118 = vmatprep.subr.mxu0 0.0
        %7119 = vmatpush1.xpose.msra.mxu0 0.0
        %7120 = vmatprep.mubr.f32.mxu0 0.0
        %7121 = vmatmul.mubr.f32.gmra.mrb[0].mxu0 %v7052
        %v7122 = vpop.f32.mrb[0].mxu0
        %v7123 = vadd.f32 0.0, %v7122
        %v7124 = vpop.f32.mrb[0].mxu0
        %7125 = vdwg.mxu0
        %v7126 = vmul.f32 %v7123, 0.35355338
        %v7127 = vsel %vm1451, %v7126, -inf
        %7128 = vmax.xlane.f32.xlu0 %v7127
        %v7129 = vpop.xlane.xlu0 %7128
        %v7130 = vsub.f32 %v7126, %v7129
        %v7131 = vmul.f32 %v7130, 1.442695
        %v7132 = vpow.pop %v7131
        %v7133 = vsel %vm1451, %v7132, 0.0
        %7134 = vadd.xlane.f32.xlu0 %v7133
        %v7135 = vpop.xlane.xlu0 %7134
        %v7136 = vrcp.pop %v7135
        %v7137 = vmul.f32 %v7132, %v7136
        %7138 = vrot.lane.b32.xlu0 %v6323, 40
        %v7139 = vpop.permute.xlu0 %7138
        %v7141 = vsel %vm1465, %v7137, 0
        %v7143 = vsel %vm1469, %v7139, 0
        %7145 = vmatprep.subr.mxu0 0.0
        %7146 = vmatpush1.msra.mxu0 %v7143
        %7147 = vmatprep.subr.mxu0 0.0
        %7148 = vmatpush1.msra.mxu0 0.0
        %7149 = vmatprep.subr.mxu0 0.0
        %7150 = vmatpush1.msra.mxu0 0.0
        %7151 = vmatprep.subr.mxu0 0.0
        %7152 = vmatpush1.msra.mxu0 0.0
        %7153 = vmatprep.subr.mxu0 0.0
        %7154 = vmatpush1.msra.mxu0 0.0
        %7155 = vmatprep.subr.mxu0 0.0
        %7156 = vmatpush1.msra.mxu0 0.0
        %7157 = vmatprep.subr.mxu0 0.0
        %7158 = vmatpush1.msra.mxu0 0.0
        %7159 = vmatprep.subr.mxu0 0.0
        %7160 = vmatpush1.msra.mxu0 0.0
        %7161 = vmatprep.subr.mxu0 0.0
        %7162 = vmatpush1.msra.mxu0 0.0
        %7163 = vmatprep.subr.mxu0 0.0
        %7164 = vmatpush1.msra.mxu0 0.0
        %7165 = vmatprep.subr.mxu0 0.0
        %7166 = vmatpush1.msra.mxu0 0.0
        %7167 = vmatprep.subr.mxu0 0.0
        %7168 = vmatpush1.msra.mxu0 0.0
        %7169 = vmatprep.subr.mxu0 0.0
        %7170 = vmatpush1.msra.mxu0 0.0
        %7171 = vmatprep.subr.mxu0 0.0
        %7172 = vmatpush1.msra.mxu0 0.0
        %7173 = vmatprep.subr.mxu0 0.0
        %7174 = vmatpush1.msra.mxu0 0.0
        %7175 = vmatprep.subr.mxu0 0.0
        %7176 = vmatpush1.msra.mxu0 0.0
        %7177 = vmatprep.subr.mxu0 0.0
        %7178 = vmatpush1.msra.mxu0 0.0
        %7179 = vmatprep.subr.mxu0 0.0
        %7180 = vmatpush1.msra.mxu0 0.0
        %7181 = vmatprep.subr.mxu0 0.0
        %7182 = vmatpush1.msra.mxu0 0.0
        %7183 = vmatprep.subr.mxu0 0.0
        %7184 = vmatpush1.msra.mxu0 0.0
        %7185 = vmatprep.subr.mxu0 0.0
        %7186 = vmatpush1.msra.mxu0 0.0
        %7187 = vmatprep.subr.mxu0 0.0
        %7188 = vmatpush1.msra.mxu0 0.0
        %7189 = vmatprep.subr.mxu0 0.0
        %7190 = vmatpush1.msra.mxu0 0.0
        %7191 = vmatprep.subr.mxu0 0.0
        %7192 = vmatpush1.msra.mxu0 0.0
        %7193 = vmatprep.subr.mxu0 0.0
        %7194 = vmatpush1.msra.mxu0 0.0
        %7195 = vmatprep.subr.mxu0 0.0
        %7196 = vmatpush1.msra.mxu0 0.0
        %7197 = vmatprep.subr.mxu0 0.0
        %7198 = vmatpush1.msra.mxu0 0.0
        %7199 = vmatprep.subr.mxu0 0.0
        %7200 = vmatpush1.msra.mxu0 0.0
        %7201 = vmatprep.subr.mxu0 0.0
        %7202 = vmatpush1.msra.mxu0 0.0
        %7203 = vmatprep.subr.mxu0 0.0
        %7204 = vmatpush1.msra.mxu0 0.0
        %7205 = vmatprep.subr.mxu0 0.0
        %7206 = vmatpush1.msra.mxu0 0.0
        %7207 = vmatprep.subr.mxu0 0.0
        %7208 = vmatpush1.msra.mxu0 0.0
        %7209 = vmatprep.mubr.f32.mxu0 0.0
        %7210 = vmatmul.mubr.f32.gmra.mrb[0].mxu0 %v7141
        %v7211 = vpop.f32.mrb[0].mxu0
        %v7212 = vadd.f32 0.0, %v7211
        %v7213 = vpop.f32.mrb[0].mxu0
        %7214 = vdwg.mxu0
        %v7216 = vsel %vm1375, %v7212, 0
        %7218 = vmatprep.subr.mxu0 0.0
        %7219 = vmatpush1.msra.mxu0 %v3884
        %7220 = vmatprep.subr.mxu0 0.0
        %7221 = vmatpush1.msra.mxu0 0.0
        %7222 = vmatprep.subr.mxu0 0.0
        %7223 = vmatpush1.msra.mxu0 0.0
        %7224 = vmatprep.subr.mxu0 0.0
        %7225 = vmatpush1.msra.mxu0 0.0
        %7226 = vmatprep.subr.mxu0 0.0
        %7227 = vmatpush1.msra.mxu0 0.0
        %7228 = vmatprep.subr.mxu0 0.0
        %7229 = vmatpush1.msra.mxu0 0.0
        %7230 = vmatprep.subr.mxu0 0.0
        %7231 = vmatpush1.msra.mxu0 0.0
        %7232 = vmatprep.subr.mxu0 0.0
        %7233 = vmatpush1.msra.mxu0 0.0
        %7234 = vmatprep.subr.mxu0 0.0
        %7235 = vmatpush1.msra.mxu0 0.0
        %7236 = vmatprep.subr.mxu0 0.0
        %7237 = vmatpush1.msra.mxu0 0.0
        %7238 = vmatprep.subr.mxu0 0.0
        %7239 = vmatpush1.msra.mxu0 0.0
        %7240 = vmatprep.subr.mxu0 0.0
        %7241 = vmatpush1.msra.mxu0 0.0
        %7242 = vmatprep.subr.mxu0 0.0
        %7243 = vmatpush1.msra.mxu0 0.0
        %7244 = vmatprep.subr.mxu0 0.0
        %7245 = vmatpush1.msra.mxu0 0.0
        %7246 = vmatprep.subr.mxu0 0.0
        %7247 = vmatpush1.msra.mxu0 0.0
        %7248 = vmatprep.subr.mxu0 0.0
        %7249 = vmatpush1.msra.mxu0 0.0
        %7250 = vmatprep.subr.mxu0 0.0
        %7251 = vmatpush1.msra.mxu0 0.0
        %7252 = vmatprep.subr.mxu0 0.0
        %7253 = vmatpush1.msra.mxu0 0.0
        %7254 = vmatprep.subr.mxu0 0.0
        %7255 = vmatpush1.msra.mxu0 0.0
        %7256 = vmatprep.subr.mxu0 0.0
        %7257 = vmatpush1.msra.mxu0 0.0
        %7258 = vmatprep.subr.mxu0 0.0
        %7259 = vmatpush1.msra.mxu0 0.0
        %7260 = vmatprep.subr.mxu0 0.0
        %7261 = vmatpush1.msra.mxu0 0.0
        %7262 = vmatprep.subr.mxu0 0.0
        %7263 = vmatpush1.msra.mxu0 0.0
        %7264 = vmatprep.subr.mxu0 0.0
        %7265 = vmatpush1.msra.mxu0 0.0
        %7266 = vmatprep.subr.mxu0 0.0
        %7267 = vmatpush1.msra.mxu0 0.0
        %7268 = vmatprep.subr.mxu0 0.0
        %7269 = vmatpush1.msra.mxu0 0.0
        %7270 = vmatprep.subr.mxu0 0.0
        %7271 = vmatpush1.msra.mxu0 0.0
        %7272 = vmatprep.subr.mxu0 0.0
        %7273 = vmatpush1.msra.mxu0 0.0
        %7274 = vmatprep.subr.mxu0 0.0
        %7275 = vmatpush1.msra.mxu0 0.0
        %7276 = vmatprep.subr.mxu0 0.0
        %7277 = vmatpush1.msra.mxu0 0.0
        %7278 = vmatprep.subr.mxu0 0.0
        %7279 = vmatpush1.msra.mxu0 0.0
        %7280 = vmatprep.subr.mxu0 0.0
        %7281 = vmatpush1.msra.mxu0 0.0
        %7282 = vmatprep.mubr.f32.mxu0 0.0
        %7283 = vmatmul.mubr.f32.gmra.mrb[0].mxu0 %v7216
        %v7284 = vpop.f32.mrb[0].mxu0
        %v7285 = vadd.f32 0.0, %v7284
        %v7286 = vpop.f32.mrb[0].mxu0
        %7287 = vdwg.mxu0
        %v7288 = vadd.f32 %v7047, %v7285
        %v7289 = vadd.f32 %v6237, %v7288
        %v7290 = vsel %vm1253, %v7289, 0.0
        %7291 = vadd.xlane.f32.xlu0 %v7290
        %v7292 = vpop.xlane.xlu0 %7291
        %v7293 = vmul.f32 %v7292, %v1257
        %v7294 = vsub.f32 %v7289, %v7293
        %v7295 = vmul.f32 %v7294, %v7294
        %v7296 = vsel %vm1253, %v7295, 0.0
        %7297 = vadd.xlane.f32.xlu0 %v7296
        %v7298 = vpop.xlane.xlu0 %7297
        %v7299 = vmul.f32 %v7298, %v1257
        %v7300 = vadd.f32 %v7299, 1e-06
        %v7301 = vrsqrt.pop %v7300
        %v7302 = vmul.f32 %v7294, %v7301
        %v7303 = vmul.f32 %v7302, %v4875
        %v7304 = vadd.f32 %v7303, %v4882
        %v7306 = vsel %vm1293, %v7304, 0
        %7308 = vmatprep.subr.mxu0 0.0
        %7309 = vmatpush1.msra.mxu0 %v4885
        %7310 = vmatprep.subr.mxu0 0.0
        %7311 = vmatpush1.msra.mxu0 %v4886
        %7312 = vmatprep.subr.mxu0 0.0
        %7313 = vmatpush1.msra.mxu0 %v4887
        %7314 = vmatprep.subr.mxu0 0.0
        %7315 = vmatpush1.msra.mxu0 %v4888
        %7316 = vmatprep.subr.mxu0 0.0
        %7317 = vmatpush1.msra.mxu0 0.0
        %7318 = vmatprep.subr.mxu0 0.0
        %7319 = vmatpush1.msra.mxu0 0.0
        %7320 = vmatprep.subr.mxu0 0.0
        %7321 = vmatpush1.msra.mxu0 0.0
        %7322 = vmatprep.subr.mxu0 0.0
        %7323 = vmatpush1.msra.mxu0 0.0
        %7324 = vmatprep.subr.mxu0 0.0
        %7325 = vmatpush1.msra.mxu0 0.0
        %7326 = vmatprep.subr.mxu0 0.0
        %7327 = vmatpush1.msra.mxu0 0.0
        %7328 = vmatprep.subr.mxu0 0.0
        %7329 = vmatpush1.msra.mxu0 0.0
        %7330 = vmatprep.subr.mxu0 0.0
        %7331 = vmatpush1.msra.mxu0 0.0
        %7332 = vmatprep.subr.mxu0 0.0
        %7333 = vmatpush1.msra.mxu0 0.0
        %7334 = vmatprep.subr.mxu0 0.0
        %7335 = vmatpush1.msra.mxu0 0.0
        %7336 = vmatprep.subr.mxu0 0.0
        %7337 = vmatpush1.msra.mxu0 0.0
        %7338 = vmatprep.subr.mxu0 0.0
        %7339 = vmatpush1.msra.mxu0 0.0
        %7340 = vmatprep.subr.mxu0 0.0
        %7341 = vmatpush1.msra.mxu0 0.0
        %7342 = vmatprep.subr.mxu0 0.0
        %7343 = vmatpush1.msra.mxu0 0.0
        %7344 = vmatprep.subr.mxu0 0.0
        %7345 = vmatpush1.msra.mxu0 0.0
        %7346 = vmatprep.subr.mxu0 0.0
        %7347 = vmatpush1.msra.mxu0 0.0
        %7348 = vmatprep.subr.mxu0 0.0
        %7349 = vmatpush1.msra.mxu0 0.0
        %7350 = vmatprep.subr.mxu0 0.0
        %7351 = vmatpush1.msra.mxu0 0.0
        %7352 = vmatprep.subr.mxu0 0.0
        %7353 = vmatpush1.msra.mxu0 0.0
        %7354 = vmatprep.subr.mxu0 0.0
        %7355 = vmatpush1.msra.mxu0 0.0
        %7356 = vmatprep.subr.mxu0 0.0
        %7357 = vmatpush1.msra.mxu0 0.0
        %7358 = vmatprep.subr.mxu0 0.0
        %7359 = vmatpush1.msra.mxu0 0.0
        %7360 = vmatprep.subr.mxu0 0.0
        %7361 = vmatpush1.msra.mxu0 0.0
        %7362 = vmatprep.subr.mxu0 0.0
        %7363 = vmatpush1.msra.mxu0 0.0
        %7364 = vmatprep.subr.mxu0 0.0
        %7365 = vmatpush1.msra.mxu0 0.0
        %7366 = vmatprep.subr.mxu0 0.0
        %7367 = vmatpush1.msra.mxu0 0.0
        %7368 = vmatprep.subr.mxu0 0.0
        %7369 = vmatpush1.msra.mxu0 0.0
        %7370 = vmatprep.subr.mxu0 0.0
        %7371 = vmatpush1.msra.mxu0 0.0
        %7372 = vmatprep.mubr.f32.mxu0 0.0
        %7373 = vmatmul.mubr.f32.gmra.mrb[0].mxu0 %v7306
        %v7374 = vpop.f32.mrb[0].mxu0
        %v7375 = vadd.f32 %v4894, %v7374
        %v7376 = vpop.f32.mrb[0].mxu0
        %7377 = vdwg.mxu0
        %v7379 = vsel %vm1375, %v7375, 0
        %7381 = vmatprep.subr.mxu0 0.0
        %7382 = vmatpush1.xpose.msra.mxu0 %v5062
        %7383 = vmatprep.subr.mxu0 0.0
        %7384 = vmatpush1.xpose.msra.mxu0 0.0
        %7385 = vmatprep.subr.mxu0 0.0
        %7386 = vmatpush1.xpose.msra.mxu0 0.0
        %7387 = vmatprep.subr.mxu0 0.0
        %7388 = vmatpush1.xpose.msra.mxu0 0.0
        %7389 = vmatprep.subr.mxu0 0.0
        %7390 = vmatpush1.xpose.msra.mxu0 0.0
        %7391 = vmatprep.subr.mxu0 0.0
        %7392 = vmatpush1.xpose.msra.mxu0 0.0
        %7393 = vmatprep.subr.mxu0 0.0
        %7394 = vmatpush1.xpose.msra.mxu0 0.0
        %7395 = vmatprep.subr.mxu0 0.0
        %7396 = vmatpush1.xpose.msra.mxu0 0.0
        %7397 = vmatprep.subr.mxu0 0.0
        %7398 = vmatpush1.xpose.msra.mxu0 0.0
        %7399 = vmatprep.subr.mxu0 0.0
        %7400 = vmatpush1.xpose.msra.mxu0 0.0
        %7401 = vmatprep.subr.mxu0 0.0
        %7402 = vmatpush1.xpose.msra.mxu0 0.0
        %7403 = vmatprep.subr.mxu0 0.0
        %7404 = vmatpush1.xpose.msra.mxu0 0.0
        %7405 = vmatprep.subr.mxu0 0.0
        %7406 = vmatpush1.xpose.msra.mxu0 0.0
        %7407 = vmatprep.subr.mxu0 0.0
        %7408 = vmatpush1.xpose.msra.mxu0 0.0
        %7409 = vmatprep.subr.mxu0 0.0
        %7410 = vmatpush1.xpose.msra.mxu0 0.0
        %7411 = vmatprep.subr.mxu0 0.0
        %7412 = vmatpush1.xpose.msra.mxu0 0.0
        %7413 = vmatprep.subr.mxu0 0.0
        %7414 = vmatpush1.xpose.msra.mxu0 0.0
        %7415 = vmatprep.subr.mxu0 0.0
        %7416 = vmatpush1.xpose.msra.mxu0 0.0
        %7417 = vmatprep.subr.mxu0 0.0
        %7418 = vmatpush1.xpose.msra.mxu0 0.0
        %7419 = vmatprep.subr.mxu0 0.0
        %7420 = vmatpush1.xpose.msra.mxu0 0.0
        %7421 = vmatprep.subr.mxu0 0.0
        %7422 = vmatpush1.xpose.msra.mxu0 0.0
        %7423 = vmatprep.subr.mxu0 0.0
        %7424 = vmatpush1.xpose.msra.mxu0 0.0
        %7425 = vmatprep.subr.mxu0 0.0
        %7426 = vmatpush1.xpose.msra.mxu0 0.0
        %7427 = vmatprep.subr.mxu0 0.0
        %7428 = vmatpush1.xpose.msra.mxu0 0.0
        %7429 = vmatprep.subr.mxu0 0.0
        %7430 = vmatpush1.xpose.msra.mxu0 0.0
        %7431 = vmatprep.subr.mxu0 0.0
        %7432 = vmatpush1.xpose.msra.mxu0 0.0
        %7433 = vmatprep.subr.mxu0 0.0
        %7434 = vmatpush1.xpose.msra.mxu0 0.0
        %7435 = vmatprep.subr.mxu0 0.0
        %7436 = vmatpush1.xpose.msra.mxu0 0.0
        %7437 = vmatprep.subr.mxu0 0.0
        %7438 = vmatpush1.xpose.msra.mxu0 0.0
        %7439 = vmatprep.subr.mxu0 0.0
        %7440 = vmatpush1.xpose.msra.mxu0 0.0
        %7441 = vmatprep.subr.mxu0 0.0
        %7442 = vmatpush1.xpose.msra.mxu0 0.0
        %7443 = vmatprep.subr.mxu0 0.0
        %7444 = vmatpush1.xpose.msra.mxu0 0.0
        %7445 = vmatprep.mubr.f32.mxu0 0.0
        %7446 = vmatmul.mubr.f32.gmra.mrb[0].mxu0 %v7379
        %v7447 = vpop.f32.mrb[0].mxu0
        %v7448 = vadd.f32 0.0, %v7447
        %v7449 = vpop.f32.mrb[0].mxu0
        %7450 = vdwg.mxu0
        %v7451 = vmul.f32 %v7448, 0.35355338
        %v7452 = vsel %vm1451, %v7451, -inf
        %7453 = vmax.xlane.f32.xlu0 %v7452
        %v7454 = vpop.xlane.xlu0 %7453
        %v7455 = vsub.f32 %v7451, %v7454
        %v7456 = vmul.f32 %v7455, 1.442695
        %v7457 = vpow.pop %v7456
        %v7458 = vsel %vm1451, %v7457, 0.0
        %7459 = vadd.xlane.f32.xlu0 %v7458
        %v7460 = vpop.xlane.xlu0 %7459
        %v7461 = vrcp.pop %v7460
        %v7462 = vmul.f32 %v7457, %v7461
        %v7464 = vsel %vm1465, %v7462, 0
        %7466 = vmatprep.subr.mxu0 0.0
        %7467 = vmatpush1.msra.mxu0 %v5151
        %7468 = vmatprep.subr.mxu0 0.0
        %7469 = vmatpush1.msra.mxu0 0.0
        %7470 = vmatprep.subr.mxu0 0.0
        %7471 = vmatpush1.msra.mxu0 0.0
        %7472 = vmatprep.subr.mxu0 0.0
        %7473 = vmatpush1.msra.mxu0 0.0
        %7474 = vmatprep.subr.mxu0 0.0
        %7475 = vmatpush1.msra.mxu0 0.0
        %7476 = vmatprep.subr.mxu0 0.0
        %7477 = vmatpush1.msra.mxu0 0.0
        %7478 = vmatprep.subr.mxu0 0.0
        %7479 = vmatpush1.msra.mxu0 0.0
        %7480 = vmatprep.subr.mxu0 0.0
        %7481 = vmatpush1.msra.mxu0 0.0
        %7482 = vmatprep.subr.mxu0 0.0
        %7483 = vmatpush1.msra.mxu0 0.0
        %7484 = vmatprep.subr.mxu0 0.0
        %7485 = vmatpush1.msra.mxu0 0.0
        %7486 = vmatprep.subr.mxu0 0.0
        %7487 = vmatpush1.msra.mxu0 0.0
        %7488 = vmatprep.subr.mxu0 0.0
        %7489 = vmatpush1.msra.mxu0 0.0
        %7490 = vmatprep.subr.mxu0 0.0
        %7491 = vmatpush1.msra.mxu0 0.0
        %7492 = vmatprep.subr.mxu0 0.0
        %7493 = vmatpush1.msra.mxu0 0.0
        %7494 = vmatprep.subr.mxu0 0.0
        %7495 = vmatpush1.msra.mxu0 0.0
        %7496 = vmatprep.subr.mxu0 0.0
        %7497 = vmatpush1.msra.mxu0 0.0
        %7498 = vmatprep.subr.mxu0 0.0
        %7499 = vmatpush1.msra.mxu0 0.0
        %7500 = vmatprep.subr.mxu0 0.0
        %7501 = vmatpush1.msra.mxu0 0.0
        %7502 = vmatprep.subr.mxu0 0.0
        %7503 = vmatpush1.msra.mxu0 0.0
        %7504 = vmatprep.subr.mxu0 0.0
        %7505 = vmatpush1.msra.mxu0 0.0
        %7506 = vmatprep.subr.mxu0 0.0
        %7507 = vmatpush1.msra.mxu0 0.0
        %7508 = vmatprep.subr.mxu0 0.0
        %7509 = vmatpush1.msra.mxu0 0.0
        %7510 = vmatprep.subr.mxu0 0.0
        %7511 = vmatpush1.msra.mxu0 0.0
        %7512 = vmatprep.subr.mxu0 0.0
        %7513 = vmatpush1.msra.mxu0 0.0
        %7514 = vmatprep.subr.mxu0 0.0
        %7515 = vmatpush1.msra.mxu0 0.0
        %7516 = vmatprep.subr.mxu0 0.0
        %7517 = vmatpush1.msra.mxu0 0.0
        %7518 = vmatprep.subr.mxu0 0.0
        %7519 = vmatpush1.msra.mxu0 0.0
        %7520 = vmatprep.subr.mxu0 0.0
        %7521 = vmatpush1.msra.mxu0 0.0
        %7522 = vmatprep.subr.mxu0 0.0
        %7523 = vmatpush1.msra.mxu0 0.0
        %7524 = vmatprep.subr.mxu0 0.0
        %7525 = vmatpush1.msra.mxu0 0.0
        %7526 = vmatprep.subr.mxu0 0.0
        %7527 = vmatpush1.msra.mxu0 0.0
        %7528 = vmatprep.subr.mxu0 0.0
        %7529 = vmatpush1.msra.mxu0 0.0
        %7530 = vmatprep.mubr.f32.mxu0 0.0
        %7531 = vmatmul.mubr.f32.gmra.mrb[0].mxu0 %v7464
        %v7532 = vpop.f32.mrb[0].mxu0
        %v7533 = vadd.f32 0.0, %v7532
        %v7534 = vpop.f32.mrb[0].mxu0
        %7535 = vdwg.mxu0
        %v7537 = vsel %vm1375, %v7533, 0
        %7539 = vmatprep.subr.mxu0 0.0
        %7540 = vmatpush1.msra.mxu0 %v5053
        %7541 = vmatprep.subr.mxu0 0.0
        %7542 = vmatpush1.msra.mxu0 0.0
        %7543 = vmatprep.subr.mxu0 0.0
        %7544 = vmatpush1.msra.mxu0 0.0
        %7545 = vmatprep.subr.mxu0 0.0
        %7546 = vmatpush1.msra.mxu0 0.0
        %7547 = vmatprep.subr.mxu0 0.0
        %7548 = vmatpush1.msra.mxu0 0.0
        %7549 = vmatprep.subr.mxu0 0.0
        %7550 = vmatpush1.msra.mxu0 0.0
        %7551 = vmatprep.subr.mxu0 0.0
        %7552 = vmatpush1.msra.mxu0 0.0
        %7553 = vmatprep.subr.mxu0 0.0
        %7554 = vmatpush1.msra.mxu0 0.0
        %7555 = vmatprep.subr.mxu0 0.0
        %7556 = vmatpush1.msra.mxu0 0.0
        %7557 = vmatprep.subr.mxu0 0.0
        %7558 = vmatpush1.msra.mxu0 0.0
        %7559 = vmatprep.subr.mxu0 0.0
        %7560 = vmatpush1.msra.mxu0 0.0
        %7561 = vmatprep.subr.mxu0 0.0
        %7562 = vmatpush1.msra.mxu0 0.0
        %7563 = vmatprep.subr.mxu0 0.0
        %7564 = vmatpush1.msra.mxu0 0.0
        %7565 = vmatprep.subr.mxu0 0.0
        %7566 = vmatpush1.msra.mxu0 0.0
        %7567 = vmatprep.subr.mxu0 0.0
        %7568 = vmatpush1.msra.mxu0 0.0
        %7569 = vmatprep.subr.mxu0 0.0
        %7570 = vmatpush1.msra.mxu0 0.0
        %7571 = vmatprep.subr.mxu0 0.0
        %7572 = vmatpush1.msra.mxu0 0.0
        %7573 = vmatprep.subr.mxu0 0.0
        %7574 = vmatpush1.msra.mxu0 0.0
        %7575 = vmatprep.subr.mxu0 0.0
        %7576 = vmatpush1.msra.mxu0 0.0
        %7577 = vmatprep.subr.mxu0 0.0
        %7578 = vmatpush1.msra.mxu0 0.0
        %7579 = vmatprep.subr.mxu0 0.0
        %7580 = vmatpush1.msra.mxu0 0.0
        %7581 = vmatprep.subr.mxu0 0.0
        %7582 = vmatpush1.msra.mxu0 0.0
        %7583 = vmatprep.subr.mxu0 0.0
        %7584 = vmatpush1.msra.mxu0 0.0
        %7585 = vmatprep.subr.mxu0 0.0
        %7586 = vmatpush1.msra.mxu0 0.0
        %7587 = vmatprep.subr.mxu0 0.0
        %7588 = vmatpush1.msra.mxu0 0.0
        %7589 = vmatprep.subr.mxu0 0.0
        %7590 = vmatpush1.msra.mxu0 0.0
        %7591 = vmatprep.subr.mxu0 0.0
        %7592 = vmatpush1.msra.mxu0 0.0
        %7593 = vmatprep.subr.mxu0 0.0
        %7594 = vmatpush1.msra.mxu0 0.0
        %7595 = vmatprep.subr.mxu0 0.0
        %7596 = vmatpush1.msra.mxu0 0.0
        %7597 = vmatprep.subr.mxu0 0.0
        %7598 = vmatpush1.msra.mxu0 0.0
        %7599 = vmatprep.subr.mxu0 0.0
        %7600 = vmatpush1.msra.mxu0 0.0
        %7601 = vmatprep.subr.mxu0 0.0
        %7602 = vmatpush1.msra.mxu0 0.0
        %7603 = vmatprep.mubr.f32.mxu0 0.0
        %7604 = vmatmul.mubr.f32.gmra.mrb[0].mxu0 %v7537
        %v7605 = vpop.f32.mrb[0].mxu0
        %v7606 = vadd.f32 0.0, %v7605
        %v7607 = vpop.f32.mrb[0].mxu0
        %7608 = vdwg.mxu0
        %v7609 = vadd.f32 %v5300, %v7606
        %7610 = vrot.lane.b32.xlu0 %v7375, 120
        %v7611 = vpop.permute.xlu0 %7610
        %v7612 = vsel %vm1375, %v7611, 0
        %7614 = vmatprep.subr.mxu0 0.0
        %7615 = vmatpush1.xpose.msra.mxu0 %v5309
        %7616 = vmatprep.subr.mxu0 0.0
        %7617 = vmatpush1.xpose.msra.mxu0 0.0
        %7618 = vmatprep.subr.mxu0 0.0
        %7619 = vmatpush1.xpose.msra.mxu0 0.0
        %7620 = vmatprep.subr.mxu0 0.0
        %7621 = vmatpush1.xpose.msra.mxu0 0.0
        %7622 = vmatprep.subr.mxu0 0.0
        %7623 = vmatpush1.xpose.msra.mxu0 0.0
        %7624 = vmatprep.subr.mxu0 0.0
        %7625 = vmatpush1.xpose.msra.mxu0 0.0
        %7626 = vmatprep.subr.mxu0 0.0
        %7627 = vmatpush1.xpose.msra.mxu0 0.0
        %7628 = vmatprep.subr.mxu0 0.0
        %7629 = vmatpush1.xpose.msra.mxu0 0.0
        %7630 = vmatprep.subr.mxu0 0.0
        %7631 = vmatpush1.xpose.msra.mxu0 0.0
        %7632 = vmatprep.subr.mxu0 0.0
        %7633 = vmatpush1.xpose.msra.mxu0 0.0
        %7634 = vmatprep.subr.mxu0 0.0
        %7635 = vmatpush1.xpose.msra.mxu0 0.0
        %7636 = vmatprep.subr.mxu0 0.0
        %7637 = vmatpush1.xpose.msra.mxu0 0.0
        %7638 = vmatprep.subr.mxu0 0.0
        %7639 = vmatpush1.xpose.msra.mxu0 0.0
        %7640 = vmatprep.subr.mxu0 0.0
        %7641 = vmatpush1.xpose.msra.mxu0 0.0
        %7642 = vmatprep.subr.mxu0 0.0
        %7643 = vmatpush1.xpose.msra.mxu0 0.0
        %7644 = vmatprep.subr.mxu0 0.0
        %7645 = vmatpush1.xpose.msra.mxu0 0.0
        %7646 = vmatprep.subr.mxu0 0.0
        %7647 = vmatpush1.xpose.msra.mxu0 0.0
        %7648 = vmatprep.subr.mxu0 0.0
        %7649 = vmatpush1.xpose.msra.mxu0 0.0
        %7650 = vmatprep.subr.mxu0 0.0
        %7651 = vmatpush1.xpose.msra.mxu0 0.0
        %7652 = vmatprep.subr.mxu0 0.0
        %7653 = vmatpush1.xpose.msra.mxu0 0.0
        %7654 = vmatprep.subr.mxu0 0.0
        %7655 = vmatpush1.xpose.msra.mxu0 0.0
        %7656 = vmatprep.subr.mxu0 0.0
        %7657 = vmatpush1.xpose.msra.mxu0 0.0
        %7658 = vmatprep.subr.mxu0 0.0
        %7659 = vmatpush1.xpose.msra.mxu0 0.0
        %7660 = vmatprep.subr.mxu0 0.0
        %7661 = vmatpush1.xpose.msra.mxu0 0.0
        %7662 = vmatprep.subr.mxu0 0.0
        %7663 = vmatpush1.xpose.msra.mxu0 0.0
        %7664 = vmatprep.subr.mxu0 0.0
        %7665 = vmatpush1.xpose.msra.mxu0 0.0
        %7666 = vmatprep.subr.mxu0 0.0
        %7667 = vmatpush1.xpose.msra.mxu0 0.0
        %7668 = vmatprep.subr.mxu0 0.0
        %7669 = vmatpush1.xpose.msra.mxu0 0.0
        %7670 = vmatprep.subr.mxu0 0.0
        %7671 = vmatpush1.xpose.msra.mxu0 0.0
        %7672 = vmatprep.subr.mxu0 0.0
        %7673 = vmatpush1.xpose.msra.mxu0 0.0
        %7674 = vmatprep.subr.mxu0 0.0
        %7675 = vmatpush1.xpose.msra.mxu0 0.0
        %7676 = vmatprep.subr.mxu0 0.0
        %7677 = vmatpush1.xpose.msra.mxu0 0.0
        %7678 = vmatprep.mubr.f32.mxu0 0.0
        %7679 = vmatmul.mubr.f32.gmra.mrb[0].mxu0 %v7612
        %v7680 = vpop.f32.mrb[0].mxu0
        %v7681 = vadd.f32 0.0, %v7680
        %v7682 = vpop.f32.mrb[0].mxu0
        %7683 = vdwg.mxu0
        %v7684 = vmul.f32 %v7681, 0.35355338
        %v7685 = vsel %vm1451, %v7684, -inf
        %7686 = vmax.xlane.f32.xlu0 %v7685
        %v7687 = vpop.xlane.xlu0 %7686
        %v7688 = vsub.f32 %v7684, %v7687
        %v7689 = vmul.f32 %v7688, 1.442695
        %v7690 = vpow.pop %v7689
        %v7691 = vsel %vm1451, %v7690, 0.0
        %7692 = vadd.xlane.f32.xlu0 %v7691
        %v7693 = vpop.xlane.xlu0 %7692
        %v7694 = vrcp.pop %v7693
        %v7695 = vmul.f32 %v7690, %v7694
        %v7697 = vsel %vm1465, %v7695, 0
        %7699 = vmatprep.subr.mxu0 0.0
        %7700 = vmatpush1.msra.mxu0 %v5398
        %7701 = vmatprep.subr.mxu0 0.0
        %7702 = vmatpush1.msra.mxu0 0.0
        %7703 = vmatprep.subr.mxu0 0.0
        %7704 = vmatpush1.msra.mxu0 0.0
        %7705 = vmatprep.subr.mxu0 0.0
        %7706 = vmatpush1.msra.mxu0 0.0
        %7707 = vmatprep.subr.mxu0 0.0
        %7708 = vmatpush1.msra.mxu0 0.0
        %7709 = vmatprep.subr.mxu0 0.0
        %7710 = vmatpush1.msra.mxu0 0.0
        %7711 = vmatprep.subr.mxu0 0.0
        %7712 = vmatpush1.msra.mxu0 0.0
        %7713 = vmatprep.subr.mxu0 0.0
        %7714 = vmatpush1.msra.mxu0 0.0
        %7715 = vmatprep.subr.mxu0 0.0
        %7716 = vmatpush1.msra.mxu0 0.0
        %7717 = vmatprep.subr.mxu0 0.0
        %7718 = vmatpush1.msra.mxu0 0.0
        %7719 = vmatprep.subr.mxu0 0.0
        %7720 = vmatpush1.msra.mxu0 0.0
        %7721 = vmatprep.subr.mxu0 0.0
        %7722 = vmatpush1.msra.mxu0 0.0
        %7723 = vmatprep.subr.mxu0 0.0
        %7724 = vmatpush1.msra.mxu0 0.0
        %7725 = vmatprep.subr.mxu0 0.0
        %7726 = vmatpush1.msra.mxu0 0.0
        %7727 = vmatprep.subr.mxu0 0.0
        %7728 = vmatpush1.msra.mxu0 0.0
        %7729 = vmatprep.subr.mxu0 0.0
        %7730 = vmatpush1.msra.mxu0 0.0
        %7731 = vmatprep.subr.mxu0 0.0
        %7732 = vmatpush1.msra.mxu0 0.0
        %7733 = vmatprep.subr.mxu0 0.0
        %7734 = vmatpush1.msra.mxu0 0.0
        %7735 = vmatprep.subr.mxu0 0.0
        %7736 = vmatpush1.msra.mxu0 0.0
        %7737 = vmatprep.subr.mxu0 0.0
        %7738 = vmatpush1.msra.mxu0 0.0
        %7739 = vmatprep.subr.mxu0 0.0
        %7740 = vmatpush1.msra.mxu0 0.0
        %7741 = vmatprep.subr.mxu0 0.0
        %7742 = vmatpush1.msra.mxu0 0.0
        %7743 = vmatprep.subr.mxu0 0.0
        %7744 = vmatpush1.msra.mxu0 0.0
        %7745 = vmatprep.subr.mxu0 0.0
        %7746 = vmatpush1.msra.mxu0 0.0
        %7747 = vmatprep.subr.mxu0 0.0
        %7748 = vmatpush1.msra.mxu0 0.0
        %7749 = vmatprep.subr.mxu0 0.0
        %7750 = vmatpush1.msra.mxu0 0.0
        %7751 = vmatprep.subr.mxu0 0.0
        %7752 = vmatpush1.msra.mxu0 0.0
        %7753 = vmatprep.subr.mxu0 0.0
        %7754 = vmatpush1.msra.mxu0 0.0
        %7755 = vmatprep.subr.mxu0 0.0
        %7756 = vmatpush1.msra.mxu0 0.0
        %7757 = vmatprep.subr.mxu0 0.0
        %7758 = vmatpush1.msra.mxu0 0.0
        %7759 = vmatprep.subr.mxu0 0.0
        %7760 = vmatpush1.msra.mxu0 0.0
        %7761 = vmatprep.subr.mxu0 0.0
        %7762 = vmatpush1.msra.mxu0 0.0
        %7763 = vmatprep.mubr.f32.mxu0 0.0
        %7764 = vmatmul.mubr.f32.gmra.mrb[0].mxu0 %v7697
        %v7765 = vpop.f32.mrb[0].mxu0
        %v7766 = vadd.f32 0.0, %v7765
        %v7767 = vpop.f32.mrb[0].mxu0
        %7768 = vdwg.mxu0
        %v7770 = vsel %vm1375, %v7766, 0
        %7772 = vmatprep.subr.mxu0 0.0
        %7773 = vmatpush1.msra.mxu0 %v5054
        %7774 = vmatprep.subr.mxu0 0.0
        %7775 = vmatpush1.msra.mxu0 0.0
        %7776 = vmatprep.subr.mxu0 0.0
        %7777 = vmatpush1.msra.mxu0 0.0
        %7778 = vmatprep.subr.mxu0 0.0
        %7779 = vmatpush1.msra.mxu0 0.0
        %7780 = vmatprep.subr.mxu0 0.0
        %7781 = vmatpush1.msra.mxu0 0.0
        %7782 = vmatprep.subr.mxu0 0.0
        %7783 = vmatpush1.msra.mxu0 0.0
        %7784 = vmatprep.subr.mxu0 0.0
        %7785 = vmatpush1.msra.mxu0 0.0
        %7786 = vmatprep.subr.mxu0 0.0
        %7787 = vmatpush1.msra.mxu0 0.0
        %7788 = vmatprep.subr.mxu0 0.0
        %7789 = vmatpush1.msra.mxu0 0.0
        %7790 = vmatprep.subr.mxu0 0.0
        %7791 = vmatpush1.msra.mxu0 0.0
        %7792 = vmatprep.subr.mxu0 0.0
        %7793 = vmatpush1.msra.mxu0 0.0
        %7794 = vmatprep.subr.mxu0 0.0
        %7795 = vmatpush1.msra.mxu0 0.0
        %7796 = vmatprep.subr.mxu0 0.0
        %7797 = vmatpush1.msra.mxu0 0.0
        %7798 = vmatprep.subr.mxu0 0.0
        %7799 = vmatpush1.msra.mxu0 0.0
        %7800 = vmatprep.subr.mxu0 0.0
        %7801 = vmatpush1.msra.mxu0 0.0
        %7802 = vmatprep.subr.mxu0 0.0
        %7803 = vmatpush1.msra.mxu0 0.0
        %7804 = vmatprep.subr.mxu0 0.0
        %7805 = vmatpush1.msra.mxu0 0.0
        %7806 = vmatprep.subr.mxu0 0.0
        %7807 = vmatpush1.msra.mxu0 0.0
        %7808 = vmatprep.subr.mxu0 0.0
        %7809 = vmatpush1.msra.mxu0 0.0
        %7810 = vmatprep.subr.mxu0 0.0
        %7811 = vmatpush1.msra.mxu0 0.0
        %7812 = vmatprep.subr.mxu0 0.0
        %7813 = vmatpush1.msra.mxu0 0.0
        %7814 = vmatprep.subr.mxu0 0.0
        %7815 = vmatpush1.msra.mxu0 0.0
        %7816 = vmatprep.subr.mxu0 0.0
        %7817 = vmatpush1.msra.mxu0 0.0
        %7818 = vmatprep.subr.mxu0 0.0
        %7819 = vmatpush1.msra.mxu0 0.0
        %7820 = vmatprep.subr.mxu0 0.0
        %7821 = vmatpush1.msra.mxu0 0.0
        %7822 = vmatprep.subr.mxu0 0.0
        %7823 = vmatpush1.msra.mxu0 0.0
        %7824 = vmatprep.subr.mxu0 0.0
        %7825 = vmatpush1.msra.mxu0 0.0
        %7826 = vmatprep.subr.mxu0 0.0
        %7827 = vmatpush1.msra.mxu0 0.0
        %7828 = vmatprep.subr.mxu0 0.0
        %7829 = vmatpush1.msra.mxu0 0.0
        %7830 = vmatprep.subr.mxu0 0.0
        %7831 = vmatpush1.msra.mxu0 0.0
        %7832 = vmatprep.subr.mxu0 0.0
        %7833 = vmatpush1.msra.mxu0 0.0
        %7834 = vmatprep.subr.mxu0 0.0
        %7835 = vmatpush1.msra.mxu0 0.0
        %7836 = vmatprep.mubr.f32.mxu0 0.0
        %7837 = vmatmul.mubr.f32.gmra.mrb[0].mxu0 %v7770
        %v7838 = vpop.f32.mrb[0].mxu0
        %v7839 = vadd.f32 0.0, %v7838
        %v7840 = vpop.f32.mrb[0].mxu0
        %7841 = vdwg.mxu0
        %v7842 = vadd.f32 %v7609, %v7839
        %7843 = vrot.lane.b32.xlu0 %v7375, 112
        %v7844 = vpop.permute.xlu0 %7843
        %v7845 = vsel %vm1375, %v7844, 0
        %7847 = vmatprep.subr.mxu0 0.0
        %7848 = vmatpush1.xpose.msra.mxu0 %v5550
        %7849 = vmatprep.subr.mxu0 0.0
        %7850 = vmatpush1.xpose.msra.mxu0 0.0
        %7851 = vmatprep.subr.mxu0 0.0
        %7852 = vmatpush1.xpose.msra.mxu0 0.0
        %7853 = vmatprep.subr.mxu0 0.0
        %7854 = vmatpush1.xpose.msra.mxu0 0.0
        %7855 = vmatprep.subr.mxu0 0.0
        %7856 = vmatpush1.xpose.msra.mxu0 0.0
        %7857 = vmatprep.subr.mxu0 0.0
        %7858 = vmatpush1.xpose.msra.mxu0 0.0
        %7859 = vmatprep.subr.mxu0 0.0
        %7860 = vmatpush1.xpose.msra.mxu0 0.0
        %7861 = vmatprep.subr.mxu0 0.0
        %7862 = vmatpush1.xpose.msra.mxu0 0.0
        %7863 = vmatprep.subr.mxu0 0.0
        %7864 = vmatpush1.xpose.msra.mxu0 0.0
        %7865 = vmatprep.subr.mxu0 0.0
        %7866 = vmatpush1.xpose.msra.mxu0 0.0
        %7867 = vmatprep.subr.mxu0 0.0
        %7868 = vmatpush1.xpose.msra.mxu0 0.0
        %7869 = vmatprep.subr.mxu0 0.0
        %7870 = vmatpush1.xpose.msra.mxu0 0.0
        %7871 = vmatprep.subr.mxu0 0.0
        %7872 = vmatpush1.xpose.msra.mxu0 0.0
        %7873 = vmatprep.subr.mxu0 0.0
        %7874 = vmatpush1.xpose.msra.mxu0 0.0
        %7875 = vmatprep.subr.mxu0 0.0
        %7876 = vmatpush1.xpose.msra.mxu0 0.0
        %7877 = vmatprep.subr.mxu0 0.0
        %7878 = vmatpush1.xpose.msra.mxu0 0.0
        %7879 = vmatprep.subr.mxu0 0.0
        %7880 = vmatpush1.xpose.msra.mxu0 0.0
        %7881 = vmatprep.subr.mxu0 0.0
        %7882 = vmatpush1.xpose.msra.mxu0 0.0
        %7883 = vmatprep.subr.mxu0 0.0
        %7884 = vmatpush1.xpose.msra.mxu0 0.0
        %7885 = vmatprep.subr.mxu0 0.0
        %7886 = vmatpush1.xpose.msra.mxu0 0.0
        %7887 = vmatprep.subr.mxu0 0.0
        %7888 = vmatpush1.xpose.msra.mxu0 0.0
        %7889 = vmatprep.subr.mxu0 0.0
        %7890 = vmatpush1.xpose.msra.mxu0 0.0
        %7891 = vmatprep.subr.mxu0 0.0
        %7892 = vmatpush1.xpose.msra.mxu0 0.0
        %7893 = vmatprep.subr.mxu0 0.0
        %7894 = vmatpush1.xpose.msra.mxu0 0.0
        %7895 = vmatprep.subr.mxu0 0.0
        %7896 = vmatpush1.xpose.msra.mxu0 0.0
        %7897 = vmatprep.subr.mxu0 0.0
        %7898 = vmatpush1.xpose.msra.mxu0 0.0
        %7899 = vmatprep.subr.mxu0 0.0
        %7900 = vmatpush1.xpose.msra.mxu0 0.0
        %7901 = vmatprep.subr.mxu0 0.0
        %7902 = vmatpush1.xpose.msra.mxu0 0.0
        %7903 = vmatprep.subr.mxu0 0.0
        %7904 = vmatpush1.xpose.msra.mxu0 0.0
        %7905 = vmatprep.subr.mxu0 0.0
        %7906 = vmatpush1.xpose.msra.mxu0 0.0
        %7907 = vmatprep.subr.mxu0 0.0
        %7908 = vmatpush1.xpose.msra.mxu0 0.0
        %7909 = vmatprep.subr.mxu0 0.0
        %7910 = vmatpush1.xpose.msra.mxu0 0.0
        %7911 = vmatprep.mubr.f32.mxu0 0.0
        %7912 = vmatmul.mubr.f32.gmra.mrb[0].mxu0 %v7845
        %v7913 = vpop.f32.mrb[0].mxu0
        %v7914 = vadd.f32 0.0, %v7913
        %v7915 = vpop.f32.mrb[0].mxu0
        %7916 = vdwg.mxu0
        %v7917 = vmul.f32 %v7914, 0.35355338
        %v7918 = vsel %vm1451, %v7917, -inf
        %7919 = vmax.xlane.f32.xlu0 %v7918
        %v7920 = vpop.xlane.xlu0 %7919
        %v7921 = vsub.f32 %v7917, %v7920
        %v7922 = vmul.f32 %v7921, 1.442695
        %v7923 = vpow.pop %v7922
        %v7924 = vsel %vm1451, %v7923, 0.0
        %7925 = vadd.xlane.f32.xlu0 %v7924
        %v7926 = vpop.xlane.xlu0 %7925
        %v7927 = vrcp.pop %v7926
        %v7928 = vmul.f32 %v7923, %v7927
        %v7930 = vsel %vm1465, %v7928, 0
        %7932 = vmatprep.subr.mxu0 0.0
        %7933 = vmatpush1.msra.mxu0 %v5639
        %7934 = vmatprep.subr.mxu0 0.0
        %7935 = vmatpush1.msra.mxu0 0.0
        %7936 = vmatprep.subr.mxu0 0.0
        %7937 = vmatpush1.msra.mxu0 0.0
        %7938 = vmatprep.subr.mxu0 0.0
        %7939 = vmatpush1.msra.mxu0 0.0
        %7940 = vmatprep.subr.mxu0 0.0
        %7941 = vmatpush1.msra.mxu0 0.0
        %7942 = vmatprep.subr.mxu0 0.0
        %7943 = vmatpush1.msra.mxu0 0.0
        %7944 = vmatprep.subr.mxu0 0.0
        %7945 = vmatpush1.msra.mxu0 0.0
        %7946 = vmatprep.subr.mxu0 0.0
        %7947 = vmatpush1.msra.mxu0 0.0
        %7948 = vmatprep.subr.mxu0 0.0
        %7949 = vmatpush1.msra.mxu0 0.0
        %7950 = vmatprep.subr.mxu0 0.0
        %7951 = vmatpush1.msra.mxu0 0.0
        %7952 = vmatprep.subr.mxu0 0.0
        %7953 = vmatpush1.msra.mxu0 0.0
        %7954 = vmatprep.subr.mxu0 0.0
        %7955 = vmatpush1.msra.mxu0 0.0
        %7956 = vmatprep.subr.mxu0 0.0
        %7957 = vmatpush1.msra.mxu0 0.0
        %7958 = vmatprep.subr.mxu0 0.0
        %7959 = vmatpush1.msra.mxu0 0.0
        %7960 = vmatprep.subr.mxu0 0.0
        %7961 = vmatpush1.msra.mxu0 0.0
        %7962 = vmatprep.subr.mxu0 0.0
        %7963 = vmatpush1.msra.mxu0 0.0
        %7964 = vmatprep.subr.mxu0 0.0
        %7965 = vmatpush1.msra.mxu0 0.0
        %7966 = vmatprep.subr.mxu0 0.0
        %7967 = vmatpush1.msra.mxu0 0.0
        %7968 = vmatprep.subr.mxu0 0.0
        %7969 = vmatpush1.msra.mxu0 0.0
        %7970 = vmatprep.subr.mxu0 0.0
        %7971 = vmatpush1.msra.mxu0 0.0
        %7972 = vmatprep.subr.mxu0 0.0
        %7973 = vmatpush1.msra.mxu0 0.0
        %7974 = vmatprep.subr.mxu0 0.0
        %7975 = vmatpush1.msra.mxu0 0.0
        %7976 = vmatprep.subr.mxu0 0.0
        %7977 = vmatpush1.msra.mxu0 0.0
        %7978 = vmatprep.subr.mxu0 0.0
        %7979 = vmatpush1.msra.mxu0 0.0
        %7980 = vmatprep.subr.mxu0 0.0
        %7981 = vmatpush1.msra.mxu0 0.0
        %7982 = vmatprep.subr.mxu0 0.0
        %7983 = vmatpush1.msra.mxu0 0.0
        %7984 = vmatprep.subr.mxu0 0.0
        %7985 = vmatpush1.msra.mxu0 0.0
        %7986 = vmatprep.subr.mxu0 0.0
        %7987 = vmatpush1.msra.mxu0 0.0
        %7988 = vmatprep.subr.mxu0 0.0
        %7989 = vmatpush1.msra.mxu0 0.0
        %7990 = vmatprep.subr.mxu0 0.0
        %7991 = vmatpush1.msra.mxu0 0.0
        %7992 = vmatprep.subr.mxu0 0.0
        %7993 = vmatpush1.msra.mxu0 0.0
        %7994 = vmatprep.subr.mxu0 0.0
        %7995 = vmatpush1.msra.mxu0 0.0
        %7996 = vmatprep.mubr.f32.mxu0 0.0
        %7997 = vmatmul.mubr.f32.gmra.mrb[0].mxu0 %v7930
        %v7998 = vpop.f32.mrb[0].mxu0
        %v7999 = vadd.f32 0.0, %v7998
        %v8000 = vpop.f32.mrb[0].mxu0
        %8001 = vdwg.mxu0
        %v8003 = vsel %vm1375, %v7999, 0
        %8005 = vmatprep.subr.mxu0 0.0
        %8006 = vmatpush1.msra.mxu0 %v5055
        %8007 = vmatprep.subr.mxu0 0.0
        %8008 = vmatpush1.msra.mxu0 0.0
        %8009 = vmatprep.subr.mxu0 0.0
        %8010 = vmatpush1.msra.mxu0 0.0
        %8011 = vmatprep.subr.mxu0 0.0
        %8012 = vmatpush1.msra.mxu0 0.0
        %8013 = vmatprep.subr.mxu0 0.0
        %8014 = vmatpush1.msra.mxu0 0.0
        %8015 = vmatprep.subr.mxu0 0.0
        %8016 = vmatpush1.msra.mxu0 0.0
        %8017 = vmatprep.subr.mxu0 0.0
        %8018 = vmatpush1.msra.mxu0 0.0
        %8019 = vmatprep.subr.mxu0 0.0
        %8020 = vmatpush1.msra.mxu0 0.0
        %8021 = vmatprep.subr.mxu0 0.0
        %8022 = vmatpush1.msra.mxu0 0.0
        %8023 = vmatprep.subr.mxu0 0.0
        %8024 = vmatpush1.msra.mxu0 0.0
        %8025 = vmatprep.subr.mxu0 0.0
        %8026 = vmatpush1.msra.mxu0 0.0
        %8027 = vmatprep.subr.mxu0 0.0
        %8028 = vmatpush1.msra.mxu0 0.0
        %8029 = vmatprep.subr.mxu0 0.0
        %8030 = vmatpush1.msra.mxu0 0.0
        %8031 = vmatprep.subr.mxu0 0.0
        %8032 = vmatpush1.msra.mxu0 0.0
        %8033 = vmatprep.subr.mxu0 0.0
        %8034 = vmatpush1.msra.mxu0 0.0
        %8035 = vmatprep.subr.mxu0 0.0
        %8036 = vmatpush1.msra.mxu0 0.0
        %8037 = vmatprep.subr.mxu0 0.0
        %8038 = vmatpush1.msra.mxu0 0.0
        %8039 = vmatprep.subr.mxu0 0.0
        %8040 = vmatpush1.msra.mxu0 0.0
        %8041 = vmatprep.subr.mxu0 0.0
        %8042 = vmatpush1.msra.mxu0 0.0
        %8043 = vmatprep.subr.mxu0 0.0
        %8044 = vmatpush1.msra.mxu0 0.0
        %8045 = vmatprep.subr.mxu0 0.0
        %8046 = vmatpush1.msra.mxu0 0.0
        %8047 = vmatprep.subr.mxu0 0.0
        %8048 = vmatpush1.msra.mxu0 0.0
        %8049 = vmatprep.subr.mxu0 0.0
        %8050 = vmatpush1.msra.mxu0 0.0
        %8051 = vmatprep.subr.mxu0 0.0
        %8052 = vmatpush1.msra.mxu0 0.0
        %8053 = vmatprep.subr.mxu0 0.0
        %8054 = vmatpush1.msra.mxu0 0.0
        %8055 = vmatprep.subr.mxu0 0.0
        %8056 = vmatpush1.msra.mxu0 0.0
        %8057 = vmatprep.subr.mxu0 0.0
        %8058 = vmatpush1.msra.mxu0 0.0
        %8059 = vmatprep.subr.mxu0 0.0
        %8060 = vmatpush1.msra.mxu0 0.0
        %8061 = vmatprep.subr.mxu0 0.0
        %8062 = vmatpush1.msra.mxu0 0.0
        %8063 = vmatprep.subr.mxu0 0.0
        %8064 = vmatpush1.msra.mxu0 0.0
        %8065 = vmatprep.subr.mxu0 0.0
        %8066 = vmatpush1.msra.mxu0 0.0
        %8067 = vmatprep.subr.mxu0 0.0
        %8068 = vmatpush1.msra.mxu0 0.0
        %8069 = vmatprep.mubr.f32.mxu0 0.0
        %8070 = vmatmul.mubr.f32.gmra.mrb[0].mxu0 %v8003
        %v8071 = vpop.f32.mrb[0].mxu0
        %v8072 = vadd.f32 0.0, %v8071
        %v8073 = vpop.f32.mrb[0].mxu0
        %8074 = vdwg.mxu0
        %v8075 = vadd.f32 %v7842, %v8072
        %8076 = vrot.lane.b32.xlu0 %v7375, 104
        %v8077 = vpop.permute.xlu0 %8076
        %v8078 = vsel %vm1375, %v8077, 0
        %8080 = vmatprep.subr.mxu0 0.0
        %8081 = vmatpush1.xpose.msra.mxu0 %v5791
        %8082 = vmatprep.subr.mxu0 0.0
        %8083 = vmatpush1.xpose.msra.mxu0 0.0
        %8084 = vmatprep.subr.mxu0 0.0
        %8085 = vmatpush1.xpose.msra.mxu0 0.0
        %8086 = vmatprep.subr.mxu0 0.0
        %8087 = vmatpush1.xpose.msra.mxu0 0.0
        %8088 = vmatprep.subr.mxu0 0.0
        %8089 = vmatpush1.xpose.msra.mxu0 0.0
        %8090 = vmatprep.subr.mxu0 0.0
        %8091 = vmatpush1.xpose.msra.mxu0 0.0
        %8092 = vmatprep.subr.mxu0 0.0
        %8093 = vmatpush1.xpose.msra.mxu0 0.0
        %8094 = vmatprep.subr.mxu0 0.0
        %8095 = vmatpush1.xpose.msra.mxu0 0.0
        %8096 = vmatprep.subr.mxu0 0.0
        %8097 = vmatpush1.xpose.msra.mxu0 0.0
        %8098 = vmatprep.subr.mxu0 0.0
        %8099 = vmatpush1.xpose.msra.mxu0 0.0
        %8100 = vmatprep.subr.mxu0 0.0
        %8101 = vmatpush1.xpose.msra.mxu0 0.0
        %8102 = vmatprep.subr.mxu0 0.0
        %8103 = vmatpush1.xpose.msra.mxu0 0.0
        %8104 = vmatprep.subr.mxu0 0.0
        %8105 = vmatpush1.xpose.msra.mxu0 0.0
        %8106 = vmatprep.subr.mxu0 0.0
        %8107 = vmatpush1.xpose.msra.mxu0 0.0
        %8108 = vmatprep.subr.mxu0 0.0
        %8109 = vmatpush1.xpose.msra.mxu0 0.0
        %8110 = vmatprep.subr.mxu0 0.0
        %8111 = vmatpush1.xpose.msra.mxu0 0.0
        %8112 = vmatprep.subr.mxu0 0.0
        %8113 = vmatpush1.xpose.msra.mxu0 0.0
        %8114 = vmatprep.subr.mxu0 0.0
        %8115 = vmatpush1.xpose.msra.mxu0 0.0
        %8116 = vmatprep.subr.mxu0 0.0
        %8117 = vmatpush1.xpose.msra.mxu0 0.0
        %8118 = vmatprep.subr.mxu0 0.0
        %8119 = vmatpush1.xpose.msra.mxu0 0.0
        %8120 = vmatprep.subr.mxu0 0.0
        %8121 = vmatpush1.xpose.msra.mxu0 0.0
        %8122 = vmatprep.subr.mxu0 0.0
        %8123 = vmatpush1.xpose.msra.mxu0 0.0
        %8124 = vmatprep.subr.mxu0 0.0
        %8125 = vmatpush1.xpose.msra.mxu0 0.0
        %8126 = vmatprep.subr.mxu0 0.0
        %8127 = vmatpush1.xpose.msra.mxu0 0.0
        %8128 = vmatprep.subr.mxu0 0.0
        %8129 = vmatpush1.xpose.msra.mxu0 0.0
        %8130 = vmatprep.subr.mxu0 0.0
        %8131 = vmatpush1.xpose.msra.mxu0 0.0
        %8132 = vmatprep.subr.mxu0 0.0
        %8133 = vmatpush1.xpose.msra.mxu0 0.0
        %8134 = vmatprep.subr.mxu0 0.0
        %8135 = vmatpush1.xpose.msra.mxu0 0.0
        %8136 = vmatprep.subr.mxu0 0.0
        %8137 = vmatpush1.xpose.msra.mxu0 0.0
        %8138 = vmatprep.subr.mxu0 0.0
        %8139 = vmatpush1.xpose.msra.mxu0 0.0
        %8140 = vmatprep.subr.mxu0 0.0
        %8141 = vmatpush1.xpose.msra.mxu0 0.0
        %8142 = vmatprep.subr.mxu0 0.0
        %8143 = vmatpush1.xpose.msra.mxu0 0.0
        %8144 = vmatprep.mubr.f32.mxu0 0.0
        %8145 = vmatmul.mubr.f32.gmra.mrb[0].mxu0 %v8078
        %v8146 = vpop.f32.mrb[0].mxu0
        %v8147 = vadd.f32 0.0, %v8146
        %v8148 = vpop.f32.mrb[0].mxu0
        %8149 = vdwg.mxu0
        %v8150 = vmul.f32 %v8147, 0.35355338
        %v8151 = vsel %vm1451, %v8150, -inf
        %8152 = vmax.xlane.f32.xlu0 %v8151
        %v8153 = vpop.xlane.xlu0 %8152
        %v8154 = vsub.f32 %v8150, %v8153
        %v8155 = vmul.f32 %v8154, 1.442695
        %v8156 = vpow.pop %v8155
        %v8157 = vsel %vm1451, %v8156, 0.0
        %8158 = vadd.xlane.f32.xlu0 %v8157
        %v8159 = vpop.xlane.xlu0 %8158
        %v8160 = vrcp.pop %v8159
        %v8161 = vmul.f32 %v8156, %v8160
        %v8163 = vsel %vm1465, %v8161, 0
        %8165 = vmatprep.subr.mxu0 0.0
        %8166 = vmatpush1.msra.mxu0 %v5880
        %8167 = vmatprep.subr.mxu0 0.0
        %8168 = vmatpush1.msra.mxu0 0.0
        %8169 = vmatprep.subr.mxu0 0.0
        %8170 = vmatpush1.msra.mxu0 0.0
        %8171 = vmatprep.subr.mxu0 0.0
        %8172 = vmatpush1.msra.mxu0 0.0
        %8173 = vmatprep.subr.mxu0 0.0
        %8174 = vmatpush1.msra.mxu0 0.0
        %8175 = vmatprep.subr.mxu0 0.0
        %8176 = vmatpush1.msra.mxu0 0.0
        %8177 = vmatprep.subr.mxu0 0.0
        %8178 = vmatpush1.msra.mxu0 0.0
        %8179 = vmatprep.subr.mxu0 0.0
        %8180 = vmatpush1.msra.mxu0 0.0
        %8181 = vmatprep.subr.mxu0 0.0
        %8182 = vmatpush1.msra.mxu0 0.0
        %8183 = vmatprep.subr.mxu0 0.0
        %8184 = vmatpush1.msra.mxu0 0.0
        %8185 = vmatprep.subr.mxu0 0.0
        %8186 = vmatpush1.msra.mxu0 0.0
        %8187 = vmatprep.subr.mxu0 0.0
        %8188 = vmatpush1.msra.mxu0 0.0
        %8189 = vmatprep.subr.mxu0 0.0
        %8190 = vmatpush1.msra.mxu0 0.0
        %8191 = vmatprep.subr.mxu0 0.0
        %8192 = vmatpush1.msra.mxu0 0.0
        %8193 = vmatprep.subr.mxu0 0.0
        %8194 = vmatpush1.msra.mxu0 0.0
        %8195 = vmatprep.subr.mxu0 0.0
        %8196 = vmatpush1.msra.mxu0 0.0
        %8197 = vmatprep.subr.mxu0 0.0
        %8198 = vmatpush1.msra.mxu0 0.0
        %8199 = vmatprep.subr.mxu0 0.0
        %8200 = vmatpush1.msra.mxu0 0.0
        %8201 = vmatprep.subr.mxu0 0.0
        %8202 = vmatpush1.msra.mxu0 0.0
        %8203 = vmatprep.subr.mxu0 0.0
        %8204 = vmatpush1.msra.mxu0 0.0
        %8205 = vmatprep.subr.mxu0 0.0
        %8206 = vmatpush1.msra.mxu0 0.0
        %8207 = vmatprep.subr.mxu0 0.0
        %8208 = vmatpush1.msra.mxu0 0.0
        %8209 = vmatprep.subr.mxu0 0.0
        %8210 = vmatpush1.msra.mxu0 0.0
        %8211 = vmatprep.subr.mxu0 0.0
        %8212 = vmatpush1.msra.mxu0 0.0
        %8213 = vmatprep.subr.mxu0 0.0
        %8214 = vmatpush1.msra.mxu0 0.0
        %8215 = vmatprep.subr.mxu0 0.0
        %8216 = vmatpush1.msra.mxu0 0.0
        %8217 = vmatprep.subr.mxu0 0.0
        %8218 = vmatpush1.msra.mxu0 0.0
        %8219 = vmatprep.subr.mxu0 0.0
        %8220 = vmatpush1.msra.mxu0 0.0
        %8221 = vmatprep.subr.mxu0 0.0
        %8222 = vmatpush1.msra.mxu0 0.0
        %8223 = vmatprep.subr.mxu0 0.0
        %8224 = vmatpush1.msra.mxu0 0.0
        %8225 = vmatprep.subr.mxu0 0.0
        %8226 = vmatpush1.msra.mxu0 0.0
        %8227 = vmatprep.subr.mxu0 0.0
        %8228 = vmatpush1.msra.mxu0 0.0
        %8229 = vmatprep.mubr.f32.mxu0 0.0
        %8230 = vmatmul.mubr.f32.gmra.mrb[0].mxu0 %v8163
        %v8231 = vpop.f32.mrb[0].mxu0
        %v8232 = vadd.f32 0.0, %v8231
        %v8233 = vpop.f32.mrb[0].mxu0
        %8234 = vdwg.mxu0
        %v8236 = vsel %vm1375, %v8232, 0
        %8238 = vmatprep.subr.mxu0 0.0
        %8239 = vmatpush1.msra.mxu0 %v5056
        %8240 = vmatprep.subr.mxu0 0.0
        %8241 = vmatpush1.msra.mxu0 0.0
        %8242 = vmatprep.subr.mxu0 0.0
        %8243 = vmatpush1.msra.mxu0 0.0
        %8244 = vmatprep.subr.mxu0 0.0
        %8245 = vmatpush1.msra.mxu0 0.0
        %8246 = vmatprep.subr.mxu0 0.0
        %8247 = vmatpush1.msra.mxu0 0.0
        %8248 = vmatprep.subr.mxu0 0.0
        %8249 = vmatpush1.msra.mxu0 0.0
        %8250 = vmatprep.subr.mxu0 0.0
        %8251 = vmatpush1.msra.mxu0 0.0
        %8252 = vmatprep.subr.mxu0 0.0
        %8253 = vmatpush1.msra.mxu0 0.0
        %8254 = vmatprep.subr.mxu0 0.0
        %8255 = vmatpush1.msra.mxu0 0.0
        %8256 = vmatprep.subr.mxu0 0.0
        %8257 = vmatpush1.msra.mxu0 0.0
        %8258 = vmatprep.subr.mxu0 0.0
        %8259 = vmatpush1.msra.mxu0 0.0
        %8260 = vmatprep.subr.mxu0 0.0
        %8261 = vmatpush1.msra.mxu0 0.0
        %8262 = vmatprep.subr.mxu0 0.0
        %8263 = vmatpush1.msra.mxu0 0.0
        %8264 = vmatprep.subr.mxu0 0.0
        %8265 = vmatpush1.msra.mxu0 0.0
        %8266 = vmatprep.subr.mxu0 0.0
        %8267 = vmatpush1.msra.mxu0 0.0
        %8268 = vmatprep.subr.mxu0 0.0
        %8269 = vmatpush1.msra.mxu0 0.0
        %8270 = vmatprep.subr.mxu0 0.0
        %8271 = vmatpush1.msra.mxu0 0.0
        %8272 = vmatprep.subr.mxu0 0.0
        %8273 = vmatpush1.msra.mxu0 0.0
        %8274 = vmatprep.subr.mxu0 0.0
        %8275 = vmatpush1.msra.mxu0 0.0
        %8276 = vmatprep.subr.mxu0 0.0
        %8277 = vmatpush1.msra.mxu0 0.0
        %8278 = vmatprep.subr.mxu0 0.0
        %8279 = vmatpush1.msra.mxu0 0.0
        %8280 = vmatprep.subr.mxu0 0.0
        %8281 = vmatpush1.msra.mxu0 0.0
        %8282 = vmatprep.subr.mxu0 0.0
        %8283 = vmatpush1.msra.mxu0 0.0
        %8284 = vmatprep.subr.mxu0 0.0
        %8285 = vmatpush1.msra.mxu0 0.0
        %8286 = vmatprep.subr.mxu0 0.0
        %8287 = vmatpush1.msra.mxu0 0.0
        %8288 = vmatprep.subr.mxu0 0.0
        %8289 = vmatpush1.msra.mxu0 0.0
        %8290 = vmatprep.subr.mxu0 0.0
        %8291 = vmatpush1.msra.mxu0 0.0
        %8292 = vmatprep.subr.mxu0 0.0
        %8293 = vmatpush1.msra.mxu0 0.0
        %8294 = vmatprep.subr.mxu0 0.0
        %8295 = vmatpush1.msra.mxu0 0.0
        %8296 = vmatprep.subr.mxu0 0.0
        %8297 = vmatpush1.msra.mxu0 0.0
        %8298 = vmatprep.subr.mxu0 0.0
        %8299 = vmatpush1.msra.mxu0 0.0
        %8300 = vmatprep.subr.mxu0 0.0
        %8301 = vmatpush1.msra.mxu0 0.0
        %8302 = vmatprep.mubr.f32.mxu0 0.0
        %8303 = vmatmul.mubr.f32.gmra.mrb[0].mxu0 %v8236
        %v8304 = vpop.f32.mrb[0].mxu0
        %v8305 = vadd.f32 0.0, %v8304
        %v8306 = vpop.f32.mrb[0].mxu0
        %8307 = vdwg.mxu0
        %v8308 = vadd.f32 %v8075, %v8305
        %v8309 = vadd.f32 %v7289, %v8308
        %v8310 = vsel %vm1253, %v8309, 0.0
        %8311 = vadd.xlane.f32.xlu0 %v8310
        %v8312 = vpop.xlane.xlu0 %8311
        %v8313 = vmul.f32 %v8312, %v1257
        %v8314 = vsub.f32 %v8309, %v8313
        %v8315 = vmul.f32 %v8314, %v8314
        %v8316 = vsel %vm1253, %v8315, 0.0
        %8317 = vadd.xlane.f32.xlu0 %v8316
        %v8318 = vpop.xlane.xlu0 %8317
        %v8319 = vmul.f32 %v8318, %v1257
        %v8320 = vadd.f32 %v8319, 1e-06
        %v8321 = vrsqrt.pop %v8320
        %v8322 = vmul.f32 %v8314, %v8321
        %v8323 = vmul.f32 %v8322, %v6046
        %v8324 = vadd.f32 %v8323, %v6053
        %v8326 = vsel %vm1293, %v8324, 0
        %8328 = vmatprep.subr.mxu0 0.0
        %8329 = vmatpush1.msra.mxu0 %v6056
        %8330 = vmatprep.subr.mxu0 0.0
        %8331 = vmatpush1.msra.mxu0 %v6057
        %8332 = vmatprep.subr.mxu0 0.0
        %8333 = vmatpush1.msra.mxu0 %v6058
        %8334 = vmatprep.subr.mxu0 0.0
        %8335 = vmatpush1.msra.mxu0 %v6059
        %8336 = vmatprep.subr.mxu0 0.0
        %8337 = vmatpush1.msra.mxu0 0.0
        %8338 = vmatprep.subr.mxu0 0.0
        %8339 = vmatpush1.msra.mxu0 0.0
        %8340 = vmatprep.subr.mxu0 0.0
        %8341 = vmatpush1.msra.mxu0 0.0
        %8342 = vmatprep.subr.mxu0 0.0
        %8343 = vmatpush1.msra.mxu0 0.0
        %8344 = vmatprep.subr.mxu0 0.0
        %8345 = vmatpush1.msra.mxu0 0.0
        %8346 = vmatprep.subr.mxu0 0.0
        %8347 = vmatpush1.msra.mxu0 0.0
        %8348 = vmatprep.subr.mxu0 0.0
        %8349 = vmatpush1.msra.mxu0 0.0
        %8350 = vmatprep.subr.mxu0 0.0
        %8351 = vmatpush1.msra.mxu0 0.0
        %8352 = vmatprep.subr.mxu0 0.0
        %8353 = vmatpush1.msra.mxu0 0.0
        %8354 = vmatprep.subr.mxu0 0.0
        %8355 = vmatpush1.msra.mxu0 0.0
        %8356 = vmatprep.subr.mxu0 0.0
        %8357 = vmatpush1.msra.mxu0 0.0
        %8358 = vmatprep.subr.mxu0 0.0
        %8359 = vmatpush1.msra.mxu0 0.0
        %8360 = vmatprep.subr.mxu0 0.0
        %8361 = vmatpush1.msra.mxu0 0.0
        %8362 = vmatprep.subr.mxu0 0.0
        %8363 = vmatpush1.msra.mxu0 0.0
        %8364 = vmatprep.subr.mxu0 0.0
        %8365 = vmatpush1.msra.mxu0 0.0
        %8366 = vmatprep.subr.mxu0 0.0
        %8367 = vmatpush1.msra.mxu0 0.0
        %8368 = vmatprep.subr.mxu0 0.0
        %8369 = vmatpush1.msra.mxu0 0.0
        %8370 = vmatprep.subr.mxu0 0.0
        %8371 = vmatpush1.msra.mxu0 0.0
        %8372 = vmatprep.subr.mxu0 0.0
        %8373 = vmatpush1.msra.mxu0 0.0
        %8374 = vmatprep.subr.mxu0 0.0
        %8375 = vmatpush1.msra.mxu0 0.0
        %8376 = vmatprep.subr.mxu0 0.0
        %8377 = vmatpush1.msra.mxu0 0.0
        %8378 = vmatprep.subr.mxu0 0.0
        %8379 = vmatpush1.msra.mxu0 0.0
        %8380 = vmatprep.subr.mxu0 0.0
        %8381 = vmatpush1.msra.mxu0 0.0
        %8382 = vmatprep.subr.mxu0 0.0
        %8383 = vmatpush1.msra.mxu0 0.0
        %8384 = vmatprep.subr.mxu0 0.0
        %8385 = vmatpush1.msra.mxu0 0.0
        %8386 = vmatprep.subr.mxu0 0.0
        %8387 = vmatpush1.msra.mxu0 0.0
        %8388 = vmatprep.subr.mxu0 0.0
        %8389 = vmatpush1.msra.mxu0 0.0
        %8390 = vmatprep.subr.mxu0 0.0
        %8391 = vmatpush1.msra.mxu0 0.0
        %8392 = vmatprep.mubr.f32.mxu0 0.0
        %8393 = vmatmul.mubr.f32.gmra.mrb[0].mxu0 %v8326
        %v8394 = vpop.f32.mrb[0].mxu0
        %v8395 = vadd.f32 %v6065, %v8394
        %v8396 = vpop.f32.mrb[0].mxu0
        %8397 = vdwg.mxu0
        %v8398 = vmul.f32 %v8395, %v8395
        %v8399 = vmul.f32 %v8395, %v8398
        %v8400 = vmul.f32 %v8399, 0.044715
        %v8401 = vadd.f32 %v8395, %v8400
        %v8402 = vmul.f32 %v8401, 0.7978846
        %v8403 = vtanh.pop %v8402
        %v8404 = vadd.f32 %v8403, 1.0
        %v8405 = vmul.f32 %v8404, 0.5
        %v8406 = vmul.f32 %v8395, %v8405
        %v8408 = vsel %vm2483, %v8406, 0
        %8410 = vmatprep.subr.mxu0 0.0
        %8411 = vmatpush1.msra.mxu0 %v6149
        %8412 = vmatprep.subr.mxu0 0.0
        %8413 = vmatpush1.msra.mxu0 %v6150
        %8414 = vmatprep.subr.mxu0 0.0
        %8415 = vmatpush1.msra.mxu0 %v6151
        %8416 = vmatprep.subr.mxu0 0.0
        %8417 = vmatpush1.msra.mxu0 %v6152
        %8418 = vmatprep.subr.mxu0 0.0
        %8419 = vmatpush1.msra.mxu0 %v6153
        %8420 = vmatprep.subr.mxu0 0.0
        %8421 = vmatpush1.msra.mxu0 %v6154
        %8422 = vmatprep.subr.mxu0 0.0
        %8423 = vmatpush1.msra.mxu0 %v6155
        %8424 = vmatprep.subr.mxu0 0.0
        %8425 = vmatpush1.msra.mxu0 %v6156
        %8426 = vmatprep.subr.mxu0 0.0
        %8427 = vmatpush1.msra.mxu0 0.0
        %8428 = vmatprep.subr.mxu0 0.0
        %8429 = vmatpush1.msra.mxu0 0.0
        %8430 = vmatprep.subr.mxu0 0.0
        %8431 = vmatpush1.msra.mxu0 0.0
        %8432 = vmatprep.subr.mxu0 0.0
        %8433 = vmatpush1.msra.mxu0 0.0
        %8434 = vmatprep.subr.mxu0 0.0
        %8435 = vmatpush1.msra.mxu0 0.0
        %8436 = vmatprep.subr.mxu0 0.0
        %8437 = vmatpush1.msra.mxu0 0.0
        %8438 = vmatprep.subr.mxu0 0.0
        %8439 = vmatpush1.msra.mxu0 0.0
        %8440 = vmatprep.subr.mxu0 0.0
        %8441 = vmatpush1.msra.mxu0 0.0
        %8442 = vmatprep.subr.mxu0 0.0
        %8443 = vmatpush1.msra.mxu0 0.0
        %8444 = vmatprep.subr.mxu0 0.0
        %8445 = vmatpush1.msra.mxu0 0.0
        %8446 = vmatprep.subr.mxu0 0.0
        %8447 = vmatpush1.msra.mxu0 0.0
        %8448 = vmatprep.subr.mxu0 0.0
        %8449 = vmatpush1.msra.mxu0 0.0
        %8450 = vmatprep.subr.mxu0 0.0
        %8451 = vmatpush1.msra.mxu0 0.0
        %8452 = vmatprep.subr.mxu0 0.0
        %8453 = vmatpush1.msra.mxu0 0.0
        %8454 = vmatprep.subr.mxu0 0.0
        %8455 = vmatpush1.msra.mxu0 0.0
        %8456 = vmatprep.subr.mxu0 0.0
        %8457 = vmatpush1.msra.mxu0 0.0
        %8458 = vmatprep.subr.mxu0 0.0
        %8459 = vmatpush1.msra.mxu0 0.0
        %8460 = vmatprep.subr.mxu0 0.0
        %8461 = vmatpush1.msra.mxu0 0.0
        %8462 = vmatprep.subr.mxu0 0.0
        %8463 = vmatpush1.msra.mxu0 0.0
        %8464 = vmatprep.subr.mxu0 0.0
        %8465 = vmatpush1.msra.mxu0 0.0
        %8466 = vmatprep.subr.mxu0 0.0
        %8467 = vmatpush1.msra.mxu0 0.0
        %8468 = vmatprep.subr.mxu0 0.0
        %8469 = vmatpush1.msra.mxu0 0.0
        %8470 = vmatprep.subr.mxu0 0.0
        %8471 = vmatpush1.msra.mxu0 0.0
        %8472 = vmatprep.subr.mxu0 0.0
        %8473 = vmatpush1.msra.mxu0 0.0
        %8474 = vmatprep.mubr.f32.mxu0 0.0
        %8475 = vmatmul.mubr.f32.gmra.mrb[0].mxu0 %v8408
        %v8476 = vpop.f32.mrb[0].mxu0
        %v8477 = vadd.f32 %v6162, %v8476
        %v8478 = vpop.f32.mrb[0].mxu0
        %8479 = vdwg.mxu0
        %v8480 = vadd.f32 %v8309, %v8477
        %8481 = vst.msk [vmem:[%s1123] sm:$0xf] %vm1253, %v8480
        %8482 = vst.msk [vmem:[%s1130] sm:$0xf] %vm1451, %v7462
        %s8483 = scalar_lea.vmem %s1130, 4 [#allocation4]
        %8484 = vst.msk [vmem:[%s8483] sm:$0xf] %vm1451, %v7695
        %s8485 = scalar_lea.vmem %s1130, 8 [#allocation4]
        %8486 = vst.msk [vmem:[%s8485] sm:$0xf] %vm1451, %v7928
        %s8487 = scalar_lea.vmem %s1130, 12 [#allocation4]
        %8488 = vst.msk [vmem:[%s8487] sm:$0xf] %vm1451, %v8161
        %s8489 = sand.u32 %s862, 1
        %s8490 = scalar_lea.sflag [#allocation3], %s8489
        %s8491 = sand.u32 %s862, 1
        %s8492 = smul.addr %s8491, 4
        %s8493 = scalar_lea.vmem [#allocation2], %s8492
        %s8494 = sand.u32 %s888, 1
        %s8495 = scalar_lea.sflag [#allocation5], %s8494
        %s8496 = sand.u32 %s888, 1
        %s8497 = smul.addr %s8496, 16
        %s8498 = scalar_lea.vmem [#allocation4], %s8497
        // Predicated region
        $region165: #{transformer_forward.1} parent=163 // pred_check
          %p8499 = pneg %p872
        $region166: #{transformer_forward.1} parent=163 // pred_check_branch
          %8501 = sbr.rel (%p8499) target = $region168
        $region167: #{transformer_forward.1} parent=163 // pred_region
          %s8503 = ssub.s32 64, 64
          %8504 = vsyncadd %s8490, %s8503
          %s8505 = smul.addr %s93, 64
          %s8506 = scalar_lea.hbm %s73, %s8505
          %s8508 = sshll.u32 %s8493, 4
          %s8509 = int_to_ptr.vmem [resolvable:$true] %s8508
          %8511 = dma.vmem_to_hbm [thread:$0]  %s8509, 64, %s8506, %s8490
        $region168: #{transformer_forward.1} parent=163 // pred_fallthru
          _
        // Predicated region
        $region169: #{transformer_forward.1} parent=163 // pred_check
          %p8512 = pneg %p898
        $region170: #{transformer_forward.1} parent=163 // pred_check_branch
          %8514 = sbr.rel (%p8512) target = $region172
        $region171: #{transformer_forward.1} parent=163 // pred_region
          %s8516 = ssub.s32 256, 256
          %8517 = vsyncadd %s8495, %s8516
          %s8518 = smul.addr %s93, 4
          %s8519 = smul.addr %s8518, 64
          %s8520 = scalar_lea.hbm %s75, %s8519
          %s8521 = sshll.u32 %s8498, 4
          %s8522 = int_to_ptr.vmem [resolvable:$true] %s8521
          %8527 = dma.vmem_to_hbm [thread:$0]  %s8522, 256, %s8520, %s8495, 64, 64, 4
        $region172: #{transformer_forward.1} parent=163 // pred_fallthru
          _
      $region164: #{transformer_forward.1} parent=5 // pred_fallthru
        _
      %p8528 = scmp.le.s32.totalorder 2, %s88
      // Predicated region
      $region173: #{transformer_forward.1} parent=5 // pred_check
        %p8529 = pneg %p8528
      $region174: #{transformer_forward.1} parent=5 // pred_check_branch
        %8531 = sbr.rel (%p8529) target = $region176
      $region175: #{transformer_forward.1} parent=5 // pred_region
        %s8532 = ssub.s32 %s88, 2
        // Predicated region
        $region177: #{transformer_forward.1} parent=175 // pred_check
          %p8533 = pneg %p878
        $region178: #{transformer_forward.1} parent=175 // pred_check_branch
          %8535 = sbr.rel (%p8533) target = $region180
        $region179: #{transformer_forward.1} parent=175 // pred_region
          %s8536 = sand.u32 %s863, 1
          %s8537 = scalar_lea.sflag [#allocation3], %s8536
          %s8538 = sand.u32 %s863, 1
          %s8539 = smul.addr %s8538, 4
          %s8540 = scalar_lea.vmem [#allocation2], %s8539
          %8541 = dma.done %s8537, 64
        $region180: #{transformer_forward.1} parent=175 // pred_fallthru
          _
        // Predicated region
        $region181: #{transformer_forward.1} parent=175 // pred_check
          %p8542 = pneg %p904
        $region182: #{transformer_forward.1} parent=175 // pred_check_branch
          %8544 = sbr.rel (%p8542) target = $region184
        $region183: #{transformer_forward.1} parent=175 // pred_region
          %s8545 = sand.u32 %s889, 1
          %s8546 = scalar_lea.sflag [#allocation5], %s8545
          %s8547 = sand.u32 %s889, 1
          %s8548 = smul.addr %s8547, 16
          %s8549 = scalar_lea.vmem [#allocation4], %s8548
          %8550 = dma.done %s8546, 256
        $region184: #{transformer_forward.1} parent=175 // pred_fallthru
          _
      $region176: #{transformer_forward.1} parent=5 // pred_fallthru
        _
    $region6: #{transformer_forward.1} parent=1 // loop_footer
      %s92 = sadd.s32 1, %s88
    $region7: #{transformer_forward.1} parent=1 // loop_footer_branch
      %87 = sbr.rel target = $region3
    $region8: #{transformer_forward.1} parent=1 // loop_exit
      _
    %8551 = vsyncpa [#allocation3], 1
    %s8552 = scalar_lea.sflag [#allocation3], 1
    %8553 = vsyncpa %s8552, 1
    %8554 = vsyncpa [#allocation5], 1
    %s8555 = scalar_lea.sflag [#allocation5], 1
    %8556 = vsyncpa %s8555, 1

</llo_original>
